<compile_context>
chip_gen: v6e
topology: v6e:2x2x1
jax: 0.10.0
libtpu: 0.0.40
codegen_flags: <defaults>
</compile_context>

<pallas_src>
import functools

import jax
import jax.numpy as jnp
from jax.experimental import pallas as pl
from jax.experimental.pallas import tpu as pltpu


def _round_up(x, m):
    return (x + m - 1) // m * m


def _vmem_capacity_bytes():
    """Physical per-core VMEM, with a conservative (v7x, 64 MiB) fallback."""
    try:
        info = pltpu.get_tpu_info()
        cap = getattr(info, "vmem_capacity_bytes", None)
        if cap:
            return int(cap)
    except Exception:
        pass
    return 64 << 20


def _double_conv_kernel(x_ref, w1_ref, s1_ref, b1_ref, w2_ref, s2_ref, b2_ref,
                        o_ref, xpad_ref, midpad_ref, col1_ref, col2_ref, *,
                        chunks, act):
    """Fused (conv3x3+BN+ReLU) -> (conv3x3+BN+act) for one image.

    x_ref      : (1, H, W, Cin)        unpadded input image block
    w1_ref     : (9*C0, C1)            stage-1 weights, tap-major rows
    s1_ref/b1_ref : (1, C1) f32        folded BN scale / bias
    w2_ref     : (9*C1, C2)            stage-2 weights
    s2_ref/b2_ref : (1, C2) f32
    o_ref      : (1, H, W, Cout)       unpadded output block
    xpad_ref   : VMEM (H+2, W+2, C0)   compute-dtype zero-haloed input
    midpad_ref : VMEM (H+2, W+2, C1)   compute-dtype zero-haloed mid activation
    col1_ref   : VMEM (tile_h*W, 9*C0) im2col slab for one row chunk (stage 1)
    col2_ref   : VMEM (tile_h*W, 9*C1) im2col slab for one row chunk (stage 2)
    chunks     : static tuple of (row_start, row_count) covering [0, H)
    """
    _, h, w, cin = x_ref.shape
    cout = o_ref.shape[-1]
    c0 = xpad_ref.shape[-1]
    c1 = midpad_ref.shape[-1]
    cdt = xpad_ref.dtype

    def zero_halo(ref, c):
        # Only the 1-pixel border is zeroed; interiors are always fully
        # overwritten below (no full-buffer zeroing per step).
        ref[0:1, :, :] = jnp.zeros((1, w + 2, c), cdt)
        ref[h + 1:h + 2, :, :] = jnp.zeros((1, w + 2, c), cdt)
        ref[:, 0:1, :] = jnp.zeros((h + 2, 1, c), cdt)
        ref[:, w + 1:w + 2, :] = jnp.zeros((h + 2, 1, c), cdt)

    zero_halo(xpad_ref, c0)
    zero_halo(midpad_ref, c1)

    # Place the image interior; zero only the padded-channel tail (the real
    # channels are written here, the tail is never written elsewhere).
    xpad_ref[1:h + 1, 1:w + 1, :cin] = x_ref[0].astype(cdt)
    if cin < c0:
        xpad_ref[1:h + 1, 1:w + 1, cin:] = jnp.zeros((h, w, c0 - cin), cdt)

    def build_col(src_ref, col_ref, r0, th, c):
        # 9 shifted (th, W, c) views written side by side -> (th*W, 9*c) slab,
        # so each conv chunk is a single K=9*c MXU matmul.
        tm = th * w
        for ky in range(3):
            for kx in range(3):
                t = ky * 3 + kx
                patch = src_ref[r0 + ky:r0 + ky + th, kx:kx + w, :]
                col_ref[:tm, t * c:(t + 1) * c] = patch.reshape(tm, c)

    # ---- Stage 1: conv3x3 + BN + ReLU (row-chunked; mid stays in VMEM) -----
    for r0, th in chunks:
        tm = th * w
        build_col(xpad_ref, col1_ref, r0, th, c0)
        y1 = jnp.dot(col1_ref[:tm, :], w1_ref[...],
                     preferred_element_type=jnp.float32)      # (tm, C1) f32
        y1 = jnp.maximum(y1 * s1_ref[0] + b1_ref[0], 0.0)     # fused BN + ReLU
        midpad_ref[1 + r0:1 + r0 + th, 1:w + 1, :] = (
            y1.reshape(th, w, c1).astype(cdt))

    # ---- Stage 2: conv3x3 + BN + output activation (row-chunked) -----------
    for r0, th in chunks:
        tm = th * w
        build_col(midpad_ref, col2_ref, r0, th, c1)
        y2 = jnp.dot(col2_ref[:tm, :], w2_ref[...],
                     preferred_element_type=jnp.float32)      # (tm, C2) f32
        y2 = y2 * s2_ref[0] + b2_ref[0]
        if act == "relu":
            y2 = jnp.maximum(y2, 0.0)
        else:  # sigmoid
            y2 = jax.nn.sigmoid(y2)
        # Unpadded store: only the real Cout channels go back to HBM.
        o_ref[:, r0:r0 + th, :, :] = (
            y2[:, :cout].reshape(1, th, w, cout).astype(o_ref.dtype))


def _double_conv_nhwc(x_nhwc, params, *, output_act_fn, eps=1e-5,
                      compute_dtype=jnp.bfloat16, lane=128,
                      col_slab_budget_bytes=4 << 20):
    """Fused DoubleConv on NHWC input. Returns (N, H, W, Cout)."""
    n, h, w, cin = x_nhwc.shape
    w1_hwio, w2_hwio = params["w1"], params["w2"]
    cmid = w1_hwio.shape[-1]
    cout = w2_hwio.shape[-1]

    # Pad channel extents to the 128-lane width for the MXU contraction.
    c0 = _round_up(cin, lane)
    c1 = _round_up(cmid, lane)
    c2 = _round_up(cout, lane)

    def fold_bn(g, b, m, v, cpad):
        s = g / jnp.sqrt(v + eps)
        bias = b - m * s
        s = jnp.pad(s, (0, cpad - s.shape[0])).reshape(1, cpad)
        bias = jnp.pad(bias, (0, cpad - bias.shape[0])).reshape(1, cpad)
        return s.astype(jnp.float32), bias.astype(jnp.float32)

    def prep_w(w_hwio, ci_pad, co_pad):
        kh, kw, ci, co = w_hwio.shape
        wp = jnp.pad(w_hwio, ((0, 0), (0, 0), (0, ci_pad - ci),
                              (0, co_pad - co)))
        # (3,3,Ci,Co) -> (9*Ci, Co): rows tap-major then channel, matching the
        # im2col column ordering inside the kernel.
        return wp.reshape(kh * kw * ci_pad, co_pad).astype(compute_dtype)

    w1p = prep_w(w1_hwio, c0, c1)
    w2p = prep_w(w2_hwio, c1, c2)
    s1, b1 = fold_bn(params["g1"], params["b1"], params["m1"], params["v1"], c1)
    s2, b2 = fold_bn(params["g2"], params["b2"], params["m2"], params["v2"], c2)

    # Row-chunked im2col: bound each (tile_h*W, 9*C) slab to a fixed budget so
    # the kernel fits v7x's 64 MiB VMEM even for large layers.
    csize = jnp.dtype(compute_dtype).itemsize
    per_row = w * 9 * max(c0, c1) * csize
    tile_h = int(max(1, min(h, col_slab_budget_bytes // per_row)))
    chunks = tuple((r0, min(tile_h, h - r0)) for r0 in range(0, h, tile_h))

    # VMEM budget: scratches + double-buffered in/out blocks + weights, with
    # slack, clamped to a generation-aware cap (v5e/v6e 128 MiB vs v7x 64 MiB).
    itemsize = x_nhwc.dtype.itemsize
    scratch_bytes = ((h + 2) * (w + 2) * (c0 + c1) * csize
                     + tile_h * w * 9 * (c0 + c1) * csize)
    block_bytes = (2 * (h * w * cin + h * w * cout) * itemsize
                   + 2 * (w1p.size + w2p.size) * csize
                   + 2 * (s1.size + b1.size + s2.size + b2.size) * 4)
    cap = _vmem_capacity_bytes()
    vmem_limit = int(min(max(2 * (scratch_bytes + block_bytes), 32 << 20),
                         int(0.85 * cap)))

    kernel = functools.partial(_double_conv_kernel, chunks=chunks,
                               act=output_act_fn)

    out = pl.pallas_call(
        kernel,
        out_shape=jax.ShapeDtypeStruct((n, h, w, cout), x_nhwc.dtype),
        grid_spec=pltpu.PrefetchScalarGridSpec(
            num_scalar_prefetch=0,
            grid=(n,),
            in_specs=[
                pl.BlockSpec((1, h, w, cin), lambda i: (i, 0, 0, 0)),
                # Grid-invariant operands (constant index_map): Pallas skips
                # re-fetch across steps.  TODO(synk): pl.Buffered(1) these.
                pl.BlockSpec(w1p.shape, lambda i: (0, 0)),
                pl.BlockSpec(s1.shape, lambda i: (0, 0)),
                pl.BlockSpec(b1.shape, lambda i: (0, 0)),
                pl.BlockSpec(w2p.shape, lambda i: (0, 0)),
                pl.BlockSpec(s2.shape, lambda i: (0, 0)),
                pl.BlockSpec(b2.shape, lambda i: (0, 0)),
            ],
            out_specs=pl.BlockSpec((1, h, w, cout), lambda i: (i, 0, 0, 0)),
            scratch_shapes=[
                pltpu.VMEM((h + 2, w + 2, c0), compute_dtype),    # haloed in
                pltpu.VMEM((h + 2, w + 2, c1), compute_dtype),    # haloed mid
                pltpu.VMEM((tile_h * w, 9 * c0), compute_dtype),  # col chunk 1
                pltpu.VMEM((tile_h * w, 9 * c1), compute_dtype),  # col chunk 2
            ]),
        compiler_params=pltpu.CompilerParams(
            dimension_semantics=("parallel",),
            vmem_limit_bytes=vmem_limit),
    )(x_nhwc, w1p, s1, b1, w2p, s2, b2)

    return out


def double_conv(x_nchw, params, *, output_act_fn="relu", eps=1e-5,
                compute_dtype=jnp.bfloat16):
    """Pallas DoubleConv forward. Input/output layout: NCHW (PyTorch)."""
    assert output_act_fn in ("relu", "sigmoid")
    x = jnp.transpose(x_nchw, (0, 2, 3, 1))                    # NCHW -> NHWC
    y = _double_conv_nhwc(x, params, output_act_fn=output_act_fn, eps=eps,
                          compute_dtype=compute_dtype)
    return jnp.transpose(y, (0, 3, 1, 2))                      # NHWC -> NCHW


def init_params(key, in_channels, out_channels, mid_channels=None):
    if not mid_channels:
        mid_channels = out_channels
    ks = jax.random.split(key, 8)
    # Conv weights generated in PyTorch OIHW then transposed to HWIO.
    w1_oihw = 0.1 * jax.random.normal(ks[0], (mid_channels, in_channels, 3, 3),
                                      jnp.float32)
    w2_oihw = 0.1 * jax.random.normal(ks[1], (out_channels, mid_channels, 3, 3),
                                      jnp.float32)
    return {
        "w1": jnp.transpose(w1_oihw, (2, 3, 1, 0)),
        "g1": 1.0 + 0.1 * jax.random.normal(ks[2], (mid_channels,), jnp.float32),
        "b1": 0.1 * jax.random.normal(ks[3], (mid_channels,), jnp.float32),
        "m1": 0.05 * jax.random.normal(ks[4], (mid_channels,), jnp.float32),
        "v1": 1.0 + 0.1 * jnp.abs(jax.random.normal(ks[5], (mid_channels,),
                                                    jnp.float32)),
        "w2": jnp.transpose(w2_oihw, (2, 3, 1, 0)),
        "g2": 1.0 + 0.1 * jax.random.normal(ks[6], (out_channels,), jnp.float32),
        "b2": 0.1 * jax.random.normal(ks[7], (out_channels,), jnp.float32),
        "m2": jnp.zeros((out_channels,), jnp.float32),
        "v2": jnp.ones((out_channels,), jnp.float32),
    }


def _reference(x_nchw, params, *, output_act_fn="relu", eps=1e-5):
    """Pure-JAX reference (lax.conv) mirroring PyTorch eval-mode semantics."""
    def block(x, w_hwio, g, b, m, v, act):
        y = jax.lax.conv_general_dilated(
            x, w_hwio, window_strides=(1, 1), padding="SAME",
            dimension_numbers=("NCHW", "HWIO", "NCHW"))
        s = (g / jnp.sqrt(v + eps))[None, :, None, None]
        y = (y - m[None, :, None, None]) * s + b[None, :, None, None]
        return jnp.maximum(y, 0.0) if act == "relu" else jax.nn.sigmoid(y)

    y = block(x_nchw, params["w1"], params["g1"], params["b1"],
              params["m1"], params["v1"], "relu")
    return block(y, params["w2"], params["g2"], params["b2"],
                 params["m2"], params["v2"], output_act_fn)


if __name__ == "__main__":
    key = jax.random.PRNGKey(0)
    k_x, k_p = jax.random.split(key)

    N, C_IN, C_OUT, H, W = 2, 4, 8, 16, 16
    x = jax.random.normal(k_x, (N, C_IN, H, W), jnp.float32)
    params = init_params(k_p, C_IN, C_OUT)

    ref = _reference(x, params, output_act_fn="relu")

    # 1) Exact-algorithm check: f32 matmuls/scratches, tight tolerance.
    out_f32 = jax.block_until_ready(
        double_conv(x, params, output_act_fn="relu",
                    compute_dtype=jnp.float32))
    assert out_f32.shape == (N, C_OUT, H, W)
    assert jnp.allclose(out_f32, ref, atol=1e-4, rtol=1e-4)

    # 2) Default fast path: bf16 MXU operands/scratches, f32 accum + epilogue.
    out_bf16 = jax.block_until_ready(double_conv(x, params,
                                                 output_act_fn="relu"))
    assert out_bf16.shape == (N, C_OUT, H, W)
    assert jnp.allclose(out_bf16, ref, atol=5e-2, rtol=5e-2)

    # 3) Exercise the sigmoid output head.
    ref_sig = _reference(x, params, output_act_fn="sigmoid")
    out_sig = jax.block_until_ready(double_conv(x, params,
                                                output_act_fn="sigmoid"))
    assert out_sig.shape == (N, C_OUT, H, W)
    assert jnp.allclose(out_sig, ref_sig, atol=5e-2, rtol=5e-2)

    print("KERNEL_OK")
</pallas_src>

<mosaic_0001>
module attributes {stable_mosaic.version = 11 : i64} {
  func.func @_double_conv_kernel(%arg0: i32, %arg1: memref<1x16x16x4xf32, #tpu.memory_space<vmem>>, %arg2: memref<1152x128xf32, #tpu.memory_space<vmem>>, %arg3: memref<1x128xf32, #tpu.memory_space<vmem>>, %arg4: memref<1x128xf32, #tpu.memory_space<vmem>>, %arg5: memref<1152x128xf32, #tpu.memory_space<vmem>>, %arg6: memref<1x128xf32, #tpu.memory_space<vmem>>, %arg7: memref<1x128xf32, #tpu.memory_space<vmem>>, %arg8: memref<1x16x16x8xf32, #tpu.memory_space<vmem>>, %arg9: memref<18x18x128xf32, #tpu.memory_space<vmem>>, %arg10: memref<18x18x128xf32, #tpu.memory_space<vmem>>, %arg11: memref<256x1152xf32, #tpu.memory_space<vmem>>, %arg12: memref<256x1152xf32, #tpu.memory_space<vmem>>) attributes {dimension_semantics = [#tpu.dimension_semantics<parallel>], iteration_bounds = array<i64: 2>, scalar_prefetch = 0 : i64, scratch_operands = 4 : i64, tpu.core_type = #tpu.core_type<tc>, window_params = [{transform_indices = @transform_0, window_bounds = array<i64: 1, 16, 16, 4>}, {pipeline_mode = #tpu.pipeline_mode<synchronous>, transform_indices = @transform_1, window_bounds = array<i64: 1152, 128>}, {pipeline_mode = #tpu.pipeline_mode<synchronous>, transform_indices = @transform_2, window_bounds = array<i64: 1, 128>}, {pipeline_mode = #tpu.pipeline_mode<synchronous>, transform_indices = @transform_3, window_bounds = array<i64: 1, 128>}, {pipeline_mode = #tpu.pipeline_mode<synchronous>, transform_indices = @transform_4, window_bounds = array<i64: 1152, 128>}, {pipeline_mode = #tpu.pipeline_mode<synchronous>, transform_indices = @transform_5, window_bounds = array<i64: 1, 128>}, {pipeline_mode = #tpu.pipeline_mode<synchronous>, transform_indices = @transform_6, window_bounds = array<i64: 1, 128>}, {transform_indices = @transform_7, window_bounds = array<i64: 1, 16, 16, 8>}]} {
    %cst = arith.constant 0.000000e+00 : f32
    %0 = vector.broadcast %cst : f32 to vector<1x18x128xf32>
    %c0 = arith.constant 0 : index
    %c0_0 = arith.constant 0 : index
    %c0_1 = arith.constant 0 : index
    %1 = vector.load %arg9[%c0, %c0_0, %c0_1] : memref<18x18x128xf32, #tpu.memory_space<vmem>>, vector<1x18x128xf32>
    tpu.vector_store %arg9[%c0, %c0_0, %c0_1], %0 {strides = array<i32>} : memref<18x18x128xf32, #tpu.memory_space<vmem>>, vector<1x18x128xf32>,
    %cst_2 = arith.constant 0.000000e+00 : f32
    %2 = vector.broadcast %cst_2 : f32 to vector<1x18x128xf32>
    %c17 = arith.constant 17 : index
    %c0_3 = arith.constant 0 : index
    %c0_4 = arith.constant 0 : index
    %3 = vector.load %arg9[%c17, %c0_3, %c0_4] : memref<18x18x128xf32, #tpu.memory_space<vmem>>, vector<1x18x128xf32>
    tpu.vector_store %arg9[%c17, %c0_3, %c0_4], %2 {strides = array<i32>} : memref<18x18x128xf32, #tpu.memory_space<vmem>>, vector<1x18x128xf32>,
    %cst_5 = arith.constant 0.000000e+00 : f32
    %4 = vector.broadcast %cst_5 : f32 to vector<18x1x128xf32>
    %c0_6 = arith.constant 0 : index
    %c0_7 = arith.constant 0 : index
    %c0_8 = arith.constant 0 : index
    %5 = vector.load %arg9[%c0_6, %c0_7, %c0_8] : memref<18x18x128xf32, #tpu.memory_space<vmem>>, vector<18x1x128xf32>
    tpu.vector_store %arg9[%c0_6, %c0_7, %c0_8], %4 {strides = array<i32>} : memref<18x18x128xf32, #tpu.memory_space<vmem>>, vector<18x1x128xf32>,
    %cst_9 = arith.constant 0.000000e+00 : f32
    %6 = vector.broadcast %cst_9 : f32 to vector<18x1x128xf32>
    %c0_10 = arith.constant 0 : index
    %c17_11 = arith.constant 17 : index
    %c0_12 = arith.constant 0 : index
    %7 = vector.load %arg9[%c0_10, %c17_11, %c0_12] : memref<18x18x128xf32, #tpu.memory_space<vmem>>, vector<18x1x128xf32>
    tpu.vector_store %arg9[%c0_10, %c17_11, %c0_12], %6 {strides = array<i32>} : memref<18x18x128xf32, #tpu.memory_space<vmem>>, vector<18x1x128xf32>,
    %cst_13 = arith.constant 0.000000e+00 : f32
    %8 = vector.broadcast %cst_13 : f32 to vector<1x18x128xf32>
    %c0_14 = arith.constant 0 : index
    %c0_15 = arith.constant 0 : index
    %c0_16 = arith.constant 0 : index
    %9 = vector.load %arg10[%c0_14, %c0_15, %c0_16] : memref<18x18x128xf32, #tpu.memory_space<vmem>>, vector<1x18x128xf32>
    tpu.vector_store %arg10[%c0_14, %c0_15, %c0_16], %8 {strides = array<i32>} : memref<18x18x128xf32, #tpu.memory_space<vmem>>, vector<1x18x128xf32>,
    %cst_17 = arith.constant 0.000000e+00 : f32
    %10 = vector.broadcast %cst_17 : f32 to vector<1x18x128xf32>
    %c17_18 = arith.constant 17 : index
    %c0_19 = arith.constant 0 : index
    %c0_20 = arith.constant 0 : index
    %11 = vector.load %arg10[%c17_18, %c0_19, %c0_20] : memref<18x18x128xf32, #tpu.memory_space<vmem>>, vector<1x18x128xf32>
    tpu.vector_store %arg10[%c17_18, %c0_19, %c0_20], %10 {strides = array<i32>} : memref<18x18x128xf32, #tpu.memory_space<vmem>>, vector<1x18x128xf32>,
    %cst_21 = arith.constant 0.000000e+00 : f32
    %12 = vector.broadcast %cst_21 : f32 to vector<18x1x128xf32>
    %c0_22 = arith.constant 0 : index
    %c0_23 = arith.constant 0 : index
    %c0_24 = arith.constant 0 : index
    %13 = vector.load %arg10[%c0_22, %c0_23, %c0_24] : memref<18x18x128xf32, #tpu.memory_space<vmem>>, vector<18x1x128xf32>
    tpu.vector_store %arg10[%c0_22, %c0_23, %c0_24], %12 {strides = array<i32>} : memref<18x18x128xf32, #tpu.memory_space<vmem>>, vector<18x1x128xf32>,
    %cst_25 = arith.constant 0.000000e+00 : f32
    %14 = vector.broadcast %cst_25 : f32 to vector<18x1x128xf32>
    %c0_26 = arith.constant 0 : index
    %c17_27 = arith.constant 17 : index
    %c0_28 = arith.constant 0 : index
    %15 = vector.load %arg10[%c0_26, %c17_27, %c0_28] : memref<18x18x128xf32, #tpu.memory_space<vmem>>, vector<18x1x128xf32>
    tpu.vector_store %arg10[%c0_26, %c17_27, %c0_28], %14 {strides = array<i32>} : memref<18x18x128xf32, #tpu.memory_space<vmem>>, vector<18x1x128xf32>,
    %c0_29 = arith.constant 0 : index
    %c0_30 = arith.constant 0 : index
    %c0_31 = arith.constant 0 : index
    %c0_32 = arith.constant 0 : index
    %16 = vector.load %arg1[%c0_29, %c0_30, %c0_31, %c0_32] : memref<1x16x16x4xf32, #tpu.memory_space<vmem>>, vector<1x16x16x4xf32>
    %17 = vector.shape_cast %16 : vector<1x16x16x4xf32> to vector<16x16x4xf32>
    %c1 = arith.constant 1 : index
    %c1_33 = arith.constant 1 : index
    %c0_34 = arith.constant 0 : index
    %18 = vector.load %arg9[%c1, %c1_33, %c0_34] : memref<18x18x128xf32, #tpu.memory_space<vmem>>, vector<16x16x4xf32>
    tpu.vector_store %arg9[%c1, %c1_33, %c0_34], %17 {strides = array<i32>} : memref<18x18x128xf32, #tpu.memory_space<vmem>>, vector<16x16x4xf32>,
    %cst_35 = arith.constant 0.000000e+00 : f32
    %19 = vector.broadcast %cst_35 : f32 to vector<16x16x124xf32>
    %c1_36 = arith.constant 1 : index
    %c1_37 = arith.constant 1 : index
    %c4 = arith.constant 4 : index
    %20 = vector.load %arg9[%c1_36, %c1_37, %c4] : memref<18x18x128xf32, #tpu.memory_space<vmem>>, vector<16x16x124xf32>
    tpu.vector_store %arg9[%c1_36, %c1_37, %c4], %19 {strides = array<i32>} : memref<18x18x128xf32, #tpu.memory_space<vmem>>, vector<16x16x124xf32>,
    %c0_38 = arith.constant 0 : index
    %c0_39 = arith.constant 0 : index
    %c0_40 = arith.constant 0 : index
    %21 = vector.load %arg9[%c0_38, %c0_39, %c0_40] : memref<18x18x128xf32, #tpu.memory_space<vmem>>, vector<16x16x128xf32>
    %22 = vector.shape_cast %21 : vector<16x16x128xf32> to vector<256x128xf32>
    %c0_41 = arith.constant 0 : index
    %c0_42 = arith.constant 0 : index
    %23 = vector.load %arg11[%c0_41, %c0_42] : memref<256x1152xf32, #tpu.memory_space<vmem>>, vector<256x128xf32>
    tpu.vector_store %arg11[%c0_41, %c0_42], %22 {strides = array<i32>} : memref<256x1152xf32, #tpu.memory_space<vmem>>, vector<256x128xf32>,
    %c0_43 = arith.constant 0 : index
    %c1_44 = arith.constant 1 : index
    %c0_45 = arith.constant 0 : index
    %24 = vector.load %arg9[%c0_43, %c1_44, %c0_45] : memref<18x18x128xf32, #tpu.memory_space<vmem>>, vector<16x16x128xf32>
    %25 = vector.shape_cast %24 : vector<16x16x128xf32> to vector<256x128xf32>
    %c0_46 = arith.constant 0 : index
    %c128 = arith.constant 128 : index
    %26 = vector.load %arg11[%c0_46, %c128] : memref<256x1152xf32, #tpu.memory_space<vmem>>, vector<256x128xf32>
    tpu.vector_store %arg11[%c0_46, %c128], %25 {strides = array<i32>} : memref<256x1152xf32, #tpu.memory_space<vmem>>, vector<256x128xf32>,
    %c0_47 = arith.constant 0 : index
    %c2 = arith.constant 2 : index
    %c0_48 = arith.constant 0 : index
    %27 = vector.load %arg9[%c0_47, %c2, %c0_48] : memref<18x18x128xf32, #tpu.memory_space<vmem>>, vector<16x16x128xf32>
    %28 = vector.shape_cast %27 : vector<16x16x128xf32> to vector<256x128xf32>
    %c0_49 = arith.constant 0 : index
    %c256 = arith.constant 256 : index
    %29 = vector.load %arg11[%c0_49, %c256] : memref<256x1152xf32, #tpu.memory_space<vmem>>, vector<256x128xf32>
    tpu.vector_store %arg11[%c0_49, %c256], %28 {strides = array<i32>} : memref<256x1152xf32, #tpu.memory_space<vmem>>, vector<256x128xf32>,
    %c1_50 = arith.constant 1 : index
    %c0_51 = arith.constant 0 : index
    %c0_52 = arith.constant 0 : index
    %30 = vector.load %arg9[%c1_50, %c0_51, %c0_52] : memref<18x18x128xf32, #tpu.memory_space<vmem>>, vector<16x16x128xf32>
    %31 = vector.shape_cast %30 : vector<16x16x128xf32> to vector<256x128xf32>
    %c0_53 = arith.constant 0 : index
    %c384 = arith.constant 384 : index
    %32 = vector.load %arg11[%c0_53, %c384] : memref<256x1152xf32, #tpu.memory_space<vmem>>, vector<256x128xf32>
    tpu.vector_store %arg11[%c0_53, %c384], %31 {strides = array<i32>} : memref<256x1152xf32, #tpu.memory_space<vmem>>, vector<256x128xf32>,
    %c1_54 = arith.constant 1 : index
    %c1_55 = arith.constant 1 : index
    %c0_56 = arith.constant 0 : index
    %33 = vector.load %arg9[%c1_54, %c1_55, %c0_56] : memref<18x18x128xf32, #tpu.memory_space<vmem>>, vector<16x16x128xf32>
    %34 = vector.shape_cast %33 : vector<16x16x128xf32> to vector<256x128xf32>
    %c0_57 = arith.constant 0 : index
    %c512 = arith.constant 512 : index
    %35 = vector.load %arg11[%c0_57, %c512] : memref<256x1152xf32, #tpu.memory_space<vmem>>, vector<256x128xf32>
    tpu.vector_store %arg11[%c0_57, %c512], %34 {strides = array<i32>} : memref<256x1152xf32, #tpu.memory_space<vmem>>, vector<256x128xf32>,
    %c1_58 = arith.constant 1 : index
    %c2_59 = arith.constant 2 : index
    %c0_60 = arith.constant 0 : index
    %36 = vector.load %arg9[%c1_58, %c2_59, %c0_60] : memref<18x18x128xf32, #tpu.memory_space<vmem>>, vector<16x16x128xf32>
    %37 = vector.shape_cast %36 : vector<16x16x128xf32> to vector<256x128xf32>
    %c0_61 = arith.constant 0 : index
    %c640 = arith.constant 640 : index
    %38 = vector.load %arg11[%c0_61, %c640] : memref<256x1152xf32, #tpu.memory_space<vmem>>, vector<256x128xf32>
    tpu.vector_store %arg11[%c0_61, %c640], %37 {strides = array<i32>} : memref<256x1152xf32, #tpu.memory_space<vmem>>, vector<256x128xf32>,
    %c2_62 = arith.constant 2 : index
    %c0_63 = arith.constant 0 : index
    %c0_64 = arith.constant 0 : index
    %39 = vector.load %arg9[%c2_62, %c0_63, %c0_64] : memref<18x18x128xf32, #tpu.memory_space<vmem>>, vector<16x16x128xf32>
    %40 = vector.shape_cast %39 : vector<16x16x128xf32> to vector<256x128xf32>
    %c0_65 = arith.constant 0 : index
    %c768 = arith.constant 768 : index
    %41 = vector.load %arg11[%c0_65, %c768] : memref<256x1152xf32, #tpu.memory_space<vmem>>, vector<256x128xf32>
    tpu.vector_store %arg11[%c0_65, %c768], %40 {strides = array<i32>} : memref<256x1152xf32, #tpu.memory_space<vmem>>, vector<256x128xf32>,
    %c2_66 = arith.constant 2 : index
    %c1_67 = arith.constant 1 : index
    %c0_68 = arith.constant 0 : index
    %42 = vector.load %arg9[%c2_66, %c1_67, %c0_68] : memref<18x18x128xf32, #tpu.memory_space<vmem>>, vector<16x16x128xf32>
    %43 = vector.shape_cast %42 : vector<16x16x128xf32> to vector<256x128xf32>
    %c0_69 = arith.constant 0 : index
    %c896 = arith.constant 896 : index
    %44 = vector.load %arg11[%c0_69, %c896] : memref<256x1152xf32, #tpu.memory_space<vmem>>, vector<256x128xf32>
    tpu.vector_store %arg11[%c0_69, %c896], %43 {strides = array<i32>} : memref<256x1152xf32, #tpu.memory_space<vmem>>, vector<256x128xf32>,
    %c2_70 = arith.constant 2 : index
    %c2_71 = arith.constant 2 : index
    %c0_72 = arith.constant 0 : index
    %45 = vector.load %arg9[%c2_70, %c2_71, %c0_72] : memref<18x18x128xf32, #tpu.memory_space<vmem>>, vector<16x16x128xf32>
    %46 = vector.shape_cast %45 : vector<16x16x128xf32> to vector<256x128xf32>
    %c0_73 = arith.constant 0 : index
    %c1024 = arith.constant 1024 : index
    %47 = vector.load %arg11[%c0_73, %c1024] : memref<256x1152xf32, #tpu.memory_space<vmem>>, vector<256x128xf32>
    tpu.vector_store %arg11[%c0_73, %c1024], %46 {strides = array<i32>} : memref<256x1152xf32, #tpu.memory_space<vmem>>, vector<256x128xf32>,
    %c0_74 = arith.constant 0 : index
    %c0_75 = arith.constant 0 : index
    %48 = vector.load %arg11[%c0_74, %c0_75] : memref<256x1152xf32, #tpu.memory_space<vmem>>, vector<256x1152xf32>
    %c0_76 = arith.constant 0 : index
    %c0_77 = arith.constant 0 : index
    %49 = vector.load %arg2[%c0_76, %c0_77] : memref<1152x128xf32, #tpu.memory_space<vmem>>, vector<1152x128xf32>
    %cst_78 = arith.constant dense<0.000000e+00> : vector<256x128xf32>
    %50 = tpu.matmul %48, %49, %cst_78 {dimension_numbers = #tpu.dot_dimension_numbers<[1], [0], [0], [1], [0, 0, 1, 1], [], []>} : vector<256x1152xf32>, vector<1152x128xf32>, vector<256x128xf32> -> vector<256x128xf32>
    %c0_79 = arith.constant 0 : index
    %c0_80 = arith.constant 0 : index
    %51 = vector.load %arg3[%c0_79, %c0_80] : memref<1x128xf32, #tpu.memory_space<vmem>>, vector<1x128xf32>
    %52 = vector.shape_cast %51 : vector<1x128xf32> to vector<128xf32>
    %53 = vector.shape_cast %52 : vector<128xf32> to vector<1x128xf32>
    %54 = vector.broadcast %53 : vector<1x128xf32> to vector<256x128xf32>
    %55 = arith.mulf %50, %54 : vector<256x128xf32>
    %c0_81 = arith.constant 0 : index
    %c0_82 = arith.constant 0 : index
    %56 = vector.load %arg4[%c0_81, %c0_82] : memref<1x128xf32, #tpu.memory_space<vmem>>, vector<1x128xf32>
    %57 = vector.shape_cast %56 : vector<1x128xf32> to vector<128xf32>
    %58 = vector.shape_cast %57 : vector<128xf32> to vector<1x128xf32>
    %59 = vector.broadcast %58 : vector<1x128xf32> to vector<256x128xf32>
    %60 = arith.addf %55, %59 : vector<256x128xf32>
    %cst_83 = arith.constant 0.000000e+00 : f32
    %61 = vector.broadcast %cst_83 : f32 to vector<256x128xf32>
    %62 = arith.maximumf %60, %61 : vector<256x128xf32>
    %63 = vector.shape_cast %62 : vector<256x128xf32> to vector<16x16x128xf32>
    %c1_84 = arith.constant 1 : index
    %c1_85 = arith.constant 1 : index
    %c0_86 = arith.constant 0 : index
    %64 = vector.load %arg10[%c1_84, %c1_85, %c0_86] : memref<18x18x128xf32, #tpu.memory_space<vmem>>, vector<16x16x128xf32>
    tpu.vector_store %arg10[%c1_84, %c1_85, %c0_86], %63 {strides = array<i32>} : memref<18x18x128xf32, #tpu.memory_space<vmem>>, vector<16x16x128xf32>,
    %c0_87 = arith.constant 0 : index
    %c0_88 = arith.constant 0 : index
    %c0_89 = arith.constant 0 : index
    %65 = vector.load %arg10[%c0_87, %c0_88, %c0_89] : memref<18x18x128xf32, #tpu.memory_space<vmem>>, vector<16x16x128xf32>
    %66 = vector.shape_cast %65 : vector<16x16x128xf32> to vector<256x128xf32>
    %c0_90 = arith.constant 0 : index
    %c0_91 = arith.constant 0 : index
    %67 = vector.load %arg12[%c0_90, %c0_91] : memref<256x1152xf32, #tpu.memory_space<vmem>>, vector<256x128xf32>
    tpu.vector_store %arg12[%c0_90, %c0_91], %66 {strides = array<i32>} : memref<256x1152xf32, #tpu.memory_space<vmem>>, vector<256x128xf32>,
    %c0_92 = arith.constant 0 : index
    %c1_93 = arith.constant 1 : index
    %c0_94 = arith.constant 0 : index
    %68 = vector.load %arg10[%c0_92, %c1_93, %c0_94] : memref<18x18x128xf32, #tpu.memory_space<vmem>>, vector<16x16x128xf32>
    %69 = vector.shape_cast %68 : vector<16x16x128xf32> to vector<256x128xf32>
    %c0_95 = arith.constant 0 : index
    %c128_96 = arith.constant 128 : index
    %70 = vector.load %arg12[%c0_95, %c128_96] : memref<256x1152xf32, #tpu.memory_space<vmem>>, vector<256x128xf32>
    tpu.vector_store %arg12[%c0_95, %c128_96], %69 {strides = array<i32>} : memref<256x1152xf32, #tpu.memory_space<vmem>>, vector<256x128xf32>,
    %c0_97 = arith.constant 0 : index
    %c2_98 = arith.constant 2 : index
    %c0_99 = arith.constant 0 : index
    %71 = vector.load %arg10[%c0_97, %c2_98, %c0_99] : memref<18x18x128xf32, #tpu.memory_space<vmem>>, vector<16x16x128xf32>
    %72 = vector.shape_cast %71 : vector<16x16x128xf32> to vector<256x128xf32>
    %c0_100 = arith.constant 0 : index
    %c256_101 = arith.constant 256 : index
    %73 = vector.load %arg12[%c0_100, %c256_101] : memref<256x1152xf32, #tpu.memory_space<vmem>>, vector<256x128xf32>
    tpu.vector_store %arg12[%c0_100, %c256_101], %72 {strides = array<i32>} : memref<256x1152xf32, #tpu.memory_space<vmem>>, vector<256x128xf32>,
    %c1_102 = arith.constant 1 : index
    %c0_103 = arith.constant 0 : index
    %c0_104 = arith.constant 0 : index
    %74 = vector.load %arg10[%c1_102, %c0_103, %c0_104] : memref<18x18x128xf32, #tpu.memory_space<vmem>>, vector<16x16x128xf32>
    %75 = vector.shape_cast %74 : vector<16x16x128xf32> to vector<256x128xf32>
    %c0_105 = arith.constant 0 : index
    %c384_106 = arith.constant 384 : index
    %76 = vector.load %arg12[%c0_105, %c384_106] : memref<256x1152xf32, #tpu.memory_space<vmem>>, vector<256x128xf32>
    tpu.vector_store %arg12[%c0_105, %c384_106], %75 {strides = array<i32>} : memref<256x1152xf32, #tpu.memory_space<vmem>>, vector<256x128xf32>,
    %c1_107 = arith.constant 1 : index
    %c1_108 = arith.constant 1 : index
    %c0_109 = arith.constant 0 : index
    %77 = vector.load %arg10[%c1_107, %c1_108, %c0_109] : memref<18x18x128xf32, #tpu.memory_space<vmem>>, vector<16x16x128xf32>
    %78 = vector.shape_cast %77 : vector<16x16x128xf32> to vector<256x128xf32>
    %c0_110 = arith.constant 0 : index
    %c512_111 = arith.constant 512 : index
    %79 = vector.load %arg12[%c0_110, %c512_111] : memref<256x1152xf32, #tpu.memory_space<vmem>>, vector<256x128xf32>
    tpu.vector_store %arg12[%c0_110, %c512_111], %78 {strides = array<i32>} : memref<256x1152xf32, #tpu.memory_space<vmem>>, vector<256x128xf32>,
    %c1_112 = arith.constant 1 : index
    %c2_113 = arith.constant 2 : index
    %c0_114 = arith.constant 0 : index
    %80 = vector.load %arg10[%c1_112, %c2_113, %c0_114] : memref<18x18x128xf32, #tpu.memory_space<vmem>>, vector<16x16x128xf32>
    %81 = vector.shape_cast %80 : vector<16x16x128xf32> to vector<256x128xf32>
    %c0_115 = arith.constant 0 : index
    %c640_116 = arith.constant 640 : index
    %82 = vector.load %arg12[%c0_115, %c640_116] : memref<256x1152xf32, #tpu.memory_space<vmem>>, vector<256x128xf32>
    tpu.vector_store %arg12[%c0_115, %c640_116], %81 {strides = array<i32>} : memref<256x1152xf32, #tpu.memory_space<vmem>>, vector<256x128xf32>,
    %c2_117 = arith.constant 2 : index
    %c0_118 = arith.constant 0 : index
    %c0_119 = arith.constant 0 : index
    %83 = vector.load %arg10[%c2_117, %c0_118, %c0_119] : memref<18x18x128xf32, #tpu.memory_space<vmem>>, vector<16x16x128xf32>
    %84 = vector.shape_cast %83 : vector<16x16x128xf32> to vector<256x128xf32>
    %c0_120 = arith.constant 0 : index
    %c768_121 = arith.constant 768 : index
    %85 = vector.load %arg12[%c0_120, %c768_121] : memref<256x1152xf32, #tpu.memory_space<vmem>>, vector<256x128xf32>
    tpu.vector_store %arg12[%c0_120, %c768_121], %84 {strides = array<i32>} : memref<256x1152xf32, #tpu.memory_space<vmem>>, vector<256x128xf32>,
    %c2_122 = arith.constant 2 : index
    %c1_123 = arith.constant 1 : index
    %c0_124 = arith.constant 0 : index
    %86 = vector.load %arg10[%c2_122, %c1_123, %c0_124] : memref<18x18x128xf32, #tpu.memory_space<vmem>>, vector<16x16x128xf32>
    %87 = vector.shape_cast %86 : vector<16x16x128xf32> to vector<256x128xf32>
    %c0_125 = arith.constant 0 : index
    %c896_126 = arith.constant 896 : index
    %88 = vector.load %arg12[%c0_125, %c896_126] : memref<256x1152xf32, #tpu.memory_space<vmem>>, vector<256x128xf32>
    tpu.vector_store %arg12[%c0_125, %c896_126], %87 {strides = array<i32>} : memref<256x1152xf32, #tpu.memory_space<vmem>>, vector<256x128xf32>,
    %c2_127 = arith.constant 2 : index
    %c2_128 = arith.constant 2 : index
    %c0_129 = arith.constant 0 : index
    %89 = vector.load %arg10[%c2_127, %c2_128, %c0_129] : memref<18x18x128xf32, #tpu.memory_space<vmem>>, vector<16x16x128xf32>
    %90 = vector.shape_cast %89 : vector<16x16x128xf32> to vector<256x128xf32>
    %c0_130 = arith.constant 0 : index
    %c1024_131 = arith.constant 1024 : index
    %91 = vector.load %arg12[%c0_130, %c1024_131] : memref<256x1152xf32, #tpu.memory_space<vmem>>, vector<256x128xf32>
    tpu.vector_store %arg12[%c0_130, %c1024_131], %90 {strides = array<i32>} : memref<256x1152xf32, #tpu.memory_space<vmem>>, vector<256x128xf32>,
    %c0_132 = arith.constant 0 : index
    %c0_133 = arith.constant 0 : index
    %92 = vector.load %arg12[%c0_132, %c0_133] : memref<256x1152xf32, #tpu.memory_space<vmem>>, vector<256x1152xf32>
    %c0_134 = arith.constant 0 : index
    %c0_135 = arith.constant 0 : index
    %93 = vector.load %arg5[%c0_134, %c0_135] : memref<1152x128xf32, #tpu.memory_space<vmem>>, vector<1152x128xf32>
    %cst_136 = arith.constant dense<0.000000e+00> : vector<256x128xf32>
    %94 = tpu.matmul %92, %93, %cst_136 {dimension_numbers = #tpu.dot_dimension_numbers<[1], [0], [0], [1], [0, 0, 1, 1], [], []>} : vector<256x1152xf32>, vector<1152x128xf32>, vector<256x128xf32> -> vector<256x128xf32>
    %c0_137 = arith.constant 0 : index
    %c0_138 = arith.constant 0 : index
    %95 = vector.load %arg6[%c0_137, %c0_138] : memref<1x128xf32, #tpu.memory_space<vmem>>, vector<1x128xf32>
    %96 = vector.shape_cast %95 : vector<1x128xf32> to vector<128xf32>
    %97 = vector.shape_cast %96 : vector<128xf32> to vector<1x128xf32>
    %98 = vector.broadcast %97 : vector<1x128xf32> to vector<256x128xf32>
    %99 = arith.mulf %94, %98 : vector<256x128xf32>
    %c0_139 = arith.constant 0 : index
    %c0_140 = arith.constant 0 : index
    %100 = vector.load %arg7[%c0_139, %c0_140] : memref<1x128xf32, #tpu.memory_space<vmem>>, vector<1x128xf32>
    %101 = vector.shape_cast %100 : vector<1x128xf32> to vector<128xf32>
    %102 = vector.shape_cast %101 : vector<128xf32> to vector<1x128xf32>
    %103 = vector.broadcast %102 : vector<1x128xf32> to vector<256x128xf32>
    %104 = arith.addf %99, %103 : vector<256x128xf32>
    %cst_141 = arith.constant 0.000000e+00 : f32
    %105 = vector.broadcast %cst_141 : f32 to vector<256x128xf32>
    %106 = arith.maximumf %104, %105 : vector<256x128xf32>
    %107 = vector.extract_strided_slice %106 {offsets = [0, 0], sizes = [256, 8], strides = [1, 1]} : vector<256x128xf32> to vector<256x8xf32>
    %108 = vector.shape_cast %107 : vector<256x8xf32> to vector<1x16x16x8xf32>
    %c0_142 = arith.constant 0 : index
    %c0_143 = arith.constant 0 : index
    %c0_144 = arith.constant 0 : index
    %c0_145 = arith.constant 0 : index
    %109 = vector.load %arg8[%c0_142, %c0_143, %c0_144, %c0_145] : memref<1x16x16x8xf32, #tpu.memory_space<vmem>>, vector<1x16x16x8xf32>
    tpu.vector_store %arg8[%c0_142, %c0_143, %c0_144, %c0_145], %108 {strides = array<i32>} : memref<1x16x16x8xf32, #tpu.memory_space<vmem>>, vector<1x16x16x8xf32>,
    return
  }
  func.func @transform_0(%arg0: i32) -> (i32, i32, i32, i32) {
    %c0_i32 = arith.constant 0 : i32
    %c0_i32_0 = arith.constant 0 : i32
    %c0_i32_1 = arith.constant 0 : i32
    %c0_i32_2 = arith.constant 0 : i32
    return %arg0, %c0_i32, %c0_i32_0, %c0_i32_1 : i32, i32, i32, i32
  }
  func.func @transform_1(%arg0: i32) -> (i32, i32) {
    %c0_i32 = arith.constant 0 : i32
    %c0_i32_0 = arith.constant 0 : i32
    %c0_i32_1 = arith.constant 0 : i32
    return %c0_i32, %c0_i32_0 : i32, i32
  }
  func.func @transform_2(%arg0: i32) -> (i32, i32) {
    %c0_i32 = arith.constant 0 : i32
    %c0_i32_0 = arith.constant 0 : i32
    %c0_i32_1 = arith.constant 0 : i32
    return %c0_i32, %c0_i32_0 : i32, i32
  }
  func.func @transform_3(%arg0: i32) -> (i32, i32) {
    %c0_i32 = arith.constant 0 : i32
    %c0_i32_0 = arith.constant 0 : i32
    %c0_i32_1 = arith.constant 0 : i32
    return %c0_i32, %c0_i32_0 : i32, i32
  }
  func.func @transform_4(%arg0: i32) -> (i32, i32) {
    %c0_i32 = arith.constant 0 : i32
    %c0_i32_0 = arith.constant 0 : i32
    %c0_i32_1 = arith.constant 0 : i32
    return %c0_i32, %c0_i32_0 : i32, i32
  }
  func.func @transform_5(%arg0: i32) -> (i32, i32) {
    %c0_i32 = arith.constant 0 : i32
    %c0_i32_0 = arith.constant 0 : i32
    %c0_i32_1 = arith.constant 0 : i32
    return %c0_i32, %c0_i32_0 : i32, i32
  }
  func.func @transform_6(%arg0: i32) -> (i32, i32) {
    %c0_i32 = arith.constant 0 : i32
    %c0_i32_0 = arith.constant 0 : i32
    %c0_i32_1 = arith.constant 0 : i32
    return %c0_i32, %c0_i32_0 : i32, i32
  }
  func.func @transform_7(%arg0: i32) -> (i32, i32, i32, i32) {
    %c0_i32 = arith.constant 0 : i32
    %c0_i32_0 = arith.constant 0 : i32
    %c0_i32_1 = arith.constant 0 : i32
    %c0_i32_2 = arith.constant 0 : i32
    return %arg0, %c0_i32, %c0_i32_0, %c0_i32_1 : i32, i32, i32, i32
  }
}

</mosaic_0001>

<llo_original>
// kernel: tpu_custom_call.1
$region0: #{tpu_custom_call.1}
  #allocation0 [shape = 'u32[]', space=smem, size = 0x4, offset = 0x4, fixed_abs, tag = 'smem constant byte address 0x4 - core index']
  #allocation1 [shape = 'u32[144,128]{1,0:T(1,128)}', space=vmem, size = 0x12000, scoped, tag = 'internal scratch']
  #allocation2 [shape = 'f32[18,18,128]{2,1,0:T(8,128)}', space=vmem, size = 0x36000, scoped, tag = 'scratch operand']
  #allocation3 [shape = 'f32[18,18,128]{2,1,0:T(8,128)}', space=vmem, size = 0x36000, scoped, tag = 'scratch operand']
  #allocation4 [shape = 'f32[256,1152]{1,0:T(8,128)}', space=vmem, size = 0x120000, scoped, tag = 'scratch operand']
  #allocation5 [shape = 'f32[256,1152]{1,0:T(8,128)}', space=vmem, size = 0x120000, scoped, tag = 'scratch operand']
  %s0 = inlined_call_operand.vmem [shape: f32[2,16,16,4], index: 0, kind: input, shape index: {}]
  %s1 = inlined_call_operand.hbm [shape: f32[1152,128], index: 1, kind: input, shape index: {}]
  %s2 = inlined_call_operand.vmem [shape: f32[1,128], index: 2, kind: input, shape index: {}]
  %s3 = inlined_call_operand.vmem [shape: f32[1,128], index: 3, kind: input, shape index: {}]
  %s4 = inlined_call_operand.hbm [shape: f32[1152,128], index: 4, kind: input, shape index: {}]
  %s5 = inlined_call_operand.vmem [shape: f32[1,128], index: 5, kind: input, shape index: {}]
  %s6 = inlined_call_operand.vmem [shape: f32[1,128], index: 6, kind: input, shape index: {}]
  %s7 = inlined_call_operand.vmem [shape: f32[2,16,16,8], index: 7, kind: output, shape index: {}]
  %s8 = sld [smem:[#allocation0]]
  $region69: #{tpu_custom_call.1} parent=0
    _
  %s10 = ssub.s32 1, %s8
  %s11 = scalar_select 0, %s10, %s8
  $region1: #{tpu_custom_call.1} parent=0
    #allocation6 [shape = 'u8[589824]{0}', space=vmem, size = 0x90000, scoped, tag = 'input window, operand 1, single buffered']
    #allocation7 [shape = 's32[2]{0}', space=sflag, size = 0x8, scoped, tag = 'scoped memory for tpu_custom_call.1']
    #allocation8 [shape = 'u8[589824]{0}', space=vmem, size = 0x90000, scoped, tag = 'input window, operand 4, single buffered']
    #allocation9 [shape = 's32[1]{0}', space=sflag, size = 0x4, scoped, tag = 'scoped memory for tpu_custom_call.1']
    %12 = vsyncpa [#allocation7], 0
    %13 = vsyncpa [#allocation9], 0
    loop: start=0, step=1, limit=4
    $region2: #{tpu_custom_call.1} parent=1 // loop_pre_header
      _
    $region3: #{tpu_custom_call.1} parent=1 // loop_header
      %s15 = sphi 0, %s19
      %p16 = scmp.ge.s32.totalorder %s15, 4
      %s25 = sphi 0, %s27
      %s28 = sphi 0, %s25
      %s29 = sphi 0, %s28
      %s45 = sphi 0, %s29
      %s49 = sphi 0, %s49
      %s51 = sphi 0, %s49
      %s52 = sphi 0, %s51
      %s66 = sphi 0, %s52
      %s70 = sphi 0, %s70
      %s72 = sphi 0, %s70
      %s73 = sphi 0, %s72
      %s87 = sphi 0, %s73
      %s91 = sphi 0, %s91
      %s93 = sphi 0, %s91
      %s94 = sphi 0, %s93
      %s108 = sphi 0, %s94
      %s112 = sphi 0, %s112
      %s114 = sphi 0, %s112
      %s115 = sphi 0, %s114
      %s129 = sphi 0, %s115
      %s133 = sphi 0, %s133
      %s135 = sphi 0, %s133
      %s136 = sphi 0, %s135
      %s150 = sphi 0, %s136
      %s154 = sphi 0, %s154
      %s156 = sphi 0, %s154
      %s157 = sphi 0, %s156
      %s171 = sphi 0, %s157
      %s177 = sphi 0, %s179
      %s180 = sphi 0, %s177
      %s181 = sphi 0, %s180
      %s197 = sphi 0, %s181
    $region4: #{tpu_custom_call.1} parent=1 // loop_header_branch
      %18 = sbr.rel (%p16) target = $region8
    $region5: #{tpu_custom_call.1} parent=1 // loop_body
      %s20 = ssub.s32 %s15, 1
      %s21 = ssub.s32 %s15, 2
      %s22 = sadd.s32 %s15, 1
      %s23 = ssub.s32 %s15, %s22
      %p24 = scmp.eq.s32.totalorder %s23, 0
      %s26 = sadd.s32 %s25, 1
      %s27 = scalar_select %p24, %s25, %s26
      %p30 = pneg %p24
      %p31 = scmp.eq.s32.totalorder %s15, 1
      %p32 = por %p30, %p31
      %p33 = scmp.ne.s32.totalorder %s25, %s28
      %p34 = scmp.eq.s32.totalorder %s15, 0
      %p35 = por %p33, %p34
      %p36 = scmp.ne.s32.totalorder %s25, %s28
      %p37 = scmp.eq.s32.totalorder %s20, 1
      %p38 = por %p36, %p37
      %p39 = scmp.ne.s32.totalorder %s28, %s29
      %p40 = scmp.eq.s32.totalorder %s20, 0
      %p41 = por %p39, %p40
      %p42 = scmp.ne.s32.totalorder %s28, %s29
      %p43 = scmp.eq.s32.totalorder %s21, 1
      %p44 = por %p42, %p43
      %p46 = scmp.ne.s32.totalorder %s29, %s45
      %p47 = scmp.eq.s32.totalorder %s21, 0
      %p48 = por %p46, %p47
      %s50 = sadd.s32 %s49, 1
      %p53 = scmp.eq.s32.totalorder %s15, 1
      %p54 = scmp.ne.s32.totalorder %s49, %s51
      %p55 = scmp.eq.s32.totalorder %s15, 0
      %p56 = por %p54, %p55
      %p57 = scmp.ne.s32.totalorder %s49, %s51
      %p58 = scmp.eq.s32.totalorder %s20, 1
      %p59 = por %p57, %p58
      %p60 = scmp.ne.s32.totalorder %s51, %s52
      %p61 = scmp.eq.s32.totalorder %s20, 0
      %p62 = por %p60, %p61
      %p63 = scmp.ne.s32.totalorder %s51, %s52
      %p64 = scmp.eq.s32.totalorder %s21, 1
      %p65 = por %p63, %p64
      %p67 = scmp.ne.s32.totalorder %s52, %s66
      %p68 = scmp.eq.s32.totalorder %s21, 0
      %p69 = por %p67, %p68
      %s71 = sadd.s32 %s70, 1
      %p74 = scmp.eq.s32.totalorder %s15, 1
      %p75 = scmp.ne.s32.totalorder %s70, %s72
      %p76 = scmp.eq.s32.totalorder %s15, 0
      %p77 = por %p75, %p76
      %p78 = scmp.ne.s32.totalorder %s70, %s72
      %p79 = scmp.eq.s32.totalorder %s20, 1
      %p80 = por %p78, %p79
      %p81 = scmp.ne.s32.totalorder %s72, %s73
      %p82 = scmp.eq.s32.totalorder %s20, 0
      %p83 = por %p81, %p82
      %p84 = scmp.ne.s32.totalorder %s72, %s73
      %p85 = scmp.eq.s32.totalorder %s21, 1
      %p86 = por %p84, %p85
      %p88 = scmp.ne.s32.totalorder %s73, %s87
      %p89 = scmp.eq.s32.totalorder %s21, 0
      %p90 = por %p88, %p89
      %s92 = sadd.s32 %s91, 1
      %p95 = scmp.eq.s32.totalorder %s15, 1
      %p96 = scmp.ne.s32.totalorder %s91, %s93
      %p97 = scmp.eq.s32.totalorder %s15, 0
      %p98 = por %p96, %p97
      %p99 = scmp.ne.s32.totalorder %s91, %s93
      %p100 = scmp.eq.s32.totalorder %s20, 1
      %p101 = por %p99, %p100
      %p102 = scmp.ne.s32.totalorder %s93, %s94
      %p103 = scmp.eq.s32.totalorder %s20, 0
      %p104 = por %p102, %p103
      %p105 = scmp.ne.s32.totalorder %s93, %s94
      %p106 = scmp.eq.s32.totalorder %s21, 1
      %p107 = por %p105, %p106
      %p109 = scmp.ne.s32.totalorder %s94, %s108
      %p110 = scmp.eq.s32.totalorder %s21, 0
      %p111 = por %p109, %p110
      %s113 = sadd.s32 %s112, 1
      %p116 = scmp.eq.s32.totalorder %s15, 1
      %p117 = scmp.ne.s32.totalorder %s112, %s114
      %p118 = scmp.eq.s32.totalorder %s15, 0
      %p119 = por %p117, %p118
      %p120 = scmp.ne.s32.totalorder %s112, %s114
      %p121 = scmp.eq.s32.totalorder %s20, 1
      %p122 = por %p120, %p121
      %p123 = scmp.ne.s32.totalorder %s114, %s115
      %p124 = scmp.eq.s32.totalorder %s20, 0
      %p125 = por %p123, %p124
      %p126 = scmp.ne.s32.totalorder %s114, %s115
      %p127 = scmp.eq.s32.totalorder %s21, 1
      %p128 = por %p126, %p127
      %p130 = scmp.ne.s32.totalorder %s115, %s129
      %p131 = scmp.eq.s32.totalorder %s21, 0
      %p132 = por %p130, %p131
      %s134 = sadd.s32 %s133, 1
      %p137 = scmp.eq.s32.totalorder %s15, 1
      %p138 = scmp.ne.s32.totalorder %s133, %s135
      %p139 = scmp.eq.s32.totalorder %s15, 0
      %p140 = por %p138, %p139
      %p141 = scmp.ne.s32.totalorder %s133, %s135
      %p142 = scmp.eq.s32.totalorder %s20, 1
      %p143 = por %p141, %p142
      %p144 = scmp.ne.s32.totalorder %s135, %s136
      %p145 = scmp.eq.s32.totalorder %s20, 0
      %p146 = por %p144, %p145
      %p147 = scmp.ne.s32.totalorder %s135, %s136
      %p148 = scmp.eq.s32.totalorder %s21, 1
      %p149 = por %p147, %p148
      %p151 = scmp.ne.s32.totalorder %s136, %s150
      %p152 = scmp.eq.s32.totalorder %s21, 0
      %p153 = por %p151, %p152
      %s155 = sadd.s32 %s154, 1
      %p158 = scmp.eq.s32.totalorder %s15, 1
      %p159 = scmp.ne.s32.totalorder %s154, %s156
      %p160 = scmp.eq.s32.totalorder %s15, 0
      %p161 = por %p159, %p160
      %p162 = scmp.ne.s32.totalorder %s154, %s156
      %p163 = scmp.eq.s32.totalorder %s20, 1
      %p164 = por %p162, %p163
      %p165 = scmp.ne.s32.totalorder %s156, %s157
      %p166 = scmp.eq.s32.totalorder %s20, 0
      %p167 = por %p165, %p166
      %p168 = scmp.ne.s32.totalorder %s156, %s157
      %p169 = scmp.eq.s32.totalorder %s21, 1
      %p170 = por %p168, %p169
      %p172 = scmp.ne.s32.totalorder %s157, %s171
      %p173 = scmp.eq.s32.totalorder %s21, 0
      %p174 = por %p172, %p173
      %s175 = ssub.s32 %s15, %s22
      %p176 = scmp.eq.s32.totalorder %s175, 0
      %s178 = sadd.s32 %s177, 1
      %s179 = scalar_select %p176, %s177, %s178
      %p182 = pneg %p176
      %p183 = scmp.eq.s32.totalorder %s15, 1
      %p184 = por %p182, %p183
      %p185 = scmp.ne.s32.totalorder %s177, %s180
      %p186 = scmp.eq.s32.totalorder %s15, 0
      %p187 = por %p185, %p186
      %p188 = scmp.ne.s32.totalorder %s177, %s180
      %p189 = scmp.eq.s32.totalorder %s20, 1
      %p190 = por %p188, %p189
      %p191 = scmp.ne.s32.totalorder %s180, %s181
      %p192 = scmp.eq.s32.totalorder %s20, 0
      %p193 = por %p191, %p192
      %p194 = scmp.ne.s32.totalorder %s180, %s181
      %p195 = scmp.eq.s32.totalorder %s21, 1
      %p196 = por %p194, %p195
      %p198 = scmp.ne.s32.totalorder %s181, %s197
      %p199 = scmp.eq.s32.totalorder %s21, 0
      %p200 = por %p198, %p199
      %p201 = scmp.le.s32.totalorder 1, %s15
      %p202 = scmp.lt.s32.totalorder %s15, 3
      %p203 = pnand %p201, %p202
      %p204 = pneg %p203
      // Predicated region
      $region9: #{tpu_custom_call.1} parent=5 // pred_check
        _
      $region10: #{tpu_custom_call.1} parent=5 // pred_check_branch
        %206 = sbr.rel (%p203) target = $region12
      $region11: #{tpu_custom_call.1} parent=5 // pred_region
        %s207 = ssub.s32 %s15, 1
        // Predicated region
        $region13: #{tpu_custom_call.1} parent=11 // pred_check
          %p208 = pneg %p62
        $region14: #{tpu_custom_call.1} parent=11 // pred_check_branch
          %210 = sbr.rel (%p208) target = $region16
        $region15: #{tpu_custom_call.1} parent=11 // pred_region
          %s212 = ssub.s32 18432, 18432
          %213 = vsyncadd [#allocation7], %s212
          %s214 = sshll.u32 [#allocation6], 4
          %s215 = int_to_ptr.vmem [resolvable:$true] %s214
          %220 = dma.hbm_to_vmem [thread:$0]  %s1, 18432, %s215, [#allocation7], 128, 128, 8
        $region16: #{tpu_custom_call.1} parent=11 // pred_fallthru
          _
        // Predicated region
        $region17: #{tpu_custom_call.1} parent=11 // pred_check
          %p221 = pneg %p83
        $region18: #{tpu_custom_call.1} parent=11 // pred_check_branch
          %223 = sbr.rel (%p221) target = $region20
        $region19: #{tpu_custom_call.1} parent=11 // pred_region
          _
        $region20: #{tpu_custom_call.1} parent=11 // pred_fallthru
          _
        // Predicated region
        $region21: #{tpu_custom_call.1} parent=11 // pred_check
          %p224 = pneg %p104
        $region22: #{tpu_custom_call.1} parent=11 // pred_check_branch
          %226 = sbr.rel (%p224) target = $region24
        $region23: #{tpu_custom_call.1} parent=11 // pred_region
          _
        $region24: #{tpu_custom_call.1} parent=11 // pred_fallthru
          _
        // Predicated region
        $region25: #{tpu_custom_call.1} parent=11 // pred_check
          %p227 = pneg %p125
        $region26: #{tpu_custom_call.1} parent=11 // pred_check_branch
          %229 = sbr.rel (%p227) target = $region28
        $region27: #{tpu_custom_call.1} parent=11 // pred_region
          %s231 = ssub.s32 18432, 18432
          %232 = vsyncadd [#allocation9], %s231
          %s233 = sshll.u32 [#allocation8], 4
          %s234 = int_to_ptr.vmem [resolvable:$true] %s233
          %239 = dma.hbm_to_vmem [thread:$0]  %s4, 18432, %s234, [#allocation9], 128, 128, 8
        $region28: #{tpu_custom_call.1} parent=11 // pred_fallthru
          _
        // Predicated region
        $region29: #{tpu_custom_call.1} parent=11 // pred_check
          %p240 = pneg %p146
        $region30: #{tpu_custom_call.1} parent=11 // pred_check_branch
          %242 = sbr.rel (%p240) target = $region32
        $region31: #{tpu_custom_call.1} parent=11 // pred_region
          _
        $region32: #{tpu_custom_call.1} parent=11 // pred_fallthru
          _
        // Predicated region
        $region33: #{tpu_custom_call.1} parent=11 // pred_check
          %p243 = pneg %p167
        $region34: #{tpu_custom_call.1} parent=11 // pred_check_branch
          %245 = sbr.rel (%p243) target = $region36
        $region35: #{tpu_custom_call.1} parent=11 // pred_region
          _
        $region36: #{tpu_custom_call.1} parent=11 // pred_fallthru
          _
      $region12: #{tpu_custom_call.1} parent=5 // pred_fallthru
        _
      %p246 = scmp.lt.s32.totalorder %s15, 2
      // Predicated region
      $region37: #{tpu_custom_call.1} parent=5 // pred_check
        %p247 = pneg %p246
      $region38: #{tpu_custom_call.1} parent=5 // pred_check_branch
        %249 = sbr.rel (%p247) target = $region40
      $region39: #{tpu_custom_call.1} parent=5 // pred_region
        // Predicated region
        $region41: #{tpu_custom_call.1} parent=39 // pred_check
          %p250 = pneg %p35
        $region42: #{tpu_custom_call.1} parent=39 // pred_check_branch
          %252 = sbr.rel (%p250) target = $region44
        $region43: #{tpu_custom_call.1} parent=39 // pred_region
          %p253 = scmp.lt.s32.totalorder %s15, 1
          %s254 = scalar_select %p253, %s15, 1
          %s255 = smul.addr %s254, 32
          %s256 = smul.addr %s255, 8
          %s257 = scalar_lea.vmem %s0, %s256
        $region44: #{tpu_custom_call.1} parent=39 // pred_fallthru
          _
      $region40: #{tpu_custom_call.1} parent=5 // pred_fallthru
        _
      %p258 = scmp.le.s32.totalorder 1, %s15
      %p259 = scmp.lt.s32.totalorder %s15, 3
      %p260 = pnand %p258, %p259
      %p261 = pneg %p260
      // Predicated region
      $region45: #{tpu_custom_call.1} parent=5 // pred_check
        _
      $region46: #{tpu_custom_call.1} parent=5 // pred_check_branch
        %263 = sbr.rel (%p260) target = $region48
      $region47: #{tpu_custom_call.1} parent=5 // pred_region
        %s264 = ssub.s32 %s15, 1
        // Predicated region
        $region49: #{tpu_custom_call.1} parent=47 // pred_check
          %p265 = pneg %p62
        $region50: #{tpu_custom_call.1} parent=47 // pred_check_branch
          %267 = sbr.rel (%p265) target = $region52
        $region51: #{tpu_custom_call.1} parent=47 // pred_region
          %268 = dma.done [#allocation7], 18432
        $region52: #{tpu_custom_call.1} parent=47 // pred_fallthru
          _
        // Predicated region
        $region53: #{tpu_custom_call.1} parent=47 // pred_check
          %p269 = pneg %p125
        $region54: #{tpu_custom_call.1} parent=47 // pred_check_branch
          %271 = sbr.rel (%p269) target = $region56
        $region55: #{tpu_custom_call.1} parent=47 // pred_region
          %272 = dma.done [#allocation9], 18432
        $region56: #{tpu_custom_call.1} parent=47 // pred_fallthru
          _
        %p273 = scmp.lt.s32.totalorder %s20, 1
        %s274 = scalar_select %p273, %s20, 1
        %s275 = smul.addr %s274, 32
        %s276 = smul.addr %s275, 8
        %s277 = scalar_lea.vmem %s0, %s276
        %p278 = pneg %p41
        %p279 = pneg %p38
        %p280 = pneg %p62
        %p281 = pneg %p59
        %p282 = pneg %p83
        %p283 = pneg %p80
        %p284 = pneg %p104
        %p285 = pneg %p101
        %p286 = pneg %p125
        %p287 = pneg %p122
        %p288 = pneg %p146
        %p289 = pneg %p143
        %p290 = pneg %p167
        %p291 = pneg %p164
        %p292 = pneg %p193
        %p293 = pneg %p190
        %p294 = scmp.lt.s32.totalorder %s20, 1
        %s295 = scalar_select %p294, %s20, 1
        %s296 = smul.addr %s295, 32
        %s297 = smul.addr %s296, 8
        %s298 = scalar_lea.vmem %s7, %s297
        %p299 = scmp.lt.s32.totalorder %s20, 1
        %s300 = scalar_select %p299, %s20, 1
        %s301 = smul.addr %s300, 32
        %s302 = smul.addr %s301, 8
        %s303 = scalar_lea.vmem %s0, %s302
        %p304 = scmp.lt.s32.totalorder %s20, 1
        %s305 = scalar_select %p304, %s20, 1
        %s306 = smul.addr %s305, 32
        %s307 = smul.addr %s306, 8
        %s308 = scalar_lea.vmem %s7, %s307
        %309 = vst [vmem:[#allocation2] sm:$0xff] 0.0
        %310 = vst [vmem:[#allocation2 + $0x8] sm:$0xff] 0.0
        %311 = vst [vmem:[#allocation2 + $0x10] sm:$0x3] 0.0
        %s312 = scalar_lea.vmem [#allocation2], 408
        %313 = vst [vmem:[%s312] sm:$0xff] 0.0
        %314 = vst [vmem:[%s312 + $0x8] sm:$0xff] 0.0
        %315 = vst [vmem:[%s312 + $0x10] sm:$0x3] 0.0
        %316 = vst [vmem:[#allocation2] sm:$0x1] 0.0
        %317 = vst [vmem:[#allocation2 + $0x18] sm:$0x1] 0.0
        %318 = vst [vmem:[#allocation2 + $0x30] sm:$0x1] 0.0
        %319 = vst [vmem:[#allocation2 + $0x48] sm:$0x1] 0.0
        %320 = vst [vmem:[#allocation2 + $0x60] sm:$0x1] 0.0
        %321 = vst [vmem:[#allocation2 + $0x78] sm:$0x1] 0.0
        %322 = vst [vmem:[#allocation2 + $0x90] sm:$0x1] 0.0
        %323 = vst [vmem:[#allocation2 + $0xa8] sm:$0x1] 0.0
        %324 = vst [vmem:[#allocation2 + $0xc0] sm:$0x1] 0.0
        %325 = vst [vmem:[#allocation2 + $0xd8] sm:$0x1] 0.0
        %326 = vst [vmem:[#allocation2 + $0xf0] sm:$0x1] 0.0
        %327 = vst [vmem:[#allocation2 + $0x108] sm:$0x1] 0.0
        %328 = vst [vmem:[#allocation2 + $0x120] sm:$0x1] 0.0
        %329 = vst [vmem:[#allocation2 + $0x138] sm:$0x1] 0.0
        %330 = vst [vmem:[#allocation2 + $0x150] sm:$0x1] 0.0
        %331 = vst [vmem:[#allocation2 + $0x168] sm:$0x1] 0.0
        %332 = vst [vmem:[#allocation2 + $0x180] sm:$0x1] 0.0
        %333 = vst [vmem:[#allocation2 + $0x198] sm:$0x1] 0.0
        %334 = vst [vmem:[#allocation2 + $0x11] sm:$0x1] 0.0
        %335 = vst [vmem:[#allocation2 + $0x29] sm:$0x1] 0.0
        %336 = vst [vmem:[#allocation2 + $0x41] sm:$0x1] 0.0
        %337 = vst [vmem:[#allocation2 + $0x59] sm:$0x1] 0.0
        %338 = vst [vmem:[#allocation2 + $0x71] sm:$0x1] 0.0
        %339 = vst [vmem:[#allocation2 + $0x89] sm:$0x1] 0.0
        %340 = vst [vmem:[#allocation2 + $0xa1] sm:$0x1] 0.0
        %341 = vst [vmem:[#allocation2 + $0xb9] sm:$0x1] 0.0
        %342 = vst [vmem:[#allocation2 + $0xd1] sm:$0x1] 0.0
        %343 = vst [vmem:[#allocation2 + $0xe9] sm:$0x1] 0.0
        %344 = vst [vmem:[#allocation2 + $0x101] sm:$0x1] 0.0
        %345 = vst [vmem:[#allocation2 + $0x119] sm:$0x1] 0.0
        %346 = vst [vmem:[#allocation2 + $0x131] sm:$0x1] 0.0
        %347 = vst [vmem:[#allocation2 + $0x149] sm:$0x1] 0.0
        %348 = vst [vmem:[#allocation2 + $0x161] sm:$0x1] 0.0
        %349 = vst [vmem:[#allocation2 + $0x179] sm:$0x1] 0.0
        %350 = vst [vmem:[#allocation2 + $0x191] sm:$0x1] 0.0
        %351 = vst [vmem:[#allocation2 + $0x1a9] sm:$0x1] 0.0
        %352 = vst [vmem:[#allocation3] sm:$0xff] 0.0
        %353 = vst [vmem:[#allocation3 + $0x8] sm:$0xff] 0.0
        %354 = vst [vmem:[#allocation3 + $0x10] sm:$0x3] 0.0
        %s355 = scalar_lea.vmem [#allocation3], 408
        %356 = vst [vmem:[%s355] sm:$0xff] 0.0
        %357 = vst [vmem:[%s355 + $0x8] sm:$0xff] 0.0
        %358 = vst [vmem:[%s355 + $0x10] sm:$0x3] 0.0
        %359 = vst [vmem:[#allocation3] sm:$0x1] 0.0
        %360 = vst [vmem:[#allocation3 + $0x18] sm:$0x1] 0.0
        %361 = vst [vmem:[#allocation3 + $0x30] sm:$0x1] 0.0
        %362 = vst [vmem:[#allocation3 + $0x48] sm:$0x1] 0.0
        %363 = vst [vmem:[#allocation3 + $0x60] sm:$0x1] 0.0
        %364 = vst [vmem:[#allocation3 + $0x78] sm:$0x1] 0.0
        %365 = vst [vmem:[#allocation3 + $0x90] sm:$0x1] 0.0
        %366 = vst [vmem:[#allocation3 + $0xa8] sm:$0x1] 0.0
        %367 = vst [vmem:[#allocation3 + $0xc0] sm:$0x1] 0.0
        %368 = vst [vmem:[#allocation3 + $0xd8] sm:$0x1] 0.0
        %369 = vst [vmem:[#allocation3 + $0xf0] sm:$0x1] 0.0
        %370 = vst [vmem:[#allocation3 + $0x108] sm:$0x1] 0.0
        %371 = vst [vmem:[#allocation3 + $0x120] sm:$0x1] 0.0
        %372 = vst [vmem:[#allocation3 + $0x138] sm:$0x1] 0.0
        %373 = vst [vmem:[#allocation3 + $0x150] sm:$0x1] 0.0
        %374 = vst [vmem:[#allocation3 + $0x168] sm:$0x1] 0.0
        %375 = vst [vmem:[#allocation3 + $0x180] sm:$0x1] 0.0
        %376 = vst [vmem:[#allocation3 + $0x198] sm:$0x1] 0.0
        %377 = vst [vmem:[#allocation3 + $0x11] sm:$0x1] 0.0
        %378 = vst [vmem:[#allocation3 + $0x29] sm:$0x1] 0.0
        %379 = vst [vmem:[#allocation3 + $0x41] sm:$0x1] 0.0
        %380 = vst [vmem:[#allocation3 + $0x59] sm:$0x1] 0.0
        %381 = vst [vmem:[#allocation3 + $0x71] sm:$0x1] 0.0
        %382 = vst [vmem:[#allocation3 + $0x89] sm:$0x1] 0.0
        %383 = vst [vmem:[#allocation3 + $0xa1] sm:$0x1] 0.0
        %384 = vst [vmem:[#allocation3 + $0xb9] sm:$0x1] 0.0
        %385 = vst [vmem:[#allocation3 + $0xd1] sm:$0x1] 0.0
        %386 = vst [vmem:[#allocation3 + $0xe9] sm:$0x1] 0.0
        %387 = vst [vmem:[#allocation3 + $0x101] sm:$0x1] 0.0
        %388 = vst [vmem:[#allocation3 + $0x119] sm:$0x1] 0.0
        %389 = vst [vmem:[#allocation3 + $0x131] sm:$0x1] 0.0
        %390 = vst [vmem:[#allocation3 + $0x149] sm:$0x1] 0.0
        %391 = vst [vmem:[#allocation3 + $0x161] sm:$0x1] 0.0
        %392 = vst [vmem:[#allocation3 + $0x179] sm:$0x1] 0.0
        %393 = vst [vmem:[#allocation3 + $0x191] sm:$0x1] 0.0
        %394 = vst [vmem:[#allocation3 + $0x1a9] sm:$0x1] 0.0
        %v395 = vld [vmem:[%s303] sm:$0xff]
        %v396 = vld [vmem:[%s303 + $0x8] sm:$0xff]
        %v397 = vld [vmem:[%s303 + $0x10] sm:$0xff]
        %v398 = vld [vmem:[%s303 + $0x18] sm:$0xff]
        %v399 = vld [vmem:[%s303 + $0x20] sm:$0xff]
        %v400 = vld [vmem:[%s303 + $0x28] sm:$0xff]
        %v401 = vld [vmem:[%s303 + $0x30] sm:$0xff]
        %v402 = vld [vmem:[%s303 + $0x38] sm:$0xff]
        %v403 = vld [vmem:[%s303 + $0x40] sm:$0xff]
        %v404 = vld [vmem:[%s303 + $0x48] sm:$0xff]
        %v405 = vld [vmem:[%s303 + $0x50] sm:$0xff]
        %v406 = vld [vmem:[%s303 + $0x58] sm:$0xff]
        %v407 = vld [vmem:[%s303 + $0x60] sm:$0xff]
        %v408 = vld [vmem:[%s303 + $0x68] sm:$0xff]
        %v409 = vld [vmem:[%s303 + $0x70] sm:$0xff]
        %v410 = vld [vmem:[%s303 + $0x78] sm:$0xff]
        %v411 = vld [vmem:[%s303 + $0x80] sm:$0xff]
        %v412 = vld [vmem:[%s303 + $0x88] sm:$0xff]
        %v413 = vld [vmem:[%s303 + $0x90] sm:$0xff]
        %v414 = vld [vmem:[%s303 + $0x98] sm:$0xff]
        %v415 = vld [vmem:[%s303 + $0xa0] sm:$0xff]
        %v416 = vld [vmem:[%s303 + $0xa8] sm:$0xff]
        %v417 = vld [vmem:[%s303 + $0xb0] sm:$0xff]
        %v418 = vld [vmem:[%s303 + $0xb8] sm:$0xff]
        %v419 = vld [vmem:[%s303 + $0xc0] sm:$0xff]
        %v420 = vld [vmem:[%s303 + $0xc8] sm:$0xff]
        %v421 = vld [vmem:[%s303 + $0xd0] sm:$0xff]
        %v422 = vld [vmem:[%s303 + $0xd8] sm:$0xff]
        %v423 = vld [vmem:[%s303 + $0xe0] sm:$0xff]
        %v424 = vld [vmem:[%s303 + $0xe8] sm:$0xff]
        %v425 = vld [vmem:[%s303 + $0xf0] sm:$0xff]
        %v426 = vld [vmem:[%s303 + $0xf8] sm:$0xff]
        %s427 = scalar_lea.vmem [#allocation2], 24
        %vm428 = vcmask 31744
        %429 = vst.msk [vmem:[%s427 + $0x1] sm:$0xff] %vm428, %v395
        %430 = vst.msk [vmem:[%s427 + $0x9] sm:$0xff] %vm428, %v396
        %431 = vst.msk [vmem:[%s427 + $0x19] sm:$0xff] %vm428, %v397
        %432 = vst.msk [vmem:[%s427 + $0x21] sm:$0xff] %vm428, %v398
        %433 = vst.msk [vmem:[%s427 + $0x31] sm:$0xff] %vm428, %v399
        %434 = vst.msk [vmem:[%s427 + $0x39] sm:$0xff] %vm428, %v400
        %435 = vst.msk [vmem:[%s427 + $0x49] sm:$0xff] %vm428, %v401
        %436 = vst.msk [vmem:[%s427 + $0x51] sm:$0xff] %vm428, %v402
        %437 = vst.msk [vmem:[%s427 + $0x61] sm:$0xff] %vm428, %v403
        %438 = vst.msk [vmem:[%s427 + $0x69] sm:$0xff] %vm428, %v404
        %439 = vst.msk [vmem:[%s427 + $0x79] sm:$0xff] %vm428, %v405
        %440 = vst.msk [vmem:[%s427 + $0x81] sm:$0xff] %vm428, %v406
        %441 = vst.msk [vmem:[%s427 + $0x91] sm:$0xff] %vm428, %v407
        %442 = vst.msk [vmem:[%s427 + $0x99] sm:$0xff] %vm428, %v408
        %443 = vst.msk [vmem:[%s427 + $0xa9] sm:$0xff] %vm428, %v409
        %444 = vst.msk [vmem:[%s427 + $0xb1] sm:$0xff] %vm428, %v410
        %445 = vst.msk [vmem:[%s427 + $0xc1] sm:$0xff] %vm428, %v411
        %446 = vst.msk [vmem:[%s427 + $0xc9] sm:$0xff] %vm428, %v412
        %447 = vst.msk [vmem:[%s427 + $0xd9] sm:$0xff] %vm428, %v413
        %448 = vst.msk [vmem:[%s427 + $0xe1] sm:$0xff] %vm428, %v414
        %449 = vst.msk [vmem:[%s427 + $0xf1] sm:$0xff] %vm428, %v415
        %450 = vst.msk [vmem:[%s427 + $0xf9] sm:$0xff] %vm428, %v416
        %451 = vst.msk [vmem:[%s427 + $0x109] sm:$0xff] %vm428, %v417
        %452 = vst.msk [vmem:[%s427 + $0x111] sm:$0xff] %vm428, %v418
        %453 = vst.msk [vmem:[%s427 + $0x121] sm:$0xff] %vm428, %v419
        %454 = vst.msk [vmem:[%s427 + $0x129] sm:$0xff] %vm428, %v420
        %455 = vst.msk [vmem:[%s427 + $0x139] sm:$0xff] %vm428, %v421
        %456 = vst.msk [vmem:[%s427 + $0x141] sm:$0xff] %vm428, %v422
        %457 = vst.msk [vmem:[%s427 + $0x151] sm:$0xff] %vm428, %v423
        %458 = vst.msk [vmem:[%s427 + $0x159] sm:$0xff] %vm428, %v424
        %459 = vst.msk [vmem:[%s427 + $0x169] sm:$0xff] %vm428, %v425
        %460 = vst.msk [vmem:[%s427 + $0x171] sm:$0xff] %vm428, %v426
        %vm461 = vcmask 1047584
        %462 = vst.msk [vmem:[%s427 + $0x1] sm:$0xff] %vm461, 0.0
        %463 = vst.msk [vmem:[%s427 + $0x9] sm:$0xff] %vm461, 0.0
        %464 = vst.msk [vmem:[%s427 + $0x19] sm:$0xff] %vm461, 0.0
        %465 = vst.msk [vmem:[%s427 + $0x21] sm:$0xff] %vm461, 0.0
        %466 = vst.msk [vmem:[%s427 + $0x31] sm:$0xff] %vm461, 0.0
        %467 = vst.msk [vmem:[%s427 + $0x39] sm:$0xff] %vm461, 0.0
        %468 = vst.msk [vmem:[%s427 + $0x49] sm:$0xff] %vm461, 0.0
        %469 = vst.msk [vmem:[%s427 + $0x51] sm:$0xff] %vm461, 0.0
        %470 = vst.msk [vmem:[%s427 + $0x61] sm:$0xff] %vm461, 0.0
        %471 = vst.msk [vmem:[%s427 + $0x69] sm:$0xff] %vm461, 0.0
        %472 = vst.msk [vmem:[%s427 + $0x79] sm:$0xff] %vm461, 0.0
        %473 = vst.msk [vmem:[%s427 + $0x81] sm:$0xff] %vm461, 0.0
        %474 = vst.msk [vmem:[%s427 + $0x91] sm:$0xff] %vm461, 0.0
        %475 = vst.msk [vmem:[%s427 + $0x99] sm:$0xff] %vm461, 0.0
        %476 = vst.msk [vmem:[%s427 + $0xa9] sm:$0xff] %vm461, 0.0
        %477 = vst.msk [vmem:[%s427 + $0xb1] sm:$0xff] %vm461, 0.0
        %478 = vst.msk [vmem:[%s427 + $0xc1] sm:$0xff] %vm461, 0.0
        %479 = vst.msk [vmem:[%s427 + $0xc9] sm:$0xff] %vm461, 0.0
        %480 = vst.msk [vmem:[%s427 + $0xd9] sm:$0xff] %vm461, 0.0
        %481 = vst.msk [vmem:[%s427 + $0xe1] sm:$0xff] %vm461, 0.0
        %482 = vst.msk [vmem:[%s427 + $0xf1] sm:$0xff] %vm461, 0.0
        %483 = vst.msk [vmem:[%s427 + $0xf9] sm:$0xff] %vm461, 0.0
        %484 = vst.msk [vmem:[%s427 + $0x109] sm:$0xff] %vm461, 0.0
        %485 = vst.msk [vmem:[%s427 + $0x111] sm:$0xff] %vm461, 0.0
        %486 = vst.msk [vmem:[%s427 + $0x121] sm:$0xff] %vm461, 0.0
        %487 = vst.msk [vmem:[%s427 + $0x129] sm:$0xff] %vm461, 0.0
        %488 = vst.msk [vmem:[%s427 + $0x139] sm:$0xff] %vm461, 0.0
        %489 = vst.msk [vmem:[%s427 + $0x141] sm:$0xff] %vm461, 0.0
        %490 = vst.msk [vmem:[%s427 + $0x151] sm:$0xff] %vm461, 0.0
        %491 = vst.msk [vmem:[%s427 + $0x159] sm:$0xff] %vm461, 0.0
        %492 = vst.msk [vmem:[%s427 + $0x169] sm:$0xff] %vm461, 0.0
        %493 = vst.msk [vmem:[%s427 + $0x171] sm:$0xff] %vm461, 0.0
        %v494 = vld [vmem:[#allocation2] sm:$0xff]
        %v495 = vld [vmem:[#allocation2 + $0x8] sm:$0xff]
        %v496 = vld [vmem:[#allocation2 + $0x18] sm:$0xff]
        %v497 = vld [vmem:[#allocation2 + $0x20] sm:$0xff]
        %v498 = vld [vmem:[#allocation2 + $0x30] sm:$0xff]
        %v499 = vld [vmem:[#allocation2 + $0x38] sm:$0xff]
        %v500 = vld [vmem:[#allocation2 + $0x48] sm:$0xff]
        %v501 = vld [vmem:[#allocation2 + $0x50] sm:$0xff]
        %v502 = vld [vmem:[#allocation2 + $0x60] sm:$0xff]
        %v503 = vld [vmem:[#allocation2 + $0x68] sm:$0xff]
        %v504 = vld [vmem:[#allocation2 + $0x78] sm:$0xff]
        %v505 = vld [vmem:[#allocation2 + $0x80] sm:$0xff]
        %v506 = vld [vmem:[#allocation2 + $0x90] sm:$0xff]
        %v507 = vld [vmem:[#allocation2 + $0x98] sm:$0xff]
        %v508 = vld [vmem:[#allocation2 + $0xa8] sm:$0xff]
        %v509 = vld [vmem:[#allocation2 + $0xb0] sm:$0xff]
        %v510 = vld [vmem:[#allocation2 + $0xc0] sm:$0xff]
        %v511 = vld [vmem:[#allocation2 + $0xc8] sm:$0xff]
        %v512 = vld [vmem:[#allocation2 + $0xd8] sm:$0xff]
        %v513 = vld [vmem:[#allocation2 + $0xe0] sm:$0xff]
        %v514 = vld [vmem:[#allocation2 + $0xf0] sm:$0xff]
        %v515 = vld [vmem:[#allocation2 + $0xf8] sm:$0xff]
        %v516 = vld [vmem:[#allocation2 + $0x108] sm:$0xff]
        %v517 = vld [vmem:[#allocation2 + $0x110] sm:$0xff]
        %v518 = vld [vmem:[#allocation2 + $0x120] sm:$0xff]
        %v519 = vld [vmem:[#allocation2 + $0x128] sm:$0xff]
        %v520 = vld [vmem:[#allocation2 + $0x138] sm:$0xff]
        %v521 = vld [vmem:[#allocation2 + $0x140] sm:$0xff]
        %v522 = vld [vmem:[#allocation2 + $0x150] sm:$0xff]
        %v523 = vld [vmem:[#allocation2 + $0x158] sm:$0xff]
        %v524 = vld [vmem:[#allocation2 + $0x168] sm:$0xff]
        %v525 = vld [vmem:[#allocation2 + $0x170] sm:$0xff]
        %526 = vst [vmem:[#allocation4] sm:$0xff] %v494
        %527 = vst [vmem:[#allocation4 + $0x48] sm:$0xff] %v495
        %528 = vst [vmem:[#allocation4 + $0x90] sm:$0xff] %v496
        %529 = vst [vmem:[#allocation4 + $0xd8] sm:$0xff] %v497
        %530 = vst [vmem:[#allocation4 + $0x120] sm:$0xff] %v498
        %531 = vst [vmem:[#allocation4 + $0x168] sm:$0xff] %v499
        %532 = vst [vmem:[#allocation4 + $0x1b0] sm:$0xff] %v500
        %533 = vst [vmem:[#allocation4 + $0x1f8] sm:$0xff] %v501
        %534 = vst [vmem:[#allocation4 + $0x240] sm:$0xff] %v502
        %535 = vst [vmem:[#allocation4 + $0x288] sm:$0xff] %v503
        %536 = vst [vmem:[#allocation4 + $0x2d0] sm:$0xff] %v504
        %537 = vst [vmem:[#allocation4 + $0x318] sm:$0xff] %v505
        %538 = vst [vmem:[#allocation4 + $0x360] sm:$0xff] %v506
        %539 = vst [vmem:[#allocation4 + $0x3a8] sm:$0xff] %v507
        %540 = vst [vmem:[#allocation4 + $0x3f0] sm:$0xff] %v508
        %541 = vst [vmem:[#allocation4 + $0x438] sm:$0xff] %v509
        %542 = vst [vmem:[#allocation4 + $0x480] sm:$0xff] %v510
        %543 = vst [vmem:[#allocation4 + $0x4c8] sm:$0xff] %v511
        %544 = vst [vmem:[#allocation4 + $0x510] sm:$0xff] %v512
        %545 = vst [vmem:[#allocation4 + $0x558] sm:$0xff] %v513
        %546 = vst [vmem:[#allocation4 + $0x5a0] sm:$0xff] %v514
        %547 = vst [vmem:[#allocation4 + $0x5e8] sm:$0xff] %v515
        %548 = vst [vmem:[#allocation4 + $0x630] sm:$0xff] %v516
        %549 = vst [vmem:[#allocation4 + $0x678] sm:$0xff] %v517
        %550 = vst [vmem:[#allocation4 + $0x6c0] sm:$0xff] %v518
        %551 = vst [vmem:[#allocation4 + $0x708] sm:$0xff] %v519
        %552 = vst [vmem:[#allocation4 + $0x750] sm:$0xff] %v520
        %553 = vst [vmem:[#allocation4 + $0x798] sm:$0xff] %v521
        %554 = vst [vmem:[#allocation4 + $0x7e0] sm:$0xff] %v522
        %555 = vst [vmem:[#allocation4 + $0x828] sm:$0xff] %v523
        %556 = vst [vmem:[#allocation4 + $0x870] sm:$0xff] %v524
        %557 = vst [vmem:[#allocation4 + $0x8b8] sm:$0xff] %v525
        %v558 = vld [vmem:[#allocation2 + $0x1] sm:$0xff]
        %v559 = vld [vmem:[#allocation2 + $0x9] sm:$0xff]
        %v560 = vld [vmem:[#allocation2 + $0x19] sm:$0xff]
        %v561 = vld [vmem:[#allocation2 + $0x21] sm:$0xff]
        %v562 = vld [vmem:[#allocation2 + $0x31] sm:$0xff]
        %v563 = vld [vmem:[#allocation2 + $0x39] sm:$0xff]
        %v564 = vld [vmem:[#allocation2 + $0x49] sm:$0xff]
        %v565 = vld [vmem:[#allocation2 + $0x51] sm:$0xff]
        %v566 = vld [vmem:[#allocation2 + $0x61] sm:$0xff]
        %v567 = vld [vmem:[#allocation2 + $0x69] sm:$0xff]
        %v568 = vld [vmem:[#allocation2 + $0x79] sm:$0xff]
        %v569 = vld [vmem:[#allocation2 + $0x81] sm:$0xff]
        %v570 = vld [vmem:[#allocation2 + $0x91] sm:$0xff]
        %v571 = vld [vmem:[#allocation2 + $0x99] sm:$0xff]
        %v572 = vld [vmem:[#allocation2 + $0xa9] sm:$0xff]
        %v573 = vld [vmem:[#allocation2 + $0xb1] sm:$0xff]
        %v574 = vld [vmem:[#allocation2 + $0xc1] sm:$0xff]
        %v575 = vld [vmem:[#allocation2 + $0xc9] sm:$0xff]
        %v576 = vld [vmem:[#allocation2 + $0xd9] sm:$0xff]
        %v577 = vld [vmem:[#allocation2 + $0xe1] sm:$0xff]
        %v578 = vld [vmem:[#allocation2 + $0xf1] sm:$0xff]
        %v579 = vld [vmem:[#allocation2 + $0xf9] sm:$0xff]
        %v580 = vld [vmem:[#allocation2 + $0x109] sm:$0xff]
        %v581 = vld [vmem:[#allocation2 + $0x111] sm:$0xff]
        %v582 = vld [vmem:[#allocation2 + $0x121] sm:$0xff]
        %v583 = vld [vmem:[#allocation2 + $0x129] sm:$0xff]
        %v584 = vld [vmem:[#allocation2 + $0x139] sm:$0xff]
        %v585 = vld [vmem:[#allocation2 + $0x141] sm:$0xff]
        %v586 = vld [vmem:[#allocation2 + $0x151] sm:$0xff]
        %v587 = vld [vmem:[#allocation2 + $0x159] sm:$0xff]
        %v588 = vld [vmem:[#allocation2 + $0x169] sm:$0xff]
        %v589 = vld [vmem:[#allocation2 + $0x171] sm:$0xff]
        %590 = vst [vmem:[#allocation4 + $0x8] sm:$0xff] %v558
        %591 = vst [vmem:[#allocation4 + $0x50] sm:$0xff] %v559
        %592 = vst [vmem:[#allocation4 + $0x98] sm:$0xff] %v560
        %593 = vst [vmem:[#allocation4 + $0xe0] sm:$0xff] %v561
        %594 = vst [vmem:[#allocation4 + $0x128] sm:$0xff] %v562
        %595 = vst [vmem:[#allocation4 + $0x170] sm:$0xff] %v563
        %596 = vst [vmem:[#allocation4 + $0x1b8] sm:$0xff] %v564
        %597 = vst [vmem:[#allocation4 + $0x200] sm:$0xff] %v565
        %598 = vst [vmem:[#allocation4 + $0x248] sm:$0xff] %v566
        %599 = vst [vmem:[#allocation4 + $0x290] sm:$0xff] %v567
        %600 = vst [vmem:[#allocation4 + $0x2d8] sm:$0xff] %v568
        %601 = vst [vmem:[#allocation4 + $0x320] sm:$0xff] %v569
        %602 = vst [vmem:[#allocation4 + $0x368] sm:$0xff] %v570
        %603 = vst [vmem:[#allocation4 + $0x3b0] sm:$0xff] %v571
        %604 = vst [vmem:[#allocation4 + $0x3f8] sm:$0xff] %v572
        %605 = vst [vmem:[#allocation4 + $0x440] sm:$0xff] %v573
        %606 = vst [vmem:[#allocation4 + $0x488] sm:$0xff] %v574
        %607 = vst [vmem:[#allocation4 + $0x4d0] sm:$0xff] %v575
        %608 = vst [vmem:[#allocation4 + $0x518] sm:$0xff] %v576
        %609 = vst [vmem:[#allocation4 + $0x560] sm:$0xff] %v577
        %610 = vst [vmem:[#allocation4 + $0x5a8] sm:$0xff] %v578
        %611 = vst [vmem:[#allocation4 + $0x5f0] sm:$0xff] %v579
        %612 = vst [vmem:[#allocation4 + $0x638] sm:$0xff] %v580
        %613 = vst [vmem:[#allocation4 + $0x680] sm:$0xff] %v581
        %614 = vst [vmem:[#allocation4 + $0x6c8] sm:$0xff] %v582
        %615 = vst [vmem:[#allocation4 + $0x710] sm:$0xff] %v583
        %616 = vst [vmem:[#allocation4 + $0x758] sm:$0xff] %v584
        %617 = vst [vmem:[#allocation4 + $0x7a0] sm:$0xff] %v585
        %618 = vst [vmem:[#allocation4 + $0x7e8] sm:$0xff] %v586
        %619 = vst [vmem:[#allocation4 + $0x830] sm:$0xff] %v587
        %620 = vst [vmem:[#allocation4 + $0x878] sm:$0xff] %v588
        %621 = vst [vmem:[#allocation4 + $0x8c0] sm:$0xff] %v589
        %v622 = vld [vmem:[#allocation2 + $0x2] sm:$0xff]
        %v623 = vld [vmem:[#allocation2 + $0xa] sm:$0xff]
        %v624 = vld [vmem:[#allocation2 + $0x1a] sm:$0xff]
        %v625 = vld [vmem:[#allocation2 + $0x22] sm:$0xff]
        %v626 = vld [vmem:[#allocation2 + $0x32] sm:$0xff]
        %v627 = vld [vmem:[#allocation2 + $0x3a] sm:$0xff]
        %v628 = vld [vmem:[#allocation2 + $0x4a] sm:$0xff]
        %v629 = vld [vmem:[#allocation2 + $0x52] sm:$0xff]
        %v630 = vld [vmem:[#allocation2 + $0x62] sm:$0xff]
        %v631 = vld [vmem:[#allocation2 + $0x6a] sm:$0xff]
        %v632 = vld [vmem:[#allocation2 + $0x7a] sm:$0xff]
        %v633 = vld [vmem:[#allocation2 + $0x82] sm:$0xff]
        %v634 = vld [vmem:[#allocation2 + $0x92] sm:$0xff]
        %v635 = vld [vmem:[#allocation2 + $0x9a] sm:$0xff]
        %v636 = vld [vmem:[#allocation2 + $0xaa] sm:$0xff]
        %v637 = vld [vmem:[#allocation2 + $0xb2] sm:$0xff]
        %v638 = vld [vmem:[#allocation2 + $0xc2] sm:$0xff]
        %v639 = vld [vmem:[#allocation2 + $0xca] sm:$0xff]
        %v640 = vld [vmem:[#allocation2 + $0xda] sm:$0xff]
        %v641 = vld [vmem:[#allocation2 + $0xe2] sm:$0xff]
        %v642 = vld [vmem:[#allocation2 + $0xf2] sm:$0xff]
        %v643 = vld [vmem:[#allocation2 + $0xfa] sm:$0xff]
        %v644 = vld [vmem:[#allocation2 + $0x10a] sm:$0xff]
        %v645 = vld [vmem:[#allocation2 + $0x112] sm:$0xff]
        %v646 = vld [vmem:[#allocation2 + $0x122] sm:$0xff]
        %v647 = vld [vmem:[#allocation2 + $0x12a] sm:$0xff]
        %v648 = vld [vmem:[#allocation2 + $0x13a] sm:$0xff]
        %v649 = vld [vmem:[#allocation2 + $0x142] sm:$0xff]
        %v650 = vld [vmem:[#allocation2 + $0x152] sm:$0xff]
        %v651 = vld [vmem:[#allocation2 + $0x15a] sm:$0xff]
        %v652 = vld [vmem:[#allocation2 + $0x16a] sm:$0xff]
        %v653 = vld [vmem:[#allocation2 + $0x172] sm:$0xff]
        %654 = vst [vmem:[#allocation4 + $0x10] sm:$0xff] %v622
        %655 = vst [vmem:[#allocation4 + $0x58] sm:$0xff] %v623
        %656 = vst [vmem:[#allocation4 + $0xa0] sm:$0xff] %v624
        %657 = vst [vmem:[#allocation4 + $0xe8] sm:$0xff] %v625
        %658 = vst [vmem:[#allocation4 + $0x130] sm:$0xff] %v626
        %659 = vst [vmem:[#allocation4 + $0x178] sm:$0xff] %v627
        %660 = vst [vmem:[#allocation4 + $0x1c0] sm:$0xff] %v628
        %661 = vst [vmem:[#allocation4 + $0x208] sm:$0xff] %v629
        %662 = vst [vmem:[#allocation4 + $0x250] sm:$0xff] %v630
        %663 = vst [vmem:[#allocation4 + $0x298] sm:$0xff] %v631
        %664 = vst [vmem:[#allocation4 + $0x2e0] sm:$0xff] %v632
        %665 = vst [vmem:[#allocation4 + $0x328] sm:$0xff] %v633
        %666 = vst [vmem:[#allocation4 + $0x370] sm:$0xff] %v634
        %667 = vst [vmem:[#allocation4 + $0x3b8] sm:$0xff] %v635
        %668 = vst [vmem:[#allocation4 + $0x400] sm:$0xff] %v636
        %669 = vst [vmem:[#allocation4 + $0x448] sm:$0xff] %v637
        %670 = vst [vmem:[#allocation4 + $0x490] sm:$0xff] %v638
        %671 = vst [vmem:[#allocation4 + $0x4d8] sm:$0xff] %v639
        %672 = vst [vmem:[#allocation4 + $0x520] sm:$0xff] %v640
        %673 = vst [vmem:[#allocation4 + $0x568] sm:$0xff] %v641
        %674 = vst [vmem:[#allocation4 + $0x5b0] sm:$0xff] %v642
        %675 = vst [vmem:[#allocation4 + $0x5f8] sm:$0xff] %v643
        %676 = vst [vmem:[#allocation4 + $0x640] sm:$0xff] %v644
        %677 = vst [vmem:[#allocation4 + $0x688] sm:$0xff] %v645
        %678 = vst [vmem:[#allocation4 + $0x6d0] sm:$0xff] %v646
        %679 = vst [vmem:[#allocation4 + $0x718] sm:$0xff] %v647
        %680 = vst [vmem:[#allocation4 + $0x760] sm:$0xff] %v648
        %681 = vst [vmem:[#allocation4 + $0x7a8] sm:$0xff] %v649
        %682 = vst [vmem:[#allocation4 + $0x7f0] sm:$0xff] %v650
        %683 = vst [vmem:[#allocation4 + $0x838] sm:$0xff] %v651
        %684 = vst [vmem:[#allocation4 + $0x880] sm:$0xff] %v652
        %685 = vst [vmem:[#allocation4 + $0x8c8] sm:$0xff] %v653
        %v686 = vld [vmem:[%s427] sm:$0xff]
        %v687 = vld [vmem:[%s427 + $0x8] sm:$0xff]
        %v688 = vld [vmem:[%s427 + $0x18] sm:$0xff]
        %v689 = vld [vmem:[%s427 + $0x20] sm:$0xff]
        %v690 = vld [vmem:[%s427 + $0x30] sm:$0xff]
        %v691 = vld [vmem:[%s427 + $0x38] sm:$0xff]
        %v692 = vld [vmem:[%s427 + $0x48] sm:$0xff]
        %v693 = vld [vmem:[%s427 + $0x50] sm:$0xff]
        %v694 = vld [vmem:[%s427 + $0x60] sm:$0xff]
        %v695 = vld [vmem:[%s427 + $0x68] sm:$0xff]
        %v696 = vld [vmem:[%s427 + $0x78] sm:$0xff]
        %v697 = vld [vmem:[%s427 + $0x80] sm:$0xff]
        %v698 = vld [vmem:[%s427 + $0x90] sm:$0xff]
        %v699 = vld [vmem:[%s427 + $0x98] sm:$0xff]
        %v700 = vld [vmem:[%s427 + $0xa8] sm:$0xff]
        %v701 = vld [vmem:[%s427 + $0xb0] sm:$0xff]
        %v702 = vld [vmem:[%s427 + $0xc0] sm:$0xff]
        %v703 = vld [vmem:[%s427 + $0xc8] sm:$0xff]
        %v704 = vld [vmem:[%s427 + $0xd8] sm:$0xff]
        %v705 = vld [vmem:[%s427 + $0xe0] sm:$0xff]
        %v706 = vld [vmem:[%s427 + $0xf0] sm:$0xff]
        %v707 = vld [vmem:[%s427 + $0xf8] sm:$0xff]
        %v708 = vld [vmem:[%s427 + $0x108] sm:$0xff]
        %v709 = vld [vmem:[%s427 + $0x110] sm:$0xff]
        %v710 = vld [vmem:[%s427 + $0x120] sm:$0xff]
        %v711 = vld [vmem:[%s427 + $0x128] sm:$0xff]
        %v712 = vld [vmem:[%s427 + $0x138] sm:$0xff]
        %v713 = vld [vmem:[%s427 + $0x140] sm:$0xff]
        %v714 = vld [vmem:[%s427 + $0x150] sm:$0xff]
        %v715 = vld [vmem:[%s427 + $0x158] sm:$0xff]
        %v716 = vld [vmem:[%s427 + $0x168] sm:$0xff]
        %v717 = vld [vmem:[%s427 + $0x170] sm:$0xff]
        %718 = vst [vmem:[#allocation4 + $0x18] sm:$0xff] %v686
        %719 = vst [vmem:[#allocation4 + $0x60] sm:$0xff] %v687
        %720 = vst [vmem:[#allocation4 + $0xa8] sm:$0xff] %v688
        %721 = vst [vmem:[#allocation4 + $0xf0] sm:$0xff] %v689
        %722 = vst [vmem:[#allocation4 + $0x138] sm:$0xff] %v690
        %723 = vst [vmem:[#allocation4 + $0x180] sm:$0xff] %v691
        %724 = vst [vmem:[#allocation4 + $0x1c8] sm:$0xff] %v692
        %725 = vst [vmem:[#allocation4 + $0x210] sm:$0xff] %v693
        %726 = vst [vmem:[#allocation4 + $0x258] sm:$0xff] %v694
        %727 = vst [vmem:[#allocation4 + $0x2a0] sm:$0xff] %v695
        %728 = vst [vmem:[#allocation4 + $0x2e8] sm:$0xff] %v696
        %729 = vst [vmem:[#allocation4 + $0x330] sm:$0xff] %v697
        %730 = vst [vmem:[#allocation4 + $0x378] sm:$0xff] %v698
        %731 = vst [vmem:[#allocation4 + $0x3c0] sm:$0xff] %v699
        %732 = vst [vmem:[#allocation4 + $0x408] sm:$0xff] %v700
        %733 = vst [vmem:[#allocation4 + $0x450] sm:$0xff] %v701
        %734 = vst [vmem:[#allocation4 + $0x498] sm:$0xff] %v702
        %735 = vst [vmem:[#allocation4 + $0x4e0] sm:$0xff] %v703
        %736 = vst [vmem:[#allocation4 + $0x528] sm:$0xff] %v704
        %737 = vst [vmem:[#allocation4 + $0x570] sm:$0xff] %v705
        %738 = vst [vmem:[#allocation4 + $0x5b8] sm:$0xff] %v706
        %739 = vst [vmem:[#allocation4 + $0x600] sm:$0xff] %v707
        %740 = vst [vmem:[#allocation4 + $0x648] sm:$0xff] %v708
        %741 = vst [vmem:[#allocation4 + $0x690] sm:$0xff] %v709
        %742 = vst [vmem:[#allocation4 + $0x6d8] sm:$0xff] %v710
        %743 = vst [vmem:[#allocation4 + $0x720] sm:$0xff] %v711
        %744 = vst [vmem:[#allocation4 + $0x768] sm:$0xff] %v712
        %745 = vst [vmem:[#allocation4 + $0x7b0] sm:$0xff] %v713
        %746 = vst [vmem:[#allocation4 + $0x7f8] sm:$0xff] %v714
        %747 = vst [vmem:[#allocation4 + $0x840] sm:$0xff] %v715
        %748 = vst [vmem:[#allocation4 + $0x888] sm:$0xff] %v716
        %749 = vst [vmem:[#allocation4 + $0x8d0] sm:$0xff] %v717
        %v750 = vld [vmem:[%s427 + $0x1] sm:$0xff]
        %v751 = vld [vmem:[%s427 + $0x9] sm:$0xff]
        %v752 = vld [vmem:[%s427 + $0x19] sm:$0xff]
        %v753 = vld [vmem:[%s427 + $0x21] sm:$0xff]
        %v754 = vld [vmem:[%s427 + $0x31] sm:$0xff]
        %v755 = vld [vmem:[%s427 + $0x39] sm:$0xff]
        %v756 = vld [vmem:[%s427 + $0x49] sm:$0xff]
        %v757 = vld [vmem:[%s427 + $0x51] sm:$0xff]
        %v758 = vld [vmem:[%s427 + $0x61] sm:$0xff]
        %v759 = vld [vmem:[%s427 + $0x69] sm:$0xff]
        %v760 = vld [vmem:[%s427 + $0x79] sm:$0xff]
        %v761 = vld [vmem:[%s427 + $0x81] sm:$0xff]
        %v762 = vld [vmem:[%s427 + $0x91] sm:$0xff]
        %v763 = vld [vmem:[%s427 + $0x99] sm:$0xff]
        %v764 = vld [vmem:[%s427 + $0xa9] sm:$0xff]
        %v765 = vld [vmem:[%s427 + $0xb1] sm:$0xff]
        %v766 = vld [vmem:[%s427 + $0xc1] sm:$0xff]
        %v767 = vld [vmem:[%s427 + $0xc9] sm:$0xff]
        %v768 = vld [vmem:[%s427 + $0xd9] sm:$0xff]
        %v769 = vld [vmem:[%s427 + $0xe1] sm:$0xff]
        %v770 = vld [vmem:[%s427 + $0xf1] sm:$0xff]
        %v771 = vld [vmem:[%s427 + $0xf9] sm:$0xff]
        %v772 = vld [vmem:[%s427 + $0x109] sm:$0xff]
        %v773 = vld [vmem:[%s427 + $0x111] sm:$0xff]
        %v774 = vld [vmem:[%s427 + $0x121] sm:$0xff]
        %v775 = vld [vmem:[%s427 + $0x129] sm:$0xff]
        %v776 = vld [vmem:[%s427 + $0x139] sm:$0xff]
        %v777 = vld [vmem:[%s427 + $0x141] sm:$0xff]
        %v778 = vld [vmem:[%s427 + $0x151] sm:$0xff]
        %v779 = vld [vmem:[%s427 + $0x159] sm:$0xff]
        %v780 = vld [vmem:[%s427 + $0x169] sm:$0xff]
        %v781 = vld [vmem:[%s427 + $0x171] sm:$0xff]
        %782 = vst [vmem:[#allocation4 + $0x20] sm:$0xff] %v750
        %783 = vst [vmem:[#allocation4 + $0x68] sm:$0xff] %v751
        %784 = vst [vmem:[#allocation4 + $0xb0] sm:$0xff] %v752
        %785 = vst [vmem:[#allocation4 + $0xf8] sm:$0xff] %v753
        %786 = vst [vmem:[#allocation4 + $0x140] sm:$0xff] %v754
        %787 = vst [vmem:[#allocation4 + $0x188] sm:$0xff] %v755
        %788 = vst [vmem:[#allocation4 + $0x1d0] sm:$0xff] %v756
        %789 = vst [vmem:[#allocation4 + $0x218] sm:$0xff] %v757
        %790 = vst [vmem:[#allocation4 + $0x260] sm:$0xff] %v758
        %791 = vst [vmem:[#allocation4 + $0x2a8] sm:$0xff] %v759
        %792 = vst [vmem:[#allocation4 + $0x2f0] sm:$0xff] %v760
        %793 = vst [vmem:[#allocation4 + $0x338] sm:$0xff] %v761
        %794 = vst [vmem:[#allocation4 + $0x380] sm:$0xff] %v762
        %795 = vst [vmem:[#allocation4 + $0x3c8] sm:$0xff] %v763
        %796 = vst [vmem:[#allocation4 + $0x410] sm:$0xff] %v764
        %797 = vst [vmem:[#allocation4 + $0x458] sm:$0xff] %v765
        %798 = vst [vmem:[#allocation4 + $0x4a0] sm:$0xff] %v766
        %799 = vst [vmem:[#allocation4 + $0x4e8] sm:$0xff] %v767
        %800 = vst [vmem:[#allocation4 + $0x530] sm:$0xff] %v768
        %801 = vst [vmem:[#allocation4 + $0x578] sm:$0xff] %v769
        %802 = vst [vmem:[#allocation4 + $0x5c0] sm:$0xff] %v770
        %803 = vst [vmem:[#allocation4 + $0x608] sm:$0xff] %v771
        %804 = vst [vmem:[#allocation4 + $0x650] sm:$0xff] %v772
        %805 = vst [vmem:[#allocation4 + $0x698] sm:$0xff] %v773
        %806 = vst [vmem:[#allocation4 + $0x6e0] sm:$0xff] %v774
        %807 = vst [vmem:[#allocation4 + $0x728] sm:$0xff] %v775
        %808 = vst [vmem:[#allocation4 + $0x770] sm:$0xff] %v776
        %809 = vst [vmem:[#allocation4 + $0x7b8] sm:$0xff] %v777
        %810 = vst [vmem:[#allocation4 + $0x800] sm:$0xff] %v778
        %811 = vst [vmem:[#allocation4 + $0x848] sm:$0xff] %v779
        %812 = vst [vmem:[#allocation4 + $0x890] sm:$0xff] %v780
        %813 = vst [vmem:[#allocation4 + $0x8d8] sm:$0xff] %v781
        %v814 = vld [vmem:[%s427 + $0x2] sm:$0xff]
        %v815 = vld [vmem:[%s427 + $0xa] sm:$0xff]
        %v816 = vld [vmem:[%s427 + $0x1a] sm:$0xff]
        %v817 = vld [vmem:[%s427 + $0x22] sm:$0xff]
        %v818 = vld [vmem:[%s427 + $0x32] sm:$0xff]
        %v819 = vld [vmem:[%s427 + $0x3a] sm:$0xff]
        %v820 = vld [vmem:[%s427 + $0x4a] sm:$0xff]
        %v821 = vld [vmem:[%s427 + $0x52] sm:$0xff]
        %v822 = vld [vmem:[%s427 + $0x62] sm:$0xff]
        %v823 = vld [vmem:[%s427 + $0x6a] sm:$0xff]
        %v824 = vld [vmem:[%s427 + $0x7a] sm:$0xff]
        %v825 = vld [vmem:[%s427 + $0x82] sm:$0xff]
        %v826 = vld [vmem:[%s427 + $0x92] sm:$0xff]
        %v827 = vld [vmem:[%s427 + $0x9a] sm:$0xff]
        %v828 = vld [vmem:[%s427 + $0xaa] sm:$0xff]
        %v829 = vld [vmem:[%s427 + $0xb2] sm:$0xff]
        %v830 = vld [vmem:[%s427 + $0xc2] sm:$0xff]
        %v831 = vld [vmem:[%s427 + $0xca] sm:$0xff]
        %v832 = vld [vmem:[%s427 + $0xda] sm:$0xff]
        %v833 = vld [vmem:[%s427 + $0xe2] sm:$0xff]
        %v834 = vld [vmem:[%s427 + $0xf2] sm:$0xff]
        %v835 = vld [vmem:[%s427 + $0xfa] sm:$0xff]
        %v836 = vld [vmem:[%s427 + $0x10a] sm:$0xff]
        %v837 = vld [vmem:[%s427 + $0x112] sm:$0xff]
        %v838 = vld [vmem:[%s427 + $0x122] sm:$0xff]
        %v839 = vld [vmem:[%s427 + $0x12a] sm:$0xff]
        %v840 = vld [vmem:[%s427 + $0x13a] sm:$0xff]
        %v841 = vld [vmem:[%s427 + $0x142] sm:$0xff]
        %v842 = vld [vmem:[%s427 + $0x152] sm:$0xff]
        %v843 = vld [vmem:[%s427 + $0x15a] sm:$0xff]
        %v844 = vld [vmem:[%s427 + $0x16a] sm:$0xff]
        %v845 = vld [vmem:[%s427 + $0x172] sm:$0xff]
        %846 = vst [vmem:[#allocation4 + $0x28] sm:$0xff] %v814
        %847 = vst [vmem:[#allocation4 + $0x70] sm:$0xff] %v815
        %848 = vst [vmem:[#allocation4 + $0xb8] sm:$0xff] %v816
        %849 = vst [vmem:[#allocation4 + $0x100] sm:$0xff] %v817
        %850 = vst [vmem:[#allocation4 + $0x148] sm:$0xff] %v818
        %851 = vst [vmem:[#allocation4 + $0x190] sm:$0xff] %v819
        %852 = vst [vmem:[#allocation4 + $0x1d8] sm:$0xff] %v820
        %853 = vst [vmem:[#allocation4 + $0x220] sm:$0xff] %v821
        %854 = vst [vmem:[#allocation4 + $0x268] sm:$0xff] %v822
        %855 = vst [vmem:[#allocation4 + $0x2b0] sm:$0xff] %v823
        %856 = vst [vmem:[#allocation4 + $0x2f8] sm:$0xff] %v824
        %857 = vst [vmem:[#allocation4 + $0x340] sm:$0xff] %v825
        %858 = vst [vmem:[#allocation4 + $0x388] sm:$0xff] %v826
        %859 = vst [vmem:[#allocation4 + $0x3d0] sm:$0xff] %v827
        %860 = vst [vmem:[#allocation4 + $0x418] sm:$0xff] %v828
        %861 = vst [vmem:[#allocation4 + $0x460] sm:$0xff] %v829
        %862 = vst [vmem:[#allocation4 + $0x4a8] sm:$0xff] %v830
        %863 = vst [vmem:[#allocation4 + $0x4f0] sm:$0xff] %v831
        %864 = vst [vmem:[#allocation4 + $0x538] sm:$0xff] %v832
        %865 = vst [vmem:[#allocation4 + $0x580] sm:$0xff] %v833
        %866 = vst [vmem:[#allocation4 + $0x5c8] sm:$0xff] %v834
        %867 = vst [vmem:[#allocation4 + $0x610] sm:$0xff] %v835
        %868 = vst [vmem:[#allocation4 + $0x658] sm:$0xff] %v836
        %869 = vst [vmem:[#allocation4 + $0x6a0] sm:$0xff] %v837
        %870 = vst [vmem:[#allocation4 + $0x6e8] sm:$0xff] %v838
        %871 = vst [vmem:[#allocation4 + $0x730] sm:$0xff] %v839
        %872 = vst [vmem:[#allocation4 + $0x778] sm:$0xff] %v840
        %873 = vst [vmem:[#allocation4 + $0x7c0] sm:$0xff] %v841
        %874 = vst [vmem:[#allocation4 + $0x808] sm:$0xff] %v842
        %875 = vst [vmem:[#allocation4 + $0x850] sm:$0xff] %v843
        %876 = vst [vmem:[#allocation4 + $0x898] sm:$0xff] %v844
        %877 = vst [vmem:[#allocation4 + $0x8e0] sm:$0xff] %v845
        %s878 = scalar_lea.vmem [#allocation2], 48
        %v879 = vld [vmem:[%s878] sm:$0xff]
        %v880 = vld [vmem:[%s878 + $0x8] sm:$0xff]
        %v881 = vld [vmem:[%s878 + $0x18] sm:$0xff]
        %v882 = vld [vmem:[%s878 + $0x20] sm:$0xff]
        %v883 = vld [vmem:[%s878 + $0x30] sm:$0xff]
        %v884 = vld [vmem:[%s878 + $0x38] sm:$0xff]
        %v885 = vld [vmem:[%s878 + $0x48] sm:$0xff]
        %v886 = vld [vmem:[%s878 + $0x50] sm:$0xff]
        %v887 = vld [vmem:[%s878 + $0x60] sm:$0xff]
        %v888 = vld [vmem:[%s878 + $0x68] sm:$0xff]
        %v889 = vld [vmem:[%s878 + $0x78] sm:$0xff]
        %v890 = vld [vmem:[%s878 + $0x80] sm:$0xff]
        %v891 = vld [vmem:[%s878 + $0x90] sm:$0xff]
        %v892 = vld [vmem:[%s878 + $0x98] sm:$0xff]
        %v893 = vld [vmem:[%s878 + $0xa8] sm:$0xff]
        %v894 = vld [vmem:[%s878 + $0xb0] sm:$0xff]
        %v895 = vld [vmem:[%s878 + $0xc0] sm:$0xff]
        %v896 = vld [vmem:[%s878 + $0xc8] sm:$0xff]
        %v897 = vld [vmem:[%s878 + $0xd8] sm:$0xff]
        %v898 = vld [vmem:[%s878 + $0xe0] sm:$0xff]
        %v899 = vld [vmem:[%s878 + $0xf0] sm:$0xff]
        %v900 = vld [vmem:[%s878 + $0xf8] sm:$0xff]
        %v901 = vld [vmem:[%s878 + $0x108] sm:$0xff]
        %v902 = vld [vmem:[%s878 + $0x110] sm:$0xff]
        %v903 = vld [vmem:[%s878 + $0x120] sm:$0xff]
        %v904 = vld [vmem:[%s878 + $0x128] sm:$0xff]
        %v905 = vld [vmem:[%s878 + $0x138] sm:$0xff]
        %v906 = vld [vmem:[%s878 + $0x140] sm:$0xff]
        %v907 = vld [vmem:[%s878 + $0x150] sm:$0xff]
        %v908 = vld [vmem:[%s878 + $0x158] sm:$0xff]
        %v909 = vld [vmem:[%s878 + $0x168] sm:$0xff]
        %v910 = vld [vmem:[%s878 + $0x170] sm:$0xff]
        %911 = vst [vmem:[#allocation4 + $0x30] sm:$0xff] %v879
        %912 = vst [vmem:[#allocation4 + $0x78] sm:$0xff] %v880
        %913 = vst [vmem:[#allocation4 + $0xc0] sm:$0xff] %v881
        %914 = vst [vmem:[#allocation4 + $0x108] sm:$0xff] %v882
        %915 = vst [vmem:[#allocation4 + $0x150] sm:$0xff] %v883
        %916 = vst [vmem:[#allocation4 + $0x198] sm:$0xff] %v884
        %917 = vst [vmem:[#allocation4 + $0x1e0] sm:$0xff] %v885
        %918 = vst [vmem:[#allocation4 + $0x228] sm:$0xff] %v886
        %919 = vst [vmem:[#allocation4 + $0x270] sm:$0xff] %v887
        %920 = vst [vmem:[#allocation4 + $0x2b8] sm:$0xff] %v888
        %921 = vst [vmem:[#allocation4 + $0x300] sm:$0xff] %v889
        %922 = vst [vmem:[#allocation4 + $0x348] sm:$0xff] %v890
        %923 = vst [vmem:[#allocation4 + $0x390] sm:$0xff] %v891
        %924 = vst [vmem:[#allocation4 + $0x3d8] sm:$0xff] %v892
        %925 = vst [vmem:[#allocation4 + $0x420] sm:$0xff] %v893
        %926 = vst [vmem:[#allocation4 + $0x468] sm:$0xff] %v894
        %927 = vst [vmem:[#allocation4 + $0x4b0] sm:$0xff] %v895
        %928 = vst [vmem:[#allocation4 + $0x4f8] sm:$0xff] %v896
        %929 = vst [vmem:[#allocation4 + $0x540] sm:$0xff] %v897
        %930 = vst [vmem:[#allocation4 + $0x588] sm:$0xff] %v898
        %931 = vst [vmem:[#allocation4 + $0x5d0] sm:$0xff] %v899
        %932 = vst [vmem:[#allocation4 + $0x618] sm:$0xff] %v900
        %933 = vst [vmem:[#allocation4 + $0x660] sm:$0xff] %v901
        %934 = vst [vmem:[#allocation4 + $0x6a8] sm:$0xff] %v902
        %935 = vst [vmem:[#allocation4 + $0x6f0] sm:$0xff] %v903
        %936 = vst [vmem:[#allocation4 + $0x738] sm:$0xff] %v904
        %937 = vst [vmem:[#allocation4 + $0x780] sm:$0xff] %v905
        %938 = vst [vmem:[#allocation4 + $0x7c8] sm:$0xff] %v906
        %939 = vst [vmem:[#allocation4 + $0x810] sm:$0xff] %v907
        %940 = vst [vmem:[#allocation4 + $0x858] sm:$0xff] %v908
        %941 = vst [vmem:[#allocation4 + $0x8a0] sm:$0xff] %v909
        %942 = vst [vmem:[#allocation4 + $0x8e8] sm:$0xff] %v910
        %v943 = vld [vmem:[%s878 + $0x1] sm:$0xff]
        %v944 = vld [vmem:[%s878 + $0x9] sm:$0xff]
        %v945 = vld [vmem:[%s878 + $0x19] sm:$0xff]
        %v946 = vld [vmem:[%s878 + $0x21] sm:$0xff]
        %v947 = vld [vmem:[%s878 + $0x31] sm:$0xff]
        %v948 = vld [vmem:[%s878 + $0x39] sm:$0xff]
        %v949 = vld [vmem:[%s878 + $0x49] sm:$0xff]
        %v950 = vld [vmem:[%s878 + $0x51] sm:$0xff]
        %v951 = vld [vmem:[%s878 + $0x61] sm:$0xff]
        %v952 = vld [vmem:[%s878 + $0x69] sm:$0xff]
        %v953 = vld [vmem:[%s878 + $0x79] sm:$0xff]
        %v954 = vld [vmem:[%s878 + $0x81] sm:$0xff]
        %v955 = vld [vmem:[%s878 + $0x91] sm:$0xff]
        %v956 = vld [vmem:[%s878 + $0x99] sm:$0xff]
        %v957 = vld [vmem:[%s878 + $0xa9] sm:$0xff]
        %v958 = vld [vmem:[%s878 + $0xb1] sm:$0xff]
        %v959 = vld [vmem:[%s878 + $0xc1] sm:$0xff]
        %v960 = vld [vmem:[%s878 + $0xc9] sm:$0xff]
        %v961 = vld [vmem:[%s878 + $0xd9] sm:$0xff]
        %v962 = vld [vmem:[%s878 + $0xe1] sm:$0xff]
        %v963 = vld [vmem:[%s878 + $0xf1] sm:$0xff]
        %v964 = vld [vmem:[%s878 + $0xf9] sm:$0xff]
        %v965 = vld [vmem:[%s878 + $0x109] sm:$0xff]
        %v966 = vld [vmem:[%s878 + $0x111] sm:$0xff]
        %v967 = vld [vmem:[%s878 + $0x121] sm:$0xff]
        %v968 = vld [vmem:[%s878 + $0x129] sm:$0xff]
        %v969 = vld [vmem:[%s878 + $0x139] sm:$0xff]
        %v970 = vld [vmem:[%s878 + $0x141] sm:$0xff]
        %v971 = vld [vmem:[%s878 + $0x151] sm:$0xff]
        %v972 = vld [vmem:[%s878 + $0x159] sm:$0xff]
        %v973 = vld [vmem:[%s878 + $0x169] sm:$0xff]
        %v974 = vld [vmem:[%s878 + $0x171] sm:$0xff]
        %975 = vst [vmem:[#allocation4 + $0x38] sm:$0xff] %v943
        %976 = vst [vmem:[#allocation4 + $0x80] sm:$0xff] %v944
        %977 = vst [vmem:[#allocation4 + $0xc8] sm:$0xff] %v945
        %978 = vst [vmem:[#allocation4 + $0x110] sm:$0xff] %v946
        %979 = vst [vmem:[#allocation4 + $0x158] sm:$0xff] %v947
        %980 = vst [vmem:[#allocation4 + $0x1a0] sm:$0xff] %v948
        %981 = vst [vmem:[#allocation4 + $0x1e8] sm:$0xff] %v949
        %982 = vst [vmem:[#allocation4 + $0x230] sm:$0xff] %v950
        %983 = vst [vmem:[#allocation4 + $0x278] sm:$0xff] %v951
        %984 = vst [vmem:[#allocation4 + $0x2c0] sm:$0xff] %v952
        %985 = vst [vmem:[#allocation4 + $0x308] sm:$0xff] %v953
        %986 = vst [vmem:[#allocation4 + $0x350] sm:$0xff] %v954
        %987 = vst [vmem:[#allocation4 + $0x398] sm:$0xff] %v955
        %988 = vst [vmem:[#allocation4 + $0x3e0] sm:$0xff] %v956
        %989 = vst [vmem:[#allocation4 + $0x428] sm:$0xff] %v957
        %990 = vst [vmem:[#allocation4 + $0x470] sm:$0xff] %v958
        %991 = vst [vmem:[#allocation4 + $0x4b8] sm:$0xff] %v959
        %992 = vst [vmem:[#allocation4 + $0x500] sm:$0xff] %v960
        %993 = vst [vmem:[#allocation4 + $0x548] sm:$0xff] %v961
        %994 = vst [vmem:[#allocation4 + $0x590] sm:$0xff] %v962
        %995 = vst [vmem:[#allocation4 + $0x5d8] sm:$0xff] %v963
        %996 = vst [vmem:[#allocation4 + $0x620] sm:$0xff] %v964
        %997 = vst [vmem:[#allocation4 + $0x668] sm:$0xff] %v965
        %998 = vst [vmem:[#allocation4 + $0x6b0] sm:$0xff] %v966
        %999 = vst [vmem:[#allocation4 + $0x6f8] sm:$0xff] %v967
        %1000 = vst [vmem:[#allocation4 + $0x740] sm:$0xff] %v968
        %1001 = vst [vmem:[#allocation4 + $0x788] sm:$0xff] %v969
        %1002 = vst [vmem:[#allocation4 + $0x7d0] sm:$0xff] %v970
        %1003 = vst [vmem:[#allocation4 + $0x818] sm:$0xff] %v971
        %1004 = vst [vmem:[#allocation4 + $0x860] sm:$0xff] %v972
        %1005 = vst [vmem:[#allocation4 + $0x8a8] sm:$0xff] %v973
        %1006 = vst [vmem:[#allocation4 + $0x8f0] sm:$0xff] %v974
        %v1007 = vld [vmem:[%s878 + $0x2] sm:$0xff]
        %v1008 = vld [vmem:[%s878 + $0xa] sm:$0xff]
        %v1009 = vld [vmem:[%s878 + $0x1a] sm:$0xff]
        %v1010 = vld [vmem:[%s878 + $0x22] sm:$0xff]
        %v1011 = vld [vmem:[%s878 + $0x32] sm:$0xff]
        %v1012 = vld [vmem:[%s878 + $0x3a] sm:$0xff]
        %v1013 = vld [vmem:[%s878 + $0x4a] sm:$0xff]
        %v1014 = vld [vmem:[%s878 + $0x52] sm:$0xff]
        %v1015 = vld [vmem:[%s878 + $0x62] sm:$0xff]
        %v1016 = vld [vmem:[%s878 + $0x6a] sm:$0xff]
        %v1017 = vld [vmem:[%s878 + $0x7a] sm:$0xff]
        %v1018 = vld [vmem:[%s878 + $0x82] sm:$0xff]
        %v1019 = vld [vmem:[%s878 + $0x92] sm:$0xff]
        %v1020 = vld [vmem:[%s878 + $0x9a] sm:$0xff]
        %v1021 = vld [vmem:[%s878 + $0xaa] sm:$0xff]
        %v1022 = vld [vmem:[%s878 + $0xb2] sm:$0xff]
        %v1023 = vld [vmem:[%s878 + $0xc2] sm:$0xff]
        %v1024 = vld [vmem:[%s878 + $0xca] sm:$0xff]
        %v1025 = vld [vmem:[%s878 + $0xda] sm:$0xff]
        %v1026 = vld [vmem:[%s878 + $0xe2] sm:$0xff]
        %v1027 = vld [vmem:[%s878 + $0xf2] sm:$0xff]
        %v1028 = vld [vmem:[%s878 + $0xfa] sm:$0xff]
        %v1029 = vld [vmem:[%s878 + $0x10a] sm:$0xff]
        %v1030 = vld [vmem:[%s878 + $0x112] sm:$0xff]
        %v1031 = vld [vmem:[%s878 + $0x122] sm:$0xff]
        %v1032 = vld [vmem:[%s878 + $0x12a] sm:$0xff]
        %v1033 = vld [vmem:[%s878 + $0x13a] sm:$0xff]
        %v1034 = vld [vmem:[%s878 + $0x142] sm:$0xff]
        %v1035 = vld [vmem:[%s878 + $0x152] sm:$0xff]
        %v1036 = vld [vmem:[%s878 + $0x15a] sm:$0xff]
        %v1037 = vld [vmem:[%s878 + $0x16a] sm:$0xff]
        %v1038 = vld [vmem:[%s878 + $0x172] sm:$0xff]
        %1039 = vst [vmem:[#allocation4 + $0x40] sm:$0xff] %v1007
        %1040 = vst [vmem:[#allocation4 + $0x88] sm:$0xff] %v1008
        %1041 = vst [vmem:[#allocation4 + $0xd0] sm:$0xff] %v1009
        %1042 = vst [vmem:[#allocation4 + $0x118] sm:$0xff] %v1010
        %1043 = vst [vmem:[#allocation4 + $0x160] sm:$0xff] %v1011
        %1044 = vst [vmem:[#allocation4 + $0x1a8] sm:$0xff] %v1012
        %1045 = vst [vmem:[#allocation4 + $0x1f0] sm:$0xff] %v1013
        %1046 = vst [vmem:[#allocation4 + $0x238] sm:$0xff] %v1014
        %1047 = vst [vmem:[#allocation4 + $0x280] sm:$0xff] %v1015
        %1048 = vst [vmem:[#allocation4 + $0x2c8] sm:$0xff] %v1016
        %1049 = vst [vmem:[#allocation4 + $0x310] sm:$0xff] %v1017
        %1050 = vst [vmem:[#allocation4 + $0x358] sm:$0xff] %v1018
        %1051 = vst [vmem:[#allocation4 + $0x3a0] sm:$0xff] %v1019
        %1052 = vst [vmem:[#allocation4 + $0x3e8] sm:$0xff] %v1020
        %1053 = vst [vmem:[#allocation4 + $0x430] sm:$0xff] %v1021
        %1054 = vst [vmem:[#allocation4 + $0x478] sm:$0xff] %v1022
        %1055 = vst [vmem:[#allocation4 + $0x4c0] sm:$0xff] %v1023
        %1056 = vst [vmem:[#allocation4 + $0x508] sm:$0xff] %v1024
        %1057 = vst [vmem:[#allocation4 + $0x550] sm:$0xff] %v1025
        %1058 = vst [vmem:[#allocation4 + $0x598] sm:$0xff] %v1026
        %1059 = vst [vmem:[#allocation4 + $0x5e0] sm:$0xff] %v1027
        %1060 = vst [vmem:[#allocation4 + $0x628] sm:$0xff] %v1028
        %1061 = vst [vmem:[#allocation4 + $0x670] sm:$0xff] %v1029
        %1062 = vst [vmem:[#allocation4 + $0x6b8] sm:$0xff] %v1030
        %1063 = vst [vmem:[#allocation4 + $0x700] sm:$0xff] %v1031
        %1064 = vst [vmem:[#allocation4 + $0x748] sm:$0xff] %v1032
        %1065 = vst [vmem:[#allocation4 + $0x790] sm:$0xff] %v1033
        %1066 = vst [vmem:[#allocation4 + $0x7d8] sm:$0xff] %v1034
        %1067 = vst [vmem:[#allocation4 + $0x820] sm:$0xff] %v1035
        %1068 = vst [vmem:[#allocation4 + $0x868] sm:$0xff] %v1036
        %1069 = vst [vmem:[#allocation4 + $0x8b0] sm:$0xff] %v1037
        %1070 = vst [vmem:[#allocation4 + $0x8f8] sm:$0xff] %v1038
        %v1071 = vld [vmem:[#allocation4] sm:$0xff]
        %v1072 = vld [vmem:[#allocation4 + $0x8] sm:$0xff]
        %v1073 = vld [vmem:[#allocation4 + $0x10] sm:$0xff]
        %v1074 = vld [vmem:[#allocation4 + $0x18] sm:$0xff]
        %v1075 = vld [vmem:[#allocation4 + $0x20] sm:$0xff]
        %v1076 = vld [vmem:[#allocation4 + $0x28] sm:$0xff]
        %v1077 = vld [vmem:[#allocation4 + $0x30] sm:$0xff]
        %v1078 = vld [vmem:[#allocation4 + $0x38] sm:$0xff]
        %v1079 = vld [vmem:[#allocation4 + $0x40] sm:$0xff]
        %v1080 = vld [vmem:[#allocation4 + $0x48] sm:$0xff]
        %v1081 = vld [vmem:[#allocation4 + $0x50] sm:$0xff]
        %v1082 = vld [vmem:[#allocation4 + $0x58] sm:$0xff]
        %v1083 = vld [vmem:[#allocation4 + $0x60] sm:$0xff]
        %v1084 = vld [vmem:[#allocation4 + $0x68] sm:$0xff]
        %v1085 = vld [vmem:[#allocation4 + $0x70] sm:$0xff]
        %v1086 = vld [vmem:[#allocation4 + $0x78] sm:$0xff]
        %v1087 = vld [vmem:[#allocation4 + $0x80] sm:$0xff]
        %v1088 = vld [vmem:[#allocation4 + $0x88] sm:$0xff]
        %v1089 = vld [vmem:[#allocation4 + $0x90] sm:$0xff]
        %v1090 = vld [vmem:[#allocation4 + $0x98] sm:$0xff]
        %v1091 = vld [vmem:[#allocation4 + $0xa0] sm:$0xff]
        %v1092 = vld [vmem:[#allocation4 + $0xa8] sm:$0xff]
        %v1093 = vld [vmem:[#allocation4 + $0xb0] sm:$0xff]
        %v1094 = vld [vmem:[#allocation4 + $0xb8] sm:$0xff]
        %v1095 = vld [vmem:[#allocation4 + $0xc0] sm:$0xff]
        %v1096 = vld [vmem:[#allocation4 + $0xc8] sm:$0xff]
        %v1097 = vld [vmem:[#allocation4 + $0xd0] sm:$0xff]
        %v1098 = vld [vmem:[#allocation4 + $0xd8] sm:$0xff]
        %v1099 = vld [vmem:[#allocation4 + $0xe0] sm:$0xff]
        %v1100 = vld [vmem:[#allocation4 + $0xe8] sm:$0xff]
        %v1101 = vld [vmem:[#allocation4 + $0xf0] sm:$0xff]
        %v1102 = vld [vmem:[#allocation4 + $0xf8] sm:$0xff]
        %v1103 = vld [vmem:[#allocation4 + $0x100] sm:$0xff]
        %v1104 = vld [vmem:[#allocation4 + $0x108] sm:$0xff]
        %v1105 = vld [vmem:[#allocation4 + $0x110] sm:$0xff]
        %v1106 = vld [vmem:[#allocation4 + $0x118] sm:$0xff]
        %v1107 = vld [vmem:[#allocation4 + $0x120] sm:$0xff]
        %v1108 = vld [vmem:[#allocation4 + $0x128] sm:$0xff]
        %v1109 = vld [vmem:[#allocation4 + $0x130] sm:$0xff]
        %v1110 = vld [vmem:[#allocation4 + $0x138] sm:$0xff]
        %v1111 = vld [vmem:[#allocation4 + $0x140] sm:$0xff]
        %v1112 = vld [vmem:[#allocation4 + $0x148] sm:$0xff]
        %v1113 = vld [vmem:[#allocation4 + $0x150] sm:$0xff]
        %v1114 = vld [vmem:[#allocation4 + $0x158] sm:$0xff]
        %v1115 = vld [vmem:[#allocation4 + $0x160] sm:$0xff]
        %v1116 = vld [vmem:[#allocation4 + $0x168] sm:$0xff]
        %v1117 = vld [vmem:[#allocation4 + $0x170] sm:$0xff]
        %v1118 = vld [vmem:[#allocation4 + $0x178] sm:$0xff]
        %v1119 = vld [vmem:[#allocation4 + $0x180] sm:$0xff]
        %v1120 = vld [vmem:[#allocation4 + $0x188] sm:$0xff]
        %v1121 = vld [vmem:[#allocation4 + $0x190] sm:$0xff]
        %v1122 = vld [vmem:[#allocation4 + $0x198] sm:$0xff]
        %v1123 = vld [vmem:[#allocation4 + $0x1a0] sm:$0xff]
        %v1124 = vld [vmem:[#allocation4 + $0x1a8] sm:$0xff]
        %v1125 = vld [vmem:[#allocation4 + $0x1b0] sm:$0xff]
        %v1126 = vld [vmem:[#allocation4 + $0x1b8] sm:$0xff]
        %v1127 = vld [vmem:[#allocation4 + $0x1c0] sm:$0xff]
        %v1128 = vld [vmem:[#allocation4 + $0x1c8] sm:$0xff]
        %v1129 = vld [vmem:[#allocation4 + $0x1d0] sm:$0xff]
        %v1130 = vld [vmem:[#allocation4 + $0x1d8] sm:$0xff]
        %v1131 = vld [vmem:[#allocation4 + $0x1e0] sm:$0xff]
        %v1132 = vld [vmem:[#allocation4 + $0x1e8] sm:$0xff]
        %v1133 = vld [vmem:[#allocation4 + $0x1f0] sm:$0xff]
        %v1134 = vld [vmem:[#allocation4 + $0x1f8] sm:$0xff]
        %v1135 = vld [vmem:[#allocation4 + $0x200] sm:$0xff]
        %v1136 = vld [vmem:[#allocation4 + $0x208] sm:$0xff]
        %v1137 = vld [vmem:[#allocation4 + $0x210] sm:$0xff]
        %v1138 = vld [vmem:[#allocation4 + $0x218] sm:$0xff]
        %v1139 = vld [vmem:[#allocation4 + $0x220] sm:$0xff]
        %v1140 = vld [vmem:[#allocation4 + $0x228] sm:$0xff]
        %v1141 = vld [vmem:[#allocation4 + $0x230] sm:$0xff]
        %v1142 = vld [vmem:[#allocation4 + $0x238] sm:$0xff]
        %v1143 = vld [vmem:[#allocation4 + $0x240] sm:$0xff]
        %v1144 = vld [vmem:[#allocation4 + $0x248] sm:$0xff]
        %v1145 = vld [vmem:[#allocation4 + $0x250] sm:$0xff]
        %v1146 = vld [vmem:[#allocation4 + $0x258] sm:$0xff]
        %v1147 = vld [vmem:[#allocation4 + $0x260] sm:$0xff]
        %v1148 = vld [vmem:[#allocation4 + $0x268] sm:$0xff]
        %v1149 = vld [vmem:[#allocation4 + $0x270] sm:$0xff]
        %v1150 = vld [vmem:[#allocation4 + $0x278] sm:$0xff]
        %v1151 = vld [vmem:[#allocation4 + $0x280] sm:$0xff]
        %v1152 = vld [vmem:[#allocation4 + $0x288] sm:$0xff]
        %v1153 = vld [vmem:[#allocation4 + $0x290] sm:$0xff]
        %v1154 = vld [vmem:[#allocation4 + $0x298] sm:$0xff]
        %v1155 = vld [vmem:[#allocation4 + $0x2a0] sm:$0xff]
        %v1156 = vld [vmem:[#allocation4 + $0x2a8] sm:$0xff]
        %v1157 = vld [vmem:[#allocation4 + $0x2b0] sm:$0xff]
        %v1158 = vld [vmem:[#allocation4 + $0x2b8] sm:$0xff]
        %v1159 = vld [vmem:[#allocation4 + $0x2c0] sm:$0xff]
        %v1160 = vld [vmem:[#allocation4 + $0x2c8] sm:$0xff]
        %v1161 = vld [vmem:[#allocation4 + $0x2d0] sm:$0xff]
        %v1162 = vld [vmem:[#allocation4 + $0x2d8] sm:$0xff]
        %v1163 = vld [vmem:[#allocation4 + $0x2e0] sm:$0xff]
        %v1164 = vld [vmem:[#allocation4 + $0x2e8] sm:$0xff]
        %v1165 = vld [vmem:[#allocation4 + $0x2f0] sm:$0xff]
        %v1166 = vld [vmem:[#allocation4 + $0x2f8] sm:$0xff]
        %v1167 = vld [vmem:[#allocation4 + $0x300] sm:$0xff]
        %v1168 = vld [vmem:[#allocation4 + $0x308] sm:$0xff]
        %v1169 = vld [vmem:[#allocation4 + $0x310] sm:$0xff]
        %v1170 = vld [vmem:[#allocation4 + $0x318] sm:$0xff]
        %v1171 = vld [vmem:[#allocation4 + $0x320] sm:$0xff]
        %v1172 = vld [vmem:[#allocation4 + $0x328] sm:$0xff]
        %v1173 = vld [vmem:[#allocation4 + $0x330] sm:$0xff]
        %v1174 = vld [vmem:[#allocation4 + $0x338] sm:$0xff]
        %v1175 = vld [vmem:[#allocation4 + $0x340] sm:$0xff]
        %v1176 = vld [vmem:[#allocation4 + $0x348] sm:$0xff]
        %v1177 = vld [vmem:[#allocation4 + $0x350] sm:$0xff]
        %v1178 = vld [vmem:[#allocation4 + $0x358] sm:$0xff]
        %v1179 = vld [vmem:[#allocation4 + $0x360] sm:$0xff]
        %v1180 = vld [vmem:[#allocation4 + $0x368] sm:$0xff]
        %v1181 = vld [vmem:[#allocation4 + $0x370] sm:$0xff]
        %v1182 = vld [vmem:[#allocation4 + $0x378] sm:$0xff]
        %v1183 = vld [vmem:[#allocation4 + $0x380] sm:$0xff]
        %v1184 = vld [vmem:[#allocation4 + $0x388] sm:$0xff]
        %v1185 = vld [vmem:[#allocation4 + $0x390] sm:$0xff]
        %v1186 = vld [vmem:[#allocation4 + $0x398] sm:$0xff]
        %v1187 = vld [vmem:[#allocation4 + $0x3a0] sm:$0xff]
        %v1188 = vld [vmem:[#allocation4 + $0x3a8] sm:$0xff]
        %v1189 = vld [vmem:[#allocation4 + $0x3b0] sm:$0xff]
        %v1190 = vld [vmem:[#allocation4 + $0x3b8] sm:$0xff]
        %v1191 = vld [vmem:[#allocation4 + $0x3c0] sm:$0xff]
        %v1192 = vld [vmem:[#allocation4 + $0x3c8] sm:$0xff]
        %v1193 = vld [vmem:[#allocation4 + $0x3d0] sm:$0xff]
        %v1194 = vld [vmem:[#allocation4 + $0x3d8] sm:$0xff]
        %v1195 = vld [vmem:[#allocation4 + $0x3e0] sm:$0xff]
        %v1196 = vld [vmem:[#allocation4 + $0x3e8] sm:$0xff]
        %v1197 = vld [vmem:[#allocation4 + $0x3f0] sm:$0xff]
        %v1198 = vld [vmem:[#allocation4 + $0x3f8] sm:$0xff]
        %v1199 = vld [vmem:[#allocation4 + $0x400] sm:$0xff]
        %v1200 = vld [vmem:[#allocation4 + $0x408] sm:$0xff]
        %v1201 = vld [vmem:[#allocation4 + $0x410] sm:$0xff]
        %v1202 = vld [vmem:[#allocation4 + $0x418] sm:$0xff]
        %v1203 = vld [vmem:[#allocation4 + $0x420] sm:$0xff]
        %v1204 = vld [vmem:[#allocation4 + $0x428] sm:$0xff]
        %v1205 = vld [vmem:[#allocation4 + $0x430] sm:$0xff]
        %v1206 = vld [vmem:[#allocation4 + $0x438] sm:$0xff]
        %v1207 = vld [vmem:[#allocation4 + $0x440] sm:$0xff]
        %v1208 = vld [vmem:[#allocation4 + $0x448] sm:$0xff]
        %v1209 = vld [vmem:[#allocation4 + $0x450] sm:$0xff]
        %v1210 = vld [vmem:[#allocation4 + $0x458] sm:$0xff]
        %v1211 = vld [vmem:[#allocation4 + $0x460] sm:$0xff]
        %v1212 = vld [vmem:[#allocation4 + $0x468] sm:$0xff]
        %v1213 = vld [vmem:[#allocation4 + $0x470] sm:$0xff]
        %v1214 = vld [vmem:[#allocation4 + $0x478] sm:$0xff]
        %v1215 = vld [vmem:[#allocation4 + $0x480] sm:$0xff]
        %v1216 = vld [vmem:[#allocation4 + $0x488] sm:$0xff]
        %v1217 = vld [vmem:[#allocation4 + $0x490] sm:$0xff]
        %v1218 = vld [vmem:[#allocation4 + $0x498] sm:$0xff]
        %v1219 = vld [vmem:[#allocation4 + $0x4a0] sm:$0xff]
        %v1220 = vld [vmem:[#allocation4 + $0x4a8] sm:$0xff]
        %v1221 = vld [vmem:[#allocation4 + $0x4b0] sm:$0xff]
        %v1222 = vld [vmem:[#allocation4 + $0x4b8] sm:$0xff]
        %v1223 = vld [vmem:[#allocation4 + $0x4c0] sm:$0xff]
        %v1224 = vld [vmem:[#allocation4 + $0x4c8] sm:$0xff]
        %v1225 = vld [vmem:[#allocation4 + $0x4d0] sm:$0xff]
        %v1226 = vld [vmem:[#allocation4 + $0x4d8] sm:$0xff]
        %v1227 = vld [vmem:[#allocation4 + $0x4e0] sm:$0xff]
        %v1228 = vld [vmem:[#allocation4 + $0x4e8] sm:$0xff]
        %v1229 = vld [vmem:[#allocation4 + $0x4f0] sm:$0xff]
        %v1230 = vld [vmem:[#allocation4 + $0x4f8] sm:$0xff]
        %v1231 = vld [vmem:[#allocation4 + $0x500] sm:$0xff]
        %v1232 = vld [vmem:[#allocation4 + $0x508] sm:$0xff]
        %v1233 = vld [vmem:[#allocation4 + $0x510] sm:$0xff]
        %v1234 = vld [vmem:[#allocation4 + $0x518] sm:$0xff]
        %v1235 = vld [vmem:[#allocation4 + $0x520] sm:$0xff]
        %v1236 = vld [vmem:[#allocation4 + $0x528] sm:$0xff]
        %v1237 = vld [vmem:[#allocation4 + $0x530] sm:$0xff]
        %v1238 = vld [vmem:[#allocation4 + $0x538] sm:$0xff]
        %v1239 = vld [vmem:[#allocation4 + $0x540] sm:$0xff]
        %v1240 = vld [vmem:[#allocation4 + $0x548] sm:$0xff]
        %v1241 = vld [vmem:[#allocation4 + $0x550] sm:$0xff]
        %v1242 = vld [vmem:[#allocation4 + $0x558] sm:$0xff]
        %v1243 = vld [vmem:[#allocation4 + $0x560] sm:$0xff]
        %v1244 = vld [vmem:[#allocation4 + $0x568] sm:$0xff]
        %v1245 = vld [vmem:[#allocation4 + $0x570] sm:$0xff]
        %v1246 = vld [vmem:[#allocation4 + $0x578] sm:$0xff]
        %v1247 = vld [vmem:[#allocation4 + $0x580] sm:$0xff]
        %v1248 = vld [vmem:[#allocation4 + $0x588] sm:$0xff]
        %v1249 = vld [vmem:[#allocation4 + $0x590] sm:$0xff]
        %v1250 = vld [vmem:[#allocation4 + $0x598] sm:$0xff]
        %v1251 = vld [vmem:[#allocation4 + $0x5a0] sm:$0xff]
        %v1252 = vld [vmem:[#allocation4 + $0x5a8] sm:$0xff]
        %v1253 = vld [vmem:[#allocation4 + $0x5b0] sm:$0xff]
        %v1254 = vld [vmem:[#allocation4 + $0x5b8] sm:$0xff]
        %v1255 = vld [vmem:[#allocation4 + $0x5c0] sm:$0xff]
        %v1256 = vld [vmem:[#allocation4 + $0x5c8] sm:$0xff]
        %v1257 = vld [vmem:[#allocation4 + $0x5d0] sm:$0xff]
        %v1258 = vld [vmem:[#allocation4 + $0x5d8] sm:$0xff]
        %v1259 = vld [vmem:[#allocation4 + $0x5e0] sm:$0xff]
        %v1260 = vld [vmem:[#allocation4 + $0x5e8] sm:$0xff]
        %v1261 = vld [vmem:[#allocation4 + $0x5f0] sm:$0xff]
        %v1262 = vld [vmem:[#allocation4 + $0x5f8] sm:$0xff]
        %v1263 = vld [vmem:[#allocation4 + $0x600] sm:$0xff]
        %v1264 = vld [vmem:[#allocation4 + $0x608] sm:$0xff]
        %v1265 = vld [vmem:[#allocation4 + $0x610] sm:$0xff]
        %v1266 = vld [vmem:[#allocation4 + $0x618] sm:$0xff]
        %v1267 = vld [vmem:[#allocation4 + $0x620] sm:$0xff]
        %v1268 = vld [vmem:[#allocation4 + $0x628] sm:$0xff]
        %v1269 = vld [vmem:[#allocation4 + $0x630] sm:$0xff]
        %v1270 = vld [vmem:[#allocation4 + $0x638] sm:$0xff]
        %v1271 = vld [vmem:[#allocation4 + $0x640] sm:$0xff]
        %v1272 = vld [vmem:[#allocation4 + $0x648] sm:$0xff]
        %v1273 = vld [vmem:[#allocation4 + $0x650] sm:$0xff]
        %v1274 = vld [vmem:[#allocation4 + $0x658] sm:$0xff]
        %v1275 = vld [vmem:[#allocation4 + $0x660] sm:$0xff]
        %v1276 = vld [vmem:[#allocation4 + $0x668] sm:$0xff]
        %v1277 = vld [vmem:[#allocation4 + $0x670] sm:$0xff]
        %v1278 = vld [vmem:[#allocation4 + $0x678] sm:$0xff]
        %v1279 = vld [vmem:[#allocation4 + $0x680] sm:$0xff]
        %v1280 = vld [vmem:[#allocation4 + $0x688] sm:$0xff]
        %v1281 = vld [vmem:[#allocation4 + $0x690] sm:$0xff]
        %v1282 = vld [vmem:[#allocation4 + $0x698] sm:$0xff]
        %v1283 = vld [vmem:[#allocation4 + $0x6a0] sm:$0xff]
        %v1284 = vld [vmem:[#allocation4 + $0x6a8] sm:$0xff]
        %v1285 = vld [vmem:[#allocation4 + $0x6b0] sm:$0xff]
        %v1286 = vld [vmem:[#allocation4 + $0x6b8] sm:$0xff]
        %v1287 = vld [vmem:[#allocation4 + $0x6c0] sm:$0xff]
        %v1288 = vld [vmem:[#allocation4 + $0x6c8] sm:$0xff]
        %v1289 = vld [vmem:[#allocation4 + $0x6d0] sm:$0xff]
        %v1290 = vld [vmem:[#allocation4 + $0x6d8] sm:$0xff]
        %v1291 = vld [vmem:[#allocation4 + $0x6e0] sm:$0xff]
        %v1292 = vld [vmem:[#allocation4 + $0x6e8] sm:$0xff]
        %v1293 = vld [vmem:[#allocation4 + $0x6f0] sm:$0xff]
        %v1294 = vld [vmem:[#allocation4 + $0x6f8] sm:$0xff]
        %v1295 = vld [vmem:[#allocation4 + $0x700] sm:$0xff]
        %v1296 = vld [vmem:[#allocation4 + $0x708] sm:$0xff]
        %v1297 = vld [vmem:[#allocation4 + $0x710] sm:$0xff]
        %v1298 = vld [vmem:[#allocation4 + $0x718] sm:$0xff]
        %v1299 = vld [vmem:[#allocation4 + $0x720] sm:$0xff]
        %v1300 = vld [vmem:[#allocation4 + $0x728] sm:$0xff]
        %v1301 = vld [vmem:[#allocation4 + $0x730] sm:$0xff]
        %v1302 = vld [vmem:[#allocation4 + $0x738] sm:$0xff]
        %v1303 = vld [vmem:[#allocation4 + $0x740] sm:$0xff]
        %v1304 = vld [vmem:[#allocation4 + $0x748] sm:$0xff]
        %v1305 = vld [vmem:[#allocation4 + $0x750] sm:$0xff]
        %v1306 = vld [vmem:[#allocation4 + $0x758] sm:$0xff]
        %v1307 = vld [vmem:[#allocation4 + $0x760] sm:$0xff]
        %v1308 = vld [vmem:[#allocation4 + $0x768] sm:$0xff]
        %v1309 = vld [vmem:[#allocation4 + $0x770] sm:$0xff]
        %v1310 = vld [vmem:[#allocation4 + $0x778] sm:$0xff]
        %v1311 = vld [vmem:[#allocation4 + $0x780] sm:$0xff]
        %v1312 = vld [vmem:[#allocation4 + $0x788] sm:$0xff]
        %v1313 = vld [vmem:[#allocation4 + $0x790] sm:$0xff]
        %v1314 = vld [vmem:[#allocation4 + $0x798] sm:$0xff]
        %v1315 = vld [vmem:[#allocation4 + $0x7a0] sm:$0xff]
        %v1316 = vld [vmem:[#allocation4 + $0x7a8] sm:$0xff]
        %v1317 = vld [vmem:[#allocation4 + $0x7b0] sm:$0xff]
        %v1318 = vld [vmem:[#allocation4 + $0x7b8] sm:$0xff]
        %v1319 = vld [vmem:[#allocation4 + $0x7c0] sm:$0xff]
        %v1320 = vld [vmem:[#allocation4 + $0x7c8] sm:$0xff]
        %v1321 = vld [vmem:[#allocation4 + $0x7d0] sm:$0xff]
        %v1322 = vld [vmem:[#allocation4 + $0x7d8] sm:$0xff]
        %v1323 = vld [vmem:[#allocation4 + $0x7e0] sm:$0xff]
        %v1324 = vld [vmem:[#allocation4 + $0x7e8] sm:$0xff]
        %v1325 = vld [vmem:[#allocation4 + $0x7f0] sm:$0xff]
        %v1326 = vld [vmem:[#allocation4 + $0x7f8] sm:$0xff]
        %v1327 = vld [vmem:[#allocation4 + $0x800] sm:$0xff]
        %v1328 = vld [vmem:[#allocation4 + $0x808] sm:$0xff]
        %v1329 = vld [vmem:[#allocation4 + $0x810] sm:$0xff]
        %v1330 = vld [vmem:[#allocation4 + $0x818] sm:$0xff]
        %v1331 = vld [vmem:[#allocation4 + $0x820] sm:$0xff]
        %v1332 = vld [vmem:[#allocation4 + $0x828] sm:$0xff]
        %v1333 = vld [vmem:[#allocation4 + $0x830] sm:$0xff]
        %v1334 = vld [vmem:[#allocation4 + $0x838] sm:$0xff]
        %v1335 = vld [vmem:[#allocation4 + $0x840] sm:$0xff]
        %v1336 = vld [vmem:[#allocation4 + $0x848] sm:$0xff]
        %v1337 = vld [vmem:[#allocation4 + $0x850] sm:$0xff]
        %v1338 = vld [vmem:[#allocation4 + $0x858] sm:$0xff]
        %v1339 = vld [vmem:[#allocation4 + $0x860] sm:$0xff]
        %v1340 = vld [vmem:[#allocation4 + $0x868] sm:$0xff]
        %v1341 = vld [vmem:[#allocation4 + $0x870] sm:$0xff]
        %v1342 = vld [vmem:[#allocation4 + $0x878] sm:$0xff]
        %v1343 = vld [vmem:[#allocation4 + $0x880] sm:$0xff]
        %v1344 = vld [vmem:[#allocation4 + $0x888] sm:$0xff]
        %v1345 = vld [vmem:[#allocation4 + $0x890] sm:$0xff]
        %v1346 = vld [vmem:[#allocation4 + $0x898] sm:$0xff]
        %v1347 = vld [vmem:[#allocation4 + $0x8a0] sm:$0xff]
        %v1348 = vld [vmem:[#allocation4 + $0x8a8] sm:$0xff]
        %v1349 = vld [vmem:[#allocation4 + $0x8b0] sm:$0xff]
        %v1350 = vld [vmem:[#allocation4 + $0x8b8] sm:$0xff]
        %v1351 = vld [vmem:[#allocation4 + $0x8c0] sm:$0xff]
        %v1352 = vld [vmem:[#allocation4 + $0x8c8] sm:$0xff]
        %v1353 = vld [vmem:[#allocation4 + $0x8d0] sm:$0xff]
        %v1354 = vld [vmem:[#allocation4 + $0x8d8] sm:$0xff]
        %v1355 = vld [vmem:[#allocation4 + $0x8e0] sm:$0xff]
        %v1356 = vld [vmem:[#allocation4 + $0x8e8] sm:$0xff]
        %v1357 = vld [vmem:[#allocation4 + $0x8f0] sm:$0xff]
        %v1358 = vld [vmem:[#allocation4 + $0x8f8] sm:$0xff]
        %v1359 = vld [vmem:[#allocation6] sm:$0xff]
        %v1360 = vld [vmem:[#allocation6 + $0x8] sm:$0xff]
        %v1361 = vld [vmem:[#allocation6 + $0x10] sm:$0xff]
        %v1362 = vld [vmem:[#allocation6 + $0x18] sm:$0xff]
        %v1363 = vld [vmem:[#allocation6 + $0x20] sm:$0xff]
        %v1364 = vld [vmem:[#allocation6 + $0x28] sm:$0xff]
        %v1365 = vld [vmem:[#allocation6 + $0x30] sm:$0xff]
        %v1366 = vld [vmem:[#allocation6 + $0x38] sm:$0xff]
        %v1367 = vld [vmem:[#allocation6 + $0x40] sm:$0xff]
        %v1368 = vld [vmem:[#allocation6 + $0x48] sm:$0xff]
        %v1369 = vld [vmem:[#allocation6 + $0x50] sm:$0xff]
        %v1370 = vld [vmem:[#allocation6 + $0x58] sm:$0xff]
        %v1371 = vld [vmem:[#allocation6 + $0x60] sm:$0xff]
        %v1372 = vld [vmem:[#allocation6 + $0x68] sm:$0xff]
        %v1373 = vld [vmem:[#allocation6 + $0x70] sm:$0xff]
        %v1374 = vld [vmem:[#allocation6 + $0x78] sm:$0xff]
        %v1375 = vld [vmem:[#allocation6 + $0x80] sm:$0xff]
        %v1376 = vld [vmem:[#allocation6 + $0x88] sm:$0xff]
        %v1377 = vld [vmem:[#allocation6 + $0x90] sm:$0xff]
        %v1378 = vld [vmem:[#allocation6 + $0x98] sm:$0xff]
        %v1379 = vld [vmem:[#allocation6 + $0xa0] sm:$0xff]
        %v1380 = vld [vmem:[#allocation6 + $0xa8] sm:$0xff]
        %v1381 = vld [vmem:[#allocation6 + $0xb0] sm:$0xff]
        %v1382 = vld [vmem:[#allocation6 + $0xb8] sm:$0xff]
        %v1383 = vld [vmem:[#allocation6 + $0xc0] sm:$0xff]
        %v1384 = vld [vmem:[#allocation6 + $0xc8] sm:$0xff]
        %v1385 = vld [vmem:[#allocation6 + $0xd0] sm:$0xff]
        %v1386 = vld [vmem:[#allocation6 + $0xd8] sm:$0xff]
        %v1387 = vld [vmem:[#allocation6 + $0xe0] sm:$0xff]
        %v1388 = vld [vmem:[#allocation6 + $0xe8] sm:$0xff]
        %v1389 = vld [vmem:[#allocation6 + $0xf0] sm:$0xff]
        %v1390 = vld [vmem:[#allocation6 + $0xf8] sm:$0xff]
        %v1391 = vld [vmem:[#allocation6 + $0x100] sm:$0xff]
        %v1392 = vld [vmem:[#allocation6 + $0x108] sm:$0xff]
        %v1393 = vld [vmem:[#allocation6 + $0x110] sm:$0xff]
        %v1394 = vld [vmem:[#allocation6 + $0x118] sm:$0xff]
        %v1395 = vld [vmem:[#allocation6 + $0x120] sm:$0xff]
        %v1396 = vld [vmem:[#allocation6 + $0x128] sm:$0xff]
        %v1397 = vld [vmem:[#allocation6 + $0x130] sm:$0xff]
        %v1398 = vld [vmem:[#allocation6 + $0x138] sm:$0xff]
        %v1399 = vld [vmem:[#allocation6 + $0x140] sm:$0xff]
        %v1400 = vld [vmem:[#allocation6 + $0x148] sm:$0xff]
        %v1401 = vld [vmem:[#allocation6 + $0x150] sm:$0xff]
        %v1402 = vld [vmem:[#allocation6 + $0x158] sm:$0xff]
        %v1403 = vld [vmem:[#allocation6 + $0x160] sm:$0xff]
        %v1404 = vld [vmem:[#allocation6 + $0x168] sm:$0xff]
        %v1405 = vld [vmem:[#allocation6 + $0x170] sm:$0xff]
        %v1406 = vld [vmem:[#allocation6 + $0x178] sm:$0xff]
        %v1407 = vld [vmem:[#allocation6 + $0x180] sm:$0xff]
        %v1408 = vld [vmem:[#allocation6 + $0x188] sm:$0xff]
        %v1409 = vld [vmem:[#allocation6 + $0x190] sm:$0xff]
        %v1410 = vld [vmem:[#allocation6 + $0x198] sm:$0xff]
        %v1411 = vld [vmem:[#allocation6 + $0x1a0] sm:$0xff]
        %v1412 = vld [vmem:[#allocation6 + $0x1a8] sm:$0xff]
        %v1413 = vld [vmem:[#allocation6 + $0x1b0] sm:$0xff]
        %v1414 = vld [vmem:[#allocation6 + $0x1b8] sm:$0xff]
        %v1415 = vld [vmem:[#allocation6 + $0x1c0] sm:$0xff]
        %v1416 = vld [vmem:[#allocation6 + $0x1c8] sm:$0xff]
        %v1417 = vld [vmem:[#allocation6 + $0x1d0] sm:$0xff]
        %v1418 = vld [vmem:[#allocation6 + $0x1d8] sm:$0xff]
        %v1419 = vld [vmem:[#allocation6 + $0x1e0] sm:$0xff]
        %v1420 = vld [vmem:[#allocation6 + $0x1e8] sm:$0xff]
        %v1421 = vld [vmem:[#allocation6 + $0x1f0] sm:$0xff]
        %v1422 = vld [vmem:[#allocation6 + $0x1f8] sm:$0xff]
        %v1423 = vld [vmem:[#allocation6 + $0x200] sm:$0xff]
        %v1424 = vld [vmem:[#allocation6 + $0x208] sm:$0xff]
        %v1425 = vld [vmem:[#allocation6 + $0x210] sm:$0xff]
        %v1426 = vld [vmem:[#allocation6 + $0x218] sm:$0xff]
        %v1427 = vld [vmem:[#allocation6 + $0x220] sm:$0xff]
        %v1428 = vld [vmem:[#allocation6 + $0x228] sm:$0xff]
        %v1429 = vld [vmem:[#allocation6 + $0x230] sm:$0xff]
        %v1430 = vld [vmem:[#allocation6 + $0x238] sm:$0xff]
        %v1431 = vld [vmem:[#allocation6 + $0x240] sm:$0xff]
        %v1432 = vld [vmem:[#allocation6 + $0x248] sm:$0xff]
        %v1433 = vld [vmem:[#allocation6 + $0x250] sm:$0xff]
        %v1434 = vld [vmem:[#allocation6 + $0x258] sm:$0xff]
        %v1435 = vld [vmem:[#allocation6 + $0x260] sm:$0xff]
        %v1436 = vld [vmem:[#allocation6 + $0x268] sm:$0xff]
        %v1437 = vld [vmem:[#allocation6 + $0x270] sm:$0xff]
        %v1438 = vld [vmem:[#allocation6 + $0x278] sm:$0xff]
        %v1439 = vld [vmem:[#allocation6 + $0x280] sm:$0xff]
        %v1440 = vld [vmem:[#allocation6 + $0x288] sm:$0xff]
        %v1441 = vld [vmem:[#allocation6 + $0x290] sm:$0xff]
        %v1442 = vld [vmem:[#allocation6 + $0x298] sm:$0xff]
        %v1443 = vld [vmem:[#allocation6 + $0x2a0] sm:$0xff]
        %v1444 = vld [vmem:[#allocation6 + $0x2a8] sm:$0xff]
        %v1445 = vld [vmem:[#allocation6 + $0x2b0] sm:$0xff]
        %v1446 = vld [vmem:[#allocation6 + $0x2b8] sm:$0xff]
        %v1447 = vld [vmem:[#allocation6 + $0x2c0] sm:$0xff]
        %v1448 = vld [vmem:[#allocation6 + $0x2c8] sm:$0xff]
        %v1449 = vld [vmem:[#allocation6 + $0x2d0] sm:$0xff]
        %v1450 = vld [vmem:[#allocation6 + $0x2d8] sm:$0xff]
        %v1451 = vld [vmem:[#allocation6 + $0x2e0] sm:$0xff]
        %v1452 = vld [vmem:[#allocation6 + $0x2e8] sm:$0xff]
        %v1453 = vld [vmem:[#allocation6 + $0x2f0] sm:$0xff]
        %v1454 = vld [vmem:[#allocation6 + $0x2f8] sm:$0xff]
        %v1455 = vld [vmem:[#allocation6 + $0x300] sm:$0xff]
        %v1456 = vld [vmem:[#allocation6 + $0x308] sm:$0xff]
        %v1457 = vld [vmem:[#allocation6 + $0x310] sm:$0xff]
        %v1458 = vld [vmem:[#allocation6 + $0x318] sm:$0xff]
        %v1459 = vld [vmem:[#allocation6 + $0x320] sm:$0xff]
        %v1460 = vld [vmem:[#allocation6 + $0x328] sm:$0xff]
        %v1461 = vld [vmem:[#allocation6 + $0x330] sm:$0xff]
        %v1462 = vld [vmem:[#allocation6 + $0x338] sm:$0xff]
        %v1463 = vld [vmem:[#allocation6 + $0x340] sm:$0xff]
        %v1464 = vld [vmem:[#allocation6 + $0x348] sm:$0xff]
        %v1465 = vld [vmem:[#allocation6 + $0x350] sm:$0xff]
        %v1466 = vld [vmem:[#allocation6 + $0x358] sm:$0xff]
        %v1467 = vld [vmem:[#allocation6 + $0x360] sm:$0xff]
        %v1468 = vld [vmem:[#allocation6 + $0x368] sm:$0xff]
        %v1469 = vld [vmem:[#allocation6 + $0x370] sm:$0xff]
        %v1470 = vld [vmem:[#allocation6 + $0x378] sm:$0xff]
        %v1471 = vld [vmem:[#allocation6 + $0x380] sm:$0xff]
        %v1472 = vld [vmem:[#allocation6 + $0x388] sm:$0xff]
        %v1473 = vld [vmem:[#allocation6 + $0x390] sm:$0xff]
        %v1474 = vld [vmem:[#allocation6 + $0x398] sm:$0xff]
        %v1475 = vld [vmem:[#allocation6 + $0x3a0] sm:$0xff]
        %v1476 = vld [vmem:[#allocation6 + $0x3a8] sm:$0xff]
        %v1477 = vld [vmem:[#allocation6 + $0x3b0] sm:$0xff]
        %v1478 = vld [vmem:[#allocation6 + $0x3b8] sm:$0xff]
        %v1479 = vld [vmem:[#allocation6 + $0x3c0] sm:$0xff]
        %v1480 = vld [vmem:[#allocation6 + $0x3c8] sm:$0xff]
        %v1481 = vld [vmem:[#allocation6 + $0x3d0] sm:$0xff]
        %v1482 = vld [vmem:[#allocation6 + $0x3d8] sm:$0xff]
        %v1483 = vld [vmem:[#allocation6 + $0x3e0] sm:$0xff]
        %v1484 = vld [vmem:[#allocation6 + $0x3e8] sm:$0xff]
        %v1485 = vld [vmem:[#allocation6 + $0x3f0] sm:$0xff]
        %v1486 = vld [vmem:[#allocation6 + $0x3f8] sm:$0xff]
        %v1487 = vld [vmem:[#allocation6 + $0x400] sm:$0xff]
        %v1488 = vld [vmem:[#allocation6 + $0x408] sm:$0xff]
        %v1489 = vld [vmem:[#allocation6 + $0x410] sm:$0xff]
        %v1490 = vld [vmem:[#allocation6 + $0x418] sm:$0xff]
        %v1491 = vld [vmem:[#allocation6 + $0x420] sm:$0xff]
        %v1492 = vld [vmem:[#allocation6 + $0x428] sm:$0xff]
        %v1493 = vld [vmem:[#allocation6 + $0x430] sm:$0xff]
        %v1494 = vld [vmem:[#allocation6 + $0x438] sm:$0xff]
        %v1495 = vld [vmem:[#allocation6 + $0x440] sm:$0xff]
        %v1496 = vld [vmem:[#allocation6 + $0x448] sm:$0xff]
        %v1497 = vld [vmem:[#allocation6 + $0x450] sm:$0xff]
        %v1498 = vld [vmem:[#allocation6 + $0x458] sm:$0xff]
        %v1499 = vld [vmem:[#allocation6 + $0x460] sm:$0xff]
        %v1500 = vld [vmem:[#allocation6 + $0x468] sm:$0xff]
        %v1501 = vld [vmem:[#allocation6 + $0x470] sm:$0xff]
        %v1502 = vld [vmem:[#allocation6 + $0x478] sm:$0xff]
        %1503 = vmatprep.subr.mxu0 0.0
        %1504 = vmatpush1.msra.mxu0 %v1374
        %1505 = vmatprep.subr.mxu0 0.0
        %1506 = vmatpush1.msra.mxu0 %v1373
        %1507 = vmatprep.subr.mxu0 0.0
        %1508 = vmatpush1.msra.mxu0 %v1372
        %1509 = vmatprep.subr.mxu0 0.0
        %1510 = vmatpush1.msra.mxu0 %v1371
        %1511 = vmatprep.subr.mxu0 0.0
        %1512 = vmatpush1.msra.mxu0 %v1370
        %1513 = vmatprep.subr.mxu0 0.0
        %1514 = vmatpush1.msra.mxu0 %v1369
        %1515 = vmatprep.subr.mxu0 0.0
        %1516 = vmatpush1.msra.mxu0 %v1368
        %1517 = vmatprep.subr.mxu0 0.0
        %1518 = vmatpush1.msra.mxu0 %v1367
        %1519 = vmatprep.subr.mxu0 0.0
        %1520 = vmatpush1.msra.mxu0 %v1366
        %1521 = vmatprep.subr.mxu0 0.0
        %1522 = vmatpush1.msra.mxu0 %v1365
        %1523 = vmatprep.subr.mxu0 0.0
        %1524 = vmatpush1.msra.mxu0 %v1364
        %1525 = vmatprep.subr.mxu0 0.0
        %1526 = vmatpush1.msra.mxu0 %v1363
        %1527 = vmatprep.subr.mxu0 0.0
        %1528 = vmatpush1.msra.mxu0 %v1362
        %1529 = vmatprep.subr.mxu0 0.0
        %1530 = vmatpush1.msra.mxu0 %v1361
        %1531 = vmatprep.subr.mxu0 0.0
        %1532 = vmatpush1.msra.mxu0 %v1360
        %1533 = vmatprep.subr.mxu0 0.0
        %1534 = vmatpush1.msra.mxu0 %v1359
        %1535 = vmatprep.subr.mxu0 0.0
        %1536 = vmatpush2.msra.mxu0 %v1390
        %1537 = vmatprep.subr.mxu0 0.0
        %1538 = vmatpush2.msra.mxu0 %v1389
        %1539 = vmatprep.subr.mxu0 0.0
        %1540 = vmatpush2.msra.mxu0 %v1388
        %1541 = vmatprep.subr.mxu0 0.0
        %1542 = vmatpush2.msra.mxu0 %v1387
        %1543 = vmatprep.subr.mxu0 0.0
        %1544 = vmatpush2.msra.mxu0 %v1386
        %1545 = vmatprep.subr.mxu0 0.0
        %1546 = vmatpush2.msra.mxu0 %v1385
        %1547 = vmatprep.subr.mxu0 0.0
        %1548 = vmatpush2.msra.mxu0 %v1384
        %1549 = vmatprep.subr.mxu0 0.0
        %1550 = vmatpush2.msra.mxu0 %v1383
        %1551 = vmatprep.subr.mxu0 0.0
        %1552 = vmatpush2.msra.mxu0 %v1382
        %1553 = vmatprep.subr.mxu0 0.0
        %1554 = vmatpush2.msra.mxu0 %v1381
        %1555 = vmatprep.subr.mxu0 0.0
        %1556 = vmatpush2.msra.mxu0 %v1380
        %1557 = vmatprep.subr.mxu0 0.0
        %1558 = vmatpush2.msra.mxu0 %v1379
        %1559 = vmatprep.subr.mxu0 0.0
        %1560 = vmatpush2.msra.mxu0 %v1378
        %1561 = vmatprep.subr.mxu0 0.0
        %1562 = vmatpush2.msra.mxu0 %v1377
        %1563 = vmatprep.subr.mxu0 0.0
        %1564 = vmatpush2.msra.mxu0 %v1376
        %1565 = vmatprep.subr.mxu0 0.0
        %1566 = vmatpush2.msra.mxu0 %v1375
        %1567 = vmatprep.mubr.f32.mxu0 %v1072
        %1568 = vmatmul.mubr.f32.gmra.mxu0 %v1071
        %v1569 = vpop.f32.mrf.mxu0
        %v1570 = vadd.f32 0.0, %v1569
        %v1571 = vpop.f32.mrf.mxu0
        %1572 = vmatprep.mubr.f32.mxu0 %v1081
        %1573 = vmatmul.mubr.f32.gmra.mxu0 %v1080
        %v1574 = vpop.f32.mrf.mxu0
        %v1575 = vadd.f32 0.0, %v1574
        %v1576 = vpop.f32.mrf.mxu0
        %1577 = vmatprep.mubr.f32.mxu0 %v1090
        %1578 = vmatmul.mubr.f32.gmra.mxu0 %v1089
        %v1579 = vpop.f32.mrf.mxu0
        %v1580 = vadd.f32 0.0, %v1579
        %v1581 = vpop.f32.mrf.mxu0
        %1582 = vmatprep.mubr.f32.mxu0 %v1099
        %1583 = vmatmul.mubr.f32.gmra.mxu0 %v1098
        %v1584 = vpop.f32.mrf.mxu0
        %v1585 = vadd.f32 0.0, %v1584
        %v1586 = vpop.f32.mrf.mxu0
        %1587 = vmatprep.mubr.f32.mxu0 %v1108
        %1588 = vmatmul.mubr.f32.gmra.mxu0 %v1107
        %v1589 = vpop.f32.mrf.mxu0
        %v1590 = vadd.f32 0.0, %v1589
        %v1591 = vpop.f32.mrf.mxu0
        %1592 = vmatprep.mubr.f32.mxu0 %v1117
        %1593 = vmatmul.mubr.f32.gmra.mxu0 %v1116
        %v1594 = vpop.f32.mrf.mxu0
        %v1595 = vadd.f32 0.0, %v1594
        %v1596 = vpop.f32.mrf.mxu0
        %1597 = vmatprep.mubr.f32.mxu0 %v1126
        %1598 = vmatmul.mubr.f32.gmra.mxu0 %v1125
        %v1599 = vpop.f32.mrf.mxu0
        %v1600 = vadd.f32 0.0, %v1599
        %v1601 = vpop.f32.mrf.mxu0
        %1602 = vmatprep.mubr.f32.mxu0 %v1135
        %1603 = vmatmul.mubr.f32.gmra.mxu0 %v1134
        %v1604 = vpop.f32.mrf.mxu0
        %v1605 = vadd.f32 0.0, %v1604
        %v1606 = vpop.f32.mrf.mxu0
        %1607 = vmatprep.mubr.f32.mxu0 %v1144
        %1608 = vmatmul.mubr.f32.gmra.mxu0 %v1143
        %v1609 = vpop.f32.mrf.mxu0
        %v1610 = vadd.f32 0.0, %v1609
        %v1611 = vpop.f32.mrf.mxu0
        %1612 = vmatprep.mubr.f32.mxu0 %v1153
        %1613 = vmatmul.mubr.f32.gmra.mxu0 %v1152
        %v1614 = vpop.f32.mrf.mxu0
        %v1615 = vadd.f32 0.0, %v1614
        %v1616 = vpop.f32.mrf.mxu0
        %1617 = vmatprep.mubr.f32.mxu0 %v1162
        %1618 = vmatmul.mubr.f32.gmra.mxu0 %v1161
        %v1619 = vpop.f32.mrf.mxu0
        %v1620 = vadd.f32 0.0, %v1619
        %v1621 = vpop.f32.mrf.mxu0
        %1622 = vmatprep.mubr.f32.mxu0 %v1171
        %1623 = vmatmul.mubr.f32.gmra.mxu0 %v1170
        %v1624 = vpop.f32.mrf.mxu0
        %v1625 = vadd.f32 0.0, %v1624
        %v1626 = vpop.f32.mrf.mxu0
        %1627 = vmatprep.mubr.f32.mxu0 %v1180
        %1628 = vmatmul.mubr.f32.gmra.mxu0 %v1179
        %v1629 = vpop.f32.mrf.mxu0
        %v1630 = vadd.f32 0.0, %v1629
        %v1631 = vpop.f32.mrf.mxu0
        %1632 = vmatprep.mubr.f32.mxu0 %v1189
        %1633 = vmatmul.mubr.f32.gmra.mxu0 %v1188
        %v1634 = vpop.f32.mrf.mxu0
        %v1635 = vadd.f32 0.0, %v1634
        %v1636 = vpop.f32.mrf.mxu0
        %1637 = vmatprep.mubr.f32.mxu0 %v1198
        %1638 = vmatmul.mubr.f32.gmra.mxu0 %v1197
        %v1639 = vpop.f32.mrf.mxu0
        %v1640 = vadd.f32 0.0, %v1639
        %v1641 = vpop.f32.mrf.mxu0
        %1642 = vmatprep.mubr.f32.mxu0 %v1207
        %1643 = vmatmul.mubr.f32.gmra.mxu0 %v1206
        %v1644 = vpop.f32.mrf.mxu0
        %v1645 = vadd.f32 0.0, %v1644
        %v1646 = vpop.f32.mrf.mxu0
        %1647 = vmatprep.mubr.f32.mxu0 %v1216
        %1648 = vmatmul.mubr.f32.gmra.mxu0 %v1215
        %v1649 = vpop.f32.mrf.mxu0
        %v1650 = vadd.f32 0.0, %v1649
        %v1651 = vpop.f32.mrf.mxu0
        %1652 = vmatprep.mubr.f32.mxu0 %v1225
        %1653 = vmatmul.mubr.f32.gmra.mxu0 %v1224
        %v1654 = vpop.f32.mrf.mxu0
        %v1655 = vadd.f32 0.0, %v1654
        %v1656 = vpop.f32.mrf.mxu0
        %1657 = vmatprep.mubr.f32.mxu0 %v1234
        %1658 = vmatmul.mubr.f32.gmra.mxu0 %v1233
        %v1659 = vpop.f32.mrf.mxu0
        %v1660 = vadd.f32 0.0, %v1659
        %v1661 = vpop.f32.mrf.mxu0
        %1662 = vmatprep.mubr.f32.mxu0 %v1243
        %1663 = vmatmul.mubr.f32.gmra.mxu0 %v1242
        %v1664 = vpop.f32.mrf.mxu0
        %v1665 = vadd.f32 0.0, %v1664
        %v1666 = vpop.f32.mrf.mxu0
        %1667 = vmatprep.mubr.f32.mxu0 %v1252
        %1668 = vmatmul.mubr.f32.gmra.mxu0 %v1251
        %v1669 = vpop.f32.mrf.mxu0
        %v1670 = vadd.f32 0.0, %v1669
        %v1671 = vpop.f32.mrf.mxu0
        %1672 = vmatprep.mubr.f32.mxu0 %v1261
        %1673 = vmatmul.mubr.f32.gmra.mxu0 %v1260
        %v1674 = vpop.f32.mrf.mxu0
        %v1675 = vadd.f32 0.0, %v1674
        %v1676 = vpop.f32.mrf.mxu0
        %1677 = vmatprep.mubr.f32.mxu0 %v1270
        %1678 = vmatmul.mubr.f32.gmra.mxu0 %v1269
        %v1679 = vpop.f32.mrf.mxu0
        %v1680 = vadd.f32 0.0, %v1679
        %v1681 = vpop.f32.mrf.mxu0
        %1682 = vmatprep.mubr.f32.mxu0 %v1279
        %1683 = vmatmul.mubr.f32.gmra.mxu0 %v1278
        %v1684 = vpop.f32.mrf.mxu0
        %v1685 = vadd.f32 0.0, %v1684
        %v1686 = vpop.f32.mrf.mxu0
        %1687 = vmatprep.mubr.f32.mxu0 %v1288
        %1688 = vmatmul.mubr.f32.gmra.mxu0 %v1287
        %v1689 = vpop.f32.mrf.mxu0
        %v1690 = vadd.f32 0.0, %v1689
        %v1691 = vpop.f32.mrf.mxu0
        %1692 = vmatprep.mubr.f32.mxu0 %v1297
        %1693 = vmatmul.mubr.f32.gmra.mxu0 %v1296
        %v1694 = vpop.f32.mrf.mxu0
        %v1695 = vadd.f32 0.0, %v1694
        %v1696 = vpop.f32.mrf.mxu0
        %1697 = vmatprep.mubr.f32.mxu0 %v1306
        %1698 = vmatmul.mubr.f32.gmra.mxu0 %v1305
        %v1699 = vpop.f32.mrf.mxu0
        %v1700 = vadd.f32 0.0, %v1699
        %v1701 = vpop.f32.mrf.mxu0
        %1702 = vmatprep.mubr.f32.mxu0 %v1315
        %1703 = vmatmul.mubr.f32.gmra.mxu0 %v1314
        %v1704 = vpop.f32.mrf.mxu0
        %v1705 = vadd.f32 0.0, %v1704
        %v1706 = vpop.f32.mrf.mxu0
        %1707 = vmatprep.mubr.f32.mxu0 %v1324
        %1708 = vmatmul.mubr.f32.gmra.mxu0 %v1323
        %v1709 = vpop.f32.mrf.mxu0
        %v1710 = vadd.f32 0.0, %v1709
        %v1711 = vpop.f32.mrf.mxu0
        %1712 = vmatprep.mubr.f32.mxu0 %v1333
        %1713 = vmatmul.mubr.f32.gmra.mxu0 %v1332
        %v1714 = vpop.f32.mrf.mxu0
        %v1715 = vadd.f32 0.0, %v1714
        %v1716 = vpop.f32.mrf.mxu0
        %1717 = vmatprep.mubr.f32.mxu0 %v1342
        %1718 = vmatmul.mubr.f32.gmra.mxu0 %v1341
        %v1719 = vpop.f32.mrf.mxu0
        %v1720 = vadd.f32 0.0, %v1719
        %v1721 = vpop.f32.mrf.mxu0
        %1722 = vmatprep.mubr.f32.mxu0 %v1351
        %1723 = vmatmul.mubr.f32.gmra.mxu0 %v1350
        %v1724 = vpop.f32.mrf.mxu0
        %v1725 = vadd.f32 0.0, %v1724
        %v1726 = vpop.f32.mrf.mxu0
        %1727 = vdwg.mxu0
        %1728 = vmatprep.subr.mxu0 0.0
        %1729 = vmatpush1.msra.mxu0 %v1406
        %1730 = vmatprep.subr.mxu0 0.0
        %1731 = vmatpush1.msra.mxu0 %v1405
        %1732 = vmatprep.subr.mxu0 0.0
        %1733 = vmatpush1.msra.mxu0 %v1404
        %1734 = vmatprep.subr.mxu0 0.0
        %1735 = vmatpush1.msra.mxu0 %v1403
        %1736 = vmatprep.subr.mxu0 0.0
        %1737 = vmatpush1.msra.mxu0 %v1402
        %1738 = vmatprep.subr.mxu0 0.0
        %1739 = vmatpush1.msra.mxu0 %v1401
        %1740 = vmatprep.subr.mxu0 0.0
        %1741 = vmatpush1.msra.mxu0 %v1400
        %1742 = vmatprep.subr.mxu0 0.0
        %1743 = vmatpush1.msra.mxu0 %v1399
        %1744 = vmatprep.subr.mxu0 0.0
        %1745 = vmatpush1.msra.mxu0 %v1398
        %1746 = vmatprep.subr.mxu0 0.0
        %1747 = vmatpush1.msra.mxu0 %v1397
        %1748 = vmatprep.subr.mxu0 0.0
        %1749 = vmatpush1.msra.mxu0 %v1396
        %1750 = vmatprep.subr.mxu0 0.0
        %1751 = vmatpush1.msra.mxu0 %v1395
        %1752 = vmatprep.subr.mxu0 0.0
        %1753 = vmatpush1.msra.mxu0 %v1394
        %1754 = vmatprep.subr.mxu0 0.0
        %1755 = vmatpush1.msra.mxu0 %v1393
        %1756 = vmatprep.subr.mxu0 0.0
        %1757 = vmatpush1.msra.mxu0 %v1392
        %1758 = vmatprep.subr.mxu0 0.0
        %1759 = vmatpush1.msra.mxu0 %v1391
        %1760 = vmatprep.subr.mxu0 0.0
        %1761 = vmatpush2.msra.mxu0 %v1422
        %1762 = vmatprep.subr.mxu0 0.0
        %1763 = vmatpush2.msra.mxu0 %v1421
        %1764 = vmatprep.subr.mxu0 0.0
        %1765 = vmatpush2.msra.mxu0 %v1420
        %1766 = vmatprep.subr.mxu0 0.0
        %1767 = vmatpush2.msra.mxu0 %v1419
        %1768 = vmatprep.subr.mxu0 0.0
        %1769 = vmatpush2.msra.mxu0 %v1418
        %1770 = vmatprep.subr.mxu0 0.0
        %1771 = vmatpush2.msra.mxu0 %v1417
        %1772 = vmatprep.subr.mxu0 0.0
        %1773 = vmatpush2.msra.mxu0 %v1416
        %1774 = vmatprep.subr.mxu0 0.0
        %1775 = vmatpush2.msra.mxu0 %v1415
        %1776 = vmatprep.subr.mxu0 0.0
        %1777 = vmatpush2.msra.mxu0 %v1414
        %1778 = vmatprep.subr.mxu0 0.0
        %1779 = vmatpush2.msra.mxu0 %v1413
        %1780 = vmatprep.subr.mxu0 0.0
        %1781 = vmatpush2.msra.mxu0 %v1412
        %1782 = vmatprep.subr.mxu0 0.0
        %1783 = vmatpush2.msra.mxu0 %v1411
        %1784 = vmatprep.subr.mxu0 0.0
        %1785 = vmatpush2.msra.mxu0 %v1410
        %1786 = vmatprep.subr.mxu0 0.0
        %1787 = vmatpush2.msra.mxu0 %v1409
        %1788 = vmatprep.subr.mxu0 0.0
        %1789 = vmatpush2.msra.mxu0 %v1408
        %1790 = vmatprep.subr.mxu0 0.0
        %1791 = vmatpush2.msra.mxu0 %v1407
        %1792 = vmatprep.mubr.f32.mxu0 %v1074
        %1793 = vmatmul.mubr.f32.gmra.mxu0 %v1073
        %v1794 = vpop.f32.mrf.mxu0
        %v1795 = vadd.f32 %v1570, %v1794
        %v1796 = vpop.f32.mrf.mxu0
        %1797 = vmatprep.mubr.f32.mxu0 %v1083
        %1798 = vmatmul.mubr.f32.gmra.mxu0 %v1082
        %v1799 = vpop.f32.mrf.mxu0
        %v1800 = vadd.f32 %v1575, %v1799
        %v1801 = vpop.f32.mrf.mxu0
        %1802 = vmatprep.mubr.f32.mxu0 %v1092
        %1803 = vmatmul.mubr.f32.gmra.mxu0 %v1091
        %v1804 = vpop.f32.mrf.mxu0
        %v1805 = vadd.f32 %v1580, %v1804
        %v1806 = vpop.f32.mrf.mxu0
        %1807 = vmatprep.mubr.f32.mxu0 %v1101
        %1808 = vmatmul.mubr.f32.gmra.mxu0 %v1100
        %v1809 = vpop.f32.mrf.mxu0
        %v1810 = vadd.f32 %v1585, %v1809
        %v1811 = vpop.f32.mrf.mxu0
        %1812 = vmatprep.mubr.f32.mxu0 %v1110
        %1813 = vmatmul.mubr.f32.gmra.mxu0 %v1109
        %v1814 = vpop.f32.mrf.mxu0
        %v1815 = vadd.f32 %v1590, %v1814
        %v1816 = vpop.f32.mrf.mxu0
        %1817 = vmatprep.mubr.f32.mxu0 %v1119
        %1818 = vmatmul.mubr.f32.gmra.mxu0 %v1118
        %v1819 = vpop.f32.mrf.mxu0
        %v1820 = vadd.f32 %v1595, %v1819
        %v1821 = vpop.f32.mrf.mxu0
        %1822 = vmatprep.mubr.f32.mxu0 %v1128
        %1823 = vmatmul.mubr.f32.gmra.mxu0 %v1127
        %v1824 = vpop.f32.mrf.mxu0
        %v1825 = vadd.f32 %v1600, %v1824
        %v1826 = vpop.f32.mrf.mxu0
        %1827 = vmatprep.mubr.f32.mxu0 %v1137
        %1828 = vmatmul.mubr.f32.gmra.mxu0 %v1136
        %v1829 = vpop.f32.mrf.mxu0
        %v1830 = vadd.f32 %v1605, %v1829
        %v1831 = vpop.f32.mrf.mxu0
        %1832 = vmatprep.mubr.f32.mxu0 %v1146
        %1833 = vmatmul.mubr.f32.gmra.mxu0 %v1145
        %v1834 = vpop.f32.mrf.mxu0
        %v1835 = vadd.f32 %v1610, %v1834
        %v1836 = vpop.f32.mrf.mxu0
        %1837 = vmatprep.mubr.f32.mxu0 %v1155
        %1838 = vmatmul.mubr.f32.gmra.mxu0 %v1154
        %v1839 = vpop.f32.mrf.mxu0
        %v1840 = vadd.f32 %v1615, %v1839
        %v1841 = vpop.f32.mrf.mxu0
        %1842 = vmatprep.mubr.f32.mxu0 %v1164
        %1843 = vmatmul.mubr.f32.gmra.mxu0 %v1163
        %v1844 = vpop.f32.mrf.mxu0
        %v1845 = vadd.f32 %v1620, %v1844
        %v1846 = vpop.f32.mrf.mxu0
        %1847 = vmatprep.mubr.f32.mxu0 %v1173
        %1848 = vmatmul.mubr.f32.gmra.mxu0 %v1172
        %v1849 = vpop.f32.mrf.mxu0
        %v1850 = vadd.f32 %v1625, %v1849
        %v1851 = vpop.f32.mrf.mxu0
        %1852 = vmatprep.mubr.f32.mxu0 %v1182
        %1853 = vmatmul.mubr.f32.gmra.mxu0 %v1181
        %v1854 = vpop.f32.mrf.mxu0
        %v1855 = vadd.f32 %v1630, %v1854
        %v1856 = vpop.f32.mrf.mxu0
        %1857 = vmatprep.mubr.f32.mxu0 %v1191
        %1858 = vmatmul.mubr.f32.gmra.mxu0 %v1190
        %v1859 = vpop.f32.mrf.mxu0
        %v1860 = vadd.f32 %v1635, %v1859
        %v1861 = vpop.f32.mrf.mxu0
        %1862 = vmatprep.mubr.f32.mxu0 %v1200
        %1863 = vmatmul.mubr.f32.gmra.mxu0 %v1199
        %v1864 = vpop.f32.mrf.mxu0
        %v1865 = vadd.f32 %v1640, %v1864
        %v1866 = vpop.f32.mrf.mxu0
        %1867 = vmatprep.mubr.f32.mxu0 %v1209
        %1868 = vmatmul.mubr.f32.gmra.mxu0 %v1208
        %v1869 = vpop.f32.mrf.mxu0
        %v1870 = vadd.f32 %v1645, %v1869
        %v1871 = vpop.f32.mrf.mxu0
        %1872 = vmatprep.mubr.f32.mxu0 %v1218
        %1873 = vmatmul.mubr.f32.gmra.mxu0 %v1217
        %v1874 = vpop.f32.mrf.mxu0
        %v1875 = vadd.f32 %v1650, %v1874
        %v1876 = vpop.f32.mrf.mxu0
        %1877 = vmatprep.mubr.f32.mxu0 %v1227
        %1878 = vmatmul.mubr.f32.gmra.mxu0 %v1226
        %v1879 = vpop.f32.mrf.mxu0
        %v1880 = vadd.f32 %v1655, %v1879
        %v1881 = vpop.f32.mrf.mxu0
        %1882 = vmatprep.mubr.f32.mxu0 %v1236
        %1883 = vmatmul.mubr.f32.gmra.mxu0 %v1235
        %v1884 = vpop.f32.mrf.mxu0
        %v1885 = vadd.f32 %v1660, %v1884
        %v1886 = vpop.f32.mrf.mxu0
        %1887 = vmatprep.mubr.f32.mxu0 %v1245
        %1888 = vmatmul.mubr.f32.gmra.mxu0 %v1244
        %v1889 = vpop.f32.mrf.mxu0
        %v1890 = vadd.f32 %v1665, %v1889
        %v1891 = vpop.f32.mrf.mxu0
        %1892 = vmatprep.mubr.f32.mxu0 %v1254
        %1893 = vmatmul.mubr.f32.gmra.mxu0 %v1253
        %v1894 = vpop.f32.mrf.mxu0
        %v1895 = vadd.f32 %v1670, %v1894
        %v1896 = vpop.f32.mrf.mxu0
        %1897 = vmatprep.mubr.f32.mxu0 %v1263
        %1898 = vmatmul.mubr.f32.gmra.mxu0 %v1262
        %v1899 = vpop.f32.mrf.mxu0
        %v1900 = vadd.f32 %v1675, %v1899
        %v1901 = vpop.f32.mrf.mxu0
        %1902 = vmatprep.mubr.f32.mxu0 %v1272
        %1903 = vmatmul.mubr.f32.gmra.mxu0 %v1271
        %v1904 = vpop.f32.mrf.mxu0
        %v1905 = vadd.f32 %v1680, %v1904
        %v1906 = vpop.f32.mrf.mxu0
        %1907 = vmatprep.mubr.f32.mxu0 %v1281
        %1908 = vmatmul.mubr.f32.gmra.mxu0 %v1280
        %v1909 = vpop.f32.mrf.mxu0
        %v1910 = vadd.f32 %v1685, %v1909
        %v1911 = vpop.f32.mrf.mxu0
        %1912 = vmatprep.mubr.f32.mxu0 %v1290
        %1913 = vmatmul.mubr.f32.gmra.mxu0 %v1289
        %v1914 = vpop.f32.mrf.mxu0
        %v1915 = vadd.f32 %v1690, %v1914
        %v1916 = vpop.f32.mrf.mxu0
        %1917 = vmatprep.mubr.f32.mxu0 %v1299
        %1918 = vmatmul.mubr.f32.gmra.mxu0 %v1298
        %v1919 = vpop.f32.mrf.mxu0
        %v1920 = vadd.f32 %v1695, %v1919
        %v1921 = vpop.f32.mrf.mxu0
        %1922 = vmatprep.mubr.f32.mxu0 %v1308
        %1923 = vmatmul.mubr.f32.gmra.mxu0 %v1307
        %v1924 = vpop.f32.mrf.mxu0
        %v1925 = vadd.f32 %v1700, %v1924
        %v1926 = vpop.f32.mrf.mxu0
        %1927 = vmatprep.mubr.f32.mxu0 %v1317
        %1928 = vmatmul.mubr.f32.gmra.mxu0 %v1316
        %v1929 = vpop.f32.mrf.mxu0
        %v1930 = vadd.f32 %v1705, %v1929
        %v1931 = vpop.f32.mrf.mxu0
        %1932 = vmatprep.mubr.f32.mxu0 %v1326
        %1933 = vmatmul.mubr.f32.gmra.mxu0 %v1325
        %v1934 = vpop.f32.mrf.mxu0
        %v1935 = vadd.f32 %v1710, %v1934
        %v1936 = vpop.f32.mrf.mxu0
        %1937 = vmatprep.mubr.f32.mxu0 %v1335
        %1938 = vmatmul.mubr.f32.gmra.mxu0 %v1334
        %v1939 = vpop.f32.mrf.mxu0
        %v1940 = vadd.f32 %v1715, %v1939
        %v1941 = vpop.f32.mrf.mxu0
        %1942 = vmatprep.mubr.f32.mxu0 %v1344
        %1943 = vmatmul.mubr.f32.gmra.mxu0 %v1343
        %v1944 = vpop.f32.mrf.mxu0
        %v1945 = vadd.f32 %v1720, %v1944
        %v1946 = vpop.f32.mrf.mxu0
        %1947 = vmatprep.mubr.f32.mxu0 %v1353
        %1948 = vmatmul.mubr.f32.gmra.mxu0 %v1352
        %v1949 = vpop.f32.mrf.mxu0
        %v1950 = vadd.f32 %v1725, %v1949
        %v1951 = vpop.f32.mrf.mxu0
        %1952 = vdwg.mxu0
        %1953 = vmatprep.subr.mxu0 0.0
        %1954 = vmatpush1.msra.mxu0 %v1438
        %1955 = vmatprep.subr.mxu0 0.0
        %1956 = vmatpush1.msra.mxu0 %v1437
        %1957 = vmatprep.subr.mxu0 0.0
        %1958 = vmatpush1.msra.mxu0 %v1436
        %1959 = vmatprep.subr.mxu0 0.0
        %1960 = vmatpush1.msra.mxu0 %v1435
        %1961 = vmatprep.subr.mxu0 0.0
        %1962 = vmatpush1.msra.mxu0 %v1434
        %1963 = vmatprep.subr.mxu0 0.0
        %1964 = vmatpush1.msra.mxu0 %v1433
        %1965 = vmatprep.subr.mxu0 0.0
        %1966 = vmatpush1.msra.mxu0 %v1432
        %1967 = vmatprep.subr.mxu0 0.0
        %1968 = vmatpush1.msra.mxu0 %v1431
        %1969 = vmatprep.subr.mxu0 0.0
        %1970 = vmatpush1.msra.mxu0 %v1430
        %1971 = vmatprep.subr.mxu0 0.0
        %1972 = vmatpush1.msra.mxu0 %v1429
        %1973 = vmatprep.subr.mxu0 0.0
        %1974 = vmatpush1.msra.mxu0 %v1428
        %1975 = vmatprep.subr.mxu0 0.0
        %1976 = vmatpush1.msra.mxu0 %v1427
        %1977 = vmatprep.subr.mxu0 0.0
        %1978 = vmatpush1.msra.mxu0 %v1426
        %1979 = vmatprep.subr.mxu0 0.0
        %1980 = vmatpush1.msra.mxu0 %v1425
        %1981 = vmatprep.subr.mxu0 0.0
        %1982 = vmatpush1.msra.mxu0 %v1424
        %1983 = vmatprep.subr.mxu0 0.0
        %1984 = vmatpush1.msra.mxu0 %v1423
        %1985 = vmatprep.subr.mxu0 0.0
        %1986 = vmatpush2.msra.mxu0 %v1454
        %1987 = vmatprep.subr.mxu0 0.0
        %1988 = vmatpush2.msra.mxu0 %v1453
        %1989 = vmatprep.subr.mxu0 0.0
        %1990 = vmatpush2.msra.mxu0 %v1452
        %1991 = vmatprep.subr.mxu0 0.0
        %1992 = vmatpush2.msra.mxu0 %v1451
        %1993 = vmatprep.subr.mxu0 0.0
        %1994 = vmatpush2.msra.mxu0 %v1450
        %1995 = vmatprep.subr.mxu0 0.0
        %1996 = vmatpush2.msra.mxu0 %v1449
        %1997 = vmatprep.subr.mxu0 0.0
        %1998 = vmatpush2.msra.mxu0 %v1448
        %1999 = vmatprep.subr.mxu0 0.0
        %2000 = vmatpush2.msra.mxu0 %v1447
        %2001 = vmatprep.subr.mxu0 0.0
        %2002 = vmatpush2.msra.mxu0 %v1446
        %2003 = vmatprep.subr.mxu0 0.0
        %2004 = vmatpush2.msra.mxu0 %v1445
        %2005 = vmatprep.subr.mxu0 0.0
        %2006 = vmatpush2.msra.mxu0 %v1444
        %2007 = vmatprep.subr.mxu0 0.0
        %2008 = vmatpush2.msra.mxu0 %v1443
        %2009 = vmatprep.subr.mxu0 0.0
        %2010 = vmatpush2.msra.mxu0 %v1442
        %2011 = vmatprep.subr.mxu0 0.0
        %2012 = vmatpush2.msra.mxu0 %v1441
        %2013 = vmatprep.subr.mxu0 0.0
        %2014 = vmatpush2.msra.mxu0 %v1440
        %2015 = vmatprep.subr.mxu0 0.0
        %2016 = vmatpush2.msra.mxu0 %v1439
        %2017 = vmatprep.mubr.f32.mxu0 %v1076
        %2018 = vmatmul.mubr.f32.gmra.mxu0 %v1075
        %v2019 = vpop.f32.mrf.mxu0
        %v2020 = vadd.f32 %v1795, %v2019
        %v2021 = vpop.f32.mrf.mxu0
        %2022 = vmatprep.mubr.f32.mxu0 %v1085
        %2023 = vmatmul.mubr.f32.gmra.mxu0 %v1084
        %v2024 = vpop.f32.mrf.mxu0
        %v2025 = vadd.f32 %v1800, %v2024
        %v2026 = vpop.f32.mrf.mxu0
        %2027 = vmatprep.mubr.f32.mxu0 %v1094
        %2028 = vmatmul.mubr.f32.gmra.mxu0 %v1093
        %v2029 = vpop.f32.mrf.mxu0
        %v2030 = vadd.f32 %v1805, %v2029
        %v2031 = vpop.f32.mrf.mxu0
        %2032 = vmatprep.mubr.f32.mxu0 %v1103
        %2033 = vmatmul.mubr.f32.gmra.mxu0 %v1102
        %v2034 = vpop.f32.mrf.mxu0
        %v2035 = vadd.f32 %v1810, %v2034
        %v2036 = vpop.f32.mrf.mxu0
        %2037 = vmatprep.mubr.f32.mxu0 %v1112
        %2038 = vmatmul.mubr.f32.gmra.mxu0 %v1111
        %v2039 = vpop.f32.mrf.mxu0
        %v2040 = vadd.f32 %v1815, %v2039
        %v2041 = vpop.f32.mrf.mxu0
        %2042 = vmatprep.mubr.f32.mxu0 %v1121
        %2043 = vmatmul.mubr.f32.gmra.mxu0 %v1120
        %v2044 = vpop.f32.mrf.mxu0
        %v2045 = vadd.f32 %v1820, %v2044
        %v2046 = vpop.f32.mrf.mxu0
        %2047 = vmatprep.mubr.f32.mxu0 %v1130
        %2048 = vmatmul.mubr.f32.gmra.mxu0 %v1129
        %v2049 = vpop.f32.mrf.mxu0
        %v2050 = vadd.f32 %v1825, %v2049
        %v2051 = vpop.f32.mrf.mxu0
        %2052 = vmatprep.mubr.f32.mxu0 %v1139
        %2053 = vmatmul.mubr.f32.gmra.mxu0 %v1138
        %v2054 = vpop.f32.mrf.mxu0
        %v2055 = vadd.f32 %v1830, %v2054
        %v2056 = vpop.f32.mrf.mxu0
        %2057 = vmatprep.mubr.f32.mxu0 %v1148
        %2058 = vmatmul.mubr.f32.gmra.mxu0 %v1147
        %v2059 = vpop.f32.mrf.mxu0
        %v2060 = vadd.f32 %v1835, %v2059
        %v2061 = vpop.f32.mrf.mxu0
        %2062 = vmatprep.mubr.f32.mxu0 %v1157
        %2063 = vmatmul.mubr.f32.gmra.mxu0 %v1156
        %v2064 = vpop.f32.mrf.mxu0
        %v2065 = vadd.f32 %v1840, %v2064
        %v2066 = vpop.f32.mrf.mxu0
        %2067 = vmatprep.mubr.f32.mxu0 %v1166
        %2068 = vmatmul.mubr.f32.gmra.mxu0 %v1165
        %v2069 = vpop.f32.mrf.mxu0
        %v2070 = vadd.f32 %v1845, %v2069
        %v2071 = vpop.f32.mrf.mxu0
        %2072 = vmatprep.mubr.f32.mxu0 %v1175
        %2073 = vmatmul.mubr.f32.gmra.mxu0 %v1174
        %v2074 = vpop.f32.mrf.mxu0
        %v2075 = vadd.f32 %v1850, %v2074
        %v2076 = vpop.f32.mrf.mxu0
        %2077 = vmatprep.mubr.f32.mxu0 %v1184
        %2078 = vmatmul.mubr.f32.gmra.mxu0 %v1183
        %v2079 = vpop.f32.mrf.mxu0
        %v2080 = vadd.f32 %v1855, %v2079
        %v2081 = vpop.f32.mrf.mxu0
        %2082 = vmatprep.mubr.f32.mxu0 %v1193
        %2083 = vmatmul.mubr.f32.gmra.mxu0 %v1192
        %v2084 = vpop.f32.mrf.mxu0
        %v2085 = vadd.f32 %v1860, %v2084
        %v2086 = vpop.f32.mrf.mxu0
        %2087 = vmatprep.mubr.f32.mxu0 %v1202
        %2088 = vmatmul.mubr.f32.gmra.mxu0 %v1201
        %v2089 = vpop.f32.mrf.mxu0
        %v2090 = vadd.f32 %v1865, %v2089
        %v2091 = vpop.f32.mrf.mxu0
        %2092 = vmatprep.mubr.f32.mxu0 %v1211
        %2093 = vmatmul.mubr.f32.gmra.mxu0 %v1210
        %v2094 = vpop.f32.mrf.mxu0
        %v2095 = vadd.f32 %v1870, %v2094
        %v2096 = vpop.f32.mrf.mxu0
        %2097 = vmatprep.mubr.f32.mxu0 %v1220
        %2098 = vmatmul.mubr.f32.gmra.mxu0 %v1219
        %v2099 = vpop.f32.mrf.mxu0
        %v2100 = vadd.f32 %v1875, %v2099
        %v2101 = vpop.f32.mrf.mxu0
        %2102 = vmatprep.mubr.f32.mxu0 %v1229
        %2103 = vmatmul.mubr.f32.gmra.mxu0 %v1228
        %v2104 = vpop.f32.mrf.mxu0
        %v2105 = vadd.f32 %v1880, %v2104
        %v2106 = vpop.f32.mrf.mxu0
        %2107 = vmatprep.mubr.f32.mxu0 %v1238
        %2108 = vmatmul.mubr.f32.gmra.mxu0 %v1237
        %v2109 = vpop.f32.mrf.mxu0
        %v2110 = vadd.f32 %v1885, %v2109
        %v2111 = vpop.f32.mrf.mxu0
        %2112 = vmatprep.mubr.f32.mxu0 %v1247
        %2113 = vmatmul.mubr.f32.gmra.mxu0 %v1246
        %v2114 = vpop.f32.mrf.mxu0
        %v2115 = vadd.f32 %v1890, %v2114
        %v2116 = vpop.f32.mrf.mxu0
        %2117 = vmatprep.mubr.f32.mxu0 %v1256
        %2118 = vmatmul.mubr.f32.gmra.mxu0 %v1255
        %v2119 = vpop.f32.mrf.mxu0
        %v2120 = vadd.f32 %v1895, %v2119
        %v2121 = vpop.f32.mrf.mxu0
        %2122 = vmatprep.mubr.f32.mxu0 %v1265
        %2123 = vmatmul.mubr.f32.gmra.mxu0 %v1264
        %v2124 = vpop.f32.mrf.mxu0
        %v2125 = vadd.f32 %v1900, %v2124
        %v2126 = vpop.f32.mrf.mxu0
        %2127 = vmatprep.mubr.f32.mxu0 %v1274
        %2128 = vmatmul.mubr.f32.gmra.mxu0 %v1273
        %v2129 = vpop.f32.mrf.mxu0
        %v2130 = vadd.f32 %v1905, %v2129
        %v2131 = vpop.f32.mrf.mxu0
        %2132 = vmatprep.mubr.f32.mxu0 %v1283
        %2133 = vmatmul.mubr.f32.gmra.mxu0 %v1282
        %v2134 = vpop.f32.mrf.mxu0
        %v2135 = vadd.f32 %v1910, %v2134
        %v2136 = vpop.f32.mrf.mxu0
        %2137 = vmatprep.mubr.f32.mxu0 %v1292
        %2138 = vmatmul.mubr.f32.gmra.mxu0 %v1291
        %v2139 = vpop.f32.mrf.mxu0
        %v2140 = vadd.f32 %v1915, %v2139
        %v2141 = vpop.f32.mrf.mxu0
        %2142 = vmatprep.mubr.f32.mxu0 %v1301
        %2143 = vmatmul.mubr.f32.gmra.mxu0 %v1300
        %v2144 = vpop.f32.mrf.mxu0
        %v2145 = vadd.f32 %v1920, %v2144
        %v2146 = vpop.f32.mrf.mxu0
        %2147 = vmatprep.mubr.f32.mxu0 %v1310
        %2148 = vmatmul.mubr.f32.gmra.mxu0 %v1309
        %v2149 = vpop.f32.mrf.mxu0
        %v2150 = vadd.f32 %v1925, %v2149
        %v2151 = vpop.f32.mrf.mxu0
        %2152 = vmatprep.mubr.f32.mxu0 %v1319
        %2153 = vmatmul.mubr.f32.gmra.mxu0 %v1318
        %v2154 = vpop.f32.mrf.mxu0
        %v2155 = vadd.f32 %v1930, %v2154
        %v2156 = vpop.f32.mrf.mxu0
        %2157 = vmatprep.mubr.f32.mxu0 %v1328
        %2158 = vmatmul.mubr.f32.gmra.mxu0 %v1327
        %v2159 = vpop.f32.mrf.mxu0
        %v2160 = vadd.f32 %v1935, %v2159
        %v2161 = vpop.f32.mrf.mxu0
        %2162 = vmatprep.mubr.f32.mxu0 %v1337
        %2163 = vmatmul.mubr.f32.gmra.mxu0 %v1336
        %v2164 = vpop.f32.mrf.mxu0
        %v2165 = vadd.f32 %v1940, %v2164
        %v2166 = vpop.f32.mrf.mxu0
        %2167 = vmatprep.mubr.f32.mxu0 %v1346
        %2168 = vmatmul.mubr.f32.gmra.mxu0 %v1345
        %v2169 = vpop.f32.mrf.mxu0
        %v2170 = vadd.f32 %v1945, %v2169
        %v2171 = vpop.f32.mrf.mxu0
        %2172 = vmatprep.mubr.f32.mxu0 %v1355
        %2173 = vmatmul.mubr.f32.gmra.mxu0 %v1354
        %v2174 = vpop.f32.mrf.mxu0
        %v2175 = vadd.f32 %v1950, %v2174
        %v2176 = vpop.f32.mrf.mxu0
        %2177 = vdwg.mxu0
        %2178 = vmatprep.subr.mxu0 0.0
        %2179 = vmatpush1.msra.mxu0 %v1470
        %2180 = vmatprep.subr.mxu0 0.0
        %2181 = vmatpush1.msra.mxu0 %v1469
        %2182 = vmatprep.subr.mxu0 0.0
        %2183 = vmatpush1.msra.mxu0 %v1468
        %2184 = vmatprep.subr.mxu0 0.0
        %2185 = vmatpush1.msra.mxu0 %v1467
        %2186 = vmatprep.subr.mxu0 0.0
        %2187 = vmatpush1.msra.mxu0 %v1466
        %2188 = vmatprep.subr.mxu0 0.0
        %2189 = vmatpush1.msra.mxu0 %v1465
        %2190 = vmatprep.subr.mxu0 0.0
        %2191 = vmatpush1.msra.mxu0 %v1464
        %2192 = vmatprep.subr.mxu0 0.0
        %2193 = vmatpush1.msra.mxu0 %v1463
        %2194 = vmatprep.subr.mxu0 0.0
        %2195 = vmatpush1.msra.mxu0 %v1462
        %2196 = vmatprep.subr.mxu0 0.0
        %2197 = vmatpush1.msra.mxu0 %v1461
        %2198 = vmatprep.subr.mxu0 0.0
        %2199 = vmatpush1.msra.mxu0 %v1460
        %2200 = vmatprep.subr.mxu0 0.0
        %2201 = vmatpush1.msra.mxu0 %v1459
        %2202 = vmatprep.subr.mxu0 0.0
        %2203 = vmatpush1.msra.mxu0 %v1458
        %2204 = vmatprep.subr.mxu0 0.0
        %2205 = vmatpush1.msra.mxu0 %v1457
        %2206 = vmatprep.subr.mxu0 0.0
        %2207 = vmatpush1.msra.mxu0 %v1456
        %2208 = vmatprep.subr.mxu0 0.0
        %2209 = vmatpush1.msra.mxu0 %v1455
        %2210 = vmatprep.subr.mxu0 0.0
        %2211 = vmatpush2.msra.mxu0 %v1486
        %2212 = vmatprep.subr.mxu0 0.0
        %2213 = vmatpush2.msra.mxu0 %v1485
        %2214 = vmatprep.subr.mxu0 0.0
        %2215 = vmatpush2.msra.mxu0 %v1484
        %2216 = vmatprep.subr.mxu0 0.0
        %2217 = vmatpush2.msra.mxu0 %v1483
        %2218 = vmatprep.subr.mxu0 0.0
        %2219 = vmatpush2.msra.mxu0 %v1482
        %2220 = vmatprep.subr.mxu0 0.0
        %2221 = vmatpush2.msra.mxu0 %v1481
        %2222 = vmatprep.subr.mxu0 0.0
        %2223 = vmatpush2.msra.mxu0 %v1480
        %2224 = vmatprep.subr.mxu0 0.0
        %2225 = vmatpush2.msra.mxu0 %v1479
        %2226 = vmatprep.subr.mxu0 0.0
        %2227 = vmatpush2.msra.mxu0 %v1478
        %2228 = vmatprep.subr.mxu0 0.0
        %2229 = vmatpush2.msra.mxu0 %v1477
        %2230 = vmatprep.subr.mxu0 0.0
        %2231 = vmatpush2.msra.mxu0 %v1476
        %2232 = vmatprep.subr.mxu0 0.0
        %2233 = vmatpush2.msra.mxu0 %v1475
        %2234 = vmatprep.subr.mxu0 0.0
        %2235 = vmatpush2.msra.mxu0 %v1474
        %2236 = vmatprep.subr.mxu0 0.0
        %2237 = vmatpush2.msra.mxu0 %v1473
        %2238 = vmatprep.subr.mxu0 0.0
        %2239 = vmatpush2.msra.mxu0 %v1472
        %2240 = vmatprep.subr.mxu0 0.0
        %2241 = vmatpush2.msra.mxu0 %v1471
        %2242 = vmatprep.mubr.f32.mxu0 %v1078
        %2243 = vmatmul.mubr.f32.gmra.mxu0 %v1077
        %v2244 = vpop.f32.mrf.mxu0
        %v2245 = vadd.f32 %v2020, %v2244
        %v2246 = vpop.f32.mrf.mxu0
        %2247 = vmatprep.mubr.f32.mxu0 %v1087
        %2248 = vmatmul.mubr.f32.gmra.mxu0 %v1086
        %v2249 = vpop.f32.mrf.mxu0
        %v2250 = vadd.f32 %v2025, %v2249
        %v2251 = vpop.f32.mrf.mxu0
        %2252 = vmatprep.mubr.f32.mxu0 %v1096
        %2253 = vmatmul.mubr.f32.gmra.mxu0 %v1095
        %v2254 = vpop.f32.mrf.mxu0
        %v2255 = vadd.f32 %v2030, %v2254
        %v2256 = vpop.f32.mrf.mxu0
        %2257 = vmatprep.mubr.f32.mxu0 %v1105
        %2258 = vmatmul.mubr.f32.gmra.mxu0 %v1104
        %v2259 = vpop.f32.mrf.mxu0
        %v2260 = vadd.f32 %v2035, %v2259
        %v2261 = vpop.f32.mrf.mxu0
        %2262 = vmatprep.mubr.f32.mxu0 %v1114
        %2263 = vmatmul.mubr.f32.gmra.mxu0 %v1113
        %v2264 = vpop.f32.mrf.mxu0
        %v2265 = vadd.f32 %v2040, %v2264
        %v2266 = vpop.f32.mrf.mxu0
        %2267 = vmatprep.mubr.f32.mxu0 %v1123
        %2268 = vmatmul.mubr.f32.gmra.mxu0 %v1122
        %v2269 = vpop.f32.mrf.mxu0
        %v2270 = vadd.f32 %v2045, %v2269
        %v2271 = vpop.f32.mrf.mxu0
        %2272 = vmatprep.mubr.f32.mxu0 %v1132
        %2273 = vmatmul.mubr.f32.gmra.mxu0 %v1131
        %v2274 = vpop.f32.mrf.mxu0
        %v2275 = vadd.f32 %v2050, %v2274
        %v2276 = vpop.f32.mrf.mxu0
        %2277 = vmatprep.mubr.f32.mxu0 %v1141
        %2278 = vmatmul.mubr.f32.gmra.mxu0 %v1140
        %v2279 = vpop.f32.mrf.mxu0
        %v2280 = vadd.f32 %v2055, %v2279
        %v2281 = vpop.f32.mrf.mxu0
        %2282 = vmatprep.mubr.f32.mxu0 %v1150
        %2283 = vmatmul.mubr.f32.gmra.mxu0 %v1149
        %v2284 = vpop.f32.mrf.mxu0
        %v2285 = vadd.f32 %v2060, %v2284
        %v2286 = vpop.f32.mrf.mxu0
        %2287 = vmatprep.mubr.f32.mxu0 %v1159
        %2288 = vmatmul.mubr.f32.gmra.mxu0 %v1158
        %v2289 = vpop.f32.mrf.mxu0
        %v2290 = vadd.f32 %v2065, %v2289
        %v2291 = vpop.f32.mrf.mxu0
        %2292 = vmatprep.mubr.f32.mxu0 %v1168
        %2293 = vmatmul.mubr.f32.gmra.mxu0 %v1167
        %v2294 = vpop.f32.mrf.mxu0
        %v2295 = vadd.f32 %v2070, %v2294
        %v2296 = vpop.f32.mrf.mxu0
        %2297 = vmatprep.mubr.f32.mxu0 %v1177
        %2298 = vmatmul.mubr.f32.gmra.mxu0 %v1176
        %v2299 = vpop.f32.mrf.mxu0
        %v2300 = vadd.f32 %v2075, %v2299
        %v2301 = vpop.f32.mrf.mxu0
        %2302 = vmatprep.mubr.f32.mxu0 %v1186
        %2303 = vmatmul.mubr.f32.gmra.mxu0 %v1185
        %v2304 = vpop.f32.mrf.mxu0
        %v2305 = vadd.f32 %v2080, %v2304
        %v2306 = vpop.f32.mrf.mxu0
        %2307 = vmatprep.mubr.f32.mxu0 %v1195
        %2308 = vmatmul.mubr.f32.gmra.mxu0 %v1194
        %v2309 = vpop.f32.mrf.mxu0
        %v2310 = vadd.f32 %v2085, %v2309
        %v2311 = vpop.f32.mrf.mxu0
        %2312 = vmatprep.mubr.f32.mxu0 %v1204
        %2313 = vmatmul.mubr.f32.gmra.mxu0 %v1203
        %v2314 = vpop.f32.mrf.mxu0
        %v2315 = vadd.f32 %v2090, %v2314
        %v2316 = vpop.f32.mrf.mxu0
        %2317 = vmatprep.mubr.f32.mxu0 %v1213
        %2318 = vmatmul.mubr.f32.gmra.mxu0 %v1212
        %v2319 = vpop.f32.mrf.mxu0
        %v2320 = vadd.f32 %v2095, %v2319
        %v2321 = vpop.f32.mrf.mxu0
        %2322 = vmatprep.mubr.f32.mxu0 %v1222
        %2323 = vmatmul.mubr.f32.gmra.mxu0 %v1221
        %v2324 = vpop.f32.mrf.mxu0
        %v2325 = vadd.f32 %v2100, %v2324
        %v2326 = vpop.f32.mrf.mxu0
        %2327 = vmatprep.mubr.f32.mxu0 %v1231
        %2328 = vmatmul.mubr.f32.gmra.mxu0 %v1230
        %v2329 = vpop.f32.mrf.mxu0
        %v2330 = vadd.f32 %v2105, %v2329
        %v2331 = vpop.f32.mrf.mxu0
        %2332 = vmatprep.mubr.f32.mxu0 %v1240
        %2333 = vmatmul.mubr.f32.gmra.mxu0 %v1239
        %v2334 = vpop.f32.mrf.mxu0
        %v2335 = vadd.f32 %v2110, %v2334
        %v2336 = vpop.f32.mrf.mxu0
        %2337 = vmatprep.mubr.f32.mxu0 %v1249
        %2338 = vmatmul.mubr.f32.gmra.mxu0 %v1248
        %v2339 = vpop.f32.mrf.mxu0
        %v2340 = vadd.f32 %v2115, %v2339
        %v2341 = vpop.f32.mrf.mxu0
        %2342 = vmatprep.mubr.f32.mxu0 %v1258
        %2343 = vmatmul.mubr.f32.gmra.mxu0 %v1257
        %v2344 = vpop.f32.mrf.mxu0
        %v2345 = vadd.f32 %v2120, %v2344
        %v2346 = vpop.f32.mrf.mxu0
        %2347 = vmatprep.mubr.f32.mxu0 %v1267
        %2348 = vmatmul.mubr.f32.gmra.mxu0 %v1266
        %v2349 = vpop.f32.mrf.mxu0
        %v2350 = vadd.f32 %v2125, %v2349
        %v2351 = vpop.f32.mrf.mxu0
        %2352 = vmatprep.mubr.f32.mxu0 %v1276
        %2353 = vmatmul.mubr.f32.gmra.mxu0 %v1275
        %v2354 = vpop.f32.mrf.mxu0
        %v2355 = vadd.f32 %v2130, %v2354
        %v2356 = vpop.f32.mrf.mxu0
        %2357 = vmatprep.mubr.f32.mxu0 %v1285
        %2358 = vmatmul.mubr.f32.gmra.mxu0 %v1284
        %v2359 = vpop.f32.mrf.mxu0
        %v2360 = vadd.f32 %v2135, %v2359
        %v2361 = vpop.f32.mrf.mxu0
        %2362 = vmatprep.mubr.f32.mxu0 %v1294
        %2363 = vmatmul.mubr.f32.gmra.mxu0 %v1293
        %v2364 = vpop.f32.mrf.mxu0
        %v2365 = vadd.f32 %v2140, %v2364
        %v2366 = vpop.f32.mrf.mxu0
        %2367 = vmatprep.mubr.f32.mxu0 %v1303
        %2368 = vmatmul.mubr.f32.gmra.mxu0 %v1302
        %v2369 = vpop.f32.mrf.mxu0
        %v2370 = vadd.f32 %v2145, %v2369
        %v2371 = vpop.f32.mrf.mxu0
        %2372 = vmatprep.mubr.f32.mxu0 %v1312
        %2373 = vmatmul.mubr.f32.gmra.mxu0 %v1311
        %v2374 = vpop.f32.mrf.mxu0
        %v2375 = vadd.f32 %v2150, %v2374
        %v2376 = vpop.f32.mrf.mxu0
        %2377 = vmatprep.mubr.f32.mxu0 %v1321
        %2378 = vmatmul.mubr.f32.gmra.mxu0 %v1320
        %v2379 = vpop.f32.mrf.mxu0
        %v2380 = vadd.f32 %v2155, %v2379
        %v2381 = vpop.f32.mrf.mxu0
        %2382 = vmatprep.mubr.f32.mxu0 %v1330
        %2383 = vmatmul.mubr.f32.gmra.mxu0 %v1329
        %v2384 = vpop.f32.mrf.mxu0
        %v2385 = vadd.f32 %v2160, %v2384
        %v2386 = vpop.f32.mrf.mxu0
        %2387 = vmatprep.mubr.f32.mxu0 %v1339
        %2388 = vmatmul.mubr.f32.gmra.mxu0 %v1338
        %v2389 = vpop.f32.mrf.mxu0
        %v2390 = vadd.f32 %v2165, %v2389
        %v2391 = vpop.f32.mrf.mxu0
        %2392 = vmatprep.mubr.f32.mxu0 %v1348
        %2393 = vmatmul.mubr.f32.gmra.mxu0 %v1347
        %v2394 = vpop.f32.mrf.mxu0
        %v2395 = vadd.f32 %v2170, %v2394
        %v2396 = vpop.f32.mrf.mxu0
        %2397 = vmatprep.mubr.f32.mxu0 %v1357
        %2398 = vmatmul.mubr.f32.gmra.mxu0 %v1356
        %v2399 = vpop.f32.mrf.mxu0
        %v2400 = vadd.f32 %v2175, %v2399
        %v2401 = vpop.f32.mrf.mxu0
        %2402 = vdwg.mxu0
        %2403 = vmatprep.subr.mxu0 0.0
        %2404 = vmatpush1.msra.mxu0 %v1502
        %2405 = vmatprep.subr.mxu0 0.0
        %2406 = vmatpush1.msra.mxu0 %v1501
        %2407 = vmatprep.subr.mxu0 0.0
        %2408 = vmatpush1.msra.mxu0 %v1500
        %2409 = vmatprep.subr.mxu0 0.0
        %2410 = vmatpush1.msra.mxu0 %v1499
        %2411 = vmatprep.subr.mxu0 0.0
        %2412 = vmatpush1.msra.mxu0 %v1498
        %2413 = vmatprep.subr.mxu0 0.0
        %2414 = vmatpush1.msra.mxu0 %v1497
        %2415 = vmatprep.subr.mxu0 0.0
        %2416 = vmatpush1.msra.mxu0 %v1496
        %2417 = vmatprep.subr.mxu0 0.0
        %2418 = vmatpush1.msra.mxu0 %v1495
        %2419 = vmatprep.subr.mxu0 0.0
        %2420 = vmatpush1.msra.mxu0 %v1494
        %2421 = vmatprep.subr.mxu0 0.0
        %2422 = vmatpush1.msra.mxu0 %v1493
        %2423 = vmatprep.subr.mxu0 0.0
        %2424 = vmatpush1.msra.mxu0 %v1492
        %2425 = vmatprep.subr.mxu0 0.0
        %2426 = vmatpush1.msra.mxu0 %v1491
        %2427 = vmatprep.subr.mxu0 0.0
        %2428 = vmatpush1.msra.mxu0 %v1490
        %2429 = vmatprep.subr.mxu0 0.0
        %2430 = vmatpush1.msra.mxu0 %v1489
        %2431 = vmatprep.subr.mxu0 0.0
        %2432 = vmatpush1.msra.mxu0 %v1488
        %2433 = vmatprep.subr.mxu0 0.0
        %2434 = vmatpush1.msra.mxu0 %v1487
        %2435 = vmatprep.subr.mxu0 0.0
        %2436 = vmatpush2.msra.mxu0 0.0
        %2437 = vmatprep.subr.mxu0 0.0
        %2438 = vmatpush2.msra.mxu0 0.0
        %2439 = vmatprep.subr.mxu0 0.0
        %2440 = vmatpush2.msra.mxu0 0.0
        %2441 = vmatprep.subr.mxu0 0.0
        %2442 = vmatpush2.msra.mxu0 0.0
        %2443 = vmatprep.subr.mxu0 0.0
        %2444 = vmatpush2.msra.mxu0 0.0
        %2445 = vmatprep.subr.mxu0 0.0
        %2446 = vmatpush2.msra.mxu0 0.0
        %2447 = vmatprep.subr.mxu0 0.0
        %2448 = vmatpush2.msra.mxu0 0.0
        %2449 = vmatprep.subr.mxu0 0.0
        %2450 = vmatpush2.msra.mxu0 0.0
        %2451 = vmatprep.subr.mxu0 0.0
        %2452 = vmatpush2.msra.mxu0 0.0
        %2453 = vmatprep.subr.mxu0 0.0
        %2454 = vmatpush2.msra.mxu0 0.0
        %2455 = vmatprep.subr.mxu0 0.0
        %2456 = vmatpush2.msra.mxu0 0.0
        %2457 = vmatprep.subr.mxu0 0.0
        %2458 = vmatpush2.msra.mxu0 0.0
        %2459 = vmatprep.subr.mxu0 0.0
        %2460 = vmatpush2.msra.mxu0 0.0
        %2461 = vmatprep.subr.mxu0 0.0
        %2462 = vmatpush2.msra.mxu0 0.0
        %2463 = vmatprep.subr.mxu0 0.0
        %2464 = vmatpush2.msra.mxu0 0.0
        %2465 = vmatprep.subr.mxu0 0.0
        %2466 = vmatpush2.msra.mxu0 0.0
        %2467 = vmatprep.mubr.f32.mxu0 0.0
        %2468 = vmatmul.mubr.f32.gmra.mxu0 %v1079
        %v2469 = vpop.f32.mrf.mxu0
        %v2470 = vadd.f32 %v2245, %v2469
        %v2471 = vpop.f32.mrf.mxu0
        %2472 = vmatprep.mubr.f32.mxu0 0.0
        %2473 = vmatmul.mubr.f32.gmra.mxu0 %v1088
        %v2474 = vpop.f32.mrf.mxu0
        %v2475 = vadd.f32 %v2250, %v2474
        %v2476 = vpop.f32.mrf.mxu0
        %2477 = vmatprep.mubr.f32.mxu0 0.0
        %2478 = vmatmul.mubr.f32.gmra.mxu0 %v1097
        %v2479 = vpop.f32.mrf.mxu0
        %v2480 = vadd.f32 %v2255, %v2479
        %v2481 = vpop.f32.mrf.mxu0
        %2482 = vmatprep.mubr.f32.mxu0 0.0
        %2483 = vmatmul.mubr.f32.gmra.mxu0 %v1106
        %v2484 = vpop.f32.mrf.mxu0
        %v2485 = vadd.f32 %v2260, %v2484
        %v2486 = vpop.f32.mrf.mxu0
        %2487 = vmatprep.mubr.f32.mxu0 0.0
        %2488 = vmatmul.mubr.f32.gmra.mxu0 %v1115
        %v2489 = vpop.f32.mrf.mxu0
        %v2490 = vadd.f32 %v2265, %v2489
        %v2491 = vpop.f32.mrf.mxu0
        %2492 = vmatprep.mubr.f32.mxu0 0.0
        %2493 = vmatmul.mubr.f32.gmra.mxu0 %v1124
        %v2494 = vpop.f32.mrf.mxu0
        %v2495 = vadd.f32 %v2270, %v2494
        %v2496 = vpop.f32.mrf.mxu0
        %2497 = vmatprep.mubr.f32.mxu0 0.0
        %2498 = vmatmul.mubr.f32.gmra.mxu0 %v1133
        %v2499 = vpop.f32.mrf.mxu0
        %v2500 = vadd.f32 %v2275, %v2499
        %v2501 = vpop.f32.mrf.mxu0
        %2502 = vmatprep.mubr.f32.mxu0 0.0
        %2503 = vmatmul.mubr.f32.gmra.mxu0 %v1142
        %v2504 = vpop.f32.mrf.mxu0
        %v2505 = vadd.f32 %v2280, %v2504
        %v2506 = vpop.f32.mrf.mxu0
        %2507 = vmatprep.mubr.f32.mxu0 0.0
        %2508 = vmatmul.mubr.f32.gmra.mxu0 %v1151
        %v2509 = vpop.f32.mrf.mxu0
        %v2510 = vadd.f32 %v2285, %v2509
        %v2511 = vpop.f32.mrf.mxu0
        %2512 = vmatprep.mubr.f32.mxu0 0.0
        %2513 = vmatmul.mubr.f32.gmra.mxu0 %v1160
        %v2514 = vpop.f32.mrf.mxu0
        %v2515 = vadd.f32 %v2290, %v2514
        %v2516 = vpop.f32.mrf.mxu0
        %2517 = vmatprep.mubr.f32.mxu0 0.0
        %2518 = vmatmul.mubr.f32.gmra.mxu0 %v1169
        %v2519 = vpop.f32.mrf.mxu0
        %v2520 = vadd.f32 %v2295, %v2519
        %v2521 = vpop.f32.mrf.mxu0
        %2522 = vmatprep.mubr.f32.mxu0 0.0
        %2523 = vmatmul.mubr.f32.gmra.mxu0 %v1178
        %v2524 = vpop.f32.mrf.mxu0
        %v2525 = vadd.f32 %v2300, %v2524
        %v2526 = vpop.f32.mrf.mxu0
        %2527 = vmatprep.mubr.f32.mxu0 0.0
        %2528 = vmatmul.mubr.f32.gmra.mxu0 %v1187
        %v2529 = vpop.f32.mrf.mxu0
        %v2530 = vadd.f32 %v2305, %v2529
        %v2531 = vpop.f32.mrf.mxu0
        %2532 = vmatprep.mubr.f32.mxu0 0.0
        %2533 = vmatmul.mubr.f32.gmra.mxu0 %v1196
        %v2534 = vpop.f32.mrf.mxu0
        %v2535 = vadd.f32 %v2310, %v2534
        %v2536 = vpop.f32.mrf.mxu0
        %2537 = vmatprep.mubr.f32.mxu0 0.0
        %2538 = vmatmul.mubr.f32.gmra.mxu0 %v1205
        %v2539 = vpop.f32.mrf.mxu0
        %v2540 = vadd.f32 %v2315, %v2539
        %v2541 = vpop.f32.mrf.mxu0
        %2542 = vmatprep.mubr.f32.mxu0 0.0
        %2543 = vmatmul.mubr.f32.gmra.mxu0 %v1214
        %v2544 = vpop.f32.mrf.mxu0
        %v2545 = vadd.f32 %v2320, %v2544
        %v2546 = vpop.f32.mrf.mxu0
        %2547 = vmatprep.mubr.f32.mxu0 0.0
        %2548 = vmatmul.mubr.f32.gmra.mxu0 %v1223
        %v2549 = vpop.f32.mrf.mxu0
        %v2550 = vadd.f32 %v2325, %v2549
        %v2551 = vpop.f32.mrf.mxu0
        %2552 = vmatprep.mubr.f32.mxu0 0.0
        %2553 = vmatmul.mubr.f32.gmra.mxu0 %v1232
        %v2554 = vpop.f32.mrf.mxu0
        %v2555 = vadd.f32 %v2330, %v2554
        %v2556 = vpop.f32.mrf.mxu0
        %2557 = vmatprep.mubr.f32.mxu0 0.0
        %2558 = vmatmul.mubr.f32.gmra.mxu0 %v1241
        %v2559 = vpop.f32.mrf.mxu0
        %v2560 = vadd.f32 %v2335, %v2559
        %v2561 = vpop.f32.mrf.mxu0
        %2562 = vmatprep.mubr.f32.mxu0 0.0
        %2563 = vmatmul.mubr.f32.gmra.mxu0 %v1250
        %v2564 = vpop.f32.mrf.mxu0
        %v2565 = vadd.f32 %v2340, %v2564
        %v2566 = vpop.f32.mrf.mxu0
        %2567 = vmatprep.mubr.f32.mxu0 0.0
        %2568 = vmatmul.mubr.f32.gmra.mxu0 %v1259
        %v2569 = vpop.f32.mrf.mxu0
        %v2570 = vadd.f32 %v2345, %v2569
        %v2571 = vpop.f32.mrf.mxu0
        %2572 = vmatprep.mubr.f32.mxu0 0.0
        %2573 = vmatmul.mubr.f32.gmra.mxu0 %v1268
        %v2574 = vpop.f32.mrf.mxu0
        %v2575 = vadd.f32 %v2350, %v2574
        %v2576 = vpop.f32.mrf.mxu0
        %2577 = vmatprep.mubr.f32.mxu0 0.0
        %2578 = vmatmul.mubr.f32.gmra.mxu0 %v1277
        %v2579 = vpop.f32.mrf.mxu0
        %v2580 = vadd.f32 %v2355, %v2579
        %v2581 = vpop.f32.mrf.mxu0
        %2582 = vmatprep.mubr.f32.mxu0 0.0
        %2583 = vmatmul.mubr.f32.gmra.mxu0 %v1286
        %v2584 = vpop.f32.mrf.mxu0
        %v2585 = vadd.f32 %v2360, %v2584
        %v2586 = vpop.f32.mrf.mxu0
        %2587 = vmatprep.mubr.f32.mxu0 0.0
        %2588 = vmatmul.mubr.f32.gmra.mxu0 %v1295
        %v2589 = vpop.f32.mrf.mxu0
        %v2590 = vadd.f32 %v2365, %v2589
        %v2591 = vpop.f32.mrf.mxu0
        %2592 = vmatprep.mubr.f32.mxu0 0.0
        %2593 = vmatmul.mubr.f32.gmra.mxu0 %v1304
        %v2594 = vpop.f32.mrf.mxu0
        %v2595 = vadd.f32 %v2370, %v2594
        %v2596 = vpop.f32.mrf.mxu0
        %2597 = vmatprep.mubr.f32.mxu0 0.0
        %2598 = vmatmul.mubr.f32.gmra.mxu0 %v1313
        %v2599 = vpop.f32.mrf.mxu0
        %v2600 = vadd.f32 %v2375, %v2599
        %v2601 = vpop.f32.mrf.mxu0
        %2602 = vmatprep.mubr.f32.mxu0 0.0
        %2603 = vmatmul.mubr.f32.gmra.mxu0 %v1322
        %v2604 = vpop.f32.mrf.mxu0
        %v2605 = vadd.f32 %v2380, %v2604
        %v2606 = vpop.f32.mrf.mxu0
        %2607 = vmatprep.mubr.f32.mxu0 0.0
        %2608 = vmatmul.mubr.f32.gmra.mxu0 %v1331
        %v2609 = vpop.f32.mrf.mxu0
        %v2610 = vadd.f32 %v2385, %v2609
        %v2611 = vpop.f32.mrf.mxu0
        %2612 = vmatprep.mubr.f32.mxu0 0.0
        %2613 = vmatmul.mubr.f32.gmra.mxu0 %v1340
        %v2614 = vpop.f32.mrf.mxu0
        %v2615 = vadd.f32 %v2390, %v2614
        %v2616 = vpop.f32.mrf.mxu0
        %2617 = vmatprep.mubr.f32.mxu0 0.0
        %2618 = vmatmul.mubr.f32.gmra.mxu0 %v1349
        %v2619 = vpop.f32.mrf.mxu0
        %v2620 = vadd.f32 %v2395, %v2619
        %v2621 = vpop.f32.mrf.mxu0
        %2622 = vmatprep.mubr.f32.mxu0 0.0
        %2623 = vmatmul.mubr.f32.gmra.mxu0 %v1358
        %v2624 = vpop.f32.mrf.mxu0
        %v2625 = vadd.f32 %v2400, %v2624
        %v2626 = vpop.f32.mrf.mxu0
        %2627 = vdwg.mxu0
        %v2628 = vld [vmem:[%s2] sm:$0x1]
        %v2630 = vlaneseq
        %v2631 = vshrl.u32 %v2630, 7
        %v2632 = vsub.s32 0, %v2631
        %v2633 = vrot.slane %v2628, %v2632
        %v2635 = vmul.f32 %v2470, %v2633
        %v2636 = vmul.f32 %v2475, %v2633
        %v2637 = vmul.f32 %v2480, %v2633
        %v2638 = vmul.f32 %v2485, %v2633
        %v2639 = vmul.f32 %v2490, %v2633
        %v2640 = vmul.f32 %v2495, %v2633
        %v2641 = vmul.f32 %v2500, %v2633
        %v2642 = vmul.f32 %v2505, %v2633
        %v2643 = vmul.f32 %v2510, %v2633
        %v2644 = vmul.f32 %v2515, %v2633
        %v2645 = vmul.f32 %v2520, %v2633
        %v2646 = vmul.f32 %v2525, %v2633
        %v2647 = vmul.f32 %v2530, %v2633
        %v2648 = vmul.f32 %v2535, %v2633
        %v2649 = vmul.f32 %v2540, %v2633
        %v2650 = vmul.f32 %v2545, %v2633
        %v2651 = vmul.f32 %v2550, %v2633
        %v2652 = vmul.f32 %v2555, %v2633
        %v2653 = vmul.f32 %v2560, %v2633
        %v2654 = vmul.f32 %v2565, %v2633
        %v2655 = vmul.f32 %v2570, %v2633
        %v2656 = vmul.f32 %v2575, %v2633
        %v2657 = vmul.f32 %v2580, %v2633
        %v2658 = vmul.f32 %v2585, %v2633
        %v2659 = vmul.f32 %v2590, %v2633
        %v2660 = vmul.f32 %v2595, %v2633
        %v2661 = vmul.f32 %v2600, %v2633
        %v2662 = vmul.f32 %v2605, %v2633
        %v2663 = vmul.f32 %v2610, %v2633
        %v2664 = vmul.f32 %v2615, %v2633
        %v2665 = vmul.f32 %v2620, %v2633
        %v2666 = vmul.f32 %v2625, %v2633
        %v2667 = vld [vmem:[%s3] sm:$0x1]
        %v2669 = vlaneseq
        %v2670 = vshrl.u32 %v2669, 7
        %v2671 = vsub.s32 0, %v2670
        %v2672 = vrot.slane %v2667, %v2671
        %v2674 = vadd.f32 %v2635, %v2672
        %v2675 = vadd.f32 %v2636, %v2672
        %v2676 = vadd.f32 %v2637, %v2672
        %v2677 = vadd.f32 %v2638, %v2672
        %v2678 = vadd.f32 %v2639, %v2672
        %v2679 = vadd.f32 %v2640, %v2672
        %v2680 = vadd.f32 %v2641, %v2672
        %v2681 = vadd.f32 %v2642, %v2672
        %v2682 = vadd.f32 %v2643, %v2672
        %v2683 = vadd.f32 %v2644, %v2672
        %v2684 = vadd.f32 %v2645, %v2672
        %v2685 = vadd.f32 %v2646, %v2672
        %v2686 = vadd.f32 %v2647, %v2672
        %v2687 = vadd.f32 %v2648, %v2672
        %v2688 = vadd.f32 %v2649, %v2672
        %v2689 = vadd.f32 %v2650, %v2672
        %v2690 = vadd.f32 %v2651, %v2672
        %v2691 = vadd.f32 %v2652, %v2672
        %v2692 = vadd.f32 %v2653, %v2672
        %v2693 = vadd.f32 %v2654, %v2672
        %v2694 = vadd.f32 %v2655, %v2672
        %v2695 = vadd.f32 %v2656, %v2672
        %v2696 = vadd.f32 %v2657, %v2672
        %v2697 = vadd.f32 %v2658, %v2672
        %v2698 = vadd.f32 %v2659, %v2672
        %v2699 = vadd.f32 %v2660, %v2672
        %v2700 = vadd.f32 %v2661, %v2672
        %v2701 = vadd.f32 %v2662, %v2672
        %v2702 = vadd.f32 %v2663, %v2672
        %v2703 = vadd.f32 %v2664, %v2672
        %v2704 = vadd.f32 %v2665, %v2672
        %v2705 = vadd.f32 %v2666, %v2672
        %v2706 = vmax.f32 %v2674, 0.0
        %v2707 = vmax.f32 %v2675, 0.0
        %v2708 = vmax.f32 %v2676, 0.0
        %v2709 = vmax.f32 %v2677, 0.0
        %v2710 = vmax.f32 %v2678, 0.0
        %v2711 = vmax.f32 %v2679, 0.0
        %v2712 = vmax.f32 %v2680, 0.0
        %v2713 = vmax.f32 %v2681, 0.0
        %v2714 = vmax.f32 %v2682, 0.0
        %v2715 = vmax.f32 %v2683, 0.0
        %v2716 = vmax.f32 %v2684, 0.0
        %v2717 = vmax.f32 %v2685, 0.0
        %v2718 = vmax.f32 %v2686, 0.0
        %v2719 = vmax.f32 %v2687, 0.0
        %v2720 = vmax.f32 %v2688, 0.0
        %v2721 = vmax.f32 %v2689, 0.0
        %v2722 = vmax.f32 %v2690, 0.0
        %v2723 = vmax.f32 %v2691, 0.0
        %v2724 = vmax.f32 %v2692, 0.0
        %v2725 = vmax.f32 %v2693, 0.0
        %v2726 = vmax.f32 %v2694, 0.0
        %v2727 = vmax.f32 %v2695, 0.0
        %v2728 = vmax.f32 %v2696, 0.0
        %v2729 = vmax.f32 %v2697, 0.0
        %v2730 = vmax.f32 %v2698, 0.0
        %v2731 = vmax.f32 %v2699, 0.0
        %v2732 = vmax.f32 %v2700, 0.0
        %v2733 = vmax.f32 %v2701, 0.0
        %v2734 = vmax.f32 %v2702, 0.0
        %v2735 = vmax.f32 %v2703, 0.0
        %v2736 = vmax.f32 %v2704, 0.0
        %v2737 = vmax.f32 %v2705, 0.0
        %s2738 = scalar_lea.vmem [#allocation3], 24
        %2739 = vst [vmem:[%s2738 + $0x1] sm:$0xff] %v2706
        %2740 = vst [vmem:[%s2738 + $0x9] sm:$0xff] %v2707
        %2741 = vst [vmem:[%s2738 + $0x19] sm:$0xff] %v2708
        %2742 = vst [vmem:[%s2738 + $0x21] sm:$0xff] %v2709
        %2743 = vst [vmem:[%s2738 + $0x31] sm:$0xff] %v2710
        %2744 = vst [vmem:[%s2738 + $0x39] sm:$0xff] %v2711
        %2745 = vst [vmem:[%s2738 + $0x49] sm:$0xff] %v2712
        %2746 = vst [vmem:[%s2738 + $0x51] sm:$0xff] %v2713
        %2747 = vst [vmem:[%s2738 + $0x61] sm:$0xff] %v2714
        %2748 = vst [vmem:[%s2738 + $0x69] sm:$0xff] %v2715
        %2749 = vst [vmem:[%s2738 + $0x79] sm:$0xff] %v2716
        %2750 = vst [vmem:[%s2738 + $0x81] sm:$0xff] %v2717
        %2751 = vst [vmem:[%s2738 + $0x91] sm:$0xff] %v2718
        %2752 = vst [vmem:[%s2738 + $0x99] sm:$0xff] %v2719
        %2753 = vst [vmem:[%s2738 + $0xa9] sm:$0xff] %v2720
        %2754 = vst [vmem:[%s2738 + $0xb1] sm:$0xff] %v2721
        %2755 = vst [vmem:[%s2738 + $0xc1] sm:$0xff] %v2722
        %2756 = vst [vmem:[%s2738 + $0xc9] sm:$0xff] %v2723
        %2757 = vst [vmem:[%s2738 + $0xd9] sm:$0xff] %v2724
        %2758 = vst [vmem:[%s2738 + $0xe1] sm:$0xff] %v2725
        %2759 = vst [vmem:[%s2738 + $0xf1] sm:$0xff] %v2726
        %2760 = vst [vmem:[%s2738 + $0xf9] sm:$0xff] %v2727
        %2761 = vst [vmem:[%s2738 + $0x109] sm:$0xff] %v2728
        %2762 = vst [vmem:[%s2738 + $0x111] sm:$0xff] %v2729
        %2763 = vst [vmem:[%s2738 + $0x121] sm:$0xff] %v2730
        %2764 = vst [vmem:[%s2738 + $0x129] sm:$0xff] %v2731
        %2765 = vst [vmem:[%s2738 + $0x139] sm:$0xff] %v2732
        %2766 = vst [vmem:[%s2738 + $0x141] sm:$0xff] %v2733
        %2767 = vst [vmem:[%s2738 + $0x151] sm:$0xff] %v2734
        %2768 = vst [vmem:[%s2738 + $0x159] sm:$0xff] %v2735
        %2769 = vst [vmem:[%s2738 + $0x169] sm:$0xff] %v2736
        %2770 = vst [vmem:[%s2738 + $0x171] sm:$0xff] %v2737
        %v2771 = vld [vmem:[#allocation3] sm:$0xff]
        %v2772 = vld [vmem:[#allocation3 + $0x8] sm:$0xff]
        %v2773 = vld [vmem:[#allocation3 + $0x18] sm:$0xff]
        %v2774 = vld [vmem:[#allocation3 + $0x20] sm:$0xff]
        %v2775 = vld [vmem:[#allocation3 + $0x30] sm:$0xff]
        %v2776 = vld [vmem:[#allocation3 + $0x38] sm:$0xff]
        %v2777 = vld [vmem:[#allocation3 + $0x48] sm:$0xff]
        %v2778 = vld [vmem:[#allocation3 + $0x50] sm:$0xff]
        %v2779 = vld [vmem:[#allocation3 + $0x60] sm:$0xff]
        %v2780 = vld [vmem:[#allocation3 + $0x68] sm:$0xff]
        %v2781 = vld [vmem:[#allocation3 + $0x78] sm:$0xff]
        %v2782 = vld [vmem:[#allocation3 + $0x80] sm:$0xff]
        %v2783 = vld [vmem:[#allocation3 + $0x90] sm:$0xff]
        %v2784 = vld [vmem:[#allocation3 + $0x98] sm:$0xff]
        %v2785 = vld [vmem:[#allocation3 + $0xa8] sm:$0xff]
        %v2786 = vld [vmem:[#allocation3 + $0xb0] sm:$0xff]
        %v2787 = vld [vmem:[#allocation3 + $0xc0] sm:$0xff]
        %v2788 = vld [vmem:[#allocation3 + $0xc8] sm:$0xff]
        %v2789 = vld [vmem:[#allocation3 + $0xd8] sm:$0xff]
        %v2790 = vld [vmem:[#allocation3 + $0xe0] sm:$0xff]
        %v2791 = vld [vmem:[#allocation3 + $0xf0] sm:$0xff]
        %v2792 = vld [vmem:[#allocation3 + $0xf8] sm:$0xff]
        %v2793 = vld [vmem:[#allocation3 + $0x108] sm:$0xff]
        %v2794 = vld [vmem:[#allocation3 + $0x110] sm:$0xff]
        %v2795 = vld [vmem:[#allocation3 + $0x120] sm:$0xff]
        %v2796 = vld [vmem:[#allocation3 + $0x128] sm:$0xff]
        %v2797 = vld [vmem:[#allocation3 + $0x138] sm:$0xff]
        %v2798 = vld [vmem:[#allocation3 + $0x140] sm:$0xff]
        %v2799 = vld [vmem:[#allocation3 + $0x150] sm:$0xff]
        %v2800 = vld [vmem:[#allocation3 + $0x158] sm:$0xff]
        %v2801 = vld [vmem:[#allocation3 + $0x168] sm:$0xff]
        %v2802 = vld [vmem:[#allocation3 + $0x170] sm:$0xff]
        %2803 = vst [vmem:[#allocation5] sm:$0xff] %v2771
        %2804 = vst [vmem:[#allocation5 + $0x48] sm:$0xff] %v2772
        %2805 = vst [vmem:[#allocation5 + $0x90] sm:$0xff] %v2773
        %2806 = vst [vmem:[#allocation5 + $0xd8] sm:$0xff] %v2774
        %2807 = vst [vmem:[#allocation5 + $0x120] sm:$0xff] %v2775
        %2808 = vst [vmem:[#allocation5 + $0x168] sm:$0xff] %v2776
        %2809 = vst [vmem:[#allocation5 + $0x1b0] sm:$0xff] %v2777
        %2810 = vst [vmem:[#allocation5 + $0x1f8] sm:$0xff] %v2778
        %2811 = vst [vmem:[#allocation5 + $0x240] sm:$0xff] %v2779
        %2812 = vst [vmem:[#allocation5 + $0x288] sm:$0xff] %v2780
        %2813 = vst [vmem:[#allocation5 + $0x2d0] sm:$0xff] %v2781
        %2814 = vst [vmem:[#allocation5 + $0x318] sm:$0xff] %v2782
        %2815 = vst [vmem:[#allocation5 + $0x360] sm:$0xff] %v2783
        %2816 = vst [vmem:[#allocation5 + $0x3a8] sm:$0xff] %v2784
        %2817 = vst [vmem:[#allocation5 + $0x3f0] sm:$0xff] %v2785
        %2818 = vst [vmem:[#allocation5 + $0x438] sm:$0xff] %v2786
        %2819 = vst [vmem:[#allocation5 + $0x480] sm:$0xff] %v2787
        %2820 = vst [vmem:[#allocation5 + $0x4c8] sm:$0xff] %v2788
        %2821 = vst [vmem:[#allocation5 + $0x510] sm:$0xff] %v2789
        %2822 = vst [vmem:[#allocation5 + $0x558] sm:$0xff] %v2790
        %2823 = vst [vmem:[#allocation5 + $0x5a0] sm:$0xff] %v2791
        %2824 = vst [vmem:[#allocation5 + $0x5e8] sm:$0xff] %v2792
        %2825 = vst [vmem:[#allocation5 + $0x630] sm:$0xff] %v2793
        %2826 = vst [vmem:[#allocation5 + $0x678] sm:$0xff] %v2794
        %2827 = vst [vmem:[#allocation5 + $0x6c0] sm:$0xff] %v2795
        %2828 = vst [vmem:[#allocation5 + $0x708] sm:$0xff] %v2796
        %2829 = vst [vmem:[#allocation5 + $0x750] sm:$0xff] %v2797
        %2830 = vst [vmem:[#allocation5 + $0x798] sm:$0xff] %v2798
        %2831 = vst [vmem:[#allocation5 + $0x7e0] sm:$0xff] %v2799
        %2832 = vst [vmem:[#allocation5 + $0x828] sm:$0xff] %v2800
        %2833 = vst [vmem:[#allocation5 + $0x870] sm:$0xff] %v2801
        %2834 = vst [vmem:[#allocation5 + $0x8b8] sm:$0xff] %v2802
        %v2835 = vld [vmem:[#allocation3 + $0x1] sm:$0xff]
        %v2836 = vld [vmem:[#allocation3 + $0x9] sm:$0xff]
        %v2837 = vld [vmem:[#allocation3 + $0x19] sm:$0xff]
        %v2838 = vld [vmem:[#allocation3 + $0x21] sm:$0xff]
        %v2839 = vld [vmem:[#allocation3 + $0x31] sm:$0xff]
        %v2840 = vld [vmem:[#allocation3 + $0x39] sm:$0xff]
        %v2841 = vld [vmem:[#allocation3 + $0x49] sm:$0xff]
        %v2842 = vld [vmem:[#allocation3 + $0x51] sm:$0xff]
        %v2843 = vld [vmem:[#allocation3 + $0x61] sm:$0xff]
        %v2844 = vld [vmem:[#allocation3 + $0x69] sm:$0xff]
        %v2845 = vld [vmem:[#allocation3 + $0x79] sm:$0xff]
        %v2846 = vld [vmem:[#allocation3 + $0x81] sm:$0xff]
        %v2847 = vld [vmem:[#allocation3 + $0x91] sm:$0xff]
        %v2848 = vld [vmem:[#allocation3 + $0x99] sm:$0xff]
        %v2849 = vld [vmem:[#allocation3 + $0xa9] sm:$0xff]
        %v2850 = vld [vmem:[#allocation3 + $0xb1] sm:$0xff]
        %v2851 = vld [vmem:[#allocation3 + $0xc1] sm:$0xff]
        %v2852 = vld [vmem:[#allocation3 + $0xc9] sm:$0xff]
        %v2853 = vld [vmem:[#allocation3 + $0xd9] sm:$0xff]
        %v2854 = vld [vmem:[#allocation3 + $0xe1] sm:$0xff]
        %v2855 = vld [vmem:[#allocation3 + $0xf1] sm:$0xff]
        %v2856 = vld [vmem:[#allocation3 + $0xf9] sm:$0xff]
        %v2857 = vld [vmem:[#allocation3 + $0x109] sm:$0xff]
        %v2858 = vld [vmem:[#allocation3 + $0x111] sm:$0xff]
        %v2859 = vld [vmem:[#allocation3 + $0x121] sm:$0xff]
        %v2860 = vld [vmem:[#allocation3 + $0x129] sm:$0xff]
        %v2861 = vld [vmem:[#allocation3 + $0x139] sm:$0xff]
        %v2862 = vld [vmem:[#allocation3 + $0x141] sm:$0xff]
        %v2863 = vld [vmem:[#allocation3 + $0x151] sm:$0xff]
        %v2864 = vld [vmem:[#allocation3 + $0x159] sm:$0xff]
        %v2865 = vld [vmem:[#allocation3 + $0x169] sm:$0xff]
        %v2866 = vld [vmem:[#allocation3 + $0x171] sm:$0xff]
        %2867 = vst [vmem:[#allocation5 + $0x8] sm:$0xff] %v2835
        %2868 = vst [vmem:[#allocation5 + $0x50] sm:$0xff] %v2836
        %2869 = vst [vmem:[#allocation5 + $0x98] sm:$0xff] %v2837
        %2870 = vst [vmem:[#allocation5 + $0xe0] sm:$0xff] %v2838
        %2871 = vst [vmem:[#allocation5 + $0x128] sm:$0xff] %v2839
        %2872 = vst [vmem:[#allocation5 + $0x170] sm:$0xff] %v2840
        %2873 = vst [vmem:[#allocation5 + $0x1b8] sm:$0xff] %v2841
        %2874 = vst [vmem:[#allocation5 + $0x200] sm:$0xff] %v2842
        %2875 = vst [vmem:[#allocation5 + $0x248] sm:$0xff] %v2843
        %2876 = vst [vmem:[#allocation5 + $0x290] sm:$0xff] %v2844
        %2877 = vst [vmem:[#allocation5 + $0x2d8] sm:$0xff] %v2845
        %2878 = vst [vmem:[#allocation5 + $0x320] sm:$0xff] %v2846
        %2879 = vst [vmem:[#allocation5 + $0x368] sm:$0xff] %v2847
        %2880 = vst [vmem:[#allocation5 + $0x3b0] sm:$0xff] %v2848
        %2881 = vst [vmem:[#allocation5 + $0x3f8] sm:$0xff] %v2849
        %2882 = vst [vmem:[#allocation5 + $0x440] sm:$0xff] %v2850
        %2883 = vst [vmem:[#allocation5 + $0x488] sm:$0xff] %v2851
        %2884 = vst [vmem:[#allocation5 + $0x4d0] sm:$0xff] %v2852
        %2885 = vst [vmem:[#allocation5 + $0x518] sm:$0xff] %v2853
        %2886 = vst [vmem:[#allocation5 + $0x560] sm:$0xff] %v2854
        %2887 = vst [vmem:[#allocation5 + $0x5a8] sm:$0xff] %v2855
        %2888 = vst [vmem:[#allocation5 + $0x5f0] sm:$0xff] %v2856
        %2889 = vst [vmem:[#allocation5 + $0x638] sm:$0xff] %v2857
        %2890 = vst [vmem:[#allocation5 + $0x680] sm:$0xff] %v2858
        %2891 = vst [vmem:[#allocation5 + $0x6c8] sm:$0xff] %v2859
        %2892 = vst [vmem:[#allocation5 + $0x710] sm:$0xff] %v2860
        %2893 = vst [vmem:[#allocation5 + $0x758] sm:$0xff] %v2861
        %2894 = vst [vmem:[#allocation5 + $0x7a0] sm:$0xff] %v2862
        %2895 = vst [vmem:[#allocation5 + $0x7e8] sm:$0xff] %v2863
        %2896 = vst [vmem:[#allocation5 + $0x830] sm:$0xff] %v2864
        %2897 = vst [vmem:[#allocation5 + $0x878] sm:$0xff] %v2865
        %2898 = vst [vmem:[#allocation5 + $0x8c0] sm:$0xff] %v2866
        %v2899 = vld [vmem:[#allocation3 + $0x2] sm:$0xff]
        %v2900 = vld [vmem:[#allocation3 + $0xa] sm:$0xff]
        %v2901 = vld [vmem:[#allocation3 + $0x1a] sm:$0xff]
        %v2902 = vld [vmem:[#allocation3 + $0x22] sm:$0xff]
        %v2903 = vld [vmem:[#allocation3 + $0x32] sm:$0xff]
        %v2904 = vld [vmem:[#allocation3 + $0x3a] sm:$0xff]
        %v2905 = vld [vmem:[#allocation3 + $0x4a] sm:$0xff]
        %v2906 = vld [vmem:[#allocation3 + $0x52] sm:$0xff]
        %v2907 = vld [vmem:[#allocation3 + $0x62] sm:$0xff]
        %v2908 = vld [vmem:[#allocation3 + $0x6a] sm:$0xff]
        %v2909 = vld [vmem:[#allocation3 + $0x7a] sm:$0xff]
        %v2910 = vld [vmem:[#allocation3 + $0x82] sm:$0xff]
        %v2911 = vld [vmem:[#allocation3 + $0x92] sm:$0xff]
        %v2912 = vld [vmem:[#allocation3 + $0x9a] sm:$0xff]
        %v2913 = vld [vmem:[#allocation3 + $0xaa] sm:$0xff]
        %v2914 = vld [vmem:[#allocation3 + $0xb2] sm:$0xff]
        %v2915 = vld [vmem:[#allocation3 + $0xc2] sm:$0xff]
        %v2916 = vld [vmem:[#allocation3 + $0xca] sm:$0xff]
        %v2917 = vld [vmem:[#allocation3 + $0xda] sm:$0xff]
        %v2918 = vld [vmem:[#allocation3 + $0xe2] sm:$0xff]
        %v2919 = vld [vmem:[#allocation3 + $0xf2] sm:$0xff]
        %v2920 = vld [vmem:[#allocation3 + $0xfa] sm:$0xff]
        %v2921 = vld [vmem:[#allocation3 + $0x10a] sm:$0xff]
        %v2922 = vld [vmem:[#allocation3 + $0x112] sm:$0xff]
        %v2923 = vld [vmem:[#allocation3 + $0x122] sm:$0xff]
        %v2924 = vld [vmem:[#allocation3 + $0x12a] sm:$0xff]
        %v2925 = vld [vmem:[#allocation3 + $0x13a] sm:$0xff]
        %v2926 = vld [vmem:[#allocation3 + $0x142] sm:$0xff]
        %v2927 = vld [vmem:[#allocation3 + $0x152] sm:$0xff]
        %v2928 = vld [vmem:[#allocation3 + $0x15a] sm:$0xff]
        %v2929 = vld [vmem:[#allocation3 + $0x16a] sm:$0xff]
        %v2930 = vld [vmem:[#allocation3 + $0x172] sm:$0xff]
        %2931 = vst [vmem:[#allocation5 + $0x10] sm:$0xff] %v2899
        %2932 = vst [vmem:[#allocation5 + $0x58] sm:$0xff] %v2900
        %2933 = vst [vmem:[#allocation5 + $0xa0] sm:$0xff] %v2901
        %2934 = vst [vmem:[#allocation5 + $0xe8] sm:$0xff] %v2902
        %2935 = vst [vmem:[#allocation5 + $0x130] sm:$0xff] %v2903
        %2936 = vst [vmem:[#allocation5 + $0x178] sm:$0xff] %v2904
        %2937 = vst [vmem:[#allocation5 + $0x1c0] sm:$0xff] %v2905
        %2938 = vst [vmem:[#allocation5 + $0x208] sm:$0xff] %v2906
        %2939 = vst [vmem:[#allocation5 + $0x250] sm:$0xff] %v2907
        %2940 = vst [vmem:[#allocation5 + $0x298] sm:$0xff] %v2908
        %2941 = vst [vmem:[#allocation5 + $0x2e0] sm:$0xff] %v2909
        %2942 = vst [vmem:[#allocation5 + $0x328] sm:$0xff] %v2910
        %2943 = vst [vmem:[#allocation5 + $0x370] sm:$0xff] %v2911
        %2944 = vst [vmem:[#allocation5 + $0x3b8] sm:$0xff] %v2912
        %2945 = vst [vmem:[#allocation5 + $0x400] sm:$0xff] %v2913
        %2946 = vst [vmem:[#allocation5 + $0x448] sm:$0xff] %v2914
        %2947 = vst [vmem:[#allocation5 + $0x490] sm:$0xff] %v2915
        %2948 = vst [vmem:[#allocation5 + $0x4d8] sm:$0xff] %v2916
        %2949 = vst [vmem:[#allocation5 + $0x520] sm:$0xff] %v2917
        %2950 = vst [vmem:[#allocation5 + $0x568] sm:$0xff] %v2918
        %2951 = vst [vmem:[#allocation5 + $0x5b0] sm:$0xff] %v2919
        %2952 = vst [vmem:[#allocation5 + $0x5f8] sm:$0xff] %v2920
        %2953 = vst [vmem:[#allocation5 + $0x640] sm:$0xff] %v2921
        %2954 = vst [vmem:[#allocation5 + $0x688] sm:$0xff] %v2922
        %2955 = vst [vmem:[#allocation5 + $0x6d0] sm:$0xff] %v2923
        %2956 = vst [vmem:[#allocation5 + $0x718] sm:$0xff] %v2924
        %2957 = vst [vmem:[#allocation5 + $0x760] sm:$0xff] %v2925
        %2958 = vst [vmem:[#allocation5 + $0x7a8] sm:$0xff] %v2926
        %2959 = vst [vmem:[#allocation5 + $0x7f0] sm:$0xff] %v2927
        %2960 = vst [vmem:[#allocation5 + $0x838] sm:$0xff] %v2928
        %2961 = vst [vmem:[#allocation5 + $0x880] sm:$0xff] %v2929
        %2962 = vst [vmem:[#allocation5 + $0x8c8] sm:$0xff] %v2930
        %v2963 = vld [vmem:[%s2738] sm:$0xff]
        %v2964 = vld [vmem:[%s2738 + $0x8] sm:$0xff]
        %v2965 = vld [vmem:[%s2738 + $0x18] sm:$0xff]
        %v2966 = vld [vmem:[%s2738 + $0x20] sm:$0xff]
        %v2967 = vld [vmem:[%s2738 + $0x30] sm:$0xff]
        %v2968 = vld [vmem:[%s2738 + $0x38] sm:$0xff]
        %v2969 = vld [vmem:[%s2738 + $0x48] sm:$0xff]
        %v2970 = vld [vmem:[%s2738 + $0x50] sm:$0xff]
        %v2971 = vld [vmem:[%s2738 + $0x60] sm:$0xff]
        %v2972 = vld [vmem:[%s2738 + $0x68] sm:$0xff]
        %v2973 = vld [vmem:[%s2738 + $0x78] sm:$0xff]
        %v2974 = vld [vmem:[%s2738 + $0x80] sm:$0xff]
        %v2975 = vld [vmem:[%s2738 + $0x90] sm:$0xff]
        %v2976 = vld [vmem:[%s2738 + $0x98] sm:$0xff]
        %v2977 = vld [vmem:[%s2738 + $0xa8] sm:$0xff]
        %v2978 = vld [vmem:[%s2738 + $0xb0] sm:$0xff]
        %v2979 = vld [vmem:[%s2738 + $0xc0] sm:$0xff]
        %v2980 = vld [vmem:[%s2738 + $0xc8] sm:$0xff]
        %v2981 = vld [vmem:[%s2738 + $0xd8] sm:$0xff]
        %v2982 = vld [vmem:[%s2738 + $0xe0] sm:$0xff]
        %v2983 = vld [vmem:[%s2738 + $0xf0] sm:$0xff]
        %v2984 = vld [vmem:[%s2738 + $0xf8] sm:$0xff]
        %v2985 = vld [vmem:[%s2738 + $0x108] sm:$0xff]
        %v2986 = vld [vmem:[%s2738 + $0x110] sm:$0xff]
        %v2987 = vld [vmem:[%s2738 + $0x120] sm:$0xff]
        %v2988 = vld [vmem:[%s2738 + $0x128] sm:$0xff]
        %v2989 = vld [vmem:[%s2738 + $0x138] sm:$0xff]
        %v2990 = vld [vmem:[%s2738 + $0x140] sm:$0xff]
        %v2991 = vld [vmem:[%s2738 + $0x150] sm:$0xff]
        %v2992 = vld [vmem:[%s2738 + $0x158] sm:$0xff]
        %v2993 = vld [vmem:[%s2738 + $0x168] sm:$0xff]
        %v2994 = vld [vmem:[%s2738 + $0x170] sm:$0xff]
        %2995 = vst [vmem:[#allocation5 + $0x18] sm:$0xff] %v2963
        %2996 = vst [vmem:[#allocation5 + $0x60] sm:$0xff] %v2964
        %2997 = vst [vmem:[#allocation5 + $0xa8] sm:$0xff] %v2965
        %2998 = vst [vmem:[#allocation5 + $0xf0] sm:$0xff] %v2966
        %2999 = vst [vmem:[#allocation5 + $0x138] sm:$0xff] %v2967
        %3000 = vst [vmem:[#allocation5 + $0x180] sm:$0xff] %v2968
        %3001 = vst [vmem:[#allocation5 + $0x1c8] sm:$0xff] %v2969
        %3002 = vst [vmem:[#allocation5 + $0x210] sm:$0xff] %v2970
        %3003 = vst [vmem:[#allocation5 + $0x258] sm:$0xff] %v2971
        %3004 = vst [vmem:[#allocation5 + $0x2a0] sm:$0xff] %v2972
        %3005 = vst [vmem:[#allocation5 + $0x2e8] sm:$0xff] %v2973
        %3006 = vst [vmem:[#allocation5 + $0x330] sm:$0xff] %v2974
        %3007 = vst [vmem:[#allocation5 + $0x378] sm:$0xff] %v2975
        %3008 = vst [vmem:[#allocation5 + $0x3c0] sm:$0xff] %v2976
        %3009 = vst [vmem:[#allocation5 + $0x408] sm:$0xff] %v2977
        %3010 = vst [vmem:[#allocation5 + $0x450] sm:$0xff] %v2978
        %3011 = vst [vmem:[#allocation5 + $0x498] sm:$0xff] %v2979
        %3012 = vst [vmem:[#allocation5 + $0x4e0] sm:$0xff] %v2980
        %3013 = vst [vmem:[#allocation5 + $0x528] sm:$0xff] %v2981
        %3014 = vst [vmem:[#allocation5 + $0x570] sm:$0xff] %v2982
        %3015 = vst [vmem:[#allocation5 + $0x5b8] sm:$0xff] %v2983
        %3016 = vst [vmem:[#allocation5 + $0x600] sm:$0xff] %v2984
        %3017 = vst [vmem:[#allocation5 + $0x648] sm:$0xff] %v2985
        %3018 = vst [vmem:[#allocation5 + $0x690] sm:$0xff] %v2986
        %3019 = vst [vmem:[#allocation5 + $0x6d8] sm:$0xff] %v2987
        %3020 = vst [vmem:[#allocation5 + $0x720] sm:$0xff] %v2988
        %3021 = vst [vmem:[#allocation5 + $0x768] sm:$0xff] %v2989
        %3022 = vst [vmem:[#allocation5 + $0x7b0] sm:$0xff] %v2990
        %3023 = vst [vmem:[#allocation5 + $0x7f8] sm:$0xff] %v2991
        %3024 = vst [vmem:[#allocation5 + $0x840] sm:$0xff] %v2992
        %3025 = vst [vmem:[#allocation5 + $0x888] sm:$0xff] %v2993
        %3026 = vst [vmem:[#allocation5 + $0x8d0] sm:$0xff] %v2994
        %v3027 = vld [vmem:[%s2738 + $0x1] sm:$0xff]
        %v3028 = vld [vmem:[%s2738 + $0x9] sm:$0xff]
        %v3029 = vld [vmem:[%s2738 + $0x19] sm:$0xff]
        %v3030 = vld [vmem:[%s2738 + $0x21] sm:$0xff]
        %v3031 = vld [vmem:[%s2738 + $0x31] sm:$0xff]
        %v3032 = vld [vmem:[%s2738 + $0x39] sm:$0xff]
        %v3033 = vld [vmem:[%s2738 + $0x49] sm:$0xff]
        %v3034 = vld [vmem:[%s2738 + $0x51] sm:$0xff]
        %v3035 = vld [vmem:[%s2738 + $0x61] sm:$0xff]
        %v3036 = vld [vmem:[%s2738 + $0x69] sm:$0xff]
        %v3037 = vld [vmem:[%s2738 + $0x79] sm:$0xff]
        %v3038 = vld [vmem:[%s2738 + $0x81] sm:$0xff]
        %v3039 = vld [vmem:[%s2738 + $0x91] sm:$0xff]
        %v3040 = vld [vmem:[%s2738 + $0x99] sm:$0xff]
        %v3041 = vld [vmem:[%s2738 + $0xa9] sm:$0xff]
        %v3042 = vld [vmem:[%s2738 + $0xb1] sm:$0xff]
        %v3043 = vld [vmem:[%s2738 + $0xc1] sm:$0xff]
        %v3044 = vld [vmem:[%s2738 + $0xc9] sm:$0xff]
        %v3045 = vld [vmem:[%s2738 + $0xd9] sm:$0xff]
        %v3046 = vld [vmem:[%s2738 + $0xe1] sm:$0xff]
        %v3047 = vld [vmem:[%s2738 + $0xf1] sm:$0xff]
        %v3048 = vld [vmem:[%s2738 + $0xf9] sm:$0xff]
        %v3049 = vld [vmem:[%s2738 + $0x109] sm:$0xff]
        %v3050 = vld [vmem:[%s2738 + $0x111] sm:$0xff]
        %v3051 = vld [vmem:[%s2738 + $0x121] sm:$0xff]
        %v3052 = vld [vmem:[%s2738 + $0x129] sm:$0xff]
        %v3053 = vld [vmem:[%s2738 + $0x139] sm:$0xff]
        %v3054 = vld [vmem:[%s2738 + $0x141] sm:$0xff]
        %v3055 = vld [vmem:[%s2738 + $0x151] sm:$0xff]
        %v3056 = vld [vmem:[%s2738 + $0x159] sm:$0xff]
        %v3057 = vld [vmem:[%s2738 + $0x169] sm:$0xff]
        %v3058 = vld [vmem:[%s2738 + $0x171] sm:$0xff]
        %3059 = vst [vmem:[#allocation5 + $0x20] sm:$0xff] %v3027
        %3060 = vst [vmem:[#allocation5 + $0x68] sm:$0xff] %v3028
        %3061 = vst [vmem:[#allocation5 + $0xb0] sm:$0xff] %v3029
        %3062 = vst [vmem:[#allocation5 + $0xf8] sm:$0xff] %v3030
        %3063 = vst [vmem:[#allocation5 + $0x140] sm:$0xff] %v3031
        %3064 = vst [vmem:[#allocation5 + $0x188] sm:$0xff] %v3032
        %3065 = vst [vmem:[#allocation5 + $0x1d0] sm:$0xff] %v3033
        %3066 = vst [vmem:[#allocation5 + $0x218] sm:$0xff] %v3034
        %3067 = vst [vmem:[#allocation5 + $0x260] sm:$0xff] %v3035
        %3068 = vst [vmem:[#allocation5 + $0x2a8] sm:$0xff] %v3036
        %3069 = vst [vmem:[#allocation5 + $0x2f0] sm:$0xff] %v3037
        %3070 = vst [vmem:[#allocation5 + $0x338] sm:$0xff] %v3038
        %3071 = vst [vmem:[#allocation5 + $0x380] sm:$0xff] %v3039
        %3072 = vst [vmem:[#allocation5 + $0x3c8] sm:$0xff] %v3040
        %3073 = vst [vmem:[#allocation5 + $0x410] sm:$0xff] %v3041
        %3074 = vst [vmem:[#allocation5 + $0x458] sm:$0xff] %v3042
        %3075 = vst [vmem:[#allocation5 + $0x4a0] sm:$0xff] %v3043
        %3076 = vst [vmem:[#allocation5 + $0x4e8] sm:$0xff] %v3044
        %3077 = vst [vmem:[#allocation5 + $0x530] sm:$0xff] %v3045
        %3078 = vst [vmem:[#allocation5 + $0x578] sm:$0xff] %v3046
        %3079 = vst [vmem:[#allocation5 + $0x5c0] sm:$0xff] %v3047
        %3080 = vst [vmem:[#allocation5 + $0x608] sm:$0xff] %v3048
        %3081 = vst [vmem:[#allocation5 + $0x650] sm:$0xff] %v3049
        %3082 = vst [vmem:[#allocation5 + $0x698] sm:$0xff] %v3050
        %3083 = vst [vmem:[#allocation5 + $0x6e0] sm:$0xff] %v3051
        %3084 = vst [vmem:[#allocation5 + $0x728] sm:$0xff] %v3052
        %3085 = vst [vmem:[#allocation5 + $0x770] sm:$0xff] %v3053
        %3086 = vst [vmem:[#allocation5 + $0x7b8] sm:$0xff] %v3054
        %3087 = vst [vmem:[#allocation5 + $0x800] sm:$0xff] %v3055
        %3088 = vst [vmem:[#allocation5 + $0x848] sm:$0xff] %v3056
        %3089 = vst [vmem:[#allocation5 + $0x890] sm:$0xff] %v3057
        %3090 = vst [vmem:[#allocation5 + $0x8d8] sm:$0xff] %v3058
        %v3091 = vld [vmem:[%s2738 + $0x2] sm:$0xff]
        %v3092 = vld [vmem:[%s2738 + $0xa] sm:$0xff]
        %v3093 = vld [vmem:[%s2738 + $0x1a] sm:$0xff]
        %v3094 = vld [vmem:[%s2738 + $0x22] sm:$0xff]
        %v3095 = vld [vmem:[%s2738 + $0x32] sm:$0xff]
        %v3096 = vld [vmem:[%s2738 + $0x3a] sm:$0xff]
        %v3097 = vld [vmem:[%s2738 + $0x4a] sm:$0xff]
        %v3098 = vld [vmem:[%s2738 + $0x52] sm:$0xff]
        %v3099 = vld [vmem:[%s2738 + $0x62] sm:$0xff]
        %v3100 = vld [vmem:[%s2738 + $0x6a] sm:$0xff]
        %v3101 = vld [vmem:[%s2738 + $0x7a] sm:$0xff]
        %v3102 = vld [vmem:[%s2738 + $0x82] sm:$0xff]
        %v3103 = vld [vmem:[%s2738 + $0x92] sm:$0xff]
        %v3104 = vld [vmem:[%s2738 + $0x9a] sm:$0xff]
        %v3105 = vld [vmem:[%s2738 + $0xaa] sm:$0xff]
        %v3106 = vld [vmem:[%s2738 + $0xb2] sm:$0xff]
        %v3107 = vld [vmem:[%s2738 + $0xc2] sm:$0xff]
        %v3108 = vld [vmem:[%s2738 + $0xca] sm:$0xff]
        %v3109 = vld [vmem:[%s2738 + $0xda] sm:$0xff]
        %v3110 = vld [vmem:[%s2738 + $0xe2] sm:$0xff]
        %v3111 = vld [vmem:[%s2738 + $0xf2] sm:$0xff]
        %v3112 = vld [vmem:[%s2738 + $0xfa] sm:$0xff]
        %v3113 = vld [vmem:[%s2738 + $0x10a] sm:$0xff]
        %v3114 = vld [vmem:[%s2738 + $0x112] sm:$0xff]
        %v3115 = vld [vmem:[%s2738 + $0x122] sm:$0xff]
        %v3116 = vld [vmem:[%s2738 + $0x12a] sm:$0xff]
        %v3117 = vld [vmem:[%s2738 + $0x13a] sm:$0xff]
        %v3118 = vld [vmem:[%s2738 + $0x142] sm:$0xff]
        %v3119 = vld [vmem:[%s2738 + $0x152] sm:$0xff]
        %v3120 = vld [vmem:[%s2738 + $0x15a] sm:$0xff]
        %v3121 = vld [vmem:[%s2738 + $0x16a] sm:$0xff]
        %v3122 = vld [vmem:[%s2738 + $0x172] sm:$0xff]
        %3123 = vst [vmem:[#allocation5 + $0x28] sm:$0xff] %v3091
        %3124 = vst [vmem:[#allocation5 + $0x70] sm:$0xff] %v3092
        %3125 = vst [vmem:[#allocation5 + $0xb8] sm:$0xff] %v3093
        %3126 = vst [vmem:[#allocation5 + $0x100] sm:$0xff] %v3094
        %3127 = vst [vmem:[#allocation5 + $0x148] sm:$0xff] %v3095
        %3128 = vst [vmem:[#allocation5 + $0x190] sm:$0xff] %v3096
        %3129 = vst [vmem:[#allocation5 + $0x1d8] sm:$0xff] %v3097
        %3130 = vst [vmem:[#allocation5 + $0x220] sm:$0xff] %v3098
        %3131 = vst [vmem:[#allocation5 + $0x268] sm:$0xff] %v3099
        %3132 = vst [vmem:[#allocation5 + $0x2b0] sm:$0xff] %v3100
        %3133 = vst [vmem:[#allocation5 + $0x2f8] sm:$0xff] %v3101
        %3134 = vst [vmem:[#allocation5 + $0x340] sm:$0xff] %v3102
        %3135 = vst [vmem:[#allocation5 + $0x388] sm:$0xff] %v3103
        %3136 = vst [vmem:[#allocation5 + $0x3d0] sm:$0xff] %v3104
        %3137 = vst [vmem:[#allocation5 + $0x418] sm:$0xff] %v3105
        %3138 = vst [vmem:[#allocation5 + $0x460] sm:$0xff] %v3106
        %3139 = vst [vmem:[#allocation5 + $0x4a8] sm:$0xff] %v3107
        %3140 = vst [vmem:[#allocation5 + $0x4f0] sm:$0xff] %v3108
        %3141 = vst [vmem:[#allocation5 + $0x538] sm:$0xff] %v3109
        %3142 = vst [vmem:[#allocation5 + $0x580] sm:$0xff] %v3110
        %3143 = vst [vmem:[#allocation5 + $0x5c8] sm:$0xff] %v3111
        %3144 = vst [vmem:[#allocation5 + $0x610] sm:$0xff] %v3112
        %3145 = vst [vmem:[#allocation5 + $0x658] sm:$0xff] %v3113
        %3146 = vst [vmem:[#allocation5 + $0x6a0] sm:$0xff] %v3114
        %3147 = vst [vmem:[#allocation5 + $0x6e8] sm:$0xff] %v3115
        %3148 = vst [vmem:[#allocation5 + $0x730] sm:$0xff] %v3116
        %3149 = vst [vmem:[#allocation5 + $0x778] sm:$0xff] %v3117
        %3150 = vst [vmem:[#allocation5 + $0x7c0] sm:$0xff] %v3118
        %3151 = vst [vmem:[#allocation5 + $0x808] sm:$0xff] %v3119
        %3152 = vst [vmem:[#allocation5 + $0x850] sm:$0xff] %v3120
        %3153 = vst [vmem:[#allocation5 + $0x898] sm:$0xff] %v3121
        %3154 = vst [vmem:[#allocation5 + $0x8e0] sm:$0xff] %v3122
        %s3155 = scalar_lea.vmem [#allocation3], 48
        %v3156 = vld [vmem:[%s3155] sm:$0xff]
        %v3157 = vld [vmem:[%s3155 + $0x8] sm:$0xff]
        %v3158 = vld [vmem:[%s3155 + $0x18] sm:$0xff]
        %v3159 = vld [vmem:[%s3155 + $0x20] sm:$0xff]
        %v3160 = vld [vmem:[%s3155 + $0x30] sm:$0xff]
        %v3161 = vld [vmem:[%s3155 + $0x38] sm:$0xff]
        %v3162 = vld [vmem:[%s3155 + $0x48] sm:$0xff]
        %v3163 = vld [vmem:[%s3155 + $0x50] sm:$0xff]
        %v3164 = vld [vmem:[%s3155 + $0x60] sm:$0xff]
        %v3165 = vld [vmem:[%s3155 + $0x68] sm:$0xff]
        %v3166 = vld [vmem:[%s3155 + $0x78] sm:$0xff]
        %v3167 = vld [vmem:[%s3155 + $0x80] sm:$0xff]
        %v3168 = vld [vmem:[%s3155 + $0x90] sm:$0xff]
        %v3169 = vld [vmem:[%s3155 + $0x98] sm:$0xff]
        %v3170 = vld [vmem:[%s3155 + $0xa8] sm:$0xff]
        %v3171 = vld [vmem:[%s3155 + $0xb0] sm:$0xff]
        %v3172 = vld [vmem:[%s3155 + $0xc0] sm:$0xff]
        %v3173 = vld [vmem:[%s3155 + $0xc8] sm:$0xff]
        %v3174 = vld [vmem:[%s3155 + $0xd8] sm:$0xff]
        %v3175 = vld [vmem:[%s3155 + $0xe0] sm:$0xff]
        %v3176 = vld [vmem:[%s3155 + $0xf0] sm:$0xff]
        %v3177 = vld [vmem:[%s3155 + $0xf8] sm:$0xff]
        %v3178 = vld [vmem:[%s3155 + $0x108] sm:$0xff]
        %v3179 = vld [vmem:[%s3155 + $0x110] sm:$0xff]
        %v3180 = vld [vmem:[%s3155 + $0x120] sm:$0xff]
        %v3181 = vld [vmem:[%s3155 + $0x128] sm:$0xff]
        %v3182 = vld [vmem:[%s3155 + $0x138] sm:$0xff]
        %v3183 = vld [vmem:[%s3155 + $0x140] sm:$0xff]
        %v3184 = vld [vmem:[%s3155 + $0x150] sm:$0xff]
        %v3185 = vld [vmem:[%s3155 + $0x158] sm:$0xff]
        %v3186 = vld [vmem:[%s3155 + $0x168] sm:$0xff]
        %v3187 = vld [vmem:[%s3155 + $0x170] sm:$0xff]
        %3188 = vst [vmem:[#allocation5 + $0x30] sm:$0xff] %v3156
        %3189 = vst [vmem:[#allocation5 + $0x78] sm:$0xff] %v3157
        %3190 = vst [vmem:[#allocation5 + $0xc0] sm:$0xff] %v3158
        %3191 = vst [vmem:[#allocation5 + $0x108] sm:$0xff] %v3159
        %3192 = vst [vmem:[#allocation5 + $0x150] sm:$0xff] %v3160
        %3193 = vst [vmem:[#allocation5 + $0x198] sm:$0xff] %v3161
        %3194 = vst [vmem:[#allocation5 + $0x1e0] sm:$0xff] %v3162
        %3195 = vst [vmem:[#allocation5 + $0x228] sm:$0xff] %v3163
        %3196 = vst [vmem:[#allocation5 + $0x270] sm:$0xff] %v3164
        %3197 = vst [vmem:[#allocation5 + $0x2b8] sm:$0xff] %v3165
        %3198 = vst [vmem:[#allocation5 + $0x300] sm:$0xff] %v3166
        %3199 = vst [vmem:[#allocation5 + $0x348] sm:$0xff] %v3167
        %3200 = vst [vmem:[#allocation5 + $0x390] sm:$0xff] %v3168
        %3201 = vst [vmem:[#allocation5 + $0x3d8] sm:$0xff] %v3169
        %3202 = vst [vmem:[#allocation5 + $0x420] sm:$0xff] %v3170
        %3203 = vst [vmem:[#allocation5 + $0x468] sm:$0xff] %v3171
        %3204 = vst [vmem:[#allocation5 + $0x4b0] sm:$0xff] %v3172
        %3205 = vst [vmem:[#allocation5 + $0x4f8] sm:$0xff] %v3173
        %3206 = vst [vmem:[#allocation5 + $0x540] sm:$0xff] %v3174
        %3207 = vst [vmem:[#allocation5 + $0x588] sm:$0xff] %v3175
        %3208 = vst [vmem:[#allocation5 + $0x5d0] sm:$0xff] %v3176
        %3209 = vst [vmem:[#allocation5 + $0x618] sm:$0xff] %v3177
        %3210 = vst [vmem:[#allocation5 + $0x660] sm:$0xff] %v3178
        %3211 = vst [vmem:[#allocation5 + $0x6a8] sm:$0xff] %v3179
        %3212 = vst [vmem:[#allocation5 + $0x6f0] sm:$0xff] %v3180
        %3213 = vst [vmem:[#allocation5 + $0x738] sm:$0xff] %v3181
        %3214 = vst [vmem:[#allocation5 + $0x780] sm:$0xff] %v3182
        %3215 = vst [vmem:[#allocation5 + $0x7c8] sm:$0xff] %v3183
        %3216 = vst [vmem:[#allocation5 + $0x810] sm:$0xff] %v3184
        %3217 = vst [vmem:[#allocation5 + $0x858] sm:$0xff] %v3185
        %3218 = vst [vmem:[#allocation5 + $0x8a0] sm:$0xff] %v3186
        %3219 = vst [vmem:[#allocation5 + $0x8e8] sm:$0xff] %v3187
        %v3220 = vld [vmem:[%s3155 + $0x1] sm:$0xff]
        %v3221 = vld [vmem:[%s3155 + $0x9] sm:$0xff]
        %v3222 = vld [vmem:[%s3155 + $0x19] sm:$0xff]
        %v3223 = vld [vmem:[%s3155 + $0x21] sm:$0xff]
        %v3224 = vld [vmem:[%s3155 + $0x31] sm:$0xff]
        %v3225 = vld [vmem:[%s3155 + $0x39] sm:$0xff]
        %v3226 = vld [vmem:[%s3155 + $0x49] sm:$0xff]
        %v3227 = vld [vmem:[%s3155 + $0x51] sm:$0xff]
        %v3228 = vld [vmem:[%s3155 + $0x61] sm:$0xff]
        %v3229 = vld [vmem:[%s3155 + $0x69] sm:$0xff]
        %v3230 = vld [vmem:[%s3155 + $0x79] sm:$0xff]
        %v3231 = vld [vmem:[%s3155 + $0x81] sm:$0xff]
        %v3232 = vld [vmem:[%s3155 + $0x91] sm:$0xff]
        %v3233 = vld [vmem:[%s3155 + $0x99] sm:$0xff]
        %v3234 = vld [vmem:[%s3155 + $0xa9] sm:$0xff]
        %v3235 = vld [vmem:[%s3155 + $0xb1] sm:$0xff]
        %v3236 = vld [vmem:[%s3155 + $0xc1] sm:$0xff]
        %v3237 = vld [vmem:[%s3155 + $0xc9] sm:$0xff]
        %v3238 = vld [vmem:[%s3155 + $0xd9] sm:$0xff]
        %v3239 = vld [vmem:[%s3155 + $0xe1] sm:$0xff]
        %v3240 = vld [vmem:[%s3155 + $0xf1] sm:$0xff]
        %v3241 = vld [vmem:[%s3155 + $0xf9] sm:$0xff]
        %v3242 = vld [vmem:[%s3155 + $0x109] sm:$0xff]
        %v3243 = vld [vmem:[%s3155 + $0x111] sm:$0xff]
        %v3244 = vld [vmem:[%s3155 + $0x121] sm:$0xff]
        %v3245 = vld [vmem:[%s3155 + $0x129] sm:$0xff]
        %v3246 = vld [vmem:[%s3155 + $0x139] sm:$0xff]
        %v3247 = vld [vmem:[%s3155 + $0x141] sm:$0xff]
        %v3248 = vld [vmem:[%s3155 + $0x151] sm:$0xff]
        %v3249 = vld [vmem:[%s3155 + $0x159] sm:$0xff]
        %v3250 = vld [vmem:[%s3155 + $0x169] sm:$0xff]
        %v3251 = vld [vmem:[%s3155 + $0x171] sm:$0xff]
        %3252 = vst [vmem:[#allocation5 + $0x38] sm:$0xff] %v3220
        %3253 = vst [vmem:[#allocation5 + $0x80] sm:$0xff] %v3221
        %3254 = vst [vmem:[#allocation5 + $0xc8] sm:$0xff] %v3222
        %3255 = vst [vmem:[#allocation5 + $0x110] sm:$0xff] %v3223
        %3256 = vst [vmem:[#allocation5 + $0x158] sm:$0xff] %v3224
        %3257 = vst [vmem:[#allocation5 + $0x1a0] sm:$0xff] %v3225
        %3258 = vst [vmem:[#allocation5 + $0x1e8] sm:$0xff] %v3226
        %3259 = vst [vmem:[#allocation5 + $0x230] sm:$0xff] %v3227
        %3260 = vst [vmem:[#allocation5 + $0x278] sm:$0xff] %v3228
        %3261 = vst [vmem:[#allocation5 + $0x2c0] sm:$0xff] %v3229
        %3262 = vst [vmem:[#allocation5 + $0x308] sm:$0xff] %v3230
        %3263 = vst [vmem:[#allocation5 + $0x350] sm:$0xff] %v3231
        %3264 = vst [vmem:[#allocation5 + $0x398] sm:$0xff] %v3232
        %3265 = vst [vmem:[#allocation5 + $0x3e0] sm:$0xff] %v3233
        %3266 = vst [vmem:[#allocation5 + $0x428] sm:$0xff] %v3234
        %3267 = vst [vmem:[#allocation5 + $0x470] sm:$0xff] %v3235
        %3268 = vst [vmem:[#allocation5 + $0x4b8] sm:$0xff] %v3236
        %3269 = vst [vmem:[#allocation5 + $0x500] sm:$0xff] %v3237
        %3270 = vst [vmem:[#allocation5 + $0x548] sm:$0xff] %v3238
        %3271 = vst [vmem:[#allocation5 + $0x590] sm:$0xff] %v3239
        %3272 = vst [vmem:[#allocation5 + $0x5d8] sm:$0xff] %v3240
        %3273 = vst [vmem:[#allocation5 + $0x620] sm:$0xff] %v3241
        %3274 = vst [vmem:[#allocation5 + $0x668] sm:$0xff] %v3242
        %3275 = vst [vmem:[#allocation5 + $0x6b0] sm:$0xff] %v3243
        %3276 = vst [vmem:[#allocation5 + $0x6f8] sm:$0xff] %v3244
        %3277 = vst [vmem:[#allocation5 + $0x740] sm:$0xff] %v3245
        %3278 = vst [vmem:[#allocation5 + $0x788] sm:$0xff] %v3246
        %3279 = vst [vmem:[#allocation5 + $0x7d0] sm:$0xff] %v3247
        %3280 = vst [vmem:[#allocation5 + $0x818] sm:$0xff] %v3248
        %3281 = vst [vmem:[#allocation5 + $0x860] sm:$0xff] %v3249
        %3282 = vst [vmem:[#allocation5 + $0x8a8] sm:$0xff] %v3250
        %3283 = vst [vmem:[#allocation5 + $0x8f0] sm:$0xff] %v3251
        %v3284 = vld [vmem:[%s3155 + $0x2] sm:$0xff]
        %v3285 = vld [vmem:[%s3155 + $0xa] sm:$0xff]
        %v3286 = vld [vmem:[%s3155 + $0x1a] sm:$0xff]
        %v3287 = vld [vmem:[%s3155 + $0x22] sm:$0xff]
        %v3288 = vld [vmem:[%s3155 + $0x32] sm:$0xff]
        %v3289 = vld [vmem:[%s3155 + $0x3a] sm:$0xff]
        %v3290 = vld [vmem:[%s3155 + $0x4a] sm:$0xff]
        %v3291 = vld [vmem:[%s3155 + $0x52] sm:$0xff]
        %v3292 = vld [vmem:[%s3155 + $0x62] sm:$0xff]
        %v3293 = vld [vmem:[%s3155 + $0x6a] sm:$0xff]
        %v3294 = vld [vmem:[%s3155 + $0x7a] sm:$0xff]
        %v3295 = vld [vmem:[%s3155 + $0x82] sm:$0xff]
        %v3296 = vld [vmem:[%s3155 + $0x92] sm:$0xff]
        %v3297 = vld [vmem:[%s3155 + $0x9a] sm:$0xff]
        %v3298 = vld [vmem:[%s3155 + $0xaa] sm:$0xff]
        %v3299 = vld [vmem:[%s3155 + $0xb2] sm:$0xff]
        %v3300 = vld [vmem:[%s3155 + $0xc2] sm:$0xff]
        %v3301 = vld [vmem:[%s3155 + $0xca] sm:$0xff]
        %v3302 = vld [vmem:[%s3155 + $0xda] sm:$0xff]
        %v3303 = vld [vmem:[%s3155 + $0xe2] sm:$0xff]
        %v3304 = vld [vmem:[%s3155 + $0xf2] sm:$0xff]
        %v3305 = vld [vmem:[%s3155 + $0xfa] sm:$0xff]
        %v3306 = vld [vmem:[%s3155 + $0x10a] sm:$0xff]
        %v3307 = vld [vmem:[%s3155 + $0x112] sm:$0xff]
        %v3308 = vld [vmem:[%s3155 + $0x122] sm:$0xff]
        %v3309 = vld [vmem:[%s3155 + $0x12a] sm:$0xff]
        %v3310 = vld [vmem:[%s3155 + $0x13a] sm:$0xff]
        %v3311 = vld [vmem:[%s3155 + $0x142] sm:$0xff]
        %v3312 = vld [vmem:[%s3155 + $0x152] sm:$0xff]
        %v3313 = vld [vmem:[%s3155 + $0x15a] sm:$0xff]
        %v3314 = vld [vmem:[%s3155 + $0x16a] sm:$0xff]
        %v3315 = vld [vmem:[%s3155 + $0x172] sm:$0xff]
        %3316 = vst [vmem:[#allocation5 + $0x40] sm:$0xff] %v3284
        %3317 = vst [vmem:[#allocation5 + $0x88] sm:$0xff] %v3285
        %3318 = vst [vmem:[#allocation5 + $0xd0] sm:$0xff] %v3286
        %3319 = vst [vmem:[#allocation5 + $0x118] sm:$0xff] %v3287
        %3320 = vst [vmem:[#allocation5 + $0x160] sm:$0xff] %v3288
        %3321 = vst [vmem:[#allocation5 + $0x1a8] sm:$0xff] %v3289
        %3322 = vst [vmem:[#allocation5 + $0x1f0] sm:$0xff] %v3290
        %3323 = vst [vmem:[#allocation5 + $0x238] sm:$0xff] %v3291
        %3324 = vst [vmem:[#allocation5 + $0x280] sm:$0xff] %v3292
        %3325 = vst [vmem:[#allocation5 + $0x2c8] sm:$0xff] %v3293
        %3326 = vst [vmem:[#allocation5 + $0x310] sm:$0xff] %v3294
        %3327 = vst [vmem:[#allocation5 + $0x358] sm:$0xff] %v3295
        %3328 = vst [vmem:[#allocation5 + $0x3a0] sm:$0xff] %v3296
        %3329 = vst [vmem:[#allocation5 + $0x3e8] sm:$0xff] %v3297
        %3330 = vst [vmem:[#allocation5 + $0x430] sm:$0xff] %v3298
        %3331 = vst [vmem:[#allocation5 + $0x478] sm:$0xff] %v3299
        %3332 = vst [vmem:[#allocation5 + $0x4c0] sm:$0xff] %v3300
        %3333 = vst [vmem:[#allocation5 + $0x508] sm:$0xff] %v3301
        %3334 = vst [vmem:[#allocation5 + $0x550] sm:$0xff] %v3302
        %3335 = vst [vmem:[#allocation5 + $0x598] sm:$0xff] %v3303
        %3336 = vst [vmem:[#allocation5 + $0x5e0] sm:$0xff] %v3304
        %3337 = vst [vmem:[#allocation5 + $0x628] sm:$0xff] %v3305
        %3338 = vst [vmem:[#allocation5 + $0x670] sm:$0xff] %v3306
        %3339 = vst [vmem:[#allocation5 + $0x6b8] sm:$0xff] %v3307
        %3340 = vst [vmem:[#allocation5 + $0x700] sm:$0xff] %v3308
        %3341 = vst [vmem:[#allocation5 + $0x748] sm:$0xff] %v3309
        %3342 = vst [vmem:[#allocation5 + $0x790] sm:$0xff] %v3310
        %3343 = vst [vmem:[#allocation5 + $0x7d8] sm:$0xff] %v3311
        %3344 = vst [vmem:[#allocation5 + $0x820] sm:$0xff] %v3312
        %3345 = vst [vmem:[#allocation5 + $0x868] sm:$0xff] %v3313
        %3346 = vst [vmem:[#allocation5 + $0x8b0] sm:$0xff] %v3314
        %3347 = vst [vmem:[#allocation5 + $0x8f8] sm:$0xff] %v3315
        %v3348 = vld [vmem:[#allocation5] sm:$0xff]
        %v3349 = vld [vmem:[#allocation5 + $0x8] sm:$0xff]
        %v3350 = vld [vmem:[#allocation5 + $0x10] sm:$0xff]
        %v3351 = vld [vmem:[#allocation5 + $0x18] sm:$0xff]
        %v3352 = vld [vmem:[#allocation5 + $0x20] sm:$0xff]
        %v3353 = vld [vmem:[#allocation5 + $0x28] sm:$0xff]
        %v3354 = vld [vmem:[#allocation5 + $0x30] sm:$0xff]
        %v3355 = vld [vmem:[#allocation5 + $0x38] sm:$0xff]
        %v3356 = vld [vmem:[#allocation5 + $0x40] sm:$0xff]
        %v3357 = vld [vmem:[#allocation5 + $0x48] sm:$0xff]
        %v3358 = vld [vmem:[#allocation5 + $0x50] sm:$0xff]
        %v3359 = vld [vmem:[#allocation5 + $0x58] sm:$0xff]
        %v3360 = vld [vmem:[#allocation5 + $0x60] sm:$0xff]
        %v3361 = vld [vmem:[#allocation5 + $0x68] sm:$0xff]
        %v3362 = vld [vmem:[#allocation5 + $0x70] sm:$0xff]
        %v3363 = vld [vmem:[#allocation5 + $0x78] sm:$0xff]
        %v3364 = vld [vmem:[#allocation5 + $0x80] sm:$0xff]
        %v3365 = vld [vmem:[#allocation5 + $0x88] sm:$0xff]
        %v3366 = vld [vmem:[#allocation5 + $0x90] sm:$0xff]
        %v3367 = vld [vmem:[#allocation5 + $0x98] sm:$0xff]
        %v3368 = vld [vmem:[#allocation5 + $0xa0] sm:$0xff]
        %v3369 = vld [vmem:[#allocation5 + $0xa8] sm:$0xff]
        %v3370 = vld [vmem:[#allocation5 + $0xb0] sm:$0xff]
        %v3371 = vld [vmem:[#allocation5 + $0xb8] sm:$0xff]
        %v3372 = vld [vmem:[#allocation5 + $0xc0] sm:$0xff]
        %v3373 = vld [vmem:[#allocation5 + $0xc8] sm:$0xff]
        %v3374 = vld [vmem:[#allocation5 + $0xd0] sm:$0xff]
        %v3375 = vld [vmem:[#allocation5 + $0xd8] sm:$0xff]
        %v3376 = vld [vmem:[#allocation5 + $0xe0] sm:$0xff]
        %v3377 = vld [vmem:[#allocation5 + $0xe8] sm:$0xff]
        %v3378 = vld [vmem:[#allocation5 + $0xf0] sm:$0xff]
        %v3379 = vld [vmem:[#allocation5 + $0xf8] sm:$0xff]
        %v3380 = vld [vmem:[#allocation5 + $0x100] sm:$0xff]
        %v3381 = vld [vmem:[#allocation5 + $0x108] sm:$0xff]
        %v3382 = vld [vmem:[#allocation5 + $0x110] sm:$0xff]
        %v3383 = vld [vmem:[#allocation5 + $0x118] sm:$0xff]
        %v3384 = vld [vmem:[#allocation5 + $0x120] sm:$0xff]
        %v3385 = vld [vmem:[#allocation5 + $0x128] sm:$0xff]
        %v3386 = vld [vmem:[#allocation5 + $0x130] sm:$0xff]
        %v3387 = vld [vmem:[#allocation5 + $0x138] sm:$0xff]
        %v3388 = vld [vmem:[#allocation5 + $0x140] sm:$0xff]
        %v3389 = vld [vmem:[#allocation5 + $0x148] sm:$0xff]
        %v3390 = vld [vmem:[#allocation5 + $0x150] sm:$0xff]
        %v3391 = vld [vmem:[#allocation5 + $0x158] sm:$0xff]
        %v3392 = vld [vmem:[#allocation5 + $0x160] sm:$0xff]
        %v3393 = vld [vmem:[#allocation5 + $0x168] sm:$0xff]
        %v3394 = vld [vmem:[#allocation5 + $0x170] sm:$0xff]
        %v3395 = vld [vmem:[#allocation5 + $0x178] sm:$0xff]
        %v3396 = vld [vmem:[#allocation5 + $0x180] sm:$0xff]
        %v3397 = vld [vmem:[#allocation5 + $0x188] sm:$0xff]
        %v3398 = vld [vmem:[#allocation5 + $0x190] sm:$0xff]
        %v3399 = vld [vmem:[#allocation5 + $0x198] sm:$0xff]
        %v3400 = vld [vmem:[#allocation5 + $0x1a0] sm:$0xff]
        %v3401 = vld [vmem:[#allocation5 + $0x1a8] sm:$0xff]
        %v3402 = vld [vmem:[#allocation5 + $0x1b0] sm:$0xff]
        %v3403 = vld [vmem:[#allocation5 + $0x1b8] sm:$0xff]
        %v3404 = vld [vmem:[#allocation5 + $0x1c0] sm:$0xff]
        %v3405 = vld [vmem:[#allocation5 + $0x1c8] sm:$0xff]
        %v3406 = vld [vmem:[#allocation5 + $0x1d0] sm:$0xff]
        %v3407 = vld [vmem:[#allocation5 + $0x1d8] sm:$0xff]
        %v3408 = vld [vmem:[#allocation5 + $0x1e0] sm:$0xff]
        %v3409 = vld [vmem:[#allocation5 + $0x1e8] sm:$0xff]
        %v3410 = vld [vmem:[#allocation5 + $0x1f0] sm:$0xff]
        %v3411 = vld [vmem:[#allocation5 + $0x1f8] sm:$0xff]
        %v3412 = vld [vmem:[#allocation5 + $0x200] sm:$0xff]
        %v3413 = vld [vmem:[#allocation5 + $0x208] sm:$0xff]
        %v3414 = vld [vmem:[#allocation5 + $0x210] sm:$0xff]
        %v3415 = vld [vmem:[#allocation5 + $0x218] sm:$0xff]
        %v3416 = vld [vmem:[#allocation5 + $0x220] sm:$0xff]
        %v3417 = vld [vmem:[#allocation5 + $0x228] sm:$0xff]
        %v3418 = vld [vmem:[#allocation5 + $0x230] sm:$0xff]
        %v3419 = vld [vmem:[#allocation5 + $0x238] sm:$0xff]
        %v3420 = vld [vmem:[#allocation5 + $0x240] sm:$0xff]
        %v3421 = vld [vmem:[#allocation5 + $0x248] sm:$0xff]
        %v3422 = vld [vmem:[#allocation5 + $0x250] sm:$0xff]
        %v3423 = vld [vmem:[#allocation5 + $0x258] sm:$0xff]
        %v3424 = vld [vmem:[#allocation5 + $0x260] sm:$0xff]
        %v3425 = vld [vmem:[#allocation5 + $0x268] sm:$0xff]
        %v3426 = vld [vmem:[#allocation5 + $0x270] sm:$0xff]
        %v3427 = vld [vmem:[#allocation5 + $0x278] sm:$0xff]
        %v3428 = vld [vmem:[#allocation5 + $0x280] sm:$0xff]
        %v3429 = vld [vmem:[#allocation5 + $0x288] sm:$0xff]
        %v3430 = vld [vmem:[#allocation5 + $0x290] sm:$0xff]
        %v3431 = vld [vmem:[#allocation5 + $0x298] sm:$0xff]
        %v3432 = vld [vmem:[#allocation5 + $0x2a0] sm:$0xff]
        %v3433 = vld [vmem:[#allocation5 + $0x2a8] sm:$0xff]
        %v3434 = vld [vmem:[#allocation5 + $0x2b0] sm:$0xff]
        %v3435 = vld [vmem:[#allocation5 + $0x2b8] sm:$0xff]
        %v3436 = vld [vmem:[#allocation5 + $0x2c0] sm:$0xff]
        %v3437 = vld [vmem:[#allocation5 + $0x2c8] sm:$0xff]
        %v3438 = vld [vmem:[#allocation5 + $0x2d0] sm:$0xff]
        %v3439 = vld [vmem:[#allocation5 + $0x2d8] sm:$0xff]
        %v3440 = vld [vmem:[#allocation5 + $0x2e0] sm:$0xff]
        %v3441 = vld [vmem:[#allocation5 + $0x2e8] sm:$0xff]
        %v3442 = vld [vmem:[#allocation5 + $0x2f0] sm:$0xff]
        %v3443 = vld [vmem:[#allocation5 + $0x2f8] sm:$0xff]
        %v3444 = vld [vmem:[#allocation5 + $0x300] sm:$0xff]
        %v3445 = vld [vmem:[#allocation5 + $0x308] sm:$0xff]
        %v3446 = vld [vmem:[#allocation5 + $0x310] sm:$0xff]
        %v3447 = vld [vmem:[#allocation5 + $0x318] sm:$0xff]
        %v3448 = vld [vmem:[#allocation5 + $0x320] sm:$0xff]
        %v3449 = vld [vmem:[#allocation5 + $0x328] sm:$0xff]
        %v3450 = vld [vmem:[#allocation5 + $0x330] sm:$0xff]
        %v3451 = vld [vmem:[#allocation5 + $0x338] sm:$0xff]
        %v3452 = vld [vmem:[#allocation5 + $0x340] sm:$0xff]
        %v3453 = vld [vmem:[#allocation5 + $0x348] sm:$0xff]
        %v3454 = vld [vmem:[#allocation5 + $0x350] sm:$0xff]
        %v3455 = vld [vmem:[#allocation5 + $0x358] sm:$0xff]
        %v3456 = vld [vmem:[#allocation5 + $0x360] sm:$0xff]
        %v3457 = vld [vmem:[#allocation5 + $0x368] sm:$0xff]
        %v3458 = vld [vmem:[#allocation5 + $0x370] sm:$0xff]
        %v3459 = vld [vmem:[#allocation5 + $0x378] sm:$0xff]
        %v3460 = vld [vmem:[#allocation5 + $0x380] sm:$0xff]
        %v3461 = vld [vmem:[#allocation5 + $0x388] sm:$0xff]
        %v3462 = vld [vmem:[#allocation5 + $0x390] sm:$0xff]
        %v3463 = vld [vmem:[#allocation5 + $0x398] sm:$0xff]
        %v3464 = vld [vmem:[#allocation5 + $0x3a0] sm:$0xff]
        %v3465 = vld [vmem:[#allocation5 + $0x3a8] sm:$0xff]
        %v3466 = vld [vmem:[#allocation5 + $0x3b0] sm:$0xff]
        %v3467 = vld [vmem:[#allocation5 + $0x3b8] sm:$0xff]
        %v3468 = vld [vmem:[#allocation5 + $0x3c0] sm:$0xff]
        %v3469 = vld [vmem:[#allocation5 + $0x3c8] sm:$0xff]
        %v3470 = vld [vmem:[#allocation5 + $0x3d0] sm:$0xff]
        %v3471 = vld [vmem:[#allocation5 + $0x3d8] sm:$0xff]
        %v3472 = vld [vmem:[#allocation5 + $0x3e0] sm:$0xff]
        %v3473 = vld [vmem:[#allocation5 + $0x3e8] sm:$0xff]
        %v3474 = vld [vmem:[#allocation5 + $0x3f0] sm:$0xff]
        %v3475 = vld [vmem:[#allocation5 + $0x3f8] sm:$0xff]
        %v3476 = vld [vmem:[#allocation5 + $0x400] sm:$0xff]
        %v3477 = vld [vmem:[#allocation5 + $0x408] sm:$0xff]
        %v3478 = vld [vmem:[#allocation5 + $0x410] sm:$0xff]
        %v3479 = vld [vmem:[#allocation5 + $0x418] sm:$0xff]
        %v3480 = vld [vmem:[#allocation5 + $0x420] sm:$0xff]
        %v3481 = vld [vmem:[#allocation5 + $0x428] sm:$0xff]
        %v3482 = vld [vmem:[#allocation5 + $0x430] sm:$0xff]
        %v3483 = vld [vmem:[#allocation5 + $0x438] sm:$0xff]
        %v3484 = vld [vmem:[#allocation5 + $0x440] sm:$0xff]
        %v3485 = vld [vmem:[#allocation5 + $0x448] sm:$0xff]
        %v3486 = vld [vmem:[#allocation5 + $0x450] sm:$0xff]
        %v3487 = vld [vmem:[#allocation5 + $0x458] sm:$0xff]
        %v3488 = vld [vmem:[#allocation5 + $0x460] sm:$0xff]
        %v3489 = vld [vmem:[#allocation5 + $0x468] sm:$0xff]
        %v3490 = vld [vmem:[#allocation5 + $0x470] sm:$0xff]
        %v3491 = vld [vmem:[#allocation5 + $0x478] sm:$0xff]
        %v3492 = vld [vmem:[#allocation5 + $0x480] sm:$0xff]
        %v3493 = vld [vmem:[#allocation5 + $0x488] sm:$0xff]
        %v3494 = vld [vmem:[#allocation5 + $0x490] sm:$0xff]
        %v3495 = vld [vmem:[#allocation5 + $0x498] sm:$0xff]
        %v3496 = vld [vmem:[#allocation5 + $0x4a0] sm:$0xff]
        %v3497 = vld [vmem:[#allocation5 + $0x4a8] sm:$0xff]
        %v3498 = vld [vmem:[#allocation5 + $0x4b0] sm:$0xff]
        %v3499 = vld [vmem:[#allocation5 + $0x4b8] sm:$0xff]
        %v3500 = vld [vmem:[#allocation5 + $0x4c0] sm:$0xff]
        %v3501 = vld [vmem:[#allocation5 + $0x4c8] sm:$0xff]
        %v3502 = vld [vmem:[#allocation5 + $0x4d0] sm:$0xff]
        %v3503 = vld [vmem:[#allocation5 + $0x4d8] sm:$0xff]
        %v3504 = vld [vmem:[#allocation5 + $0x4e0] sm:$0xff]
        %v3505 = vld [vmem:[#allocation5 + $0x4e8] sm:$0xff]
        %v3506 = vld [vmem:[#allocation5 + $0x4f0] sm:$0xff]
        %v3507 = vld [vmem:[#allocation5 + $0x4f8] sm:$0xff]
        %v3508 = vld [vmem:[#allocation5 + $0x500] sm:$0xff]
        %v3509 = vld [vmem:[#allocation5 + $0x508] sm:$0xff]
        %v3510 = vld [vmem:[#allocation5 + $0x510] sm:$0xff]
        %v3511 = vld [vmem:[#allocation5 + $0x518] sm:$0xff]
        %v3512 = vld [vmem:[#allocation5 + $0x520] sm:$0xff]
        %v3513 = vld [vmem:[#allocation5 + $0x528] sm:$0xff]
        %v3514 = vld [vmem:[#allocation5 + $0x530] sm:$0xff]
        %v3515 = vld [vmem:[#allocation5 + $0x538] sm:$0xff]
        %v3516 = vld [vmem:[#allocation5 + $0x540] sm:$0xff]
        %v3517 = vld [vmem:[#allocation5 + $0x548] sm:$0xff]
        %v3518 = vld [vmem:[#allocation5 + $0x550] sm:$0xff]
        %v3519 = vld [vmem:[#allocation5 + $0x558] sm:$0xff]
        %v3520 = vld [vmem:[#allocation5 + $0x560] sm:$0xff]
        %v3521 = vld [vmem:[#allocation5 + $0x568] sm:$0xff]
        %v3522 = vld [vmem:[#allocation5 + $0x570] sm:$0xff]
        %v3523 = vld [vmem:[#allocation5 + $0x578] sm:$0xff]
        %v3524 = vld [vmem:[#allocation5 + $0x580] sm:$0xff]
        %v3525 = vld [vmem:[#allocation5 + $0x588] sm:$0xff]
        %v3526 = vld [vmem:[#allocation5 + $0x590] sm:$0xff]
        %v3527 = vld [vmem:[#allocation5 + $0x598] sm:$0xff]
        %v3528 = vld [vmem:[#allocation5 + $0x5a0] sm:$0xff]
        %v3529 = vld [vmem:[#allocation5 + $0x5a8] sm:$0xff]
        %v3530 = vld [vmem:[#allocation5 + $0x5b0] sm:$0xff]
        %v3531 = vld [vmem:[#allocation5 + $0x5b8] sm:$0xff]
        %v3532 = vld [vmem:[#allocation5 + $0x5c0] sm:$0xff]
        %v3533 = vld [vmem:[#allocation5 + $0x5c8] sm:$0xff]
        %v3534 = vld [vmem:[#allocation5 + $0x5d0] sm:$0xff]
        %v3535 = vld [vmem:[#allocation5 + $0x5d8] sm:$0xff]
        %v3536 = vld [vmem:[#allocation5 + $0x5e0] sm:$0xff]
        %v3537 = vld [vmem:[#allocation5 + $0x5e8] sm:$0xff]
        %v3538 = vld [vmem:[#allocation5 + $0x5f0] sm:$0xff]
        %v3539 = vld [vmem:[#allocation5 + $0x5f8] sm:$0xff]
        %v3540 = vld [vmem:[#allocation5 + $0x600] sm:$0xff]
        %v3541 = vld [vmem:[#allocation5 + $0x608] sm:$0xff]
        %v3542 = vld [vmem:[#allocation5 + $0x610] sm:$0xff]
        %v3543 = vld [vmem:[#allocation5 + $0x618] sm:$0xff]
        %v3544 = vld [vmem:[#allocation5 + $0x620] sm:$0xff]
        %v3545 = vld [vmem:[#allocation5 + $0x628] sm:$0xff]
        %v3546 = vld [vmem:[#allocation5 + $0x630] sm:$0xff]
        %v3547 = vld [vmem:[#allocation5 + $0x638] sm:$0xff]
        %v3548 = vld [vmem:[#allocation5 + $0x640] sm:$0xff]
        %v3549 = vld [vmem:[#allocation5 + $0x648] sm:$0xff]
        %v3550 = vld [vmem:[#allocation5 + $0x650] sm:$0xff]
        %v3551 = vld [vmem:[#allocation5 + $0x658] sm:$0xff]
        %v3552 = vld [vmem:[#allocation5 + $0x660] sm:$0xff]
        %v3553 = vld [vmem:[#allocation5 + $0x668] sm:$0xff]
        %v3554 = vld [vmem:[#allocation5 + $0x670] sm:$0xff]
        %v3555 = vld [vmem:[#allocation5 + $0x678] sm:$0xff]
        %v3556 = vld [vmem:[#allocation5 + $0x680] sm:$0xff]
        %v3557 = vld [vmem:[#allocation5 + $0x688] sm:$0xff]
        %v3558 = vld [vmem:[#allocation5 + $0x690] sm:$0xff]
        %v3559 = vld [vmem:[#allocation5 + $0x698] sm:$0xff]
        %v3560 = vld [vmem:[#allocation5 + $0x6a0] sm:$0xff]
        %v3561 = vld [vmem:[#allocation5 + $0x6a8] sm:$0xff]
        %v3562 = vld [vmem:[#allocation5 + $0x6b0] sm:$0xff]
        %v3563 = vld [vmem:[#allocation5 + $0x6b8] sm:$0xff]
        %v3564 = vld [vmem:[#allocation5 + $0x6c0] sm:$0xff]
        %v3565 = vld [vmem:[#allocation5 + $0x6c8] sm:$0xff]
        %v3566 = vld [vmem:[#allocation5 + $0x6d0] sm:$0xff]
        %v3567 = vld [vmem:[#allocation5 + $0x6d8] sm:$0xff]
        %v3568 = vld [vmem:[#allocation5 + $0x6e0] sm:$0xff]
        %v3569 = vld [vmem:[#allocation5 + $0x6e8] sm:$0xff]
        %v3570 = vld [vmem:[#allocation5 + $0x6f0] sm:$0xff]
        %v3571 = vld [vmem:[#allocation5 + $0x6f8] sm:$0xff]
        %v3572 = vld [vmem:[#allocation5 + $0x700] sm:$0xff]
        %v3573 = vld [vmem:[#allocation5 + $0x708] sm:$0xff]
        %v3574 = vld [vmem:[#allocation5 + $0x710] sm:$0xff]
        %v3575 = vld [vmem:[#allocation5 + $0x718] sm:$0xff]
        %v3576 = vld [vmem:[#allocation5 + $0x720] sm:$0xff]
        %v3577 = vld [vmem:[#allocation5 + $0x728] sm:$0xff]
        %v3578 = vld [vmem:[#allocation5 + $0x730] sm:$0xff]
        %v3579 = vld [vmem:[#allocation5 + $0x738] sm:$0xff]
        %v3580 = vld [vmem:[#allocation5 + $0x740] sm:$0xff]
        %v3581 = vld [vmem:[#allocation5 + $0x748] sm:$0xff]
        %v3582 = vld [vmem:[#allocation5 + $0x750] sm:$0xff]
        %v3583 = vld [vmem:[#allocation5 + $0x758] sm:$0xff]
        %v3584 = vld [vmem:[#allocation5 + $0x760] sm:$0xff]
        %v3585 = vld [vmem:[#allocation5 + $0x768] sm:$0xff]
        %v3586 = vld [vmem:[#allocation5 + $0x770] sm:$0xff]
        %v3587 = vld [vmem:[#allocation5 + $0x778] sm:$0xff]
        %v3588 = vld [vmem:[#allocation5 + $0x780] sm:$0xff]
        %v3589 = vld [vmem:[#allocation5 + $0x788] sm:$0xff]
        %v3590 = vld [vmem:[#allocation5 + $0x790] sm:$0xff]
        %v3591 = vld [vmem:[#allocation5 + $0x798] sm:$0xff]
        %v3592 = vld [vmem:[#allocation5 + $0x7a0] sm:$0xff]
        %v3593 = vld [vmem:[#allocation5 + $0x7a8] sm:$0xff]
        %v3594 = vld [vmem:[#allocation5 + $0x7b0] sm:$0xff]
        %v3595 = vld [vmem:[#allocation5 + $0x7b8] sm:$0xff]
        %v3596 = vld [vmem:[#allocation5 + $0x7c0] sm:$0xff]
        %v3597 = vld [vmem:[#allocation5 + $0x7c8] sm:$0xff]
        %v3598 = vld [vmem:[#allocation5 + $0x7d0] sm:$0xff]
        %v3599 = vld [vmem:[#allocation5 + $0x7d8] sm:$0xff]
        %v3600 = vld [vmem:[#allocation5 + $0x7e0] sm:$0xff]
        %v3601 = vld [vmem:[#allocation5 + $0x7e8] sm:$0xff]
        %v3602 = vld [vmem:[#allocation5 + $0x7f0] sm:$0xff]
        %v3603 = vld [vmem:[#allocation5 + $0x7f8] sm:$0xff]
        %v3604 = vld [vmem:[#allocation5 + $0x800] sm:$0xff]
        %v3605 = vld [vmem:[#allocation5 + $0x808] sm:$0xff]
        %v3606 = vld [vmem:[#allocation5 + $0x810] sm:$0xff]
        %v3607 = vld [vmem:[#allocation5 + $0x818] sm:$0xff]
        %v3608 = vld [vmem:[#allocation5 + $0x820] sm:$0xff]
        %v3609 = vld [vmem:[#allocation5 + $0x828] sm:$0xff]
        %v3610 = vld [vmem:[#allocation5 + $0x830] sm:$0xff]
        %v3611 = vld [vmem:[#allocation5 + $0x838] sm:$0xff]
        %v3612 = vld [vmem:[#allocation5 + $0x840] sm:$0xff]
        %v3613 = vld [vmem:[#allocation5 + $0x848] sm:$0xff]
        %v3614 = vld [vmem:[#allocation5 + $0x850] sm:$0xff]
        %v3615 = vld [vmem:[#allocation5 + $0x858] sm:$0xff]
        %v3616 = vld [vmem:[#allocation5 + $0x860] sm:$0xff]
        %v3617 = vld [vmem:[#allocation5 + $0x868] sm:$0xff]
        %v3618 = vld [vmem:[#allocation5 + $0x870] sm:$0xff]
        %v3619 = vld [vmem:[#allocation5 + $0x878] sm:$0xff]
        %v3620 = vld [vmem:[#allocation5 + $0x880] sm:$0xff]
        %v3621 = vld [vmem:[#allocation5 + $0x888] sm:$0xff]
        %v3622 = vld [vmem:[#allocation5 + $0x890] sm:$0xff]
        %v3623 = vld [vmem:[#allocation5 + $0x898] sm:$0xff]
        %v3624 = vld [vmem:[#allocation5 + $0x8a0] sm:$0xff]
        %v3625 = vld [vmem:[#allocation5 + $0x8a8] sm:$0xff]
        %v3626 = vld [vmem:[#allocation5 + $0x8b0] sm:$0xff]
        %v3627 = vld [vmem:[#allocation5 + $0x8b8] sm:$0xff]
        %v3628 = vld [vmem:[#allocation5 + $0x8c0] sm:$0xff]
        %v3629 = vld [vmem:[#allocation5 + $0x8c8] sm:$0xff]
        %v3630 = vld [vmem:[#allocation5 + $0x8d0] sm:$0xff]
        %v3631 = vld [vmem:[#allocation5 + $0x8d8] sm:$0xff]
        %v3632 = vld [vmem:[#allocation5 + $0x8e0] sm:$0xff]
        %v3633 = vld [vmem:[#allocation5 + $0x8e8] sm:$0xff]
        %v3634 = vld [vmem:[#allocation5 + $0x8f0] sm:$0xff]
        %v3635 = vld [vmem:[#allocation5 + $0x8f8] sm:$0xff]
        %v3636 = vld [vmem:[#allocation8] sm:$0xff]
        %v3637 = vld [vmem:[#allocation8 + $0x8] sm:$0xff]
        %v3638 = vld [vmem:[#allocation8 + $0x10] sm:$0xff]
        %v3639 = vld [vmem:[#allocation8 + $0x18] sm:$0xff]
        %v3640 = vld [vmem:[#allocation8 + $0x20] sm:$0xff]
        %v3641 = vld [vmem:[#allocation8 + $0x28] sm:$0xff]
        %v3642 = vld [vmem:[#allocation8 + $0x30] sm:$0xff]
        %v3643 = vld [vmem:[#allocation8 + $0x38] sm:$0xff]
        %v3644 = vld [vmem:[#allocation8 + $0x40] sm:$0xff]
        %v3645 = vld [vmem:[#allocation8 + $0x48] sm:$0xff]
        %v3646 = vld [vmem:[#allocation8 + $0x50] sm:$0xff]
        %v3647 = vld [vmem:[#allocation8 + $0x58] sm:$0xff]
        %v3648 = vld [vmem:[#allocation8 + $0x60] sm:$0xff]
        %v3649 = vld [vmem:[#allocation8 + $0x68] sm:$0xff]
        %v3650 = vld [vmem:[#allocation8 + $0x70] sm:$0xff]
        %v3651 = vld [vmem:[#allocation8 + $0x78] sm:$0xff]
        %v3652 = vld [vmem:[#allocation8 + $0x80] sm:$0xff]
        %v3653 = vld [vmem:[#allocation8 + $0x88] sm:$0xff]
        %v3654 = vld [vmem:[#allocation8 + $0x90] sm:$0xff]
        %v3655 = vld [vmem:[#allocation8 + $0x98] sm:$0xff]
        %v3656 = vld [vmem:[#allocation8 + $0xa0] sm:$0xff]
        %v3657 = vld [vmem:[#allocation8 + $0xa8] sm:$0xff]
        %v3658 = vld [vmem:[#allocation8 + $0xb0] sm:$0xff]
        %v3659 = vld [vmem:[#allocation8 + $0xb8] sm:$0xff]
        %v3660 = vld [vmem:[#allocation8 + $0xc0] sm:$0xff]
        %v3661 = vld [vmem:[#allocation8 + $0xc8] sm:$0xff]
        %v3662 = vld [vmem:[#allocation8 + $0xd0] sm:$0xff]
        %v3663 = vld [vmem:[#allocation8 + $0xd8] sm:$0xff]
        %v3664 = vld [vmem:[#allocation8 + $0xe0] sm:$0xff]
        %v3665 = vld [vmem:[#allocation8 + $0xe8] sm:$0xff]
        %v3666 = vld [vmem:[#allocation8 + $0xf0] sm:$0xff]
        %v3667 = vld [vmem:[#allocation8 + $0xf8] sm:$0xff]
        %v3668 = vld [vmem:[#allocation8 + $0x100] sm:$0xff]
        %v3669 = vld [vmem:[#allocation8 + $0x108] sm:$0xff]
        %v3670 = vld [vmem:[#allocation8 + $0x110] sm:$0xff]
        %v3671 = vld [vmem:[#allocation8 + $0x118] sm:$0xff]
        %v3672 = vld [vmem:[#allocation8 + $0x120] sm:$0xff]
        %v3673 = vld [vmem:[#allocation8 + $0x128] sm:$0xff]
        %v3674 = vld [vmem:[#allocation8 + $0x130] sm:$0xff]
        %v3675 = vld [vmem:[#allocation8 + $0x138] sm:$0xff]
        %v3676 = vld [vmem:[#allocation8 + $0x140] sm:$0xff]
        %v3677 = vld [vmem:[#allocation8 + $0x148] sm:$0xff]
        %v3678 = vld [vmem:[#allocation8 + $0x150] sm:$0xff]
        %v3679 = vld [vmem:[#allocation8 + $0x158] sm:$0xff]
        %v3680 = vld [vmem:[#allocation8 + $0x160] sm:$0xff]
        %v3681 = vld [vmem:[#allocation8 + $0x168] sm:$0xff]
        %v3682 = vld [vmem:[#allocation8 + $0x170] sm:$0xff]
        %v3683 = vld [vmem:[#allocation8 + $0x178] sm:$0xff]
        %v3684 = vld [vmem:[#allocation8 + $0x180] sm:$0xff]
        %v3685 = vld [vmem:[#allocation8 + $0x188] sm:$0xff]
        %v3686 = vld [vmem:[#allocation8 + $0x190] sm:$0xff]
        %v3687 = vld [vmem:[#allocation8 + $0x198] sm:$0xff]
        %v3688 = vld [vmem:[#allocation8 + $0x1a0] sm:$0xff]
        %v3689 = vld [vmem:[#allocation8 + $0x1a8] sm:$0xff]
        %v3690 = vld [vmem:[#allocation8 + $0x1b0] sm:$0xff]
        %v3691 = vld [vmem:[#allocation8 + $0x1b8] sm:$0xff]
        %v3692 = vld [vmem:[#allocation8 + $0x1c0] sm:$0xff]
        %v3693 = vld [vmem:[#allocation8 + $0x1c8] sm:$0xff]
        %v3694 = vld [vmem:[#allocation8 + $0x1d0] sm:$0xff]
        %v3695 = vld [vmem:[#allocation8 + $0x1d8] sm:$0xff]
        %v3696 = vld [vmem:[#allocation8 + $0x1e0] sm:$0xff]
        %v3697 = vld [vmem:[#allocation8 + $0x1e8] sm:$0xff]
        %v3698 = vld [vmem:[#allocation8 + $0x1f0] sm:$0xff]
        %v3699 = vld [vmem:[#allocation8 + $0x1f8] sm:$0xff]
        %v3700 = vld [vmem:[#allocation8 + $0x200] sm:$0xff]
        %v3701 = vld [vmem:[#allocation8 + $0x208] sm:$0xff]
        %v3702 = vld [vmem:[#allocation8 + $0x210] sm:$0xff]
        %v3703 = vld [vmem:[#allocation8 + $0x218] sm:$0xff]
        %v3704 = vld [vmem:[#allocation8 + $0x220] sm:$0xff]
        %v3705 = vld [vmem:[#allocation8 + $0x228] sm:$0xff]
        %v3706 = vld [vmem:[#allocation8 + $0x230] sm:$0xff]
        %v3707 = vld [vmem:[#allocation8 + $0x238] sm:$0xff]
        %v3708 = vld [vmem:[#allocation8 + $0x240] sm:$0xff]
        %v3709 = vld [vmem:[#allocation8 + $0x248] sm:$0xff]
        %v3710 = vld [vmem:[#allocation8 + $0x250] sm:$0xff]
        %v3711 = vld [vmem:[#allocation8 + $0x258] sm:$0xff]
        %v3712 = vld [vmem:[#allocation8 + $0x260] sm:$0xff]
        %v3713 = vld [vmem:[#allocation8 + $0x268] sm:$0xff]
        %v3714 = vld [vmem:[#allocation8 + $0x270] sm:$0xff]
        %v3715 = vld [vmem:[#allocation8 + $0x278] sm:$0xff]
        %v3716 = vld [vmem:[#allocation8 + $0x280] sm:$0xff]
        %v3717 = vld [vmem:[#allocation8 + $0x288] sm:$0xff]
        %v3718 = vld [vmem:[#allocation8 + $0x290] sm:$0xff]
        %v3719 = vld [vmem:[#allocation8 + $0x298] sm:$0xff]
        %v3720 = vld [vmem:[#allocation8 + $0x2a0] sm:$0xff]
        %v3721 = vld [vmem:[#allocation8 + $0x2a8] sm:$0xff]
        %v3722 = vld [vmem:[#allocation8 + $0x2b0] sm:$0xff]
        %v3723 = vld [vmem:[#allocation8 + $0x2b8] sm:$0xff]
        %v3724 = vld [vmem:[#allocation8 + $0x2c0] sm:$0xff]
        %v3725 = vld [vmem:[#allocation8 + $0x2c8] sm:$0xff]
        %v3726 = vld [vmem:[#allocation8 + $0x2d0] sm:$0xff]
        %v3727 = vld [vmem:[#allocation8 + $0x2d8] sm:$0xff]
        %v3728 = vld [vmem:[#allocation8 + $0x2e0] sm:$0xff]
        %v3729 = vld [vmem:[#allocation8 + $0x2e8] sm:$0xff]
        %v3730 = vld [vmem:[#allocation8 + $0x2f0] sm:$0xff]
        %v3731 = vld [vmem:[#allocation8 + $0x2f8] sm:$0xff]
        %v3732 = vld [vmem:[#allocation8 + $0x300] sm:$0xff]
        %v3733 = vld [vmem:[#allocation8 + $0x308] sm:$0xff]
        %v3734 = vld [vmem:[#allocation8 + $0x310] sm:$0xff]
        %v3735 = vld [vmem:[#allocation8 + $0x318] sm:$0xff]
        %v3736 = vld [vmem:[#allocation8 + $0x320] sm:$0xff]
        %v3737 = vld [vmem:[#allocation8 + $0x328] sm:$0xff]
        %v3738 = vld [vmem:[#allocation8 + $0x330] sm:$0xff]
        %v3739 = vld [vmem:[#allocation8 + $0x338] sm:$0xff]
        %v3740 = vld [vmem:[#allocation8 + $0x340] sm:$0xff]
        %v3741 = vld [vmem:[#allocation8 + $0x348] sm:$0xff]
        %v3742 = vld [vmem:[#allocation8 + $0x350] sm:$0xff]
        %v3743 = vld [vmem:[#allocation8 + $0x358] sm:$0xff]
        %v3744 = vld [vmem:[#allocation8 + $0x360] sm:$0xff]
        %v3745 = vld [vmem:[#allocation8 + $0x368] sm:$0xff]
        %v3746 = vld [vmem:[#allocation8 + $0x370] sm:$0xff]
        %v3747 = vld [vmem:[#allocation8 + $0x378] sm:$0xff]
        %v3748 = vld [vmem:[#allocation8 + $0x380] sm:$0xff]
        %v3749 = vld [vmem:[#allocation8 + $0x388] sm:$0xff]
        %v3750 = vld [vmem:[#allocation8 + $0x390] sm:$0xff]
        %v3751 = vld [vmem:[#allocation8 + $0x398] sm:$0xff]
        %v3752 = vld [vmem:[#allocation8 + $0x3a0] sm:$0xff]
        %v3753 = vld [vmem:[#allocation8 + $0x3a8] sm:$0xff]
        %v3754 = vld [vmem:[#allocation8 + $0x3b0] sm:$0xff]
        %v3755 = vld [vmem:[#allocation8 + $0x3b8] sm:$0xff]
        %v3756 = vld [vmem:[#allocation8 + $0x3c0] sm:$0xff]
        %v3757 = vld [vmem:[#allocation8 + $0x3c8] sm:$0xff]
        %v3758 = vld [vmem:[#allocation8 + $0x3d0] sm:$0xff]
        %v3759 = vld [vmem:[#allocation8 + $0x3d8] sm:$0xff]
        %v3760 = vld [vmem:[#allocation8 + $0x3e0] sm:$0xff]
        %v3761 = vld [vmem:[#allocation8 + $0x3e8] sm:$0xff]
        %v3762 = vld [vmem:[#allocation8 + $0x3f0] sm:$0xff]
        %v3763 = vld [vmem:[#allocation8 + $0x3f8] sm:$0xff]
        %v3764 = vld [vmem:[#allocation8 + $0x400] sm:$0xff]
        %v3765 = vld [vmem:[#allocation8 + $0x408] sm:$0xff]
        %v3766 = vld [vmem:[#allocation8 + $0x410] sm:$0xff]
        %v3767 = vld [vmem:[#allocation8 + $0x418] sm:$0xff]
        %v3768 = vld [vmem:[#allocation8 + $0x420] sm:$0xff]
        %v3769 = vld [vmem:[#allocation8 + $0x428] sm:$0xff]
        %v3770 = vld [vmem:[#allocation8 + $0x430] sm:$0xff]
        %v3771 = vld [vmem:[#allocation8 + $0x438] sm:$0xff]
        %v3772 = vld [vmem:[#allocation8 + $0x440] sm:$0xff]
        %v3773 = vld [vmem:[#allocation8 + $0x448] sm:$0xff]
        %v3774 = vld [vmem:[#allocation8 + $0x450] sm:$0xff]
        %v3775 = vld [vmem:[#allocation8 + $0x458] sm:$0xff]
        %v3776 = vld [vmem:[#allocation8 + $0x460] sm:$0xff]
        %v3777 = vld [vmem:[#allocation8 + $0x468] sm:$0xff]
        %v3778 = vld [vmem:[#allocation8 + $0x470] sm:$0xff]
        %v3779 = vld [vmem:[#allocation8 + $0x478] sm:$0xff]
        %3780 = vmatprep.subr.mxu0 0.0
        %3781 = vmatpush1.msra.mxu0 %v3651
        %3782 = vmatprep.subr.mxu0 0.0
        %3783 = vmatpush1.msra.mxu0 %v3650
        %3784 = vmatprep.subr.mxu0 0.0
        %3785 = vmatpush1.msra.mxu0 %v3649
        %3786 = vmatprep.subr.mxu0 0.0
        %3787 = vmatpush1.msra.mxu0 %v3648
        %3788 = vmatprep.subr.mxu0 0.0
        %3789 = vmatpush1.msra.mxu0 %v3647
        %3790 = vmatprep.subr.mxu0 0.0
        %3791 = vmatpush1.msra.mxu0 %v3646
        %3792 = vmatprep.subr.mxu0 0.0
        %3793 = vmatpush1.msra.mxu0 %v3645
        %3794 = vmatprep.subr.mxu0 0.0
        %3795 = vmatpush1.msra.mxu0 %v3644
        %3796 = vmatprep.subr.mxu0 0.0
        %3797 = vmatpush1.msra.mxu0 %v3643
        %3798 = vmatprep.subr.mxu0 0.0
        %3799 = vmatpush1.msra.mxu0 %v3642
        %3800 = vmatprep.subr.mxu0 0.0
        %3801 = vmatpush1.msra.mxu0 %v3641
        %3802 = vmatprep.subr.mxu0 0.0
        %3803 = vmatpush1.msra.mxu0 %v3640
        %3804 = vmatprep.subr.mxu0 0.0
        %3805 = vmatpush1.msra.mxu0 %v3639
        %3806 = vmatprep.subr.mxu0 0.0
        %3807 = vmatpush1.msra.mxu0 %v3638
        %3808 = vmatprep.subr.mxu0 0.0
        %3809 = vmatpush1.msra.mxu0 %v3637
        %3810 = vmatprep.subr.mxu0 0.0
        %3811 = vmatpush1.msra.mxu0 %v3636
        %3812 = vmatprep.subr.mxu0 0.0
        %3813 = vmatpush2.msra.mxu0 %v3667
        %3814 = vmatprep.subr.mxu0 0.0
        %3815 = vmatpush2.msra.mxu0 %v3666
        %3816 = vmatprep.subr.mxu0 0.0
        %3817 = vmatpush2.msra.mxu0 %v3665
        %3818 = vmatprep.subr.mxu0 0.0
        %3819 = vmatpush2.msra.mxu0 %v3664
        %3820 = vmatprep.subr.mxu0 0.0
        %3821 = vmatpush2.msra.mxu0 %v3663
        %3822 = vmatprep.subr.mxu0 0.0
        %3823 = vmatpush2.msra.mxu0 %v3662
        %3824 = vmatprep.subr.mxu0 0.0
        %3825 = vmatpush2.msra.mxu0 %v3661
        %3826 = vmatprep.subr.mxu0 0.0
        %3827 = vmatpush2.msra.mxu0 %v3660
        %3828 = vmatprep.subr.mxu0 0.0
        %3829 = vmatpush2.msra.mxu0 %v3659
        %3830 = vmatprep.subr.mxu0 0.0
        %3831 = vmatpush2.msra.mxu0 %v3658
        %3832 = vmatprep.subr.mxu0 0.0
        %3833 = vmatpush2.msra.mxu0 %v3657
        %3834 = vmatprep.subr.mxu0 0.0
        %3835 = vmatpush2.msra.mxu0 %v3656
        %3836 = vmatprep.subr.mxu0 0.0
        %3837 = vmatpush2.msra.mxu0 %v3655
        %3838 = vmatprep.subr.mxu0 0.0
        %3839 = vmatpush2.msra.mxu0 %v3654
        %3840 = vmatprep.subr.mxu0 0.0
        %3841 = vmatpush2.msra.mxu0 %v3653
        %3842 = vmatprep.subr.mxu0 0.0
        %3843 = vmatpush2.msra.mxu0 %v3652
        %3844 = vmatprep.mubr.f32.mxu0 %v3349
        %3845 = vmatmul.mubr.f32.gmra.mxu0 %v3348
        %v3846 = vpop.f32.mrf.mxu0
        %v3847 = vadd.f32 0.0, %v3846
        %v3848 = vpop.f32.mrf.mxu0
        %3849 = vmatprep.mubr.f32.mxu0 %v3358
        %3850 = vmatmul.mubr.f32.gmra.mxu0 %v3357
        %v3851 = vpop.f32.mrf.mxu0
        %v3852 = vadd.f32 0.0, %v3851
        %v3853 = vpop.f32.mrf.mxu0
        %3854 = vmatprep.mubr.f32.mxu0 %v3367
        %3855 = vmatmul.mubr.f32.gmra.mxu0 %v3366
        %v3856 = vpop.f32.mrf.mxu0
        %v3857 = vadd.f32 0.0, %v3856
        %v3858 = vpop.f32.mrf.mxu0
        %3859 = vmatprep.mubr.f32.mxu0 %v3376
        %3860 = vmatmul.mubr.f32.gmra.mxu0 %v3375
        %v3861 = vpop.f32.mrf.mxu0
        %v3862 = vadd.f32 0.0, %v3861
        %v3863 = vpop.f32.mrf.mxu0
        %3864 = vmatprep.mubr.f32.mxu0 %v3385
        %3865 = vmatmul.mubr.f32.gmra.mxu0 %v3384
        %v3866 = vpop.f32.mrf.mxu0
        %v3867 = vadd.f32 0.0, %v3866
        %v3868 = vpop.f32.mrf.mxu0
        %3869 = vmatprep.mubr.f32.mxu0 %v3394
        %3870 = vmatmul.mubr.f32.gmra.mxu0 %v3393
        %v3871 = vpop.f32.mrf.mxu0
        %v3872 = vadd.f32 0.0, %v3871
        %v3873 = vpop.f32.mrf.mxu0
        %3874 = vmatprep.mubr.f32.mxu0 %v3403
        %3875 = vmatmul.mubr.f32.gmra.mxu0 %v3402
        %v3876 = vpop.f32.mrf.mxu0
        %v3877 = vadd.f32 0.0, %v3876
        %v3878 = vpop.f32.mrf.mxu0
        %3879 = vmatprep.mubr.f32.mxu0 %v3412
        %3880 = vmatmul.mubr.f32.gmra.mxu0 %v3411
        %v3881 = vpop.f32.mrf.mxu0
        %v3882 = vadd.f32 0.0, %v3881
        %v3883 = vpop.f32.mrf.mxu0
        %3884 = vmatprep.mubr.f32.mxu0 %v3421
        %3885 = vmatmul.mubr.f32.gmra.mxu0 %v3420
        %v3886 = vpop.f32.mrf.mxu0
        %v3887 = vadd.f32 0.0, %v3886
        %v3888 = vpop.f32.mrf.mxu0
        %3889 = vmatprep.mubr.f32.mxu0 %v3430
        %3890 = vmatmul.mubr.f32.gmra.mxu0 %v3429
        %v3891 = vpop.f32.mrf.mxu0
        %v3892 = vadd.f32 0.0, %v3891
        %v3893 = vpop.f32.mrf.mxu0
        %3894 = vmatprep.mubr.f32.mxu0 %v3439
        %3895 = vmatmul.mubr.f32.gmra.mxu0 %v3438
        %v3896 = vpop.f32.mrf.mxu0
        %v3897 = vadd.f32 0.0, %v3896
        %v3898 = vpop.f32.mrf.mxu0
        %3899 = vmatprep.mubr.f32.mxu0 %v3448
        %3900 = vmatmul.mubr.f32.gmra.mxu0 %v3447
        %v3901 = vpop.f32.mrf.mxu0
        %v3902 = vadd.f32 0.0, %v3901
        %v3903 = vpop.f32.mrf.mxu0
        %3904 = vmatprep.mubr.f32.mxu0 %v3457
        %3905 = vmatmul.mubr.f32.gmra.mxu0 %v3456
        %v3906 = vpop.f32.mrf.mxu0
        %v3907 = vadd.f32 0.0, %v3906
        %v3908 = vpop.f32.mrf.mxu0
        %3909 = vmatprep.mubr.f32.mxu0 %v3466
        %3910 = vmatmul.mubr.f32.gmra.mxu0 %v3465
        %v3911 = vpop.f32.mrf.mxu0
        %v3912 = vadd.f32 0.0, %v3911
        %v3913 = vpop.f32.mrf.mxu0
        %3914 = vmatprep.mubr.f32.mxu0 %v3475
        %3915 = vmatmul.mubr.f32.gmra.mxu0 %v3474
        %v3916 = vpop.f32.mrf.mxu0
        %v3917 = vadd.f32 0.0, %v3916
        %v3918 = vpop.f32.mrf.mxu0
        %3919 = vmatprep.mubr.f32.mxu0 %v3484
        %3920 = vmatmul.mubr.f32.gmra.mxu0 %v3483
        %v3921 = vpop.f32.mrf.mxu0
        %v3922 = vadd.f32 0.0, %v3921
        %v3923 = vpop.f32.mrf.mxu0
        %3924 = vmatprep.mubr.f32.mxu0 %v3493
        %3925 = vmatmul.mubr.f32.gmra.mxu0 %v3492
        %v3926 = vpop.f32.mrf.mxu0
        %v3927 = vadd.f32 0.0, %v3926
        %v3928 = vpop.f32.mrf.mxu0
        %3929 = vmatprep.mubr.f32.mxu0 %v3502
        %3930 = vmatmul.mubr.f32.gmra.mxu0 %v3501
        %v3931 = vpop.f32.mrf.mxu0
        %v3932 = vadd.f32 0.0, %v3931
        %v3933 = vpop.f32.mrf.mxu0
        %3934 = vmatprep.mubr.f32.mxu0 %v3511
        %3935 = vmatmul.mubr.f32.gmra.mxu0 %v3510
        %v3936 = vpop.f32.mrf.mxu0
        %v3937 = vadd.f32 0.0, %v3936
        %v3938 = vpop.f32.mrf.mxu0
        %3939 = vmatprep.mubr.f32.mxu0 %v3520
        %3940 = vmatmul.mubr.f32.gmra.mxu0 %v3519
        %v3941 = vpop.f32.mrf.mxu0
        %v3942 = vadd.f32 0.0, %v3941
        %v3943 = vpop.f32.mrf.mxu0
        %3944 = vmatprep.mubr.f32.mxu0 %v3529
        %3945 = vmatmul.mubr.f32.gmra.mxu0 %v3528
        %v3946 = vpop.f32.mrf.mxu0
        %v3947 = vadd.f32 0.0, %v3946
        %v3948 = vpop.f32.mrf.mxu0
        %3949 = vmatprep.mubr.f32.mxu0 %v3538
        %3950 = vmatmul.mubr.f32.gmra.mxu0 %v3537
        %v3951 = vpop.f32.mrf.mxu0
        %v3952 = vadd.f32 0.0, %v3951
        %v3953 = vpop.f32.mrf.mxu0
        %3954 = vmatprep.mubr.f32.mxu0 %v3547
        %3955 = vmatmul.mubr.f32.gmra.mxu0 %v3546
        %v3956 = vpop.f32.mrf.mxu0
        %v3957 = vadd.f32 0.0, %v3956
        %v3958 = vpop.f32.mrf.mxu0
        %3959 = vmatprep.mubr.f32.mxu0 %v3556
        %3960 = vmatmul.mubr.f32.gmra.mxu0 %v3555
        %v3961 = vpop.f32.mrf.mxu0
        %v3962 = vadd.f32 0.0, %v3961
        %v3963 = vpop.f32.mrf.mxu0
        %3964 = vmatprep.mubr.f32.mxu0 %v3565
        %3965 = vmatmul.mubr.f32.gmra.mxu0 %v3564
        %v3966 = vpop.f32.mrf.mxu0
        %v3967 = vadd.f32 0.0, %v3966
        %v3968 = vpop.f32.mrf.mxu0
        %3969 = vmatprep.mubr.f32.mxu0 %v3574
        %3970 = vmatmul.mubr.f32.gmra.mxu0 %v3573
        %v3971 = vpop.f32.mrf.mxu0
        %v3972 = vadd.f32 0.0, %v3971
        %v3973 = vpop.f32.mrf.mxu0
        %3974 = vmatprep.mubr.f32.mxu0 %v3583
        %3975 = vmatmul.mubr.f32.gmra.mxu0 %v3582
        %v3976 = vpop.f32.mrf.mxu0
        %v3977 = vadd.f32 0.0, %v3976
        %v3978 = vpop.f32.mrf.mxu0
        %3979 = vmatprep.mubr.f32.mxu0 %v3592
        %3980 = vmatmul.mubr.f32.gmra.mxu0 %v3591
        %v3981 = vpop.f32.mrf.mxu0
        %v3982 = vadd.f32 0.0, %v3981
        %v3983 = vpop.f32.mrf.mxu0
        %3984 = vmatprep.mubr.f32.mxu0 %v3601
        %3985 = vmatmul.mubr.f32.gmra.mxu0 %v3600
        %v3986 = vpop.f32.mrf.mxu0
        %v3987 = vadd.f32 0.0, %v3986
        %v3988 = vpop.f32.mrf.mxu0
        %3989 = vmatprep.mubr.f32.mxu0 %v3610
        %3990 = vmatmul.mubr.f32.gmra.mxu0 %v3609
        %v3991 = vpop.f32.mrf.mxu0
        %v3992 = vadd.f32 0.0, %v3991
        %v3993 = vpop.f32.mrf.mxu0
        %3994 = vmatprep.mubr.f32.mxu0 %v3619
        %3995 = vmatmul.mubr.f32.gmra.mxu0 %v3618
        %v3996 = vpop.f32.mrf.mxu0
        %v3997 = vadd.f32 0.0, %v3996
        %v3998 = vpop.f32.mrf.mxu0
        %3999 = vmatprep.mubr.f32.mxu0 %v3628
        %4000 = vmatmul.mubr.f32.gmra.mxu0 %v3627
        %v4001 = vpop.f32.mrf.mxu0
        %v4002 = vadd.f32 0.0, %v4001
        %v4003 = vpop.f32.mrf.mxu0
        %4004 = vdwg.mxu0
        %4005 = vmatprep.subr.mxu0 0.0
        %4006 = vmatpush1.msra.mxu0 %v3683
        %4007 = vmatprep.subr.mxu0 0.0
        %4008 = vmatpush1.msra.mxu0 %v3682
        %4009 = vmatprep.subr.mxu0 0.0
        %4010 = vmatpush1.msra.mxu0 %v3681
        %4011 = vmatprep.subr.mxu0 0.0
        %4012 = vmatpush1.msra.mxu0 %v3680
        %4013 = vmatprep.subr.mxu0 0.0
        %4014 = vmatpush1.msra.mxu0 %v3679
        %4015 = vmatprep.subr.mxu0 0.0
        %4016 = vmatpush1.msra.mxu0 %v3678
        %4017 = vmatprep.subr.mxu0 0.0
        %4018 = vmatpush1.msra.mxu0 %v3677
        %4019 = vmatprep.subr.mxu0 0.0
        %4020 = vmatpush1.msra.mxu0 %v3676
        %4021 = vmatprep.subr.mxu0 0.0
        %4022 = vmatpush1.msra.mxu0 %v3675
        %4023 = vmatprep.subr.mxu0 0.0
        %4024 = vmatpush1.msra.mxu0 %v3674
        %4025 = vmatprep.subr.mxu0 0.0
        %4026 = vmatpush1.msra.mxu0 %v3673
        %4027 = vmatprep.subr.mxu0 0.0
        %4028 = vmatpush1.msra.mxu0 %v3672
        %4029 = vmatprep.subr.mxu0 0.0
        %4030 = vmatpush1.msra.mxu0 %v3671
        %4031 = vmatprep.subr.mxu0 0.0
        %4032 = vmatpush1.msra.mxu0 %v3670
        %4033 = vmatprep.subr.mxu0 0.0
        %4034 = vmatpush1.msra.mxu0 %v3669
        %4035 = vmatprep.subr.mxu0 0.0
        %4036 = vmatpush1.msra.mxu0 %v3668
        %4037 = vmatprep.subr.mxu0 0.0
        %4038 = vmatpush2.msra.mxu0 %v3699
        %4039 = vmatprep.subr.mxu0 0.0
        %4040 = vmatpush2.msra.mxu0 %v3698
        %4041 = vmatprep.subr.mxu0 0.0
        %4042 = vmatpush2.msra.mxu0 %v3697
        %4043 = vmatprep.subr.mxu0 0.0
        %4044 = vmatpush2.msra.mxu0 %v3696
        %4045 = vmatprep.subr.mxu0 0.0
        %4046 = vmatpush2.msra.mxu0 %v3695
        %4047 = vmatprep.subr.mxu0 0.0
        %4048 = vmatpush2.msra.mxu0 %v3694
        %4049 = vmatprep.subr.mxu0 0.0
        %4050 = vmatpush2.msra.mxu0 %v3693
        %4051 = vmatprep.subr.mxu0 0.0
        %4052 = vmatpush2.msra.mxu0 %v3692
        %4053 = vmatprep.subr.mxu0 0.0
        %4054 = vmatpush2.msra.mxu0 %v3691
        %4055 = vmatprep.subr.mxu0 0.0
        %4056 = vmatpush2.msra.mxu0 %v3690
        %4057 = vmatprep.subr.mxu0 0.0
        %4058 = vmatpush2.msra.mxu0 %v3689
        %4059 = vmatprep.subr.mxu0 0.0
        %4060 = vmatpush2.msra.mxu0 %v3688
        %4061 = vmatprep.subr.mxu0 0.0
        %4062 = vmatpush2.msra.mxu0 %v3687
        %4063 = vmatprep.subr.mxu0 0.0
        %4064 = vmatpush2.msra.mxu0 %v3686
        %4065 = vmatprep.subr.mxu0 0.0
        %4066 = vmatpush2.msra.mxu0 %v3685
        %4067 = vmatprep.subr.mxu0 0.0
        %4068 = vmatpush2.msra.mxu0 %v3684
        %4069 = vmatprep.mubr.f32.mxu0 %v3351
        %4070 = vmatmul.mubr.f32.gmra.mxu0 %v3350
        %v4071 = vpop.f32.mrf.mxu0
        %v4072 = vadd.f32 %v3847, %v4071
        %v4073 = vpop.f32.mrf.mxu0
        %4074 = vmatprep.mubr.f32.mxu0 %v3360
        %4075 = vmatmul.mubr.f32.gmra.mxu0 %v3359
        %v4076 = vpop.f32.mrf.mxu0
        %v4077 = vadd.f32 %v3852, %v4076
        %v4078 = vpop.f32.mrf.mxu0
        %4079 = vmatprep.mubr.f32.mxu0 %v3369
        %4080 = vmatmul.mubr.f32.gmra.mxu0 %v3368
        %v4081 = vpop.f32.mrf.mxu0
        %v4082 = vadd.f32 %v3857, %v4081
        %v4083 = vpop.f32.mrf.mxu0
        %4084 = vmatprep.mubr.f32.mxu0 %v3378
        %4085 = vmatmul.mubr.f32.gmra.mxu0 %v3377
        %v4086 = vpop.f32.mrf.mxu0
        %v4087 = vadd.f32 %v3862, %v4086
        %v4088 = vpop.f32.mrf.mxu0
        %4089 = vmatprep.mubr.f32.mxu0 %v3387
        %4090 = vmatmul.mubr.f32.gmra.mxu0 %v3386
        %v4091 = vpop.f32.mrf.mxu0
        %v4092 = vadd.f32 %v3867, %v4091
        %v4093 = vpop.f32.mrf.mxu0
        %4094 = vmatprep.mubr.f32.mxu0 %v3396
        %4095 = vmatmul.mubr.f32.gmra.mxu0 %v3395
        %v4096 = vpop.f32.mrf.mxu0
        %v4097 = vadd.f32 %v3872, %v4096
        %v4098 = vpop.f32.mrf.mxu0
        %4099 = vmatprep.mubr.f32.mxu0 %v3405
        %4100 = vmatmul.mubr.f32.gmra.mxu0 %v3404
        %v4101 = vpop.f32.mrf.mxu0
        %v4102 = vadd.f32 %v3877, %v4101
        %v4103 = vpop.f32.mrf.mxu0
        %4104 = vmatprep.mubr.f32.mxu0 %v3414
        %4105 = vmatmul.mubr.f32.gmra.mxu0 %v3413
        %v4106 = vpop.f32.mrf.mxu0
        %v4107 = vadd.f32 %v3882, %v4106
        %v4108 = vpop.f32.mrf.mxu0
        %4109 = vmatprep.mubr.f32.mxu0 %v3423
        %4110 = vmatmul.mubr.f32.gmra.mxu0 %v3422
        %v4111 = vpop.f32.mrf.mxu0
        %v4112 = vadd.f32 %v3887, %v4111
        %v4113 = vpop.f32.mrf.mxu0
        %4114 = vmatprep.mubr.f32.mxu0 %v3432
        %4115 = vmatmul.mubr.f32.gmra.mxu0 %v3431
        %v4116 = vpop.f32.mrf.mxu0
        %v4117 = vadd.f32 %v3892, %v4116
        %v4118 = vpop.f32.mrf.mxu0
        %4119 = vmatprep.mubr.f32.mxu0 %v3441
        %4120 = vmatmul.mubr.f32.gmra.mxu0 %v3440
        %v4121 = vpop.f32.mrf.mxu0
        %v4122 = vadd.f32 %v3897, %v4121
        %v4123 = vpop.f32.mrf.mxu0
        %4124 = vmatprep.mubr.f32.mxu0 %v3450
        %4125 = vmatmul.mubr.f32.gmra.mxu0 %v3449
        %v4126 = vpop.f32.mrf.mxu0
        %v4127 = vadd.f32 %v3902, %v4126
        %v4128 = vpop.f32.mrf.mxu0
        %4129 = vmatprep.mubr.f32.mxu0 %v3459
        %4130 = vmatmul.mubr.f32.gmra.mxu0 %v3458
        %v4131 = vpop.f32.mrf.mxu0
        %v4132 = vadd.f32 %v3907, %v4131
        %v4133 = vpop.f32.mrf.mxu0
        %4134 = vmatprep.mubr.f32.mxu0 %v3468
        %4135 = vmatmul.mubr.f32.gmra.mxu0 %v3467
        %v4136 = vpop.f32.mrf.mxu0
        %v4137 = vadd.f32 %v3912, %v4136
        %v4138 = vpop.f32.mrf.mxu0
        %4139 = vmatprep.mubr.f32.mxu0 %v3477
        %4140 = vmatmul.mubr.f32.gmra.mxu0 %v3476
        %v4141 = vpop.f32.mrf.mxu0
        %v4142 = vadd.f32 %v3917, %v4141
        %v4143 = vpop.f32.mrf.mxu0
        %4144 = vmatprep.mubr.f32.mxu0 %v3486
        %4145 = vmatmul.mubr.f32.gmra.mxu0 %v3485
        %v4146 = vpop.f32.mrf.mxu0
        %v4147 = vadd.f32 %v3922, %v4146
        %v4148 = vpop.f32.mrf.mxu0
        %4149 = vmatprep.mubr.f32.mxu0 %v3495
        %4150 = vmatmul.mubr.f32.gmra.mxu0 %v3494
        %v4151 = vpop.f32.mrf.mxu0
        %v4152 = vadd.f32 %v3927, %v4151
        %v4153 = vpop.f32.mrf.mxu0
        %4154 = vmatprep.mubr.f32.mxu0 %v3504
        %4155 = vmatmul.mubr.f32.gmra.mxu0 %v3503
        %v4156 = vpop.f32.mrf.mxu0
        %v4157 = vadd.f32 %v3932, %v4156
        %v4158 = vpop.f32.mrf.mxu0
        %4159 = vmatprep.mubr.f32.mxu0 %v3513
        %4160 = vmatmul.mubr.f32.gmra.mxu0 %v3512
        %v4161 = vpop.f32.mrf.mxu0
        %v4162 = vadd.f32 %v3937, %v4161
        %v4163 = vpop.f32.mrf.mxu0
        %4164 = vmatprep.mubr.f32.mxu0 %v3522
        %4165 = vmatmul.mubr.f32.gmra.mxu0 %v3521
        %v4166 = vpop.f32.mrf.mxu0
        %v4167 = vadd.f32 %v3942, %v4166
        %v4168 = vpop.f32.mrf.mxu0
        %4169 = vmatprep.mubr.f32.mxu0 %v3531
        %4170 = vmatmul.mubr.f32.gmra.mxu0 %v3530
        %v4171 = vpop.f32.mrf.mxu0
        %v4172 = vadd.f32 %v3947, %v4171
        %v4173 = vpop.f32.mrf.mxu0
        %4174 = vmatprep.mubr.f32.mxu0 %v3540
        %4175 = vmatmul.mubr.f32.gmra.mxu0 %v3539
        %v4176 = vpop.f32.mrf.mxu0
        %v4177 = vadd.f32 %v3952, %v4176
        %v4178 = vpop.f32.mrf.mxu0
        %4179 = vmatprep.mubr.f32.mxu0 %v3549
        %4180 = vmatmul.mubr.f32.gmra.mxu0 %v3548
        %v4181 = vpop.f32.mrf.mxu0
        %v4182 = vadd.f32 %v3957, %v4181
        %v4183 = vpop.f32.mrf.mxu0
        %4184 = vmatprep.mubr.f32.mxu0 %v3558
        %4185 = vmatmul.mubr.f32.gmra.mxu0 %v3557
        %v4186 = vpop.f32.mrf.mxu0
        %v4187 = vadd.f32 %v3962, %v4186
        %v4188 = vpop.f32.mrf.mxu0
        %4189 = vmatprep.mubr.f32.mxu0 %v3567
        %4190 = vmatmul.mubr.f32.gmra.mxu0 %v3566
        %v4191 = vpop.f32.mrf.mxu0
        %v4192 = vadd.f32 %v3967, %v4191
        %v4193 = vpop.f32.mrf.mxu0
        %4194 = vmatprep.mubr.f32.mxu0 %v3576
        %4195 = vmatmul.mubr.f32.gmra.mxu0 %v3575
        %v4196 = vpop.f32.mrf.mxu0
        %v4197 = vadd.f32 %v3972, %v4196
        %v4198 = vpop.f32.mrf.mxu0
        %4199 = vmatprep.mubr.f32.mxu0 %v3585
        %4200 = vmatmul.mubr.f32.gmra.mxu0 %v3584
        %v4201 = vpop.f32.mrf.mxu0
        %v4202 = vadd.f32 %v3977, %v4201
        %v4203 = vpop.f32.mrf.mxu0
        %4204 = vmatprep.mubr.f32.mxu0 %v3594
        %4205 = vmatmul.mubr.f32.gmra.mxu0 %v3593
        %v4206 = vpop.f32.mrf.mxu0
        %v4207 = vadd.f32 %v3982, %v4206
        %v4208 = vpop.f32.mrf.mxu0
        %4209 = vmatprep.mubr.f32.mxu0 %v3603
        %4210 = vmatmul.mubr.f32.gmra.mxu0 %v3602
        %v4211 = vpop.f32.mrf.mxu0
        %v4212 = vadd.f32 %v3987, %v4211
        %v4213 = vpop.f32.mrf.mxu0
        %4214 = vmatprep.mubr.f32.mxu0 %v3612
        %4215 = vmatmul.mubr.f32.gmra.mxu0 %v3611
        %v4216 = vpop.f32.mrf.mxu0
        %v4217 = vadd.f32 %v3992, %v4216
        %v4218 = vpop.f32.mrf.mxu0
        %4219 = vmatprep.mubr.f32.mxu0 %v3621
        %4220 = vmatmul.mubr.f32.gmra.mxu0 %v3620
        %v4221 = vpop.f32.mrf.mxu0
        %v4222 = vadd.f32 %v3997, %v4221
        %v4223 = vpop.f32.mrf.mxu0
        %4224 = vmatprep.mubr.f32.mxu0 %v3630
        %4225 = vmatmul.mubr.f32.gmra.mxu0 %v3629
        %v4226 = vpop.f32.mrf.mxu0
        %v4227 = vadd.f32 %v4002, %v4226
        %v4228 = vpop.f32.mrf.mxu0
        %4229 = vdwg.mxu0
        %4230 = vmatprep.subr.mxu0 0.0
        %4231 = vmatpush1.msra.mxu0 %v3715
        %4232 = vmatprep.subr.mxu0 0.0
        %4233 = vmatpush1.msra.mxu0 %v3714
        %4234 = vmatprep.subr.mxu0 0.0
        %4235 = vmatpush1.msra.mxu0 %v3713
        %4236 = vmatprep.subr.mxu0 0.0
        %4237 = vmatpush1.msra.mxu0 %v3712
        %4238 = vmatprep.subr.mxu0 0.0
        %4239 = vmatpush1.msra.mxu0 %v3711
        %4240 = vmatprep.subr.mxu0 0.0
        %4241 = vmatpush1.msra.mxu0 %v3710
        %4242 = vmatprep.subr.mxu0 0.0
        %4243 = vmatpush1.msra.mxu0 %v3709
        %4244 = vmatprep.subr.mxu0 0.0
        %4245 = vmatpush1.msra.mxu0 %v3708
        %4246 = vmatprep.subr.mxu0 0.0
        %4247 = vmatpush1.msra.mxu0 %v3707
        %4248 = vmatprep.subr.mxu0 0.0
        %4249 = vmatpush1.msra.mxu0 %v3706
        %4250 = vmatprep.subr.mxu0 0.0
        %4251 = vmatpush1.msra.mxu0 %v3705
        %4252 = vmatprep.subr.mxu0 0.0
        %4253 = vmatpush1.msra.mxu0 %v3704
        %4254 = vmatprep.subr.mxu0 0.0
        %4255 = vmatpush1.msra.mxu0 %v3703
        %4256 = vmatprep.subr.mxu0 0.0
        %4257 = vmatpush1.msra.mxu0 %v3702
        %4258 = vmatprep.subr.mxu0 0.0
        %4259 = vmatpush1.msra.mxu0 %v3701
        %4260 = vmatprep.subr.mxu0 0.0
        %4261 = vmatpush1.msra.mxu0 %v3700
        %4262 = vmatprep.subr.mxu0 0.0
        %4263 = vmatpush2.msra.mxu0 %v3731
        %4264 = vmatprep.subr.mxu0 0.0
        %4265 = vmatpush2.msra.mxu0 %v3730
        %4266 = vmatprep.subr.mxu0 0.0
        %4267 = vmatpush2.msra.mxu0 %v3729
        %4268 = vmatprep.subr.mxu0 0.0
        %4269 = vmatpush2.msra.mxu0 %v3728
        %4270 = vmatprep.subr.mxu0 0.0
        %4271 = vmatpush2.msra.mxu0 %v3727
        %4272 = vmatprep.subr.mxu0 0.0
        %4273 = vmatpush2.msra.mxu0 %v3726
        %4274 = vmatprep.subr.mxu0 0.0
        %4275 = vmatpush2.msra.mxu0 %v3725
        %4276 = vmatprep.subr.mxu0 0.0
        %4277 = vmatpush2.msra.mxu0 %v3724
        %4278 = vmatprep.subr.mxu0 0.0
        %4279 = vmatpush2.msra.mxu0 %v3723
        %4280 = vmatprep.subr.mxu0 0.0
        %4281 = vmatpush2.msra.mxu0 %v3722
        %4282 = vmatprep.subr.mxu0 0.0
        %4283 = vmatpush2.msra.mxu0 %v3721
        %4284 = vmatprep.subr.mxu0 0.0
        %4285 = vmatpush2.msra.mxu0 %v3720
        %4286 = vmatprep.subr.mxu0 0.0
        %4287 = vmatpush2.msra.mxu0 %v3719
        %4288 = vmatprep.subr.mxu0 0.0
        %4289 = vmatpush2.msra.mxu0 %v3718
        %4290 = vmatprep.subr.mxu0 0.0
        %4291 = vmatpush2.msra.mxu0 %v3717
        %4292 = vmatprep.subr.mxu0 0.0
        %4293 = vmatpush2.msra.mxu0 %v3716
        %4294 = vmatprep.mubr.f32.mxu0 %v3353
        %4295 = vmatmul.mubr.f32.gmra.mxu0 %v3352
        %v4296 = vpop.f32.mrf.mxu0
        %v4297 = vadd.f32 %v4072, %v4296
        %v4298 = vpop.f32.mrf.mxu0
        %4299 = vmatprep.mubr.f32.mxu0 %v3362
        %4300 = vmatmul.mubr.f32.gmra.mxu0 %v3361
        %v4301 = vpop.f32.mrf.mxu0
        %v4302 = vadd.f32 %v4077, %v4301
        %v4303 = vpop.f32.mrf.mxu0
        %4304 = vmatprep.mubr.f32.mxu0 %v3371
        %4305 = vmatmul.mubr.f32.gmra.mxu0 %v3370
        %v4306 = vpop.f32.mrf.mxu0
        %v4307 = vadd.f32 %v4082, %v4306
        %v4308 = vpop.f32.mrf.mxu0
        %4309 = vmatprep.mubr.f32.mxu0 %v3380
        %4310 = vmatmul.mubr.f32.gmra.mxu0 %v3379
        %v4311 = vpop.f32.mrf.mxu0
        %v4312 = vadd.f32 %v4087, %v4311
        %v4313 = vpop.f32.mrf.mxu0
        %4314 = vmatprep.mubr.f32.mxu0 %v3389
        %4315 = vmatmul.mubr.f32.gmra.mxu0 %v3388
        %v4316 = vpop.f32.mrf.mxu0
        %v4317 = vadd.f32 %v4092, %v4316
        %v4318 = vpop.f32.mrf.mxu0
        %4319 = vmatprep.mubr.f32.mxu0 %v3398
        %4320 = vmatmul.mubr.f32.gmra.mxu0 %v3397
        %v4321 = vpop.f32.mrf.mxu0
        %v4322 = vadd.f32 %v4097, %v4321
        %v4323 = vpop.f32.mrf.mxu0
        %4324 = vmatprep.mubr.f32.mxu0 %v3407
        %4325 = vmatmul.mubr.f32.gmra.mxu0 %v3406
        %v4326 = vpop.f32.mrf.mxu0
        %v4327 = vadd.f32 %v4102, %v4326
        %v4328 = vpop.f32.mrf.mxu0
        %4329 = vmatprep.mubr.f32.mxu0 %v3416
        %4330 = vmatmul.mubr.f32.gmra.mxu0 %v3415
        %v4331 = vpop.f32.mrf.mxu0
        %v4332 = vadd.f32 %v4107, %v4331
        %v4333 = vpop.f32.mrf.mxu0
        %4334 = vmatprep.mubr.f32.mxu0 %v3425
        %4335 = vmatmul.mubr.f32.gmra.mxu0 %v3424
        %v4336 = vpop.f32.mrf.mxu0
        %v4337 = vadd.f32 %v4112, %v4336
        %v4338 = vpop.f32.mrf.mxu0
        %4339 = vmatprep.mubr.f32.mxu0 %v3434
        %4340 = vmatmul.mubr.f32.gmra.mxu0 %v3433
        %v4341 = vpop.f32.mrf.mxu0
        %v4342 = vadd.f32 %v4117, %v4341
        %v4343 = vpop.f32.mrf.mxu0
        %4344 = vmatprep.mubr.f32.mxu0 %v3443
        %4345 = vmatmul.mubr.f32.gmra.mxu0 %v3442
        %v4346 = vpop.f32.mrf.mxu0
        %v4347 = vadd.f32 %v4122, %v4346
        %v4348 = vpop.f32.mrf.mxu0
        %4349 = vmatprep.mubr.f32.mxu0 %v3452
        %4350 = vmatmul.mubr.f32.gmra.mxu0 %v3451
        %v4351 = vpop.f32.mrf.mxu0
        %v4352 = vadd.f32 %v4127, %v4351
        %v4353 = vpop.f32.mrf.mxu0
        %4354 = vmatprep.mubr.f32.mxu0 %v3461
        %4355 = vmatmul.mubr.f32.gmra.mxu0 %v3460
        %v4356 = vpop.f32.mrf.mxu0
        %v4357 = vadd.f32 %v4132, %v4356
        %v4358 = vpop.f32.mrf.mxu0
        %4359 = vmatprep.mubr.f32.mxu0 %v3470
        %4360 = vmatmul.mubr.f32.gmra.mxu0 %v3469
        %v4361 = vpop.f32.mrf.mxu0
        %v4362 = vadd.f32 %v4137, %v4361
        %v4363 = vpop.f32.mrf.mxu0
        %4364 = vmatprep.mubr.f32.mxu0 %v3479
        %4365 = vmatmul.mubr.f32.gmra.mxu0 %v3478
        %v4366 = vpop.f32.mrf.mxu0
        %v4367 = vadd.f32 %v4142, %v4366
        %v4368 = vpop.f32.mrf.mxu0
        %4369 = vmatprep.mubr.f32.mxu0 %v3488
        %4370 = vmatmul.mubr.f32.gmra.mxu0 %v3487
        %v4371 = vpop.f32.mrf.mxu0
        %v4372 = vadd.f32 %v4147, %v4371
        %v4373 = vpop.f32.mrf.mxu0
        %4374 = vmatprep.mubr.f32.mxu0 %v3497
        %4375 = vmatmul.mubr.f32.gmra.mxu0 %v3496
        %v4376 = vpop.f32.mrf.mxu0
        %v4377 = vadd.f32 %v4152, %v4376
        %v4378 = vpop.f32.mrf.mxu0
        %4379 = vmatprep.mubr.f32.mxu0 %v3506
        %4380 = vmatmul.mubr.f32.gmra.mxu0 %v3505
        %v4381 = vpop.f32.mrf.mxu0
        %v4382 = vadd.f32 %v4157, %v4381
        %v4383 = vpop.f32.mrf.mxu0
        %4384 = vmatprep.mubr.f32.mxu0 %v3515
        %4385 = vmatmul.mubr.f32.gmra.mxu0 %v3514
        %v4386 = vpop.f32.mrf.mxu0
        %v4387 = vadd.f32 %v4162, %v4386
        %v4388 = vpop.f32.mrf.mxu0
        %4389 = vmatprep.mubr.f32.mxu0 %v3524
        %4390 = vmatmul.mubr.f32.gmra.mxu0 %v3523
        %v4391 = vpop.f32.mrf.mxu0
        %v4392 = vadd.f32 %v4167, %v4391
        %v4393 = vpop.f32.mrf.mxu0
        %4394 = vmatprep.mubr.f32.mxu0 %v3533
        %4395 = vmatmul.mubr.f32.gmra.mxu0 %v3532
        %v4396 = vpop.f32.mrf.mxu0
        %v4397 = vadd.f32 %v4172, %v4396
        %v4398 = vpop.f32.mrf.mxu0
        %4399 = vmatprep.mubr.f32.mxu0 %v3542
        %4400 = vmatmul.mubr.f32.gmra.mxu0 %v3541
        %v4401 = vpop.f32.mrf.mxu0
        %v4402 = vadd.f32 %v4177, %v4401
        %v4403 = vpop.f32.mrf.mxu0
        %4404 = vmatprep.mubr.f32.mxu0 %v3551
        %4405 = vmatmul.mubr.f32.gmra.mxu0 %v3550
        %v4406 = vpop.f32.mrf.mxu0
        %v4407 = vadd.f32 %v4182, %v4406
        %v4408 = vpop.f32.mrf.mxu0
        %4409 = vmatprep.mubr.f32.mxu0 %v3560
        %4410 = vmatmul.mubr.f32.gmra.mxu0 %v3559
        %v4411 = vpop.f32.mrf.mxu0
        %v4412 = vadd.f32 %v4187, %v4411
        %v4413 = vpop.f32.mrf.mxu0
        %4414 = vmatprep.mubr.f32.mxu0 %v3569
        %4415 = vmatmul.mubr.f32.gmra.mxu0 %v3568
        %v4416 = vpop.f32.mrf.mxu0
        %v4417 = vadd.f32 %v4192, %v4416
        %v4418 = vpop.f32.mrf.mxu0
        %4419 = vmatprep.mubr.f32.mxu0 %v3578
        %4420 = vmatmul.mubr.f32.gmra.mxu0 %v3577
        %v4421 = vpop.f32.mrf.mxu0
        %v4422 = vadd.f32 %v4197, %v4421
        %v4423 = vpop.f32.mrf.mxu0
        %4424 = vmatprep.mubr.f32.mxu0 %v3587
        %4425 = vmatmul.mubr.f32.gmra.mxu0 %v3586
        %v4426 = vpop.f32.mrf.mxu0
        %v4427 = vadd.f32 %v4202, %v4426
        %v4428 = vpop.f32.mrf.mxu0
        %4429 = vmatprep.mubr.f32.mxu0 %v3596
        %4430 = vmatmul.mubr.f32.gmra.mxu0 %v3595
        %v4431 = vpop.f32.mrf.mxu0
        %v4432 = vadd.f32 %v4207, %v4431
        %v4433 = vpop.f32.mrf.mxu0
        %4434 = vmatprep.mubr.f32.mxu0 %v3605
        %4435 = vmatmul.mubr.f32.gmra.mxu0 %v3604
        %v4436 = vpop.f32.mrf.mxu0
        %v4437 = vadd.f32 %v4212, %v4436
        %v4438 = vpop.f32.mrf.mxu0
        %4439 = vmatprep.mubr.f32.mxu0 %v3614
        %4440 = vmatmul.mubr.f32.gmra.mxu0 %v3613
        %v4441 = vpop.f32.mrf.mxu0
        %v4442 = vadd.f32 %v4217, %v4441
        %v4443 = vpop.f32.mrf.mxu0
        %4444 = vmatprep.mubr.f32.mxu0 %v3623
        %4445 = vmatmul.mubr.f32.gmra.mxu0 %v3622
        %v4446 = vpop.f32.mrf.mxu0
        %v4447 = vadd.f32 %v4222, %v4446
        %v4448 = vpop.f32.mrf.mxu0
        %4449 = vmatprep.mubr.f32.mxu0 %v3632
        %4450 = vmatmul.mubr.f32.gmra.mxu0 %v3631
        %v4451 = vpop.f32.mrf.mxu0
        %v4452 = vadd.f32 %v4227, %v4451
        %v4453 = vpop.f32.mrf.mxu0
        %4454 = vdwg.mxu0
        %4455 = vmatprep.subr.mxu0 0.0
        %4456 = vmatpush1.msra.mxu0 %v3747
        %4457 = vmatprep.subr.mxu0 0.0
        %4458 = vmatpush1.msra.mxu0 %v3746
        %4459 = vmatprep.subr.mxu0 0.0
        %4460 = vmatpush1.msra.mxu0 %v3745
        %4461 = vmatprep.subr.mxu0 0.0
        %4462 = vmatpush1.msra.mxu0 %v3744
        %4463 = vmatprep.subr.mxu0 0.0
        %4464 = vmatpush1.msra.mxu0 %v3743
        %4465 = vmatprep.subr.mxu0 0.0
        %4466 = vmatpush1.msra.mxu0 %v3742
        %4467 = vmatprep.subr.mxu0 0.0
        %4468 = vmatpush1.msra.mxu0 %v3741
        %4469 = vmatprep.subr.mxu0 0.0
        %4470 = vmatpush1.msra.mxu0 %v3740
        %4471 = vmatprep.subr.mxu0 0.0
        %4472 = vmatpush1.msra.mxu0 %v3739
        %4473 = vmatprep.subr.mxu0 0.0
        %4474 = vmatpush1.msra.mxu0 %v3738
        %4475 = vmatprep.subr.mxu0 0.0
        %4476 = vmatpush1.msra.mxu0 %v3737
        %4477 = vmatprep.subr.mxu0 0.0
        %4478 = vmatpush1.msra.mxu0 %v3736
        %4479 = vmatprep.subr.mxu0 0.0
        %4480 = vmatpush1.msra.mxu0 %v3735
        %4481 = vmatprep.subr.mxu0 0.0
        %4482 = vmatpush1.msra.mxu0 %v3734
        %4483 = vmatprep.subr.mxu0 0.0
        %4484 = vmatpush1.msra.mxu0 %v3733
        %4485 = vmatprep.subr.mxu0 0.0
        %4486 = vmatpush1.msra.mxu0 %v3732
        %4487 = vmatprep.subr.mxu0 0.0
        %4488 = vmatpush2.msra.mxu0 %v3763
        %4489 = vmatprep.subr.mxu0 0.0
        %4490 = vmatpush2.msra.mxu0 %v3762
        %4491 = vmatprep.subr.mxu0 0.0
        %4492 = vmatpush2.msra.mxu0 %v3761
        %4493 = vmatprep.subr.mxu0 0.0
        %4494 = vmatpush2.msra.mxu0 %v3760
        %4495 = vmatprep.subr.mxu0 0.0
        %4496 = vmatpush2.msra.mxu0 %v3759
        %4497 = vmatprep.subr.mxu0 0.0
        %4498 = vmatpush2.msra.mxu0 %v3758
        %4499 = vmatprep.subr.mxu0 0.0
        %4500 = vmatpush2.msra.mxu0 %v3757
        %4501 = vmatprep.subr.mxu0 0.0
        %4502 = vmatpush2.msra.mxu0 %v3756
        %4503 = vmatprep.subr.mxu0 0.0
        %4504 = vmatpush2.msra.mxu0 %v3755
        %4505 = vmatprep.subr.mxu0 0.0
        %4506 = vmatpush2.msra.mxu0 %v3754
        %4507 = vmatprep.subr.mxu0 0.0
        %4508 = vmatpush2.msra.mxu0 %v3753
        %4509 = vmatprep.subr.mxu0 0.0
        %4510 = vmatpush2.msra.mxu0 %v3752
        %4511 = vmatprep.subr.mxu0 0.0
        %4512 = vmatpush2.msra.mxu0 %v3751
        %4513 = vmatprep.subr.mxu0 0.0
        %4514 = vmatpush2.msra.mxu0 %v3750
        %4515 = vmatprep.subr.mxu0 0.0
        %4516 = vmatpush2.msra.mxu0 %v3749
        %4517 = vmatprep.subr.mxu0 0.0
        %4518 = vmatpush2.msra.mxu0 %v3748
        %4519 = vmatprep.mubr.f32.mxu0 %v3355
        %4520 = vmatmul.mubr.f32.gmra.mxu0 %v3354
        %v4521 = vpop.f32.mrf.mxu0
        %v4522 = vadd.f32 %v4297, %v4521
        %v4523 = vpop.f32.mrf.mxu0
        %4524 = vmatprep.mubr.f32.mxu0 %v3364
        %4525 = vmatmul.mubr.f32.gmra.mxu0 %v3363
        %v4526 = vpop.f32.mrf.mxu0
        %v4527 = vadd.f32 %v4302, %v4526
        %v4528 = vpop.f32.mrf.mxu0
        %4529 = vmatprep.mubr.f32.mxu0 %v3373
        %4530 = vmatmul.mubr.f32.gmra.mxu0 %v3372
        %v4531 = vpop.f32.mrf.mxu0
        %v4532 = vadd.f32 %v4307, %v4531
        %v4533 = vpop.f32.mrf.mxu0
        %4534 = vmatprep.mubr.f32.mxu0 %v3382
        %4535 = vmatmul.mubr.f32.gmra.mxu0 %v3381
        %v4536 = vpop.f32.mrf.mxu0
        %v4537 = vadd.f32 %v4312, %v4536
        %v4538 = vpop.f32.mrf.mxu0
        %4539 = vmatprep.mubr.f32.mxu0 %v3391
        %4540 = vmatmul.mubr.f32.gmra.mxu0 %v3390
        %v4541 = vpop.f32.mrf.mxu0
        %v4542 = vadd.f32 %v4317, %v4541
        %v4543 = vpop.f32.mrf.mxu0
        %4544 = vmatprep.mubr.f32.mxu0 %v3400
        %4545 = vmatmul.mubr.f32.gmra.mxu0 %v3399
        %v4546 = vpop.f32.mrf.mxu0
        %v4547 = vadd.f32 %v4322, %v4546
        %v4548 = vpop.f32.mrf.mxu0
        %4549 = vmatprep.mubr.f32.mxu0 %v3409
        %4550 = vmatmul.mubr.f32.gmra.mxu0 %v3408
        %v4551 = vpop.f32.mrf.mxu0
        %v4552 = vadd.f32 %v4327, %v4551
        %v4553 = vpop.f32.mrf.mxu0
        %4554 = vmatprep.mubr.f32.mxu0 %v3418
        %4555 = vmatmul.mubr.f32.gmra.mxu0 %v3417
        %v4556 = vpop.f32.mrf.mxu0
        %v4557 = vadd.f32 %v4332, %v4556
        %v4558 = vpop.f32.mrf.mxu0
        %4559 = vmatprep.mubr.f32.mxu0 %v3427
        %4560 = vmatmul.mubr.f32.gmra.mxu0 %v3426
        %v4561 = vpop.f32.mrf.mxu0
        %v4562 = vadd.f32 %v4337, %v4561
        %v4563 = vpop.f32.mrf.mxu0
        %4564 = vmatprep.mubr.f32.mxu0 %v3436
        %4565 = vmatmul.mubr.f32.gmra.mxu0 %v3435
        %v4566 = vpop.f32.mrf.mxu0
        %v4567 = vadd.f32 %v4342, %v4566
        %v4568 = vpop.f32.mrf.mxu0
        %4569 = vmatprep.mubr.f32.mxu0 %v3445
        %4570 = vmatmul.mubr.f32.gmra.mxu0 %v3444
        %v4571 = vpop.f32.mrf.mxu0
        %v4572 = vadd.f32 %v4347, %v4571
        %v4573 = vpop.f32.mrf.mxu0
        %4574 = vmatprep.mubr.f32.mxu0 %v3454
        %4575 = vmatmul.mubr.f32.gmra.mxu0 %v3453
        %v4576 = vpop.f32.mrf.mxu0
        %v4577 = vadd.f32 %v4352, %v4576
        %v4578 = vpop.f32.mrf.mxu0
        %4579 = vmatprep.mubr.f32.mxu0 %v3463
        %4580 = vmatmul.mubr.f32.gmra.mxu0 %v3462
        %v4581 = vpop.f32.mrf.mxu0
        %v4582 = vadd.f32 %v4357, %v4581
        %v4583 = vpop.f32.mrf.mxu0
        %4584 = vmatprep.mubr.f32.mxu0 %v3472
        %4585 = vmatmul.mubr.f32.gmra.mxu0 %v3471
        %v4586 = vpop.f32.mrf.mxu0
        %v4587 = vadd.f32 %v4362, %v4586
        %v4588 = vpop.f32.mrf.mxu0
        %4589 = vmatprep.mubr.f32.mxu0 %v3481
        %4590 = vmatmul.mubr.f32.gmra.mxu0 %v3480
        %v4591 = vpop.f32.mrf.mxu0
        %v4592 = vadd.f32 %v4367, %v4591
        %v4593 = vpop.f32.mrf.mxu0
        %4594 = vmatprep.mubr.f32.mxu0 %v3490
        %4595 = vmatmul.mubr.f32.gmra.mxu0 %v3489
        %v4596 = vpop.f32.mrf.mxu0
        %v4597 = vadd.f32 %v4372, %v4596
        %v4598 = vpop.f32.mrf.mxu0
        %4599 = vmatprep.mubr.f32.mxu0 %v3499
        %4600 = vmatmul.mubr.f32.gmra.mxu0 %v3498
        %v4601 = vpop.f32.mrf.mxu0
        %v4602 = vadd.f32 %v4377, %v4601
        %v4603 = vpop.f32.mrf.mxu0
        %4604 = vmatprep.mubr.f32.mxu0 %v3508
        %4605 = vmatmul.mubr.f32.gmra.mxu0 %v3507
        %v4606 = vpop.f32.mrf.mxu0
        %v4607 = vadd.f32 %v4382, %v4606
        %v4608 = vpop.f32.mrf.mxu0
        %4609 = vmatprep.mubr.f32.mxu0 %v3517
        %4610 = vmatmul.mubr.f32.gmra.mxu0 %v3516
        %v4611 = vpop.f32.mrf.mxu0
        %v4612 = vadd.f32 %v4387, %v4611
        %v4613 = vpop.f32.mrf.mxu0
        %4614 = vmatprep.mubr.f32.mxu0 %v3526
        %4615 = vmatmul.mubr.f32.gmra.mxu0 %v3525
        %v4616 = vpop.f32.mrf.mxu0
        %v4617 = vadd.f32 %v4392, %v4616
        %v4618 = vpop.f32.mrf.mxu0
        %4619 = vmatprep.mubr.f32.mxu0 %v3535
        %4620 = vmatmul.mubr.f32.gmra.mxu0 %v3534
        %v4621 = vpop.f32.mrf.mxu0
        %v4622 = vadd.f32 %v4397, %v4621
        %v4623 = vpop.f32.mrf.mxu0
        %4624 = vmatprep.mubr.f32.mxu0 %v3544
        %4625 = vmatmul.mubr.f32.gmra.mxu0 %v3543
        %v4626 = vpop.f32.mrf.mxu0
        %v4627 = vadd.f32 %v4402, %v4626
        %v4628 = vpop.f32.mrf.mxu0
        %4629 = vmatprep.mubr.f32.mxu0 %v3553
        %4630 = vmatmul.mubr.f32.gmra.mxu0 %v3552
        %v4631 = vpop.f32.mrf.mxu0
        %v4632 = vadd.f32 %v4407, %v4631
        %v4633 = vpop.f32.mrf.mxu0
        %4634 = vmatprep.mubr.f32.mxu0 %v3562
        %4635 = vmatmul.mubr.f32.gmra.mxu0 %v3561
        %v4636 = vpop.f32.mrf.mxu0
        %v4637 = vadd.f32 %v4412, %v4636
        %v4638 = vpop.f32.mrf.mxu0
        %4639 = vmatprep.mubr.f32.mxu0 %v3571
        %4640 = vmatmul.mubr.f32.gmra.mxu0 %v3570
        %v4641 = vpop.f32.mrf.mxu0
        %v4642 = vadd.f32 %v4417, %v4641
        %v4643 = vpop.f32.mrf.mxu0
        %4644 = vmatprep.mubr.f32.mxu0 %v3580
        %4645 = vmatmul.mubr.f32.gmra.mxu0 %v3579
        %v4646 = vpop.f32.mrf.mxu0
        %v4647 = vadd.f32 %v4422, %v4646
        %v4648 = vpop.f32.mrf.mxu0
        %4649 = vmatprep.mubr.f32.mxu0 %v3589
        %4650 = vmatmul.mubr.f32.gmra.mxu0 %v3588
        %v4651 = vpop.f32.mrf.mxu0
        %v4652 = vadd.f32 %v4427, %v4651
        %v4653 = vpop.f32.mrf.mxu0
        %4654 = vmatprep.mubr.f32.mxu0 %v3598
        %4655 = vmatmul.mubr.f32.gmra.mxu0 %v3597
        %v4656 = vpop.f32.mrf.mxu0
        %v4657 = vadd.f32 %v4432, %v4656
        %v4658 = vpop.f32.mrf.mxu0
        %4659 = vmatprep.mubr.f32.mxu0 %v3607
        %4660 = vmatmul.mubr.f32.gmra.mxu0 %v3606
        %v4661 = vpop.f32.mrf.mxu0
        %v4662 = vadd.f32 %v4437, %v4661
        %v4663 = vpop.f32.mrf.mxu0
        %4664 = vmatprep.mubr.f32.mxu0 %v3616
        %4665 = vmatmul.mubr.f32.gmra.mxu0 %v3615
        %v4666 = vpop.f32.mrf.mxu0
        %v4667 = vadd.f32 %v4442, %v4666
        %v4668 = vpop.f32.mrf.mxu0
        %4669 = vmatprep.mubr.f32.mxu0 %v3625
        %4670 = vmatmul.mubr.f32.gmra.mxu0 %v3624
        %v4671 = vpop.f32.mrf.mxu0
        %v4672 = vadd.f32 %v4447, %v4671
        %v4673 = vpop.f32.mrf.mxu0
        %4674 = vmatprep.mubr.f32.mxu0 %v3634
        %4675 = vmatmul.mubr.f32.gmra.mxu0 %v3633
        %v4676 = vpop.f32.mrf.mxu0
        %v4677 = vadd.f32 %v4452, %v4676
        %v4678 = vpop.f32.mrf.mxu0
        %4679 = vdwg.mxu0
        %4680 = vmatprep.subr.mxu0 0.0
        %4681 = vmatpush1.msra.mxu0 %v3779
        %4682 = vmatprep.subr.mxu0 0.0
        %4683 = vmatpush1.msra.mxu0 %v3778
        %4684 = vmatprep.subr.mxu0 0.0
        %4685 = vmatpush1.msra.mxu0 %v3777
        %4686 = vmatprep.subr.mxu0 0.0
        %4687 = vmatpush1.msra.mxu0 %v3776
        %4688 = vmatprep.subr.mxu0 0.0
        %4689 = vmatpush1.msra.mxu0 %v3775
        %4690 = vmatprep.subr.mxu0 0.0
        %4691 = vmatpush1.msra.mxu0 %v3774
        %4692 = vmatprep.subr.mxu0 0.0
        %4693 = vmatpush1.msra.mxu0 %v3773
        %4694 = vmatprep.subr.mxu0 0.0
        %4695 = vmatpush1.msra.mxu0 %v3772
        %4696 = vmatprep.subr.mxu0 0.0
        %4697 = vmatpush1.msra.mxu0 %v3771
        %4698 = vmatprep.subr.mxu0 0.0
        %4699 = vmatpush1.msra.mxu0 %v3770
        %4700 = vmatprep.subr.mxu0 0.0
        %4701 = vmatpush1.msra.mxu0 %v3769
        %4702 = vmatprep.subr.mxu0 0.0
        %4703 = vmatpush1.msra.mxu0 %v3768
        %4704 = vmatprep.subr.mxu0 0.0
        %4705 = vmatpush1.msra.mxu0 %v3767
        %4706 = vmatprep.subr.mxu0 0.0
        %4707 = vmatpush1.msra.mxu0 %v3766
        %4708 = vmatprep.subr.mxu0 0.0
        %4709 = vmatpush1.msra.mxu0 %v3765
        %4710 = vmatprep.subr.mxu0 0.0
        %4711 = vmatpush1.msra.mxu0 %v3764
        %4712 = vmatprep.subr.mxu0 0.0
        %4713 = vmatpush2.msra.mxu0 0.0
        %4714 = vmatprep.subr.mxu0 0.0
        %4715 = vmatpush2.msra.mxu0 0.0
        %4716 = vmatprep.subr.mxu0 0.0
        %4717 = vmatpush2.msra.mxu0 0.0
        %4718 = vmatprep.subr.mxu0 0.0
        %4719 = vmatpush2.msra.mxu0 0.0
        %4720 = vmatprep.subr.mxu0 0.0
        %4721 = vmatpush2.msra.mxu0 0.0
        %4722 = vmatprep.subr.mxu0 0.0
        %4723 = vmatpush2.msra.mxu0 0.0
        %4724 = vmatprep.subr.mxu0 0.0
        %4725 = vmatpush2.msra.mxu0 0.0
        %4726 = vmatprep.subr.mxu0 0.0
        %4727 = vmatpush2.msra.mxu0 0.0
        %4728 = vmatprep.subr.mxu0 0.0
        %4729 = vmatpush2.msra.mxu0 0.0
        %4730 = vmatprep.subr.mxu0 0.0
        %4731 = vmatpush2.msra.mxu0 0.0
        %4732 = vmatprep.subr.mxu0 0.0
        %4733 = vmatpush2.msra.mxu0 0.0
        %4734 = vmatprep.subr.mxu0 0.0
        %4735 = vmatpush2.msra.mxu0 0.0
        %4736 = vmatprep.subr.mxu0 0.0
        %4737 = vmatpush2.msra.mxu0 0.0
        %4738 = vmatprep.subr.mxu0 0.0
        %4739 = vmatpush2.msra.mxu0 0.0
        %4740 = vmatprep.subr.mxu0 0.0
        %4741 = vmatpush2.msra.mxu0 0.0
        %4742 = vmatprep.subr.mxu0 0.0
        %4743 = vmatpush2.msra.mxu0 0.0
        %4744 = vmatprep.mubr.f32.mxu0 0.0
        %4745 = vmatmul.mubr.f32.gmra.mxu0 %v3356
        %v4746 = vpop.f32.mrf.mxu0
        %v4747 = vadd.f32 %v4522, %v4746
        %v4748 = vpop.f32.mrf.mxu0
        %4749 = vmatprep.mubr.f32.mxu0 0.0
        %4750 = vmatmul.mubr.f32.gmra.mxu0 %v3365
        %v4751 = vpop.f32.mrf.mxu0
        %v4752 = vadd.f32 %v4527, %v4751
        %v4753 = vpop.f32.mrf.mxu0
        %4754 = vmatprep.mubr.f32.mxu0 0.0
        %4755 = vmatmul.mubr.f32.gmra.mxu0 %v3374
        %v4756 = vpop.f32.mrf.mxu0
        %v4757 = vadd.f32 %v4532, %v4756
        %v4758 = vpop.f32.mrf.mxu0
        %4759 = vmatprep.mubr.f32.mxu0 0.0
        %4760 = vmatmul.mubr.f32.gmra.mxu0 %v3383
        %v4761 = vpop.f32.mrf.mxu0
        %v4762 = vadd.f32 %v4537, %v4761
        %v4763 = vpop.f32.mrf.mxu0
        %4764 = vmatprep.mubr.f32.mxu0 0.0
        %4765 = vmatmul.mubr.f32.gmra.mxu0 %v3392
        %v4766 = vpop.f32.mrf.mxu0
        %v4767 = vadd.f32 %v4542, %v4766
        %v4768 = vpop.f32.mrf.mxu0
        %4769 = vmatprep.mubr.f32.mxu0 0.0
        %4770 = vmatmul.mubr.f32.gmra.mxu0 %v3401
        %v4771 = vpop.f32.mrf.mxu0
        %v4772 = vadd.f32 %v4547, %v4771
        %v4773 = vpop.f32.mrf.mxu0
        %4774 = vmatprep.mubr.f32.mxu0 0.0
        %4775 = vmatmul.mubr.f32.gmra.mxu0 %v3410
        %v4776 = vpop.f32.mrf.mxu0
        %v4777 = vadd.f32 %v4552, %v4776
        %v4778 = vpop.f32.mrf.mxu0
        %4779 = vmatprep.mubr.f32.mxu0 0.0
        %4780 = vmatmul.mubr.f32.gmra.mxu0 %v3419
        %v4781 = vpop.f32.mrf.mxu0
        %v4782 = vadd.f32 %v4557, %v4781
        %v4783 = vpop.f32.mrf.mxu0
        %4784 = vmatprep.mubr.f32.mxu0 0.0
        %4785 = vmatmul.mubr.f32.gmra.mxu0 %v3428
        %v4786 = vpop.f32.mrf.mxu0
        %v4787 = vadd.f32 %v4562, %v4786
        %v4788 = vpop.f32.mrf.mxu0
        %4789 = vmatprep.mubr.f32.mxu0 0.0
        %4790 = vmatmul.mubr.f32.gmra.mxu0 %v3437
        %v4791 = vpop.f32.mrf.mxu0
        %v4792 = vadd.f32 %v4567, %v4791
        %v4793 = vpop.f32.mrf.mxu0
        %4794 = vmatprep.mubr.f32.mxu0 0.0
        %4795 = vmatmul.mubr.f32.gmra.mxu0 %v3446
        %v4796 = vpop.f32.mrf.mxu0
        %v4797 = vadd.f32 %v4572, %v4796
        %v4798 = vpop.f32.mrf.mxu0
        %4799 = vmatprep.mubr.f32.mxu0 0.0
        %4800 = vmatmul.mubr.f32.gmra.mxu0 %v3455
        %v4801 = vpop.f32.mrf.mxu0
        %v4802 = vadd.f32 %v4577, %v4801
        %v4803 = vpop.f32.mrf.mxu0
        %4804 = vmatprep.mubr.f32.mxu0 0.0
        %4805 = vmatmul.mubr.f32.gmra.mxu0 %v3464
        %v4806 = vpop.f32.mrf.mxu0
        %v4807 = vadd.f32 %v4582, %v4806
        %v4808 = vpop.f32.mrf.mxu0
        %4809 = vmatprep.mubr.f32.mxu0 0.0
        %4810 = vmatmul.mubr.f32.gmra.mxu0 %v3473
        %v4811 = vpop.f32.mrf.mxu0
        %v4812 = vadd.f32 %v4587, %v4811
        %v4813 = vpop.f32.mrf.mxu0
        %4814 = vmatprep.mubr.f32.mxu0 0.0
        %4815 = vmatmul.mubr.f32.gmra.mxu0 %v3482
        %v4816 = vpop.f32.mrf.mxu0
        %v4817 = vadd.f32 %v4592, %v4816
        %v4818 = vpop.f32.mrf.mxu0
        %4819 = vmatprep.mubr.f32.mxu0 0.0
        %4820 = vmatmul.mubr.f32.gmra.mxu0 %v3491
        %v4821 = vpop.f32.mrf.mxu0
        %v4822 = vadd.f32 %v4597, %v4821
        %v4823 = vpop.f32.mrf.mxu0
        %4824 = vmatprep.mubr.f32.mxu0 0.0
        %4825 = vmatmul.mubr.f32.gmra.mxu0 %v3500
        %v4826 = vpop.f32.mrf.mxu0
        %v4827 = vadd.f32 %v4602, %v4826
        %v4828 = vpop.f32.mrf.mxu0
        %4829 = vmatprep.mubr.f32.mxu0 0.0
        %4830 = vmatmul.mubr.f32.gmra.mxu0 %v3509
        %v4831 = vpop.f32.mrf.mxu0
        %v4832 = vadd.f32 %v4607, %v4831
        %v4833 = vpop.f32.mrf.mxu0
        %4834 = vmatprep.mubr.f32.mxu0 0.0
        %4835 = vmatmul.mubr.f32.gmra.mxu0 %v3518
        %v4836 = vpop.f32.mrf.mxu0
        %v4837 = vadd.f32 %v4612, %v4836
        %v4838 = vpop.f32.mrf.mxu0
        %4839 = vmatprep.mubr.f32.mxu0 0.0
        %4840 = vmatmul.mubr.f32.gmra.mxu0 %v3527
        %v4841 = vpop.f32.mrf.mxu0
        %v4842 = vadd.f32 %v4617, %v4841
        %v4843 = vpop.f32.mrf.mxu0
        %4844 = vmatprep.mubr.f32.mxu0 0.0
        %4845 = vmatmul.mubr.f32.gmra.mxu0 %v3536
        %v4846 = vpop.f32.mrf.mxu0
        %v4847 = vadd.f32 %v4622, %v4846
        %v4848 = vpop.f32.mrf.mxu0
        %4849 = vmatprep.mubr.f32.mxu0 0.0
        %4850 = vmatmul.mubr.f32.gmra.mxu0 %v3545
        %v4851 = vpop.f32.mrf.mxu0
        %v4852 = vadd.f32 %v4627, %v4851
        %v4853 = vpop.f32.mrf.mxu0
        %4854 = vmatprep.mubr.f32.mxu0 0.0
        %4855 = vmatmul.mubr.f32.gmra.mxu0 %v3554
        %v4856 = vpop.f32.mrf.mxu0
        %v4857 = vadd.f32 %v4632, %v4856
        %v4858 = vpop.f32.mrf.mxu0
        %4859 = vmatprep.mubr.f32.mxu0 0.0
        %4860 = vmatmul.mubr.f32.gmra.mxu0 %v3563
        %v4861 = vpop.f32.mrf.mxu0
        %v4862 = vadd.f32 %v4637, %v4861
        %v4863 = vpop.f32.mrf.mxu0
        %4864 = vmatprep.mubr.f32.mxu0 0.0
        %4865 = vmatmul.mubr.f32.gmra.mxu0 %v3572
        %v4866 = vpop.f32.mrf.mxu0
        %v4867 = vadd.f32 %v4642, %v4866
        %v4868 = vpop.f32.mrf.mxu0
        %4869 = vmatprep.mubr.f32.mxu0 0.0
        %4870 = vmatmul.mubr.f32.gmra.mxu0 %v3581
        %v4871 = vpop.f32.mrf.mxu0
        %v4872 = vadd.f32 %v4647, %v4871
        %v4873 = vpop.f32.mrf.mxu0
        %4874 = vmatprep.mubr.f32.mxu0 0.0
        %4875 = vmatmul.mubr.f32.gmra.mxu0 %v3590
        %v4876 = vpop.f32.mrf.mxu0
        %v4877 = vadd.f32 %v4652, %v4876
        %v4878 = vpop.f32.mrf.mxu0
        %4879 = vmatprep.mubr.f32.mxu0 0.0
        %4880 = vmatmul.mubr.f32.gmra.mxu0 %v3599
        %v4881 = vpop.f32.mrf.mxu0
        %v4882 = vadd.f32 %v4657, %v4881
        %v4883 = vpop.f32.mrf.mxu0
        %4884 = vmatprep.mubr.f32.mxu0 0.0
        %4885 = vmatmul.mubr.f32.gmra.mxu0 %v3608
        %v4886 = vpop.f32.mrf.mxu0
        %v4887 = vadd.f32 %v4662, %v4886
        %v4888 = vpop.f32.mrf.mxu0
        %4889 = vmatprep.mubr.f32.mxu0 0.0
        %4890 = vmatmul.mubr.f32.gmra.mxu0 %v3617
        %v4891 = vpop.f32.mrf.mxu0
        %v4892 = vadd.f32 %v4667, %v4891
        %v4893 = vpop.f32.mrf.mxu0
        %4894 = vmatprep.mubr.f32.mxu0 0.0
        %4895 = vmatmul.mubr.f32.gmra.mxu0 %v3626
        %v4896 = vpop.f32.mrf.mxu0
        %v4897 = vadd.f32 %v4672, %v4896
        %v4898 = vpop.f32.mrf.mxu0
        %4899 = vmatprep.mubr.f32.mxu0 0.0
        %4900 = vmatmul.mubr.f32.gmra.mxu0 %v3635
        %v4901 = vpop.f32.mrf.mxu0
        %v4902 = vadd.f32 %v4677, %v4901
        %v4903 = vpop.f32.mrf.mxu0
        %4904 = vdwg.mxu0
        %v4905 = vld [vmem:[%s5] sm:$0x1]
        %v4907 = vlaneseq
        %v4908 = vshrl.u32 %v4907, 7
        %v4909 = vsub.s32 0, %v4908
        %v4910 = vrot.slane %v4905, %v4909
        %v4912 = vmul.f32 %v4747, %v4910
        %v4913 = vmul.f32 %v4752, %v4910
        %v4914 = vmul.f32 %v4757, %v4910
        %v4915 = vmul.f32 %v4762, %v4910
        %v4916 = vmul.f32 %v4767, %v4910
        %v4917 = vmul.f32 %v4772, %v4910
        %v4918 = vmul.f32 %v4777, %v4910
        %v4919 = vmul.f32 %v4782, %v4910
        %v4920 = vmul.f32 %v4787, %v4910
        %v4921 = vmul.f32 %v4792, %v4910
        %v4922 = vmul.f32 %v4797, %v4910
        %v4923 = vmul.f32 %v4802, %v4910
        %v4924 = vmul.f32 %v4807, %v4910
        %v4925 = vmul.f32 %v4812, %v4910
        %v4926 = vmul.f32 %v4817, %v4910
        %v4927 = vmul.f32 %v4822, %v4910
        %v4928 = vmul.f32 %v4827, %v4910
        %v4929 = vmul.f32 %v4832, %v4910
        %v4930 = vmul.f32 %v4837, %v4910
        %v4931 = vmul.f32 %v4842, %v4910
        %v4932 = vmul.f32 %v4847, %v4910
        %v4933 = vmul.f32 %v4852, %v4910
        %v4934 = vmul.f32 %v4857, %v4910
        %v4935 = vmul.f32 %v4862, %v4910
        %v4936 = vmul.f32 %v4867, %v4910
        %v4937 = vmul.f32 %v4872, %v4910
        %v4938 = vmul.f32 %v4877, %v4910
        %v4939 = vmul.f32 %v4882, %v4910
        %v4940 = vmul.f32 %v4887, %v4910
        %v4941 = vmul.f32 %v4892, %v4910
        %v4942 = vmul.f32 %v4897, %v4910
        %v4943 = vmul.f32 %v4902, %v4910
        %v4944 = vld [vmem:[%s6] sm:$0x1]
        %v4946 = vlaneseq
        %v4947 = vshrl.u32 %v4946, 7
        %v4948 = vsub.s32 0, %v4947
        %v4949 = vrot.slane %v4944, %v4948
        %v4951 = vadd.f32 %v4912, %v4949
        %v4952 = vadd.f32 %v4913, %v4949
        %v4953 = vadd.f32 %v4914, %v4949
        %v4954 = vadd.f32 %v4915, %v4949
        %v4955 = vadd.f32 %v4916, %v4949
        %v4956 = vadd.f32 %v4917, %v4949
        %v4957 = vadd.f32 %v4918, %v4949
        %v4958 = vadd.f32 %v4919, %v4949
        %v4959 = vadd.f32 %v4920, %v4949
        %v4960 = vadd.f32 %v4921, %v4949
        %v4961 = vadd.f32 %v4922, %v4949
        %v4962 = vadd.f32 %v4923, %v4949
        %v4963 = vadd.f32 %v4924, %v4949
        %v4964 = vadd.f32 %v4925, %v4949
        %v4965 = vadd.f32 %v4926, %v4949
        %v4966 = vadd.f32 %v4927, %v4949
        %v4967 = vadd.f32 %v4928, %v4949
        %v4968 = vadd.f32 %v4929, %v4949
        %v4969 = vadd.f32 %v4930, %v4949
        %v4970 = vadd.f32 %v4931, %v4949
        %v4971 = vadd.f32 %v4932, %v4949
        %v4972 = vadd.f32 %v4933, %v4949
        %v4973 = vadd.f32 %v4934, %v4949
        %v4974 = vadd.f32 %v4935, %v4949
        %v4975 = vadd.f32 %v4936, %v4949
        %v4976 = vadd.f32 %v4937, %v4949
        %v4977 = vadd.f32 %v4938, %v4949
        %v4978 = vadd.f32 %v4939, %v4949
        %v4979 = vadd.f32 %v4940, %v4949
        %v4980 = vadd.f32 %v4941, %v4949
        %v4981 = vadd.f32 %v4942, %v4949
        %v4982 = vadd.f32 %v4943, %v4949
        %v4983 = vmax.f32 %v4951, 0.0
        %v4984 = vmax.f32 %v4952, 0.0
        %v4985 = vmax.f32 %v4953, 0.0
        %v4986 = vmax.f32 %v4954, 0.0
        %v4987 = vmax.f32 %v4955, 0.0
        %v4988 = vmax.f32 %v4956, 0.0
        %v4989 = vmax.f32 %v4957, 0.0
        %v4990 = vmax.f32 %v4958, 0.0
        %v4991 = vmax.f32 %v4959, 0.0
        %v4992 = vmax.f32 %v4960, 0.0
        %v4993 = vmax.f32 %v4961, 0.0
        %v4994 = vmax.f32 %v4962, 0.0
        %v4995 = vmax.f32 %v4963, 0.0
        %v4996 = vmax.f32 %v4964, 0.0
        %v4997 = vmax.f32 %v4965, 0.0
        %v4998 = vmax.f32 %v4966, 0.0
        %v4999 = vmax.f32 %v4967, 0.0
        %v5000 = vmax.f32 %v4968, 0.0
        %v5001 = vmax.f32 %v4969, 0.0
        %v5002 = vmax.f32 %v4970, 0.0
        %v5003 = vmax.f32 %v4971, 0.0
        %v5004 = vmax.f32 %v4972, 0.0
        %v5005 = vmax.f32 %v4973, 0.0
        %v5006 = vmax.f32 %v4974, 0.0
        %v5007 = vmax.f32 %v4975, 0.0
        %v5008 = vmax.f32 %v4976, 0.0
        %v5009 = vmax.f32 %v4977, 0.0
        %v5010 = vmax.f32 %v4978, 0.0
        %v5011 = vmax.f32 %v4979, 0.0
        %v5012 = vmax.f32 %v4980, 0.0
        %v5013 = vmax.f32 %v4981, 0.0
        %v5014 = vmax.f32 %v4982, 0.0
        %vm5015 = vcmask 64512
        %5016 = vst.msk [vmem:[%s308] sm:$0xff] %vm5015, %v4983
        %5017 = vst.msk [vmem:[%s308 + $0x8] sm:$0xff] %vm5015, %v4984
        %5018 = vst.msk [vmem:[%s308 + $0x10] sm:$0xff] %vm5015, %v4985
        %5019 = vst.msk [vmem:[%s308 + $0x18] sm:$0xff] %vm5015, %v4986
        %5020 = vst.msk [vmem:[%s308 + $0x20] sm:$0xff] %vm5015, %v4987
        %5021 = vst.msk [vmem:[%s308 + $0x28] sm:$0xff] %vm5015, %v4988
        %5022 = vst.msk [vmem:[%s308 + $0x30] sm:$0xff] %vm5015, %v4989
        %5023 = vst.msk [vmem:[%s308 + $0x38] sm:$0xff] %vm5015, %v4990
        %5024 = vst.msk [vmem:[%s308 + $0x40] sm:$0xff] %vm5015, %v4991
        %5025 = vst.msk [vmem:[%s308 + $0x48] sm:$0xff] %vm5015, %v4992
        %5026 = vst.msk [vmem:[%s308 + $0x50] sm:$0xff] %vm5015, %v4993
        %5027 = vst.msk [vmem:[%s308 + $0x58] sm:$0xff] %vm5015, %v4994
        %5028 = vst.msk [vmem:[%s308 + $0x60] sm:$0xff] %vm5015, %v4995
        %5029 = vst.msk [vmem:[%s308 + $0x68] sm:$0xff] %vm5015, %v4996
        %5030 = vst.msk [vmem:[%s308 + $0x70] sm:$0xff] %vm5015, %v4997
        %5031 = vst.msk [vmem:[%s308 + $0x78] sm:$0xff] %vm5015, %v4998
        %5032 = vst.msk [vmem:[%s308 + $0x80] sm:$0xff] %vm5015, %v4999
        %5033 = vst.msk [vmem:[%s308 + $0x88] sm:$0xff] %vm5015, %v5000
        %5034 = vst.msk [vmem:[%s308 + $0x90] sm:$0xff] %vm5015, %v5001
        %5035 = vst.msk [vmem:[%s308 + $0x98] sm:$0xff] %vm5015, %v5002
        %5036 = vst.msk [vmem:[%s308 + $0xa0] sm:$0xff] %vm5015, %v5003
        %5037 = vst.msk [vmem:[%s308 + $0xa8] sm:$0xff] %vm5015, %v5004
        %5038 = vst.msk [vmem:[%s308 + $0xb0] sm:$0xff] %vm5015, %v5005
        %5039 = vst.msk [vmem:[%s308 + $0xb8] sm:$0xff] %vm5015, %v5006
        %5040 = vst.msk [vmem:[%s308 + $0xc0] sm:$0xff] %vm5015, %v5007
        %5041 = vst.msk [vmem:[%s308 + $0xc8] sm:$0xff] %vm5015, %v5008
        %5042 = vst.msk [vmem:[%s308 + $0xd0] sm:$0xff] %vm5015, %v5009
        %5043 = vst.msk [vmem:[%s308 + $0xd8] sm:$0xff] %vm5015, %v5010
        %5044 = vst.msk [vmem:[%s308 + $0xe0] sm:$0xff] %vm5015, %v5011
        %5045 = vst.msk [vmem:[%s308 + $0xe8] sm:$0xff] %vm5015, %v5012
        %5046 = vst.msk [vmem:[%s308 + $0xf0] sm:$0xff] %vm5015, %v5013
        %5047 = vst.msk [vmem:[%s308 + $0xf8] sm:$0xff] %vm5015, %v5014
        %p5048 = scmp.lt.s32.totalorder %s20, 1
        %s5049 = scalar_select %p5048, %s20, 1
        %s5050 = smul.addr %s5049, 32
        %s5051 = smul.addr %s5050, 8
        %s5052 = scalar_lea.vmem %s7, %s5051
        // Predicated region
        $region57: #{tpu_custom_call.1} parent=47 // pred_check
          %p5053 = pneg %p190
        $region58: #{tpu_custom_call.1} parent=47 // pred_check_branch
          %5055 = sbr.rel (%p5053) target = $region60
        $region59: #{tpu_custom_call.1} parent=47 // pred_region
          _
        $region60: #{tpu_custom_call.1} parent=47 // pred_fallthru
          _
      $region48: #{tpu_custom_call.1} parent=5 // pred_fallthru
        _
      %p5056 = scmp.le.s32.totalorder 2, %s15
      // Predicated region
      $region61: #{tpu_custom_call.1} parent=5 // pred_check
        %p5057 = pneg %p5056
      $region62: #{tpu_custom_call.1} parent=5 // pred_check_branch
        %5059 = sbr.rel (%p5057) target = $region64
      $region63: #{tpu_custom_call.1} parent=5 // pred_region
        %s5060 = ssub.s32 %s15, 2
        // Predicated region
        $region65: #{tpu_custom_call.1} parent=63 // pred_check
          %p5061 = pneg %p196
        $region66: #{tpu_custom_call.1} parent=63 // pred_check_branch
          %5063 = sbr.rel (%p5061) target = $region68
        $region67: #{tpu_custom_call.1} parent=63 // pred_region
          %p5064 = scmp.lt.s32.totalorder %s21, 1
          %s5065 = scalar_select %p5064, %s21, 1
          %s5066 = smul.addr %s5065, 32
          %s5067 = smul.addr %s5066, 8
          %s5068 = scalar_lea.vmem %s7, %s5067
        $region68: #{tpu_custom_call.1} parent=63 // pred_fallthru
          _
      $region64: #{tpu_custom_call.1} parent=5 // pred_fallthru
        _
    $region6: #{tpu_custom_call.1} parent=1 // loop_footer
      %s19 = sadd.s32 1, %s15
    $region7: #{tpu_custom_call.1} parent=1 // loop_footer_branch
      %14 = sbr.rel target = $region3
    $region8: #{tpu_custom_call.1} parent=1 // loop_exit
      _
    %5069 = vsyncpa [#allocation7], 1
    %s5070 = scalar_lea.sflag [#allocation7], 1
    %5071 = vsyncpa %s5070, 1
    %5072 = vsyncpa [#allocation9], 1

</llo_original>
